<compile_context>
chip_gen: v5e
topology: v5e:2x2
jax: 0.10.0
libtpu: 0.0.40
codegen_flags: <defaults>
</compile_context>

<pallas_src>
import functools

import numpy as np
import jax
import jax.numpy as jnp
from jax.experimental import pallas as pl
from jax.experimental.pallas import tpu as pltpu


def _qt_attn_kernel(q_ref, kv_ref, rp_ref, o_ref, *, nhead, dim):
    # q_ref : [TL, 4, c]        bf16  queries (2x2 fine offsets), channel order (h, d)
    # kv_ref: [TL, K, 2*c]      bf16  gathered keys (first c lanes) / values (last c)
    # rp_ref: [TL, 4, nhead*K]  bf16  relative-position bias, (h, k) lane order
    # o_ref : [TL, 4*c]               lane-dense output block, (t, h, d) order
    TL = q_ref.shape[0]
    K = kv_ref.shape[1]
    c = nhead * dim
    scale = 1.0 / float(dim) ** 0.5

    q = q_ref[...]
    kv = kv_ref[...]
    rp = rp_ref[...].astype(jnp.float32)

    # TODO(synk): for large nhead a block-diagonal q (M=4*nhead, contract=c)
    # would fuse the per-head MXU pushes into one per cell; with small nhead the
    # static head loop is simpler and the kernel stays HBM-bound anyway.
    msgs = []
    for h in range(nhead):
        q_h = q[:, :, h * dim:(h + 1) * dim]               # [TL, 4, D]
        k_h = kv[:, :, h * dim:(h + 1) * dim]               # [TL, K, D]
        v_h = kv[:, :, c + h * dim:c + (h + 1) * dim]       # [TL, K, D]
        rp_h = rp[:, :, h * K:(h + 1) * K]                  # [TL, 4, K]

        # Scores: batched over the L tile, contraction over D (MXU, f32 acc).
        s = jnp.einsum('ltd,lkd->ltk', q_h, k_h,
                       preferred_element_type=jnp.float32)
        s = s * scale + rp_h

        # Softmax over the K gathered keys (f32).
        m = jnp.max(s, axis=-1, keepdims=True)
        p = jnp.exp(s - m)
        denom = jnp.sum(p, axis=-1, keepdims=True)           # [TL, 4, 1]

        # Unnormalized aggregation on the MXU, one normalization multiply after.
        msg = jnp.einsum('ltk,lkd->ltd', p.astype(kv.dtype), v_h,
                         preferred_element_type=jnp.float32)  # [TL, 4, D] f32
        msgs.append(msg * (1.0 / denom))

    out = jnp.concatenate(msgs, axis=-1)                      # [TL, 4, c], (h d)
    o_ref[...] = out.reshape(TL, 4 * c).astype(o_ref.dtype)


def _round_up(x, m):
    return -(-x // m) * m


def _vmem_limit_bytes():
    """Scoped-VMEM limit parametrized per TPU generation (64 MiB physical on
    v7x, 128 MiB on v5e/v6e), with a conservative fallback when the hardware
    query is unavailable (e.g. interpret mode)."""
    cap = 64 * 1024 * 1024
    try:
        cap = int(getattr(pltpu.get_tpu_info(), "vmem_capacity_bytes", cap))
    except Exception:
        pass
    return max(32 * 1024 * 1024, min((cap * 5) // 8, 96 * 1024 * 1024))


def _per_row_vmem_bytes(c, K, nhead, out_itemsize):
    """Conservative per-L-row VMEM footprint: double-buffered I/O blocks padded
    to the (sublane, 128-lane) tiling, plus f32 in-kernel intermediates."""
    lane = 128
    q_row = 16 * _round_up(c, lane) * 2                       # (4, c) bf16 padded
    kv_row = _round_up(K, 16) * _round_up(2 * c, lane) * 2    # (K, 2c) bf16
    rp_row = 16 * _round_up(nhead * K, lane) * 2              # (4, nhead*K) bf16
    out_row = _round_up(4 * c, lane) * out_itemsize           # lane-dense out
    interm_row = (nhead + 3) * 8 * lane * 4                   # f32 scratch
    return 2 * (q_row + kv_row + rp_row + out_row) + interm_row


def _choose_tile_l(L, per_row_bytes, max_tile_l, budget_bytes):
    """Largest tile that fits the VMEM budget; prefer a divisor of L so the
    jnp.pad fallback (an extra HBM pass over every operand) is avoided."""
    cap = max(8, min(int(max_tile_l), budget_bytes // max(per_row_bytes, 1)))
    if L <= cap:
        return L, L                      # single full-L tile, no padding
    t = cap - cap % 8
    for cand in range(t, 7, -8):         # largest multiple-of-8 divisor of L
        if L % cand == 0:
            return cand, L
    t = max(t, 8)
    return t, _round_up(L, t)            # ragged fallback: pad L to a multiple


def cascade_qt_att_b(query, key, value, topk_pos, rel_pos, *, nhead, dilated=1,
                     max_tile_l=512):
    """Forward of CascadeQTAttB. Returns (message [bs, h0*w0, c], upsampled_idx)."""
    bs, c, h0, w0 = query.shape
    _, _, h1, w1 = key.shape
    k = topk_pos.shape[2]
    D = c // nhead
    H, W = h0 // 2, w0 // 2
    L, M, K = H * W, h1 * w1, k * 4

    # ---- gather indices (identical to the PyTorch module, incl. clamping) ----
    tp = topk_pos.astype(jnp.int32) * 2
    row, col = tp[..., 0], tp[..., 1]
    offs = []
    for x in (0, dilated):
        for y in (0, dilated):
            offs.append((row + x) * w1 + (col + y))
    idx = jnp.stack(offs, axis=3)                                   # [bs, L, k, 4]
    idx = jnp.clip(idx, 0, M - 1).reshape(bs, L, K)                 # [bs, L, K]

    # ---- single bf16 row gather of packed K|V rows -> [bs, L, K, 2c] ----
    # (replaces the old gather + split + per-head transposes: no extra HBM
    #  passes over the dominant K/V tensor before the kernel reads it)
    # TODO(synk): for production sizes an in-kernel gather (idx scalar-prefetched
    # to SMEM + per-strip make_async_copy from an [M, 2c] HBM array) would avoid
    # this XLA round-trip; at small strip sizes DMA-descriptor overhead wins, so
    # the gather stays in XLA here.
    k_fl = jnp.transpose(key.reshape(bs, c, M), (0, 2, 1))          # [bs, M, c]
    v_fl = jnp.transpose(value.reshape(bs, c, M), (0, 2, 1))
    kv = jnp.concatenate([k_fl, v_fl], axis=-1).astype(jnp.bfloat16)  # [bs, M, 2c]
    kvg = jax.vmap(lambda a, i: jnp.take(a, i, axis=0))(kv, idx.reshape(bs, L * K))
    kvg = kvg.reshape(bs, L, K, 2 * c)

    # query NCHW -> [bs, L, 4, c] (2x2 fine offsets), channel order stays (h, d)
    q_r = query.reshape(bs, c, H, 2, W, 2)
    q_r = jnp.transpose(q_r, (0, 2, 4, 3, 5, 1)).reshape(bs, L, 4, c)
    q_r = q_r.astype(jnp.bfloat16)

    # rel_pos [bs, nhead, h0, w0, K] -> [bs, L, 4, nhead*K], bf16 (upcast in-kernel)
    rp_r = rel_pos.reshape(bs, nhead, H, 2, W, 2, K)
    rp_r = jnp.transpose(rp_r, (0, 2, 4, 3, 5, 1, 6)).reshape(bs, L, 4, nhead * K)
    rp_r = rp_r.astype(jnp.bfloat16)

    # ---- L tiling (bounded, generation-aware VMEM; prefer no padding) ----
    out_dtype = query.dtype
    vmem_limit = _vmem_limit_bytes()
    per_row = _per_row_vmem_bytes(c, K, nhead, jnp.dtype(out_dtype).itemsize)
    tile_l, Lp = _choose_tile_l(L, per_row, max_tile_l, (vmem_limit * 3) // 4)
    n_tiles = Lp // tile_l
    if Lp != L:
        pad = [(0, 0), (0, Lp - L), (0, 0), (0, 0)]
        q_r, kvg, rp_r = (jnp.pad(a, pad) for a in (q_r, kvg, rp_r))

    out = pl.pallas_call(
        functools.partial(_qt_attn_kernel, nhead=nhead, dim=D),
        out_shape=jax.ShapeDtypeStruct((bs, Lp, 4 * c), out_dtype),
        grid_spec=pltpu.PrefetchScalarGridSpec(
            num_scalar_prefetch=0,
            grid=(bs, n_tiles),
            in_specs=[
                pl.BlockSpec((None, tile_l, 4, c), lambda b, l: (b, l, 0, 0)),
                pl.BlockSpec((None, tile_l, K, 2 * c), lambda b, l: (b, l, 0, 0)),
                pl.BlockSpec((None, tile_l, 4, nhead * K), lambda b, l: (b, l, 0, 0)),
            ],
            out_specs=pl.BlockSpec((None, tile_l, 4 * c), lambda b, l: (b, l, 0)),
        ),
        compiler_params=pltpu.CompilerParams(
            dimension_semantics=("parallel", "parallel"),
            vmem_limit_bytes=vmem_limit,
        ),
        # NOTE: if profiling shows the kv DMA exposed at large tile_l, add
        # pipeline_mode=pl.Buffered(3) on the kv in_spec only.
    )(q_r, kvg, rp_r)

    # ---- repack to the module's output layout ----
    # message: 'b (H W) (t1 t2) (h d) -> b (H t1 W t2) (h d)'
    msg = out[:, :L].reshape(bs, H, W, 2, 2, c)
    msg = jnp.transpose(msg, (0, 1, 3, 2, 4, 5)).reshape(bs, h0 * w0, c)
    # upsampled_idx: 'b (H W) (t1 t2) k -> b (H t1 W t2) k'
    ui = jnp.broadcast_to(idx[:, :, None, :], (bs, L, 4, K))
    ui = ui.reshape(bs, H, W, 2, 2, K)
    ui = jnp.transpose(ui, (0, 1, 3, 2, 4, 5)).reshape(bs, h0 * w0, K)
    return msg, ui


def ref_forward(query, key, value, topk_pos, rel_pos, nhead, dilated):
    """Pure numpy reference mirroring the PyTorch module semantics."""
    query, key, value = map(np.asarray, (query, key, value))
    topk_pos, rel_pos = np.asarray(topk_pos), np.asarray(rel_pos)
    bs, c, h0, w0 = query.shape
    _, _, h1, w1 = key.shape
    k = topk_pos.shape[2]
    d = c // nhead
    H, W = h0 // 2, w0 // 2
    L, M, K = H * W, h1 * w1, k * 4

    kr = key.reshape(bs, c, M).transpose(0, 2, 1).reshape(bs, M, nhead, d)
    vr = value.reshape(bs, c, M).transpose(0, 2, 1).reshape(bs, M, nhead, d)
    qr = query.reshape(bs, nhead, d, H, 2, W, 2)
    qr = qr.transpose(0, 3, 5, 4, 6, 1, 2).reshape(bs, L, 4, nhead, d)

    tp = topk_pos.astype(np.int64) * 2
    row, col = tp[..., 0], tp[..., 1]
    offs = []
    for x in (0, dilated):
        for y in (0, dilated):
            offs.append((row + x) * w1 + col + y)
    idx = np.stack(offs, axis=3)
    idx = np.clip(idx, 0, M - 1).reshape(bs, L, K)

    b_idx = np.arange(bs)[:, None, None]
    kg = kr[b_idx, idx]                         # [bs, L, K, nhead, d]
    vg = vr[b_idx, idx]
    qk = np.einsum('blthd,bljhd->bltjh', qr, kg) / np.sqrt(d)
    rp = rel_pos.reshape(bs, nhead, H, 2, W, 2, K)
    rp = rp.transpose(0, 2, 4, 3, 5, 6, 1).reshape(bs, L, 4, K, nhead)
    qk = qk + rp
    qk = qk - qk.max(axis=3, keepdims=True)
    e = np.exp(qk)
    A = e / e.sum(axis=3, keepdims=True)
    msg = np.einsum('bltjh,bljhd->blthd', A, vg)      # [bs, L, 4, nhead, d]
    msg = msg.reshape(bs, H, W, 2, 2, c)
    msg = msg.transpose(0, 1, 3, 2, 4, 5).reshape(bs, h0 * w0, c)
    ui = np.broadcast_to(idx[:, :, None, :], (bs, L, 4, K))
    ui = ui.reshape(bs, H, W, 2, 2, K).transpose(0, 1, 3, 2, 4, 5).reshape(bs, h0 * w0, K)
    return msg.astype(np.float32), ui.astype(np.int32)


if __name__ == "__main__":
    def _bf16_round(x):
        return x.astype(jnp.bfloat16).astype(jnp.float32)

    def run_case(bs, nhead, D, h0, w0, h1, w1, k, dilated, max_tile_l):
        c = nhead * D
        H, W = h0 // 2, w0 // 2
        L, K = H * W, k * 4

        key0 = jax.random.PRNGKey(0)
        k1, k2, k3, k4, k5 = jax.random.split(key0, 5)
        # Inputs are pre-rounded to bf16 so the f32 numpy reference sees exactly
        # the operand values the bf16 MXU path uses.
        query = _bf16_round(jax.random.normal(k1, (bs, c, h0, w0), jnp.float32))
        key_t = _bf16_round(jax.random.normal(k2, (bs, c, h1, w1), jnp.float32))
        value = _bf16_round(jax.random.normal(k3, (bs, c, h1, w1), jnp.float32))
        topk_pos = jax.random.randint(k4, (bs, L, k, 2), 0,
                                      min(h1, w1) // 2, jnp.int32)
        rel_pos = _bf16_round(0.1 * jax.random.normal(
            k5, (bs, nhead, h0, w0, K), jnp.float32))

        fn = jax.jit(functools.partial(cascade_qt_att_b, nhead=nhead,
                                       dilated=dilated, max_tile_l=max_tile_l))
        msg, ui = fn(query, key_t, value, topk_pos, rel_pos)
        msg = np.asarray(jax.block_until_ready(msg), np.float32)
        ui = np.asarray(jax.block_until_ready(ui), np.int32)

        msg_ref, ui_ref = ref_forward(query, key_t, value, topk_pos, rel_pos,
                                      nhead, dilated)
        assert msg.shape == (bs, h0 * w0, c) and ui.shape == (bs, h0 * w0, K)
        err = float(np.max(np.abs(msg - msg_ref)))
        assert np.allclose(msg, msg_ref, rtol=3e-2, atol=3e-2), f"max_abs_err={err}"
        assert np.array_equal(ui, ui_ref)

    # Multi-tile path: L=256 split into 4 tiles of 64 (no padding), dilated=1.
    run_case(bs=2, nhead=2, D=32, h0=32, w0=32, h1=32, w1=32, k=4,
             dilated=1, max_tile_l=64)
    # Single full-L tile: L=100 (not a multiple of 8, no padding), dilated=2.
    run_case(bs=1, nhead=2, D=16, h0=20, w0=20, h1=20, w1=20, k=3,
             dilated=2, max_tile_l=512)
    # Ragged-tail fallback: L=100 padded to 2 tiles of 64, dilated=2.
    run_case(bs=1, nhead=2, D=16, h0=20, w0=20, h1=20, w1=20, k=3,
             dilated=2, max_tile_l=64)

    print("KERNEL_OK")
</pallas_src>

<mosaic_0001>
module attributes {stable_mosaic.version = 11 : i64} {
  func.func @_qt_attn_kernel(%arg0: i32, %arg1: i32, %arg2: memref<1x64x4x64xbf16, #tpu.memory_space<vmem>>, %arg3: memref<1x64x16x128xbf16, #tpu.memory_space<vmem>>, %arg4: memref<1x64x4x32xbf16, #tpu.memory_space<vmem>>, %arg5: memref<1x64x256xf32, #tpu.memory_space<vmem>>) attributes {dimension_semantics = [#tpu.dimension_semantics<parallel>, #tpu.dimension_semantics<parallel>], iteration_bounds = array<i64: 2, 4>, scalar_prefetch = 0 : i64, scratch_operands = 0 : i64, tpu.core_type = #tpu.core_type<tc>, window_params = [{transform_indices = @transform_0, window_bounds = array<i64: 1, 64, 4, 64>}, {transform_indices = @transform_1, window_bounds = array<i64: 1, 64, 16, 128>}, {transform_indices = @transform_2, window_bounds = array<i64: 1, 64, 4, 32>}, {transform_indices = @transform_3, window_bounds = array<i64: 1, 64, 256>}]} {
    %c0 = arith.constant 0 : index
    %c0_0 = arith.constant 0 : index
    %c0_1 = arith.constant 0 : index
    %c0_2 = arith.constant 0 : index
    %0 = vector.load %arg2[%c0, %c0_0, %c0_1, %c0_2] : memref<1x64x4x64xbf16, #tpu.memory_space<vmem>>, vector<1x64x4x64xbf16>
    %1 = vector.shape_cast %0 : vector<1x64x4x64xbf16> to vector<64x4x64xbf16>
    %c0_3 = arith.constant 0 : index
    %c0_4 = arith.constant 0 : index
    %c0_5 = arith.constant 0 : index
    %c0_6 = arith.constant 0 : index
    %2 = vector.load %arg3[%c0_3, %c0_4, %c0_5, %c0_6] : memref<1x64x16x128xbf16, #tpu.memory_space<vmem>>, vector<1x64x16x128xbf16>
    %3 = vector.shape_cast %2 : vector<1x64x16x128xbf16> to vector<64x16x128xbf16>
    %c0_7 = arith.constant 0 : index
    %c0_8 = arith.constant 0 : index
    %c0_9 = arith.constant 0 : index
    %c0_10 = arith.constant 0 : index
    %4 = vector.load %arg4[%c0_7, %c0_8, %c0_9, %c0_10] : memref<1x64x4x32xbf16, #tpu.memory_space<vmem>>, vector<1x64x4x32xbf16>
    %5 = vector.shape_cast %4 : vector<1x64x4x32xbf16> to vector<64x4x32xbf16>
    %6 = arith.extf %5 : vector<64x4x32xbf16> to vector<64x4x32xf32>
    %7 = vector.extract_strided_slice %1 {offsets = [0, 0, 0], sizes = [64, 4, 32], strides = [1, 1, 1]} : vector<64x4x64xbf16> to vector<64x4x32xbf16>
    %8 = vector.extract_strided_slice %3 {offsets = [0, 0, 0], sizes = [64, 16, 32], strides = [1, 1, 1]} : vector<64x16x128xbf16> to vector<64x16x32xbf16>
    %9 = vector.extract_strided_slice %3 {offsets = [0, 0, 64], sizes = [64, 16, 32], strides = [1, 1, 1]} : vector<64x16x128xbf16> to vector<64x16x32xbf16>
    %10 = vector.extract_strided_slice %6 {offsets = [0, 0, 0], sizes = [64, 4, 16], strides = [1, 1, 1]} : vector<64x4x32xf32> to vector<64x4x16xf32>
    "tpu.trace_start"() <{level = 10 : i32, message = "ltd,lkd->ltk"}> : () -> ()
    %cst = arith.constant dense<0.000000e+00> : vector<64x4x16xf32>
    %11 = tpu.matmul %7, %8, %cst {dimension_numbers = #tpu.dot_dimension_numbers<[2], [2], [1], [1], [0, 0, 0, 1, 1, 1], [0], [0]>} : vector<64x4x32xbf16>, vector<64x16x32xbf16>, vector<64x4x16xf32> -> vector<64x4x16xf32>
    "tpu.trace_stop"() : () -> ()
    %cst_11 = arith.constant 0.176776692 : f32
    %12 = vector.broadcast %cst_11 : f32 to vector<64x4x16xf32>
    %13 = arith.mulf %11, %12 : vector<64x4x16xf32>
    %14 = arith.addf %13, %10 : vector<64x4x16xf32>
    %cst_12 = arith.constant dense<0xFF800000> : vector<64x4xf32>
    %15 = vector.multi_reduction <maximumf>, %14, %cst_12 [2] : vector<64x4x16xf32> to vector<64x4xf32>
    %16 = vector.shape_cast %15 : vector<64x4xf32> to vector<64x4x1xf32>
    %17 = vector.broadcast %16 : vector<64x4x1xf32> to vector<64x4x16xf32>
    %18 = arith.subf %14, %17 : vector<64x4x16xf32>
    %19 = math.exp %18 : vector<64x4x16xf32>
    %cst_13 = arith.constant dense<0.000000e+00> : vector<64x4xf32>
    %20 = vector.multi_reduction <add>, %19, %cst_13 [2] : vector<64x4x16xf32> to vector<64x4xf32>
    %21 = vector.shape_cast %20 : vector<64x4xf32> to vector<64x4x1xf32>
    %22 = arith.truncf %19 : vector<64x4x16xf32> to vector<64x4x16xbf16>
    "tpu.trace_start"() <{level = 10 : i32, message = "ltk,lkd->ltd"}> : () -> ()
    %cst_14 = arith.constant dense<0.000000e+00> : vector<64x4x32xf32>
    %23 = tpu.matmul %22, %9, %cst_14 {dimension_numbers = #tpu.dot_dimension_numbers<[2], [1], [1], [2], [0, 0, 0, 1, 1, 2], [0], [0]>} : vector<64x4x16xbf16>, vector<64x16x32xbf16>, vector<64x4x32xf32> -> vector<64x4x32xf32>
    "tpu.trace_stop"() : () -> ()
    %cst_15 = arith.constant 1.000000e+00 : f32
    %24 = vector.broadcast %cst_15 : f32 to vector<64x4x1xf32>
    %25 = arith.divf %24, %21 : vector<64x4x1xf32>
    %26 = vector.broadcast %25 : vector<64x4x1xf32> to vector<64x4x32xf32>
    %27 = arith.mulf %23, %26 : vector<64x4x32xf32>
    %28 = vector.extract_strided_slice %1 {offsets = [0, 0, 32], sizes = [64, 4, 32], strides = [1, 1, 1]} : vector<64x4x64xbf16> to vector<64x4x32xbf16>
    %29 = vector.extract_strided_slice %3 {offsets = [0, 0, 32], sizes = [64, 16, 32], strides = [1, 1, 1]} : vector<64x16x128xbf16> to vector<64x16x32xbf16>
    %30 = vector.extract_strided_slice %3 {offsets = [0, 0, 96], sizes = [64, 16, 32], strides = [1, 1, 1]} : vector<64x16x128xbf16> to vector<64x16x32xbf16>
    %31 = vector.extract_strided_slice %6 {offsets = [0, 0, 16], sizes = [64, 4, 16], strides = [1, 1, 1]} : vector<64x4x32xf32> to vector<64x4x16xf32>
    "tpu.trace_start"() <{level = 10 : i32, message = "ltd,lkd->ltk"}> : () -> ()
    %cst_16 = arith.constant dense<0.000000e+00> : vector<64x4x16xf32>
    %32 = tpu.matmul %28, %29, %cst_16 {dimension_numbers = #tpu.dot_dimension_numbers<[2], [2], [1], [1], [0, 0, 0, 1, 1, 1], [0], [0]>} : vector<64x4x32xbf16>, vector<64x16x32xbf16>, vector<64x4x16xf32> -> vector<64x4x16xf32>
    "tpu.trace_stop"() : () -> ()
    %cst_17 = arith.constant 0.176776692 : f32
    %33 = vector.broadcast %cst_17 : f32 to vector<64x4x16xf32>
    %34 = arith.mulf %32, %33 : vector<64x4x16xf32>
    %35 = arith.addf %34, %31 : vector<64x4x16xf32>
    %cst_18 = arith.constant dense<0xFF800000> : vector<64x4xf32>
    %36 = vector.multi_reduction <maximumf>, %35, %cst_18 [2] : vector<64x4x16xf32> to vector<64x4xf32>
    %37 = vector.shape_cast %36 : vector<64x4xf32> to vector<64x4x1xf32>
    %38 = vector.broadcast %37 : vector<64x4x1xf32> to vector<64x4x16xf32>
    %39 = arith.subf %35, %38 : vector<64x4x16xf32>
    %40 = math.exp %39 : vector<64x4x16xf32>
    %cst_19 = arith.constant dense<0.000000e+00> : vector<64x4xf32>
    %41 = vector.multi_reduction <add>, %40, %cst_19 [2] : vector<64x4x16xf32> to vector<64x4xf32>
    %42 = vector.shape_cast %41 : vector<64x4xf32> to vector<64x4x1xf32>
    %43 = arith.truncf %40 : vector<64x4x16xf32> to vector<64x4x16xbf16>
    "tpu.trace_start"() <{level = 10 : i32, message = "ltk,lkd->ltd"}> : () -> ()
    %cst_20 = arith.constant dense<0.000000e+00> : vector<64x4x32xf32>
    %44 = tpu.matmul %43, %30, %cst_20 {dimension_numbers = #tpu.dot_dimension_numbers<[2], [1], [1], [2], [0, 0, 0, 1, 1, 2], [0], [0]>} : vector<64x4x16xbf16>, vector<64x16x32xbf16>, vector<64x4x32xf32> -> vector<64x4x32xf32>
    "tpu.trace_stop"() : () -> ()
    %cst_21 = arith.constant 1.000000e+00 : f32
    %45 = vector.broadcast %cst_21 : f32 to vector<64x4x1xf32>
    %46 = arith.divf %45, %42 : vector<64x4x1xf32>
    %47 = vector.broadcast %46 : vector<64x4x1xf32> to vector<64x4x32xf32>
    %48 = arith.mulf %44, %47 : vector<64x4x32xf32>
    %49 = tpu.concatenate %27, %48 in 2 : vector<64x4x32xf32>, vector<64x4x32xf32> -> vector<64x4x64xf32>
    %50 = vector.shape_cast %49 : vector<64x4x64xf32> to vector<64x256xf32>
    %c0_22 = arith.constant 0 : index
    %c0_23 = arith.constant 0 : index
    %c0_24 = arith.constant 0 : index
    %51 = vector.load %arg5[%c0_22, %c0_23, %c0_24] : memref<1x64x256xf32, #tpu.memory_space<vmem>>, vector<1x64x256xf32>
    %52 = vector.shape_cast %51 : vector<1x64x256xf32> to vector<64x256xf32>
    %53 = vector.shape_cast %50 : vector<64x256xf32> to vector<1x64x256xf32>
    tpu.vector_store %arg5[%c0_22, %c0_23, %c0_24], %53 {strides = array<i32>} : memref<1x64x256xf32, #tpu.memory_space<vmem>>, vector<1x64x256xf32>,
    return
  }
  func.func @transform_0(%arg0: i32, %arg1: i32) -> (i32, i32, i32, i32) {
    %c0_i32 = arith.constant 0 : i32
    %c0_i32_0 = arith.constant 0 : i32
    %c0_i32_1 = arith.constant 0 : i32
    return %arg0, %arg1, %c0_i32, %c0_i32_0 : i32, i32, i32, i32
  }
  func.func @transform_1(%arg0: i32, %arg1: i32) -> (i32, i32, i32, i32) {
    %c0_i32 = arith.constant 0 : i32
    %c0_i32_0 = arith.constant 0 : i32
    %c0_i32_1 = arith.constant 0 : i32
    return %arg0, %arg1, %c0_i32, %c0_i32_0 : i32, i32, i32, i32
  }
  func.func @transform_2(%arg0: i32, %arg1: i32) -> (i32, i32, i32, i32) {
    %c0_i32 = arith.constant 0 : i32
    %c0_i32_0 = arith.constant 0 : i32
    %c0_i32_1 = arith.constant 0 : i32
    return %arg0, %arg1, %c0_i32, %c0_i32_0 : i32, i32, i32, i32
  }
  func.func @transform_3(%arg0: i32, %arg1: i32) -> (i32, i32, i32) {
    %c0_i32 = arith.constant 0 : i32
    %c0_i32_0 = arith.constant 0 : i32
    return %arg0, %arg1, %c0_i32 : i32, i32, i32
  }
}

</mosaic_0001>

<llo_original>
// kernel: cascade_qt_att_b.1
$region0: #{cascade_qt_att_b.1}
  #allocation0 [shape = 'u32[]', space=smem, size = 0x4, offset = 0x4, fixed_abs, tag = 'smem constant byte address 0x4 - core index']
  #allocation1 [shape = 'u32[72,128]{1,0:T(1,128)}', space=vmem, size = 0x9000, scoped, tag = 'internal scratch']
  %s0 = inlined_call_operand.vmem [shape: bf16[2,256,4,64], index: 0, kind: input, shape index: {}]
  %s1 = inlined_call_operand.vmem [shape: bf16[2,256,16,128], index: 1, kind: input, shape index: {}]
  %s2 = inlined_call_operand.vmem [shape: bf16[2,256,4,32], index: 2, kind: input, shape index: {}]
  %s3 = inlined_call_operand.vmem [shape: f32[2,256,256], index: 3, kind: output, shape index: {}]
  %s4 = sld [smem:[#allocation0]]
  $region45: #{cascade_qt_att_b.1} parent=0
    _
  %s6 = ssub.s32 1, %s4
  %s7 = scalar_select 0, %s6, %s4
  loop: start=0, step=1, limit=10
  $region2: #{cascade_qt_att_b.1} parent=0 // loop_pre_header
    _
  $region3: #{cascade_qt_att_b.1} parent=0 // loop_header
    %s9 = sphi 0, %s13
    %p10 = scmp.ge.s32.totalorder %s9, 10
    %s16 = sphi 0, %s28
    %s17 = sphi 0, %s24
    %s18 = sphi 0, %s16
    %s19 = sphi 0, %s17
    %s20 = sphi 0, %s18
    %s21 = sphi 0, %s19
    %s33 = sphi 0, %s35
    %s36 = sphi 0, %s33
    %s37 = sphi 0, %s36
    %s53 = sphi 0, %s37
    %s61 = sphi 0, %s63
    %s64 = sphi 0, %s61
    %s65 = sphi 0, %s64
    %s81 = sphi 0, %s65
    %s89 = sphi 0, %s91
    %s92 = sphi 0, %s89
    %s93 = sphi 0, %s92
    %s109 = sphi 0, %s93
    %s117 = sphi 0, %s119
    %s120 = sphi 0, %s117
    %s121 = sphi 0, %s120
    %s137 = sphi 0, %s121
  $region4: #{cascade_qt_att_b.1} parent=0 // loop_header_branch
    %12 = sbr.rel (%p10) target = $region8
  $region5: #{cascade_qt_att_b.1} parent=0 // loop_body
    %s14 = ssub.s32 %s9, 1
    %s15 = ssub.s32 %s9, 2
    %s22 = sadd.s32 1, %s17
    %p23 = scmp.ge.s32.totalorder %s22, 4
    %s24 = scalar_select %p23, 0, %s22
    %s25 = sadd.s32 1, %s16
    %s26 = scalar_select %p23, %s25, %s16
    %p27 = scmp.ge.s32.totalorder %s26, 2
    %s28 = scalar_select %p27, 0, %s26
    %s29 = ssub.s32 %s16, %s28
    %s30 = ssub.s32 %s17, %s24
    %s31 = sor.u32 %s29, %s30
    %p32 = scmp.eq.s32.totalorder %s31, 0
    %s34 = sadd.s32 %s33, 1
    %s35 = scalar_select %p32, %s33, %s34
    %p38 = pneg %p32
    %p39 = scmp.eq.s32.totalorder %s9, 7
    %p40 = por %p38, %p39
    %p41 = scmp.ne.s32.totalorder %s33, %s36
    %p42 = scmp.eq.s32.totalorder %s9, 0
    %p43 = por %p41, %p42
    %p44 = scmp.ne.s32.totalorder %s33, %s36
    %p45 = scmp.eq.s32.totalorder %s14, 7
    %p46 = por %p44, %p45
    %p47 = scmp.ne.s32.totalorder %s36, %s37
    %p48 = scmp.eq.s32.totalorder %s14, 0
    %p49 = por %p47, %p48
    %p50 = scmp.ne.s32.totalorder %s36, %s37
    %p51 = scmp.eq.s32.totalorder %s15, 7
    %p52 = por %p50, %p51
    %p54 = scmp.ne.s32.totalorder %s37, %s53
    %p55 = scmp.eq.s32.totalorder %s15, 0
    %p56 = por %p54, %p55
    %s57 = ssub.s32 %s16, %s28
    %s58 = ssub.s32 %s17, %s24
    %s59 = sor.u32 %s57, %s58
    %p60 = scmp.eq.s32.totalorder %s59, 0
    %s62 = sadd.s32 %s61, 1
    %s63 = scalar_select %p60, %s61, %s62
    %p66 = pneg %p60
    %p67 = scmp.eq.s32.totalorder %s9, 7
    %p68 = por %p66, %p67
    %p69 = scmp.ne.s32.totalorder %s61, %s64
    %p70 = scmp.eq.s32.totalorder %s9, 0
    %p71 = por %p69, %p70
    %p72 = scmp.ne.s32.totalorder %s61, %s64
    %p73 = scmp.eq.s32.totalorder %s14, 7
    %p74 = por %p72, %p73
    %p75 = scmp.ne.s32.totalorder %s64, %s65
    %p76 = scmp.eq.s32.totalorder %s14, 0
    %p77 = por %p75, %p76
    %p78 = scmp.ne.s32.totalorder %s64, %s65
    %p79 = scmp.eq.s32.totalorder %s15, 7
    %p80 = por %p78, %p79
    %p82 = scmp.ne.s32.totalorder %s65, %s81
    %p83 = scmp.eq.s32.totalorder %s15, 0
    %p84 = por %p82, %p83
    %s85 = ssub.s32 %s16, %s28
    %s86 = ssub.s32 %s17, %s24
    %s87 = sor.u32 %s85, %s86
    %p88 = scmp.eq.s32.totalorder %s87, 0
    %s90 = sadd.s32 %s89, 1
    %s91 = scalar_select %p88, %s89, %s90
    %p94 = pneg %p88
    %p95 = scmp.eq.s32.totalorder %s9, 7
    %p96 = por %p94, %p95
    %p97 = scmp.ne.s32.totalorder %s89, %s92
    %p98 = scmp.eq.s32.totalorder %s9, 0
    %p99 = por %p97, %p98
    %p100 = scmp.ne.s32.totalorder %s89, %s92
    %p101 = scmp.eq.s32.totalorder %s14, 7
    %p102 = por %p100, %p101
    %p103 = scmp.ne.s32.totalorder %s92, %s93
    %p104 = scmp.eq.s32.totalorder %s14, 0
    %p105 = por %p103, %p104
    %p106 = scmp.ne.s32.totalorder %s92, %s93
    %p107 = scmp.eq.s32.totalorder %s15, 7
    %p108 = por %p106, %p107
    %p110 = scmp.ne.s32.totalorder %s93, %s109
    %p111 = scmp.eq.s32.totalorder %s15, 0
    %p112 = por %p110, %p111
    %s113 = ssub.s32 %s16, %s28
    %s114 = ssub.s32 %s17, %s24
    %s115 = sor.u32 %s113, %s114
    %p116 = scmp.eq.s32.totalorder %s115, 0
    %s118 = sadd.s32 %s117, 1
    %s119 = scalar_select %p116, %s117, %s118
    %p122 = pneg %p116
    %p123 = scmp.eq.s32.totalorder %s9, 7
    %p124 = por %p122, %p123
    %p125 = scmp.ne.s32.totalorder %s117, %s120
    %p126 = scmp.eq.s32.totalorder %s9, 0
    %p127 = por %p125, %p126
    %p128 = scmp.ne.s32.totalorder %s117, %s120
    %p129 = scmp.eq.s32.totalorder %s14, 7
    %p130 = por %p128, %p129
    %p131 = scmp.ne.s32.totalorder %s120, %s121
    %p132 = scmp.eq.s32.totalorder %s14, 0
    %p133 = por %p131, %p132
    %p134 = scmp.ne.s32.totalorder %s120, %s121
    %p135 = scmp.eq.s32.totalorder %s15, 7
    %p136 = por %p134, %p135
    %p138 = scmp.ne.s32.totalorder %s121, %s137
    %p139 = scmp.eq.s32.totalorder %s15, 0
    %p140 = por %p138, %p139
    %p141 = scmp.le.s32.totalorder 1, %s9
    %p142 = scmp.lt.s32.totalorder %s9, 9
    %p143 = pnand %p141, %p142
    %p144 = pneg %p143
    // Predicated region
    $region9: #{cascade_qt_att_b.1} parent=5 // pred_check
      _
    $region10: #{cascade_qt_att_b.1} parent=5 // pred_check_branch
      %146 = sbr.rel (%p143) target = $region12
    $region11: #{cascade_qt_att_b.1} parent=5 // pred_region
      %s147 = ssub.s32 %s9, 1
    $region12: #{cascade_qt_att_b.1} parent=5 // pred_fallthru
      _
    %p148 = scmp.lt.s32.totalorder %s9, 8
    // Predicated region
    $region13: #{cascade_qt_att_b.1} parent=5 // pred_check
      %p149 = pneg %p148
    $region14: #{cascade_qt_att_b.1} parent=5 // pred_check_branch
      %151 = sbr.rel (%p149) target = $region16
    $region15: #{cascade_qt_att_b.1} parent=5 // pred_region
      // Predicated region
      $region17: #{cascade_qt_att_b.1} parent=15 // pred_check
        %p152 = pneg %p43
      $region18: #{cascade_qt_att_b.1} parent=15 // pred_check_branch
        %154 = sbr.rel (%p152) target = $region20
      $region19: #{cascade_qt_att_b.1} parent=15 // pred_region
        %s155 = smul.u32 64, %s17
        %p156 = scmp.lt.s32.totalorder %s16, 1
        %s157 = scalar_select %p156, %s16, 1
        %p158 = scmp.lt.s32.totalorder %s155, 255
        %s159 = scalar_select %p158, %s155, 255
        %s160 = smul.addr %s157, 256
        %s161 = sadd.s32 %s159, %s160
        %s162 = smul.addr %s161, 2
        %s163 = scalar_lea.vmem %s0, %s162
        %s164 = smul.u32 64, %s17
      $region20: #{cascade_qt_att_b.1} parent=15 // pred_fallthru
        _
      // Predicated region
      $region21: #{cascade_qt_att_b.1} parent=15 // pred_check
        %p165 = pneg %p71
      $region22: #{cascade_qt_att_b.1} parent=15 // pred_check_branch
        %167 = sbr.rel (%p165) target = $region24
      $region23: #{cascade_qt_att_b.1} parent=15 // pred_region
        %s168 = smul.u32 64, %s17
        %p169 = scmp.lt.s32.totalorder %s16, 1
        %s170 = scalar_select %p169, %s16, 1
        %p171 = scmp.lt.s32.totalorder %s168, 255
        %s172 = scalar_select %p171, %s168, 255
        %s173 = smul.addr %s172, 2
        %s174 = smul.addr %s170, 512
        %s175 = sadd.s32 %s173, %s174
        %s176 = smul.addr %s175, 4
        %s177 = scalar_lea.vmem %s1, %s176
        %s178 = smul.u32 64, %s17
      $region24: #{cascade_qt_att_b.1} parent=15 // pred_fallthru
        _
      // Predicated region
      $region25: #{cascade_qt_att_b.1} parent=15 // pred_check
        %p179 = pneg %p99
      $region26: #{cascade_qt_att_b.1} parent=15 // pred_check_branch
        %181 = sbr.rel (%p179) target = $region28
      $region27: #{cascade_qt_att_b.1} parent=15 // pred_region
        %s182 = smul.u32 64, %s17
        %p183 = scmp.lt.s32.totalorder %s16, 1
        %s184 = scalar_select %p183, %s16, 1
        %p185 = scmp.lt.s32.totalorder %s182, 255
        %s186 = scalar_select %p185, %s182, 255
        %s187 = smul.addr %s184, 256
        %s188 = sadd.s32 %s186, %s187
        %s189 = smul.addr %s188, 2
        %s190 = scalar_lea.vmem %s2, %s189
        %s191 = smul.u32 64, %s17
      $region28: #{cascade_qt_att_b.1} parent=15 // pred_fallthru
        _
    $region16: #{cascade_qt_att_b.1} parent=5 // pred_fallthru
      _
    %p192 = scmp.le.s32.totalorder 1, %s9
    %p193 = scmp.lt.s32.totalorder %s9, 9
    %p194 = pnand %p192, %p193
    %p195 = pneg %p194
    // Predicated region
    $region29: #{cascade_qt_att_b.1} parent=5 // pred_check
      _
    $region30: #{cascade_qt_att_b.1} parent=5 // pred_check_branch
      %197 = sbr.rel (%p194) target = $region32
    $region31: #{cascade_qt_att_b.1} parent=5 // pred_region
      %s198 = ssub.s32 %s9, 1
      %s199 = smul.u32 64, %s19
      %p200 = scmp.lt.s32.totalorder %s18, 1
      %s201 = scalar_select %p200, %s18, 1
      %p202 = scmp.lt.s32.totalorder %s199, 255
      %s203 = scalar_select %p202, %s199, 255
      %s204 = smul.addr %s201, 256
      %s205 = sadd.s32 %s203, %s204
      %s206 = smul.addr %s205, 2
      %s207 = scalar_lea.vmem %s0, %s206
      %p208 = pneg %p49
      %p209 = pneg %p46
      %s210 = smul.u32 64, %s19
      %p211 = scmp.lt.s32.totalorder %s18, 1
      %s212 = scalar_select %p211, %s18, 1
      %p213 = scmp.lt.s32.totalorder %s210, 255
      %s214 = scalar_select %p213, %s210, 255
      %s215 = smul.addr %s214, 2
      %s216 = smul.addr %s212, 512
      %s217 = sadd.s32 %s215, %s216
      %s218 = smul.addr %s217, 4
      %s219 = scalar_lea.vmem %s1, %s218
      %p220 = pneg %p77
      %p221 = pneg %p74
      %s222 = smul.u32 64, %s19
      %p223 = scmp.lt.s32.totalorder %s18, 1
      %s224 = scalar_select %p223, %s18, 1
      %p225 = scmp.lt.s32.totalorder %s222, 255
      %s226 = scalar_select %p225, %s222, 255
      %s227 = smul.addr %s224, 256
      %s228 = sadd.s32 %s226, %s227
      %s229 = smul.addr %s228, 2
      %s230 = scalar_lea.vmem %s2, %s229
      %p231 = pneg %p105
      %p232 = pneg %p102
      %p233 = pneg %p133
      %p234 = pneg %p130
      %s235 = smul.u32 8, %s19
      %p236 = scmp.lt.s32.totalorder %s18, 1
      %s237 = scalar_select %p236, %s18, 1
      %p238 = scmp.lt.s32.totalorder %s235, 31
      %s239 = scalar_select %p238, %s235, 31
      %s240 = smul.addr %s239, 2
      %s241 = smul.addr %s237, 64
      %s242 = sadd.s32 %s240, %s241
      %s243 = smul.addr %s242, 8
      %s244 = scalar_lea.vmem %s3, %s243
      %s245 = smul.u32 64, %s19
      %p246 = scmp.lt.s32.totalorder %s18, 1
      %s247 = scalar_select %p246, %s18, 1
      %p248 = scmp.lt.s32.totalorder %s245, 255
      %s249 = scalar_select %p248, %s245, 255
      %s250 = smul.addr %s247, 256
      %s251 = sadd.s32 %s249, %s250
      %s252 = smul.addr %s251, 2
      %s253 = scalar_lea.vmem %s0, %s252
      %s254 = smul.u32 64, %s19
      %s255 = smul.u32 64, %s19
      %p256 = scmp.lt.s32.totalorder %s18, 1
      %s257 = scalar_select %p256, %s18, 1
      %p258 = scmp.lt.s32.totalorder %s255, 255
      %s259 = scalar_select %p258, %s255, 255
      %s260 = smul.addr %s259, 2
      %s261 = smul.addr %s257, 512
      %s262 = sadd.s32 %s260, %s261
      %s263 = smul.addr %s262, 4
      %s264 = scalar_lea.vmem %s1, %s263
      %s265 = smul.u32 64, %s19
      %s266 = smul.u32 64, %s19
      %p267 = scmp.lt.s32.totalorder %s18, 1
      %s268 = scalar_select %p267, %s18, 1
      %p269 = scmp.lt.s32.totalorder %s266, 255
      %s270 = scalar_select %p269, %s266, 255
      %s271 = smul.addr %s268, 256
      %s272 = sadd.s32 %s270, %s271
      %s273 = smul.addr %s272, 2
      %s274 = scalar_lea.vmem %s2, %s273
      %s275 = smul.u32 64, %s19
      %s276 = smul.u32 8, %s19
      %p277 = scmp.lt.s32.totalorder %s18, 1
      %s278 = scalar_select %p277, %s18, 1
      %p279 = scmp.lt.s32.totalorder %s276, 31
      %s280 = scalar_select %p279, %s276, 31
      %s281 = smul.addr %s280, 2
      %s282 = smul.addr %s278, 64
      %s283 = sadd.s32 %s281, %s282
      %s284 = smul.addr %s283, 8
      %s285 = scalar_lea.vmem %s3, %s284
      %s286 = smul.u32 8, %s19
      %v288 = vld [vmem:[%s253] sm:$0x3]
      %v289 = vld [vmem:[%s253 + $0x2] sm:$0x3]
      %v290 = vld [vmem:[%s253 + $0x4] sm:$0x3]
      %v291 = vld [vmem:[%s253 + $0x6] sm:$0x3]
      %v292 = vld [vmem:[%s253 + $0x8] sm:$0x3]
      %v293 = vld [vmem:[%s253 + $0xa] sm:$0x3]
      %v294 = vld [vmem:[%s253 + $0xc] sm:$0x3]
      %v295 = vld [vmem:[%s253 + $0xe] sm:$0x3]
      %v296 = vld [vmem:[%s253 + $0x10] sm:$0x3]
      %v297 = vld [vmem:[%s253 + $0x12] sm:$0x3]
      %v298 = vld [vmem:[%s253 + $0x14] sm:$0x3]
      %v299 = vld [vmem:[%s253 + $0x16] sm:$0x3]
      %v300 = vld [vmem:[%s253 + $0x18] sm:$0x3]
      %v301 = vld [vmem:[%s253 + $0x1a] sm:$0x3]
      %v302 = vld [vmem:[%s253 + $0x1c] sm:$0x3]
      %v303 = vld [vmem:[%s253 + $0x1e] sm:$0x3]
      %v304 = vld [vmem:[%s253 + $0x20] sm:$0x3]
      %v305 = vld [vmem:[%s253 + $0x22] sm:$0x3]
      %v306 = vld [vmem:[%s253 + $0x24] sm:$0x3]
      %v307 = vld [vmem:[%s253 + $0x26] sm:$0x3]
      %v308 = vld [vmem:[%s253 + $0x28] sm:$0x3]
      %v309 = vld [vmem:[%s253 + $0x2a] sm:$0x3]
      %v310 = vld [vmem:[%s253 + $0x2c] sm:$0x3]
      %v311 = vld [vmem:[%s253 + $0x2e] sm:$0x3]
      %v312 = vld [vmem:[%s253 + $0x30] sm:$0x3]
      %v313 = vld [vmem:[%s253 + $0x32] sm:$0x3]
      %v314 = vld [vmem:[%s253 + $0x34] sm:$0x3]
      %v315 = vld [vmem:[%s253 + $0x36] sm:$0x3]
      %v316 = vld [vmem:[%s253 + $0x38] sm:$0x3]
      %v317 = vld [vmem:[%s253 + $0x3a] sm:$0x3]
      %v318 = vld [vmem:[%s253 + $0x3c] sm:$0x3]
      %v319 = vld [vmem:[%s253 + $0x3e] sm:$0x3]
      %v320 = vld [vmem:[%s253 + $0x40] sm:$0x3]
      %v321 = vld [vmem:[%s253 + $0x42] sm:$0x3]
      %v322 = vld [vmem:[%s253 + $0x44] sm:$0x3]
      %v323 = vld [vmem:[%s253 + $0x46] sm:$0x3]
      %v324 = vld [vmem:[%s253 + $0x48] sm:$0x3]
      %v325 = vld [vmem:[%s253 + $0x4a] sm:$0x3]
      %v326 = vld [vmem:[%s253 + $0x4c] sm:$0x3]
      %v327 = vld [vmem:[%s253 + $0x4e] sm:$0x3]
      %v328 = vld [vmem:[%s253 + $0x50] sm:$0x3]
      %v329 = vld [vmem:[%s253 + $0x52] sm:$0x3]
      %v330 = vld [vmem:[%s253 + $0x54] sm:$0x3]
      %v331 = vld [vmem:[%s253 + $0x56] sm:$0x3]
      %v332 = vld [vmem:[%s253 + $0x58] sm:$0x3]
      %v333 = vld [vmem:[%s253 + $0x5a] sm:$0x3]
      %v334 = vld [vmem:[%s253 + $0x5c] sm:$0x3]
      %v335 = vld [vmem:[%s253 + $0x5e] sm:$0x3]
      %v336 = vld [vmem:[%s253 + $0x60] sm:$0x3]
      %v337 = vld [vmem:[%s253 + $0x62] sm:$0x3]
      %v338 = vld [vmem:[%s253 + $0x64] sm:$0x3]
      %v339 = vld [vmem:[%s253 + $0x66] sm:$0x3]
      %v340 = vld [vmem:[%s253 + $0x68] sm:$0x3]
      %v341 = vld [vmem:[%s253 + $0x6a] sm:$0x3]
      %v342 = vld [vmem:[%s253 + $0x6c] sm:$0x3]
      %v343 = vld [vmem:[%s253 + $0x6e] sm:$0x3]
      %v344 = vld [vmem:[%s253 + $0x70] sm:$0x3]
      %v345 = vld [vmem:[%s253 + $0x72] sm:$0x3]
      %v346 = vld [vmem:[%s253 + $0x74] sm:$0x3]
      %v347 = vld [vmem:[%s253 + $0x76] sm:$0x3]
      %v348 = vld [vmem:[%s253 + $0x78] sm:$0x3]
      %v349 = vld [vmem:[%s253 + $0x7a] sm:$0x3]
      %v350 = vld [vmem:[%s253 + $0x7c] sm:$0x3]
      %v351 = vld [vmem:[%s253 + $0x7e] sm:$0x3]
      %v352 = vld [vmem:[%s264] sm:$0xf]
      %v353 = vld [vmem:[%s264 + $0x4] sm:$0xf]
      %v354 = vld [vmem:[%s264 + $0x8] sm:$0xf]
      %v355 = vld [vmem:[%s264 + $0xc] sm:$0xf]
      %v356 = vld [vmem:[%s264 + $0x10] sm:$0xf]
      %v357 = vld [vmem:[%s264 + $0x14] sm:$0xf]
      %v358 = vld [vmem:[%s264 + $0x18] sm:$0xf]
      %v359 = vld [vmem:[%s264 + $0x1c] sm:$0xf]
      %v360 = vld [vmem:[%s264 + $0x20] sm:$0xf]
      %v361 = vld [vmem:[%s264 + $0x24] sm:$0xf]
      %v362 = vld [vmem:[%s264 + $0x28] sm:$0xf]
      %v363 = vld [vmem:[%s264 + $0x2c] sm:$0xf]
      %v364 = vld [vmem:[%s264 + $0x30] sm:$0xf]
      %v365 = vld [vmem:[%s264 + $0x34] sm:$0xf]
      %v366 = vld [vmem:[%s264 + $0x38] sm:$0xf]
      %v367 = vld [vmem:[%s264 + $0x3c] sm:$0xf]
      %v368 = vld [vmem:[%s264 + $0x40] sm:$0xf]
      %v369 = vld [vmem:[%s264 + $0x44] sm:$0xf]
      %v370 = vld [vmem:[%s264 + $0x48] sm:$0xf]
      %v371 = vld [vmem:[%s264 + $0x4c] sm:$0xf]
      %v372 = vld [vmem:[%s264 + $0x50] sm:$0xf]
      %v373 = vld [vmem:[%s264 + $0x54] sm:$0xf]
      %v374 = vld [vmem:[%s264 + $0x58] sm:$0xf]
      %v375 = vld [vmem:[%s264 + $0x5c] sm:$0xf]
      %v376 = vld [vmem:[%s264 + $0x60] sm:$0xf]
      %v377 = vld [vmem:[%s264 + $0x64] sm:$0xf]
      %v378 = vld [vmem:[%s264 + $0x68] sm:$0xf]
      %v379 = vld [vmem:[%s264 + $0x6c] sm:$0xf]
      %v380 = vld [vmem:[%s264 + $0x70] sm:$0xf]
      %v381 = vld [vmem:[%s264 + $0x74] sm:$0xf]
      %v382 = vld [vmem:[%s264 + $0x78] sm:$0xf]
      %v383 = vld [vmem:[%s264 + $0x7c] sm:$0xf]
      %v384 = vld [vmem:[%s264 + $0x80] sm:$0xf]
      %v385 = vld [vmem:[%s264 + $0x84] sm:$0xf]
      %v386 = vld [vmem:[%s264 + $0x88] sm:$0xf]
      %v387 = vld [vmem:[%s264 + $0x8c] sm:$0xf]
      %v388 = vld [vmem:[%s264 + $0x90] sm:$0xf]
      %v389 = vld [vmem:[%s264 + $0x94] sm:$0xf]
      %v390 = vld [vmem:[%s264 + $0x98] sm:$0xf]
      %v391 = vld [vmem:[%s264 + $0x9c] sm:$0xf]
      %v392 = vld [vmem:[%s264 + $0xa0] sm:$0xf]
      %v393 = vld [vmem:[%s264 + $0xa4] sm:$0xf]
      %v394 = vld [vmem:[%s264 + $0xa8] sm:$0xf]
      %v395 = vld [vmem:[%s264 + $0xac] sm:$0xf]
      %v396 = vld [vmem:[%s264 + $0xb0] sm:$0xf]
      %v397 = vld [vmem:[%s264 + $0xb4] sm:$0xf]
      %v398 = vld [vmem:[%s264 + $0xb8] sm:$0xf]
      %v399 = vld [vmem:[%s264 + $0xbc] sm:$0xf]
      %v400 = vld [vmem:[%s264 + $0xc0] sm:$0xf]
      %v401 = vld [vmem:[%s264 + $0xc4] sm:$0xf]
      %v402 = vld [vmem:[%s264 + $0xc8] sm:$0xf]
      %v403 = vld [vmem:[%s264 + $0xcc] sm:$0xf]
      %v404 = vld [vmem:[%s264 + $0xd0] sm:$0xf]
      %v405 = vld [vmem:[%s264 + $0xd4] sm:$0xf]
      %v406 = vld [vmem:[%s264 + $0xd8] sm:$0xf]
      %v407 = vld [vmem:[%s264 + $0xdc] sm:$0xf]
      %v408 = vld [vmem:[%s264 + $0xe0] sm:$0xf]
      %v409 = vld [vmem:[%s264 + $0xe4] sm:$0xf]
      %v410 = vld [vmem:[%s264 + $0xe8] sm:$0xf]
      %v411 = vld [vmem:[%s264 + $0xec] sm:$0xf]
      %v412 = vld [vmem:[%s264 + $0xf0] sm:$0xf]
      %v413 = vld [vmem:[%s264 + $0xf4] sm:$0xf]
      %v414 = vld [vmem:[%s264 + $0xf8] sm:$0xf]
      %v415 = vld [vmem:[%s264 + $0xfc] sm:$0xf]
      %v416 = vld [vmem:[%s264 + $0x100] sm:$0xf]
      %v417 = vld [vmem:[%s264 + $0x104] sm:$0xf]
      %v418 = vld [vmem:[%s264 + $0x108] sm:$0xf]
      %v419 = vld [vmem:[%s264 + $0x10c] sm:$0xf]
      %v420 = vld [vmem:[%s264 + $0x110] sm:$0xf]
      %v421 = vld [vmem:[%s264 + $0x114] sm:$0xf]
      %v422 = vld [vmem:[%s264 + $0x118] sm:$0xf]
      %v423 = vld [vmem:[%s264 + $0x11c] sm:$0xf]
      %v424 = vld [vmem:[%s264 + $0x120] sm:$0xf]
      %v425 = vld [vmem:[%s264 + $0x124] sm:$0xf]
      %v426 = vld [vmem:[%s264 + $0x128] sm:$0xf]
      %v427 = vld [vmem:[%s264 + $0x12c] sm:$0xf]
      %v428 = vld [vmem:[%s264 + $0x130] sm:$0xf]
      %v429 = vld [vmem:[%s264 + $0x134] sm:$0xf]
      %v430 = vld [vmem:[%s264 + $0x138] sm:$0xf]
      %v431 = vld [vmem:[%s264 + $0x13c] sm:$0xf]
      %v432 = vld [vmem:[%s264 + $0x140] sm:$0xf]
      %v433 = vld [vmem:[%s264 + $0x144] sm:$0xf]
      %v434 = vld [vmem:[%s264 + $0x148] sm:$0xf]
      %v435 = vld [vmem:[%s264 + $0x14c] sm:$0xf]
      %v436 = vld [vmem:[%s264 + $0x150] sm:$0xf]
      %v437 = vld [vmem:[%s264 + $0x154] sm:$0xf]
      %v438 = vld [vmem:[%s264 + $0x158] sm:$0xf]
      %v439 = vld [vmem:[%s264 + $0x15c] sm:$0xf]
      %v440 = vld [vmem:[%s264 + $0x160] sm:$0xf]
      %v441 = vld [vmem:[%s264 + $0x164] sm:$0xf]
      %v442 = vld [vmem:[%s264 + $0x168] sm:$0xf]
      %v443 = vld [vmem:[%s264 + $0x16c] sm:$0xf]
      %v444 = vld [vmem:[%s264 + $0x170] sm:$0xf]
      %v445 = vld [vmem:[%s264 + $0x174] sm:$0xf]
      %v446 = vld [vmem:[%s264 + $0x178] sm:$0xf]
      %v447 = vld [vmem:[%s264 + $0x17c] sm:$0xf]
      %v448 = vld [vmem:[%s264 + $0x180] sm:$0xf]
      %v449 = vld [vmem:[%s264 + $0x184] sm:$0xf]
      %v450 = vld [vmem:[%s264 + $0x188] sm:$0xf]
      %v451 = vld [vmem:[%s264 + $0x18c] sm:$0xf]
      %v452 = vld [vmem:[%s264 + $0x190] sm:$0xf]
      %v453 = vld [vmem:[%s264 + $0x194] sm:$0xf]
      %v454 = vld [vmem:[%s264 + $0x198] sm:$0xf]
      %v455 = vld [vmem:[%s264 + $0x19c] sm:$0xf]
      %v456 = vld [vmem:[%s264 + $0x1a0] sm:$0xf]
      %v457 = vld [vmem:[%s264 + $0x1a4] sm:$0xf]
      %v458 = vld [vmem:[%s264 + $0x1a8] sm:$0xf]
      %v459 = vld [vmem:[%s264 + $0x1ac] sm:$0xf]
      %v460 = vld [vmem:[%s264 + $0x1b0] sm:$0xf]
      %v461 = vld [vmem:[%s264 + $0x1b4] sm:$0xf]
      %v462 = vld [vmem:[%s264 + $0x1b8] sm:$0xf]
      %v463 = vld [vmem:[%s264 + $0x1bc] sm:$0xf]
      %v464 = vld [vmem:[%s264 + $0x1c0] sm:$0xf]
      %v465 = vld [vmem:[%s264 + $0x1c4] sm:$0xf]
      %v466 = vld [vmem:[%s264 + $0x1c8] sm:$0xf]
      %v467 = vld [vmem:[%s264 + $0x1cc] sm:$0xf]
      %v468 = vld [vmem:[%s264 + $0x1d0] sm:$0xf]
      %v469 = vld [vmem:[%s264 + $0x1d4] sm:$0xf]
      %v470 = vld [vmem:[%s264 + $0x1d8] sm:$0xf]
      %v471 = vld [vmem:[%s264 + $0x1dc] sm:$0xf]
      %v472 = vld [vmem:[%s264 + $0x1e0] sm:$0xf]
      %v473 = vld [vmem:[%s264 + $0x1e4] sm:$0xf]
      %v474 = vld [vmem:[%s264 + $0x1e8] sm:$0xf]
      %v475 = vld [vmem:[%s264 + $0x1ec] sm:$0xf]
      %v476 = vld [vmem:[%s264 + $0x1f0] sm:$0xf]
      %v477 = vld [vmem:[%s264 + $0x1f4] sm:$0xf]
      %v478 = vld [vmem:[%s264 + $0x1f8] sm:$0xf]
      %v479 = vld [vmem:[%s264 + $0x1fc] sm:$0xf]
      %v480 = vld [vmem:[%s274] sm:$0x3]
      %v481 = vld [vmem:[%s274 + $0x2] sm:$0x3]
      %v482 = vld [vmem:[%s274 + $0x4] sm:$0x3]
      %v483 = vld [vmem:[%s274 + $0x6] sm:$0x3]
      %v484 = vld [vmem:[%s274 + $0x8] sm:$0x3]
      %v485 = vld [vmem:[%s274 + $0xa] sm:$0x3]
      %v486 = vld [vmem:[%s274 + $0xc] sm:$0x3]
      %v487 = vld [vmem:[%s274 + $0xe] sm:$0x3]
      %v488 = vld [vmem:[%s274 + $0x10] sm:$0x3]
      %v489 = vld [vmem:[%s274 + $0x12] sm:$0x3]
      %v490 = vld [vmem:[%s274 + $0x14] sm:$0x3]
      %v491 = vld [vmem:[%s274 + $0x16] sm:$0x3]
      %v492 = vld [vmem:[%s274 + $0x18] sm:$0x3]
      %v493 = vld [vmem:[%s274 + $0x1a] sm:$0x3]
      %v494 = vld [vmem:[%s274 + $0x1c] sm:$0x3]
      %v495 = vld [vmem:[%s274 + $0x1e] sm:$0x3]
      %v496 = vld [vmem:[%s274 + $0x20] sm:$0x3]
      %v497 = vld [vmem:[%s274 + $0x22] sm:$0x3]
      %v498 = vld [vmem:[%s274 + $0x24] sm:$0x3]
      %v499 = vld [vmem:[%s274 + $0x26] sm:$0x3]
      %v500 = vld [vmem:[%s274 + $0x28] sm:$0x3]
      %v501 = vld [vmem:[%s274 + $0x2a] sm:$0x3]
      %v502 = vld [vmem:[%s274 + $0x2c] sm:$0x3]
      %v503 = vld [vmem:[%s274 + $0x2e] sm:$0x3]
      %v504 = vld [vmem:[%s274 + $0x30] sm:$0x3]
      %v505 = vld [vmem:[%s274 + $0x32] sm:$0x3]
      %v506 = vld [vmem:[%s274 + $0x34] sm:$0x3]
      %v507 = vld [vmem:[%s274 + $0x36] sm:$0x3]
      %v508 = vld [vmem:[%s274 + $0x38] sm:$0x3]
      %v509 = vld [vmem:[%s274 + $0x3a] sm:$0x3]
      %v510 = vld [vmem:[%s274 + $0x3c] sm:$0x3]
      %v511 = vld [vmem:[%s274 + $0x3e] sm:$0x3]
      %v512 = vld [vmem:[%s274 + $0x40] sm:$0x3]
      %v513 = vld [vmem:[%s274 + $0x42] sm:$0x3]
      %v514 = vld [vmem:[%s274 + $0x44] sm:$0x3]
      %v515 = vld [vmem:[%s274 + $0x46] sm:$0x3]
      %v516 = vld [vmem:[%s274 + $0x48] sm:$0x3]
      %v517 = vld [vmem:[%s274 + $0x4a] sm:$0x3]
      %v518 = vld [vmem:[%s274 + $0x4c] sm:$0x3]
      %v519 = vld [vmem:[%s274 + $0x4e] sm:$0x3]
      %v520 = vld [vmem:[%s274 + $0x50] sm:$0x3]
      %v521 = vld [vmem:[%s274 + $0x52] sm:$0x3]
      %v522 = vld [vmem:[%s274 + $0x54] sm:$0x3]
      %v523 = vld [vmem:[%s274 + $0x56] sm:$0x3]
      %v524 = vld [vmem:[%s274 + $0x58] sm:$0x3]
      %v525 = vld [vmem:[%s274 + $0x5a] sm:$0x3]
      %v526 = vld [vmem:[%s274 + $0x5c] sm:$0x3]
      %v527 = vld [vmem:[%s274 + $0x5e] sm:$0x3]
      %v528 = vld [vmem:[%s274 + $0x60] sm:$0x3]
      %v529 = vld [vmem:[%s274 + $0x62] sm:$0x3]
      %v530 = vld [vmem:[%s274 + $0x64] sm:$0x3]
      %v531 = vld [vmem:[%s274 + $0x66] sm:$0x3]
      %v532 = vld [vmem:[%s274 + $0x68] sm:$0x3]
      %v533 = vld [vmem:[%s274 + $0x6a] sm:$0x3]
      %v534 = vld [vmem:[%s274 + $0x6c] sm:$0x3]
      %v535 = vld [vmem:[%s274 + $0x6e] sm:$0x3]
      %v536 = vld [vmem:[%s274 + $0x70] sm:$0x3]
      %v537 = vld [vmem:[%s274 + $0x72] sm:$0x3]
      %v538 = vld [vmem:[%s274 + $0x74] sm:$0x3]
      %v539 = vld [vmem:[%s274 + $0x76] sm:$0x3]
      %v540 = vld [vmem:[%s274 + $0x78] sm:$0x3]
      %v541 = vld [vmem:[%s274 + $0x7a] sm:$0x3]
      %v542 = vld [vmem:[%s274 + $0x7c] sm:$0x3]
      %v543 = vld [vmem:[%s274 + $0x7e] sm:$0x3]
      %v544 = vunpack.c.l.bf16 %v480
      %v545 = vunpack.c.l.bf16 %v481
      %v546 = vunpack.c.l.bf16 %v482
      %v547 = vunpack.c.l.bf16 %v483
      %v548 = vunpack.c.l.bf16 %v484
      %v549 = vunpack.c.l.bf16 %v485
      %v550 = vunpack.c.l.bf16 %v486
      %v551 = vunpack.c.l.bf16 %v487
      %v552 = vunpack.c.l.bf16 %v488
      %v553 = vunpack.c.l.bf16 %v489
      %v554 = vunpack.c.l.bf16 %v490
      %v555 = vunpack.c.l.bf16 %v491
      %v556 = vunpack.c.l.bf16 %v492
      %v557 = vunpack.c.l.bf16 %v493
      %v558 = vunpack.c.l.bf16 %v494
      %v559 = vunpack.c.l.bf16 %v495
      %v560 = vunpack.c.l.bf16 %v496
      %v561 = vunpack.c.l.bf16 %v497
      %v562 = vunpack.c.l.bf16 %v498
      %v563 = vunpack.c.l.bf16 %v499
      %v564 = vunpack.c.l.bf16 %v500
      %v565 = vunpack.c.l.bf16 %v501
      %v566 = vunpack.c.l.bf16 %v502
      %v567 = vunpack.c.l.bf16 %v503
      %v568 = vunpack.c.l.bf16 %v504
      %v569 = vunpack.c.l.bf16 %v505
      %v570 = vunpack.c.l.bf16 %v506
      %v571 = vunpack.c.l.bf16 %v507
      %v572 = vunpack.c.l.bf16 %v508
      %v573 = vunpack.c.l.bf16 %v509
      %v574 = vunpack.c.l.bf16 %v510
      %v575 = vunpack.c.l.bf16 %v511
      %v576 = vunpack.c.l.bf16 %v512
      %v577 = vunpack.c.l.bf16 %v513
      %v578 = vunpack.c.l.bf16 %v514
      %v579 = vunpack.c.l.bf16 %v515
      %v580 = vunpack.c.l.bf16 %v516
      %v581 = vunpack.c.l.bf16 %v517
      %v582 = vunpack.c.l.bf16 %v518
      %v583 = vunpack.c.l.bf16 %v519
      %v584 = vunpack.c.l.bf16 %v520
      %v585 = vunpack.c.l.bf16 %v521
      %v586 = vunpack.c.l.bf16 %v522
      %v587 = vunpack.c.l.bf16 %v523
      %v588 = vunpack.c.l.bf16 %v524
      %v589 = vunpack.c.l.bf16 %v525
      %v590 = vunpack.c.l.bf16 %v526
      %v591 = vunpack.c.l.bf16 %v527
      %v592 = vunpack.c.l.bf16 %v528
      %v593 = vunpack.c.l.bf16 %v529
      %v594 = vunpack.c.l.bf16 %v530
      %v595 = vunpack.c.l.bf16 %v531
      %v596 = vunpack.c.l.bf16 %v532
      %v597 = vunpack.c.l.bf16 %v533
      %v598 = vunpack.c.l.bf16 %v534
      %v599 = vunpack.c.l.bf16 %v535
      %v600 = vunpack.c.l.bf16 %v536
      %v601 = vunpack.c.l.bf16 %v537
      %v602 = vunpack.c.l.bf16 %v538
      %v603 = vunpack.c.l.bf16 %v539
      %v604 = vunpack.c.l.bf16 %v540
      %v605 = vunpack.c.l.bf16 %v541
      %v606 = vunpack.c.l.bf16 %v542
      %v607 = vunpack.c.l.bf16 %v543
      %v610 = vunpack.c.l.b16 %v352
      %v611 = vunpack.c.l.b16 %v353
      %v612 = vpack.c.b16 %v611, %v610
      %vm613 = vcmask 261120
      %v615 = vsel %vm613, %v288, 0
      %v618 = vsel %vm613, %v612, 0
      %620 = vmatpush.bf16.xpose.msra.mxu0 0
      %621 = vmatpush.bf16.xpose.msra.mxu0 0
      %622 = vmatpush.bf16.xpose.msra.mxu0 0
      %623 = vmatpush.bf16.xpose.msra.mxu0 0
      %624 = vmatpush.bf16.xpose.msra.mxu0 0
      %625 = vmatpush.bf16.xpose.msra.mxu0 0
      %626 = vmatpush.bf16.xpose.msra.mxu0 0
      %627 = vmatpush.bf16.xpose.msra.mxu0 %v618
      %628 = vmatmul.bf16.gmra.mxu0 %v615
      %v629 = vpop.f32.mrf.mxu0
      %v630 = vadd.f32 0.0, %v629
      %v631 = vpop.f32.mrf.mxu0
      %632 = vdwg.mxu0
      %v635 = vunpack.c.l.b16 %v354
      %v636 = vunpack.c.l.b16 %v355
      %v637 = vpack.c.b16 %v636, %v635
      %v639 = vsel %vm613, %v289, 0
      %v642 = vsel %vm613, %v637, 0
      %644 = vmatpush.bf16.xpose.msra.mxu0 0
      %645 = vmatpush.bf16.xpose.msra.mxu0 0
      %646 = vmatpush.bf16.xpose.msra.mxu0 0
      %647 = vmatpush.bf16.xpose.msra.mxu0 0
      %648 = vmatpush.bf16.xpose.msra.mxu0 0
      %649 = vmatpush.bf16.xpose.msra.mxu0 0
      %650 = vmatpush.bf16.xpose.msra.mxu0 0
      %651 = vmatpush.bf16.xpose.msra.mxu0 %v642
      %652 = vmatmul.bf16.gmra.mxu0 %v639
      %v653 = vpop.f32.mrf.mxu0
      %v654 = vadd.f32 0.0, %v653
      %v655 = vpop.f32.mrf.mxu0
      %656 = vdwg.mxu0
      %v659 = vunpack.c.l.b16 %v356
      %v660 = vunpack.c.l.b16 %v357
      %v661 = vpack.c.b16 %v660, %v659
      %v663 = vsel %vm613, %v290, 0
      %v666 = vsel %vm613, %v661, 0
      %668 = vmatpush.bf16.xpose.msra.mxu0 0
      %669 = vmatpush.bf16.xpose.msra.mxu0 0
      %670 = vmatpush.bf16.xpose.msra.mxu0 0
      %671 = vmatpush.bf16.xpose.msra.mxu0 0
      %672 = vmatpush.bf16.xpose.msra.mxu0 0
      %673 = vmatpush.bf16.xpose.msra.mxu0 0
      %674 = vmatpush.bf16.xpose.msra.mxu0 0
      %675 = vmatpush.bf16.xpose.msra.mxu0 %v666
      %676 = vmatmul.bf16.gmra.mxu0 %v663
      %v677 = vpop.f32.mrf.mxu0
      %v678 = vadd.f32 0.0, %v677
      %v679 = vpop.f32.mrf.mxu0
      %680 = vdwg.mxu0
      %v683 = vunpack.c.l.b16 %v358
      %v684 = vunpack.c.l.b16 %v359
      %v685 = vpack.c.b16 %v684, %v683
      %v687 = vsel %vm613, %v291, 0
      %v690 = vsel %vm613, %v685, 0
      %692 = vmatpush.bf16.xpose.msra.mxu0 0
      %693 = vmatpush.bf16.xpose.msra.mxu0 0
      %694 = vmatpush.bf16.xpose.msra.mxu0 0
      %695 = vmatpush.bf16.xpose.msra.mxu0 0
      %696 = vmatpush.bf16.xpose.msra.mxu0 0
      %697 = vmatpush.bf16.xpose.msra.mxu0 0
      %698 = vmatpush.bf16.xpose.msra.mxu0 0
      %699 = vmatpush.bf16.xpose.msra.mxu0 %v690
      %700 = vmatmul.bf16.gmra.mxu0 %v687
      %v701 = vpop.f32.mrf.mxu0
      %v702 = vadd.f32 0.0, %v701
      %v703 = vpop.f32.mrf.mxu0
      %704 = vdwg.mxu0
      %v707 = vunpack.c.l.b16 %v360
      %v708 = vunpack.c.l.b16 %v361
      %v709 = vpack.c.b16 %v708, %v707
      %v711 = vsel %vm613, %v292, 0
      %v714 = vsel %vm613, %v709, 0
      %716 = vmatpush.bf16.xpose.msra.mxu0 0
      %717 = vmatpush.bf16.xpose.msra.mxu0 0
      %718 = vmatpush.bf16.xpose.msra.mxu0 0
      %719 = vmatpush.bf16.xpose.msra.mxu0 0
      %720 = vmatpush.bf16.xpose.msra.mxu0 0
      %721 = vmatpush.bf16.xpose.msra.mxu0 0
      %722 = vmatpush.bf16.xpose.msra.mxu0 0
      %723 = vmatpush.bf16.xpose.msra.mxu0 %v714
      %724 = vmatmul.bf16.gmra.mxu0 %v711
      %v725 = vpop.f32.mrf.mxu0
      %v726 = vadd.f32 0.0, %v725
      %v727 = vpop.f32.mrf.mxu0
      %728 = vdwg.mxu0
      %v731 = vunpack.c.l.b16 %v362
      %v732 = vunpack.c.l.b16 %v363
      %v733 = vpack.c.b16 %v732, %v731
      %v735 = vsel %vm613, %v293, 0
      %v738 = vsel %vm613, %v733, 0
      %740 = vmatpush.bf16.xpose.msra.mxu0 0
      %741 = vmatpush.bf16.xpose.msra.mxu0 0
      %742 = vmatpush.bf16.xpose.msra.mxu0 0
      %743 = vmatpush.bf16.xpose.msra.mxu0 0
      %744 = vmatpush.bf16.xpose.msra.mxu0 0
      %745 = vmatpush.bf16.xpose.msra.mxu0 0
      %746 = vmatpush.bf16.xpose.msra.mxu0 0
      %747 = vmatpush.bf16.xpose.msra.mxu0 %v738
      %748 = vmatmul.bf16.gmra.mxu0 %v735
      %v749 = vpop.f32.mrf.mxu0
      %v750 = vadd.f32 0.0, %v749
      %v751 = vpop.f32.mrf.mxu0
      %752 = vdwg.mxu0
      %v755 = vunpack.c.l.b16 %v364
      %v756 = vunpack.c.l.b16 %v365
      %v757 = vpack.c.b16 %v756, %v755
      %v759 = vsel %vm613, %v294, 0
      %v762 = vsel %vm613, %v757, 0
      %764 = vmatpush.bf16.xpose.msra.mxu0 0
      %765 = vmatpush.bf16.xpose.msra.mxu0 0
      %766 = vmatpush.bf16.xpose.msra.mxu0 0
      %767 = vmatpush.bf16.xpose.msra.mxu0 0
      %768 = vmatpush.bf16.xpose.msra.mxu0 0
      %769 = vmatpush.bf16.xpose.msra.mxu0 0
      %770 = vmatpush.bf16.xpose.msra.mxu0 0
      %771 = vmatpush.bf16.xpose.msra.mxu0 %v762
      %772 = vmatmul.bf16.gmra.mxu0 %v759
      %v773 = vpop.f32.mrf.mxu0
      %v774 = vadd.f32 0.0, %v773
      %v775 = vpop.f32.mrf.mxu0
      %776 = vdwg.mxu0
      %v779 = vunpack.c.l.b16 %v366
      %v780 = vunpack.c.l.b16 %v367
      %v781 = vpack.c.b16 %v780, %v779
      %v783 = vsel %vm613, %v295, 0
      %v786 = vsel %vm613, %v781, 0
      %788 = vmatpush.bf16.xpose.msra.mxu0 0
      %789 = vmatpush.bf16.xpose.msra.mxu0 0
      %790 = vmatpush.bf16.xpose.msra.mxu0 0
      %791 = vmatpush.bf16.xpose.msra.mxu0 0
      %792 = vmatpush.bf16.xpose.msra.mxu0 0
      %793 = vmatpush.bf16.xpose.msra.mxu0 0
      %794 = vmatpush.bf16.xpose.msra.mxu0 0
      %795 = vmatpush.bf16.xpose.msra.mxu0 %v786
      %796 = vmatmul.bf16.gmra.mxu0 %v783
      %v797 = vpop.f32.mrf.mxu0
      %v798 = vadd.f32 0.0, %v797
      %v799 = vpop.f32.mrf.mxu0
      %800 = vdwg.mxu0
      %v803 = vunpack.c.l.b16 %v368
      %v804 = vunpack.c.l.b16 %v369
      %v805 = vpack.c.b16 %v804, %v803
      %v807 = vsel %vm613, %v296, 0
      %v810 = vsel %vm613, %v805, 0
      %812 = vmatpush.bf16.xpose.msra.mxu0 0
      %813 = vmatpush.bf16.xpose.msra.mxu0 0
      %814 = vmatpush.bf16.xpose.msra.mxu0 0
      %815 = vmatpush.bf16.xpose.msra.mxu0 0
      %816 = vmatpush.bf16.xpose.msra.mxu0 0
      %817 = vmatpush.bf16.xpose.msra.mxu0 0
      %818 = vmatpush.bf16.xpose.msra.mxu0 0
      %819 = vmatpush.bf16.xpose.msra.mxu0 %v810
      %820 = vmatmul.bf16.gmra.mxu0 %v807
      %v821 = vpop.f32.mrf.mxu0
      %v822 = vadd.f32 0.0, %v821
      %v823 = vpop.f32.mrf.mxu0
      %824 = vdwg.mxu0
      %v827 = vunpack.c.l.b16 %v370
      %v828 = vunpack.c.l.b16 %v371
      %v829 = vpack.c.b16 %v828, %v827
      %v831 = vsel %vm613, %v297, 0
      %v834 = vsel %vm613, %v829, 0
      %836 = vmatpush.bf16.xpose.msra.mxu0 0
      %837 = vmatpush.bf16.xpose.msra.mxu0 0
      %838 = vmatpush.bf16.xpose.msra.mxu0 0
      %839 = vmatpush.bf16.xpose.msra.mxu0 0
      %840 = vmatpush.bf16.xpose.msra.mxu0 0
      %841 = vmatpush.bf16.xpose.msra.mxu0 0
      %842 = vmatpush.bf16.xpose.msra.mxu0 0
      %843 = vmatpush.bf16.xpose.msra.mxu0 %v834
      %844 = vmatmul.bf16.gmra.mxu0 %v831
      %v845 = vpop.f32.mrf.mxu0
      %v846 = vadd.f32 0.0, %v845
      %v847 = vpop.f32.mrf.mxu0
      %848 = vdwg.mxu0
      %v851 = vunpack.c.l.b16 %v372
      %v852 = vunpack.c.l.b16 %v373
      %v853 = vpack.c.b16 %v852, %v851
      %v855 = vsel %vm613, %v298, 0
      %v858 = vsel %vm613, %v853, 0
      %860 = vmatpush.bf16.xpose.msra.mxu0 0
      %861 = vmatpush.bf16.xpose.msra.mxu0 0
      %862 = vmatpush.bf16.xpose.msra.mxu0 0
      %863 = vmatpush.bf16.xpose.msra.mxu0 0
      %864 = vmatpush.bf16.xpose.msra.mxu0 0
      %865 = vmatpush.bf16.xpose.msra.mxu0 0
      %866 = vmatpush.bf16.xpose.msra.mxu0 0
      %867 = vmatpush.bf16.xpose.msra.mxu0 %v858
      %868 = vmatmul.bf16.gmra.mxu0 %v855
      %v869 = vpop.f32.mrf.mxu0
      %v870 = vadd.f32 0.0, %v869
      %v871 = vpop.f32.mrf.mxu0
      %872 = vdwg.mxu0
      %v875 = vunpack.c.l.b16 %v374
      %v876 = vunpack.c.l.b16 %v375
      %v877 = vpack.c.b16 %v876, %v875
      %v879 = vsel %vm613, %v299, 0
      %v882 = vsel %vm613, %v877, 0
      %884 = vmatpush.bf16.xpose.msra.mxu0 0
      %885 = vmatpush.bf16.xpose.msra.mxu0 0
      %886 = vmatpush.bf16.xpose.msra.mxu0 0
      %887 = vmatpush.bf16.xpose.msra.mxu0 0
      %888 = vmatpush.bf16.xpose.msra.mxu0 0
      %889 = vmatpush.bf16.xpose.msra.mxu0 0
      %890 = vmatpush.bf16.xpose.msra.mxu0 0
      %891 = vmatpush.bf16.xpose.msra.mxu0 %v882
      %892 = vmatmul.bf16.gmra.mxu0 %v879
      %v893 = vpop.f32.mrf.mxu0
      %v894 = vadd.f32 0.0, %v893
      %v895 = vpop.f32.mrf.mxu0
      %896 = vdwg.mxu0
      %v899 = vunpack.c.l.b16 %v376
      %v900 = vunpack.c.l.b16 %v377
      %v901 = vpack.c.b16 %v900, %v899
      %v903 = vsel %vm613, %v300, 0
      %v906 = vsel %vm613, %v901, 0
      %908 = vmatpush.bf16.xpose.msra.mxu0 0
      %909 = vmatpush.bf16.xpose.msra.mxu0 0
      %910 = vmatpush.bf16.xpose.msra.mxu0 0
      %911 = vmatpush.bf16.xpose.msra.mxu0 0
      %912 = vmatpush.bf16.xpose.msra.mxu0 0
      %913 = vmatpush.bf16.xpose.msra.mxu0 0
      %914 = vmatpush.bf16.xpose.msra.mxu0 0
      %915 = vmatpush.bf16.xpose.msra.mxu0 %v906
      %916 = vmatmul.bf16.gmra.mxu0 %v903
      %v917 = vpop.f32.mrf.mxu0
      %v918 = vadd.f32 0.0, %v917
      %v919 = vpop.f32.mrf.mxu0
      %920 = vdwg.mxu0
      %v923 = vunpack.c.l.b16 %v378
      %v924 = vunpack.c.l.b16 %v379
      %v925 = vpack.c.b16 %v924, %v923
      %v927 = vsel %vm613, %v301, 0
      %v930 = vsel %vm613, %v925, 0
      %932 = vmatpush.bf16.xpose.msra.mxu0 0
      %933 = vmatpush.bf16.xpose.msra.mxu0 0
      %934 = vmatpush.bf16.xpose.msra.mxu0 0
      %935 = vmatpush.bf16.xpose.msra.mxu0 0
      %936 = vmatpush.bf16.xpose.msra.mxu0 0
      %937 = vmatpush.bf16.xpose.msra.mxu0 0
      %938 = vmatpush.bf16.xpose.msra.mxu0 0
      %939 = vmatpush.bf16.xpose.msra.mxu0 %v930
      %940 = vmatmul.bf16.gmra.mxu0 %v927
      %v941 = vpop.f32.mrf.mxu0
      %v942 = vadd.f32 0.0, %v941
      %v943 = vpop.f32.mrf.mxu0
      %944 = vdwg.mxu0
      %v947 = vunpack.c.l.b16 %v380
      %v948 = vunpack.c.l.b16 %v381
      %v949 = vpack.c.b16 %v948, %v947
      %v951 = vsel %vm613, %v302, 0
      %v954 = vsel %vm613, %v949, 0
      %956 = vmatpush.bf16.xpose.msra.mxu0 0
      %957 = vmatpush.bf16.xpose.msra.mxu0 0
      %958 = vmatpush.bf16.xpose.msra.mxu0 0
      %959 = vmatpush.bf16.xpose.msra.mxu0 0
      %960 = vmatpush.bf16.xpose.msra.mxu0 0
      %961 = vmatpush.bf16.xpose.msra.mxu0 0
      %962 = vmatpush.bf16.xpose.msra.mxu0 0
      %963 = vmatpush.bf16.xpose.msra.mxu0 %v954
      %964 = vmatmul.bf16.gmra.mxu0 %v951
      %v965 = vpop.f32.mrf.mxu0
      %v966 = vadd.f32 0.0, %v965
      %v967 = vpop.f32.mrf.mxu0
      %968 = vdwg.mxu0
      %v971 = vunpack.c.l.b16 %v382
      %v972 = vunpack.c.l.b16 %v383
      %v973 = vpack.c.b16 %v972, %v971
      %v975 = vsel %vm613, %v303, 0
      %v978 = vsel %vm613, %v973, 0
      %980 = vmatpush.bf16.xpose.msra.mxu0 0
      %981 = vmatpush.bf16.xpose.msra.mxu0 0
      %982 = vmatpush.bf16.xpose.msra.mxu0 0
      %983 = vmatpush.bf16.xpose.msra.mxu0 0
      %984 = vmatpush.bf16.xpose.msra.mxu0 0
      %985 = vmatpush.bf16.xpose.msra.mxu0 0
      %986 = vmatpush.bf16.xpose.msra.mxu0 0
      %987 = vmatpush.bf16.xpose.msra.mxu0 %v978
      %988 = vmatmul.bf16.gmra.mxu0 %v975
      %v989 = vpop.f32.mrf.mxu0
      %v990 = vadd.f32 0.0, %v989
      %v991 = vpop.f32.mrf.mxu0
      %992 = vdwg.mxu0
      %v995 = vunpack.c.l.b16 %v384
      %v996 = vunpack.c.l.b16 %v385
      %v997 = vpack.c.b16 %v996, %v995
      %v999 = vsel %vm613, %v304, 0
      %v1002 = vsel %vm613, %v997, 0
      %1004 = vmatpush.bf16.xpose.msra.mxu0 0
      %1005 = vmatpush.bf16.xpose.msra.mxu0 0
      %1006 = vmatpush.bf16.xpose.msra.mxu0 0
      %1007 = vmatpush.bf16.xpose.msra.mxu0 0
      %1008 = vmatpush.bf16.xpose.msra.mxu0 0
      %1009 = vmatpush.bf16.xpose.msra.mxu0 0
      %1010 = vmatpush.bf16.xpose.msra.mxu0 0
      %1011 = vmatpush.bf16.xpose.msra.mxu0 %v1002
      %1012 = vmatmul.bf16.gmra.mxu0 %v999
      %v1013 = vpop.f32.mrf.mxu0
      %v1014 = vadd.f32 0.0, %v1013
      %v1015 = vpop.f32.mrf.mxu0
      %1016 = vdwg.mxu0
      %v1019 = vunpack.c.l.b16 %v386
      %v1020 = vunpack.c.l.b16 %v387
      %v1021 = vpack.c.b16 %v1020, %v1019
      %v1023 = vsel %vm613, %v305, 0
      %v1026 = vsel %vm613, %v1021, 0
      %1028 = vmatpush.bf16.xpose.msra.mxu0 0
      %1029 = vmatpush.bf16.xpose.msra.mxu0 0
      %1030 = vmatpush.bf16.xpose.msra.mxu0 0
      %1031 = vmatpush.bf16.xpose.msra.mxu0 0
      %1032 = vmatpush.bf16.xpose.msra.mxu0 0
      %1033 = vmatpush.bf16.xpose.msra.mxu0 0
      %1034 = vmatpush.bf16.xpose.msra.mxu0 0
      %1035 = vmatpush.bf16.xpose.msra.mxu0 %v1026
      %1036 = vmatmul.bf16.gmra.mxu0 %v1023
      %v1037 = vpop.f32.mrf.mxu0
      %v1038 = vadd.f32 0.0, %v1037
      %v1039 = vpop.f32.mrf.mxu0
      %1040 = vdwg.mxu0
      %v1043 = vunpack.c.l.b16 %v388
      %v1044 = vunpack.c.l.b16 %v389
      %v1045 = vpack.c.b16 %v1044, %v1043
      %v1047 = vsel %vm613, %v306, 0
      %v1050 = vsel %vm613, %v1045, 0
      %1052 = vmatpush.bf16.xpose.msra.mxu0 0
      %1053 = vmatpush.bf16.xpose.msra.mxu0 0
      %1054 = vmatpush.bf16.xpose.msra.mxu0 0
      %1055 = vmatpush.bf16.xpose.msra.mxu0 0
      %1056 = vmatpush.bf16.xpose.msra.mxu0 0
      %1057 = vmatpush.bf16.xpose.msra.mxu0 0
      %1058 = vmatpush.bf16.xpose.msra.mxu0 0
      %1059 = vmatpush.bf16.xpose.msra.mxu0 %v1050
      %1060 = vmatmul.bf16.gmra.mxu0 %v1047
      %v1061 = vpop.f32.mrf.mxu0
      %v1062 = vadd.f32 0.0, %v1061
      %v1063 = vpop.f32.mrf.mxu0
      %1064 = vdwg.mxu0
      %v1067 = vunpack.c.l.b16 %v390
      %v1068 = vunpack.c.l.b16 %v391
      %v1069 = vpack.c.b16 %v1068, %v1067
      %v1071 = vsel %vm613, %v307, 0
      %v1074 = vsel %vm613, %v1069, 0
      %1076 = vmatpush.bf16.xpose.msra.mxu0 0
      %1077 = vmatpush.bf16.xpose.msra.mxu0 0
      %1078 = vmatpush.bf16.xpose.msra.mxu0 0
      %1079 = vmatpush.bf16.xpose.msra.mxu0 0
      %1080 = vmatpush.bf16.xpose.msra.mxu0 0
      %1081 = vmatpush.bf16.xpose.msra.mxu0 0
      %1082 = vmatpush.bf16.xpose.msra.mxu0 0
      %1083 = vmatpush.bf16.xpose.msra.mxu0 %v1074
      %1084 = vmatmul.bf16.gmra.mxu0 %v1071
      %v1085 = vpop.f32.mrf.mxu0
      %v1086 = vadd.f32 0.0, %v1085
      %v1087 = vpop.f32.mrf.mxu0
      %1088 = vdwg.mxu0
      %v1091 = vunpack.c.l.b16 %v392
      %v1092 = vunpack.c.l.b16 %v393
      %v1093 = vpack.c.b16 %v1092, %v1091
      %v1095 = vsel %vm613, %v308, 0
      %v1098 = vsel %vm613, %v1093, 0
      %1100 = vmatpush.bf16.xpose.msra.mxu0 0
      %1101 = vmatpush.bf16.xpose.msra.mxu0 0
      %1102 = vmatpush.bf16.xpose.msra.mxu0 0
      %1103 = vmatpush.bf16.xpose.msra.mxu0 0
      %1104 = vmatpush.bf16.xpose.msra.mxu0 0
      %1105 = vmatpush.bf16.xpose.msra.mxu0 0
      %1106 = vmatpush.bf16.xpose.msra.mxu0 0
      %1107 = vmatpush.bf16.xpose.msra.mxu0 %v1098
      %1108 = vmatmul.bf16.gmra.mxu0 %v1095
      %v1109 = vpop.f32.mrf.mxu0
      %v1110 = vadd.f32 0.0, %v1109
      %v1111 = vpop.f32.mrf.mxu0
      %1112 = vdwg.mxu0
      %v1115 = vunpack.c.l.b16 %v394
      %v1116 = vunpack.c.l.b16 %v395
      %v1117 = vpack.c.b16 %v1116, %v1115
      %v1119 = vsel %vm613, %v309, 0
      %v1122 = vsel %vm613, %v1117, 0
      %1124 = vmatpush.bf16.xpose.msra.mxu0 0
      %1125 = vmatpush.bf16.xpose.msra.mxu0 0
      %1126 = vmatpush.bf16.xpose.msra.mxu0 0
      %1127 = vmatpush.bf16.xpose.msra.mxu0 0
      %1128 = vmatpush.bf16.xpose.msra.mxu0 0
      %1129 = vmatpush.bf16.xpose.msra.mxu0 0
      %1130 = vmatpush.bf16.xpose.msra.mxu0 0
      %1131 = vmatpush.bf16.xpose.msra.mxu0 %v1122
      %1132 = vmatmul.bf16.gmra.mxu0 %v1119
      %v1133 = vpop.f32.mrf.mxu0
      %v1134 = vadd.f32 0.0, %v1133
      %v1135 = vpop.f32.mrf.mxu0
      %1136 = vdwg.mxu0
      %v1139 = vunpack.c.l.b16 %v396
      %v1140 = vunpack.c.l.b16 %v397
      %v1141 = vpack.c.b16 %v1140, %v1139
      %v1143 = vsel %vm613, %v310, 0
      %v1146 = vsel %vm613, %v1141, 0
      %1148 = vmatpush.bf16.xpose.msra.mxu0 0
      %1149 = vmatpush.bf16.xpose.msra.mxu0 0
      %1150 = vmatpush.bf16.xpose.msra.mxu0 0
      %1151 = vmatpush.bf16.xpose.msra.mxu0 0
      %1152 = vmatpush.bf16.xpose.msra.mxu0 0
      %1153 = vmatpush.bf16.xpose.msra.mxu0 0
      %1154 = vmatpush.bf16.xpose.msra.mxu0 0
      %1155 = vmatpush.bf16.xpose.msra.mxu0 %v1146
      %1156 = vmatmul.bf16.gmra.mxu0 %v1143
      %v1157 = vpop.f32.mrf.mxu0
      %v1158 = vadd.f32 0.0, %v1157
      %v1159 = vpop.f32.mrf.mxu0
      %1160 = vdwg.mxu0
      %v1163 = vunpack.c.l.b16 %v398
      %v1164 = vunpack.c.l.b16 %v399
      %v1165 = vpack.c.b16 %v1164, %v1163
      %v1167 = vsel %vm613, %v311, 0
      %v1170 = vsel %vm613, %v1165, 0
      %1172 = vmatpush.bf16.xpose.msra.mxu0 0
      %1173 = vmatpush.bf16.xpose.msra.mxu0 0
      %1174 = vmatpush.bf16.xpose.msra.mxu0 0
      %1175 = vmatpush.bf16.xpose.msra.mxu0 0
      %1176 = vmatpush.bf16.xpose.msra.mxu0 0
      %1177 = vmatpush.bf16.xpose.msra.mxu0 0
      %1178 = vmatpush.bf16.xpose.msra.mxu0 0
      %1179 = vmatpush.bf16.xpose.msra.mxu0 %v1170
      %1180 = vmatmul.bf16.gmra.mxu0 %v1167
      %v1181 = vpop.f32.mrf.mxu0
      %v1182 = vadd.f32 0.0, %v1181
      %v1183 = vpop.f32.mrf.mxu0
      %1184 = vdwg.mxu0
      %v1187 = vunpack.c.l.b16 %v400
      %v1188 = vunpack.c.l.b16 %v401
      %v1189 = vpack.c.b16 %v1188, %v1187
      %v1191 = vsel %vm613, %v312, 0
      %v1194 = vsel %vm613, %v1189, 0
      %1196 = vmatpush.bf16.xpose.msra.mxu0 0
      %1197 = vmatpush.bf16.xpose.msra.mxu0 0
      %1198 = vmatpush.bf16.xpose.msra.mxu0 0
      %1199 = vmatpush.bf16.xpose.msra.mxu0 0
      %1200 = vmatpush.bf16.xpose.msra.mxu0 0
      %1201 = vmatpush.bf16.xpose.msra.mxu0 0
      %1202 = vmatpush.bf16.xpose.msra.mxu0 0
      %1203 = vmatpush.bf16.xpose.msra.mxu0 %v1194
      %1204 = vmatmul.bf16.gmra.mxu0 %v1191
      %v1205 = vpop.f32.mrf.mxu0
      %v1206 = vadd.f32 0.0, %v1205
      %v1207 = vpop.f32.mrf.mxu0
      %1208 = vdwg.mxu0
      %v1211 = vunpack.c.l.b16 %v402
      %v1212 = vunpack.c.l.b16 %v403
      %v1213 = vpack.c.b16 %v1212, %v1211
      %v1215 = vsel %vm613, %v313, 0
      %v1218 = vsel %vm613, %v1213, 0
      %1220 = vmatpush.bf16.xpose.msra.mxu0 0
      %1221 = vmatpush.bf16.xpose.msra.mxu0 0
      %1222 = vmatpush.bf16.xpose.msra.mxu0 0
      %1223 = vmatpush.bf16.xpose.msra.mxu0 0
      %1224 = vmatpush.bf16.xpose.msra.mxu0 0
      %1225 = vmatpush.bf16.xpose.msra.mxu0 0
      %1226 = vmatpush.bf16.xpose.msra.mxu0 0
      %1227 = vmatpush.bf16.xpose.msra.mxu0 %v1218
      %1228 = vmatmul.bf16.gmra.mxu0 %v1215
      %v1229 = vpop.f32.mrf.mxu0
      %v1230 = vadd.f32 0.0, %v1229
      %v1231 = vpop.f32.mrf.mxu0
      %1232 = vdwg.mxu0
      %v1235 = vunpack.c.l.b16 %v404
      %v1236 = vunpack.c.l.b16 %v405
      %v1237 = vpack.c.b16 %v1236, %v1235
      %v1239 = vsel %vm613, %v314, 0
      %v1242 = vsel %vm613, %v1237, 0
      %1244 = vmatpush.bf16.xpose.msra.mxu0 0
      %1245 = vmatpush.bf16.xpose.msra.mxu0 0
      %1246 = vmatpush.bf16.xpose.msra.mxu0 0
      %1247 = vmatpush.bf16.xpose.msra.mxu0 0
      %1248 = vmatpush.bf16.xpose.msra.mxu0 0
      %1249 = vmatpush.bf16.xpose.msra.mxu0 0
      %1250 = vmatpush.bf16.xpose.msra.mxu0 0
      %1251 = vmatpush.bf16.xpose.msra.mxu0 %v1242
      %1252 = vmatmul.bf16.gmra.mxu0 %v1239
      %v1253 = vpop.f32.mrf.mxu0
      %v1254 = vadd.f32 0.0, %v1253
      %v1255 = vpop.f32.mrf.mxu0
      %1256 = vdwg.mxu0
      %v1259 = vunpack.c.l.b16 %v406
      %v1260 = vunpack.c.l.b16 %v407
      %v1261 = vpack.c.b16 %v1260, %v1259
      %v1263 = vsel %vm613, %v315, 0
      %v1266 = vsel %vm613, %v1261, 0
      %1268 = vmatpush.bf16.xpose.msra.mxu0 0
      %1269 = vmatpush.bf16.xpose.msra.mxu0 0
      %1270 = vmatpush.bf16.xpose.msra.mxu0 0
      %1271 = vmatpush.bf16.xpose.msra.mxu0 0
      %1272 = vmatpush.bf16.xpose.msra.mxu0 0
      %1273 = vmatpush.bf16.xpose.msra.mxu0 0
      %1274 = vmatpush.bf16.xpose.msra.mxu0 0
      %1275 = vmatpush.bf16.xpose.msra.mxu0 %v1266
      %1276 = vmatmul.bf16.gmra.mxu0 %v1263
      %v1277 = vpop.f32.mrf.mxu0
      %v1278 = vadd.f32 0.0, %v1277
      %v1279 = vpop.f32.mrf.mxu0
      %1280 = vdwg.mxu0
      %v1283 = vunpack.c.l.b16 %v408
      %v1284 = vunpack.c.l.b16 %v409
      %v1285 = vpack.c.b16 %v1284, %v1283
      %v1287 = vsel %vm613, %v316, 0
      %v1290 = vsel %vm613, %v1285, 0
      %1292 = vmatpush.bf16.xpose.msra.mxu0 0
      %1293 = vmatpush.bf16.xpose.msra.mxu0 0
      %1294 = vmatpush.bf16.xpose.msra.mxu0 0
      %1295 = vmatpush.bf16.xpose.msra.mxu0 0
      %1296 = vmatpush.bf16.xpose.msra.mxu0 0
      %1297 = vmatpush.bf16.xpose.msra.mxu0 0
      %1298 = vmatpush.bf16.xpose.msra.mxu0 0
      %1299 = vmatpush.bf16.xpose.msra.mxu0 %v1290
      %1300 = vmatmul.bf16.gmra.mxu0 %v1287
      %v1301 = vpop.f32.mrf.mxu0
      %v1302 = vadd.f32 0.0, %v1301
      %v1303 = vpop.f32.mrf.mxu0
      %1304 = vdwg.mxu0
      %v1307 = vunpack.c.l.b16 %v410
      %v1308 = vunpack.c.l.b16 %v411
      %v1309 = vpack.c.b16 %v1308, %v1307
      %v1311 = vsel %vm613, %v317, 0
      %v1314 = vsel %vm613, %v1309, 0
      %1316 = vmatpush.bf16.xpose.msra.mxu0 0
      %1317 = vmatpush.bf16.xpose.msra.mxu0 0
      %1318 = vmatpush.bf16.xpose.msra.mxu0 0
      %1319 = vmatpush.bf16.xpose.msra.mxu0 0
      %1320 = vmatpush.bf16.xpose.msra.mxu0 0
      %1321 = vmatpush.bf16.xpose.msra.mxu0 0
      %1322 = vmatpush.bf16.xpose.msra.mxu0 0
      %1323 = vmatpush.bf16.xpose.msra.mxu0 %v1314
      %1324 = vmatmul.bf16.gmra.mxu0 %v1311
      %v1325 = vpop.f32.mrf.mxu0
      %v1326 = vadd.f32 0.0, %v1325
      %v1327 = vpop.f32.mrf.mxu0
      %1328 = vdwg.mxu0
      %v1331 = vunpack.c.l.b16 %v412
      %v1332 = vunpack.c.l.b16 %v413
      %v1333 = vpack.c.b16 %v1332, %v1331
      %v1335 = vsel %vm613, %v318, 0
      %v1338 = vsel %vm613, %v1333, 0
      %1340 = vmatpush.bf16.xpose.msra.mxu0 0
      %1341 = vmatpush.bf16.xpose.msra.mxu0 0
      %1342 = vmatpush.bf16.xpose.msra.mxu0 0
      %1343 = vmatpush.bf16.xpose.msra.mxu0 0
      %1344 = vmatpush.bf16.xpose.msra.mxu0 0
      %1345 = vmatpush.bf16.xpose.msra.mxu0 0
      %1346 = vmatpush.bf16.xpose.msra.mxu0 0
      %1347 = vmatpush.bf16.xpose.msra.mxu0 %v1338
      %1348 = vmatmul.bf16.gmra.mxu0 %v1335
      %v1349 = vpop.f32.mrf.mxu0
      %v1350 = vadd.f32 0.0, %v1349
      %v1351 = vpop.f32.mrf.mxu0
      %1352 = vdwg.mxu0
      %v1355 = vunpack.c.l.b16 %v414
      %v1356 = vunpack.c.l.b16 %v415
      %v1357 = vpack.c.b16 %v1356, %v1355
      %v1359 = vsel %vm613, %v319, 0
      %v1362 = vsel %vm613, %v1357, 0
      %1364 = vmatpush.bf16.xpose.msra.mxu0 0
      %1365 = vmatpush.bf16.xpose.msra.mxu0 0
      %1366 = vmatpush.bf16.xpose.msra.mxu0 0
      %1367 = vmatpush.bf16.xpose.msra.mxu0 0
      %1368 = vmatpush.bf16.xpose.msra.mxu0 0
      %1369 = vmatpush.bf16.xpose.msra.mxu0 0
      %1370 = vmatpush.bf16.xpose.msra.mxu0 0
      %1371 = vmatpush.bf16.xpose.msra.mxu0 %v1362
      %1372 = vmatmul.bf16.gmra.mxu0 %v1359
      %v1373 = vpop.f32.mrf.mxu0
      %v1374 = vadd.f32 0.0, %v1373
      %v1375 = vpop.f32.mrf.mxu0
      %1376 = vdwg.mxu0
      %v1379 = vunpack.c.l.b16 %v416
      %v1380 = vunpack.c.l.b16 %v417
      %v1381 = vpack.c.b16 %v1380, %v1379
      %v1383 = vsel %vm613, %v320, 0
      %v1386 = vsel %vm613, %v1381, 0
      %1388 = vmatpush.bf16.xpose.msra.mxu0 0
      %1389 = vmatpush.bf16.xpose.msra.mxu0 0
      %1390 = vmatpush.bf16.xpose.msra.mxu0 0
      %1391 = vmatpush.bf16.xpose.msra.mxu0 0
      %1392 = vmatpush.bf16.xpose.msra.mxu0 0
      %1393 = vmatpush.bf16.xpose.msra.mxu0 0
      %1394 = vmatpush.bf16.xpose.msra.mxu0 0
      %1395 = vmatpush.bf16.xpose.msra.mxu0 %v1386
      %1396 = vmatmul.bf16.gmra.mxu0 %v1383
      %v1397 = vpop.f32.mrf.mxu0
      %v1398 = vadd.f32 0.0, %v1397
      %v1399 = vpop.f32.mrf.mxu0
      %1400 = vdwg.mxu0
      %v1403 = vunpack.c.l.b16 %v418
      %v1404 = vunpack.c.l.b16 %v419
      %v1405 = vpack.c.b16 %v1404, %v1403
      %v1407 = vsel %vm613, %v321, 0
      %v1410 = vsel %vm613, %v1405, 0
      %1412 = vmatpush.bf16.xpose.msra.mxu0 0
      %1413 = vmatpush.bf16.xpose.msra.mxu0 0
      %1414 = vmatpush.bf16.xpose.msra.mxu0 0
      %1415 = vmatpush.bf16.xpose.msra.mxu0 0
      %1416 = vmatpush.bf16.xpose.msra.mxu0 0
      %1417 = vmatpush.bf16.xpose.msra.mxu0 0
      %1418 = vmatpush.bf16.xpose.msra.mxu0 0
      %1419 = vmatpush.bf16.xpose.msra.mxu0 %v1410
      %1420 = vmatmul.bf16.gmra.mxu0 %v1407
      %v1421 = vpop.f32.mrf.mxu0
      %v1422 = vadd.f32 0.0, %v1421
      %v1423 = vpop.f32.mrf.mxu0
      %1424 = vdwg.mxu0
      %v1427 = vunpack.c.l.b16 %v420
      %v1428 = vunpack.c.l.b16 %v421
      %v1429 = vpack.c.b16 %v1428, %v1427
      %v1431 = vsel %vm613, %v322, 0
      %v1434 = vsel %vm613, %v1429, 0
      %1436 = vmatpush.bf16.xpose.msra.mxu0 0
      %1437 = vmatpush.bf16.xpose.msra.mxu0 0
      %1438 = vmatpush.bf16.xpose.msra.mxu0 0
      %1439 = vmatpush.bf16.xpose.msra.mxu0 0
      %1440 = vmatpush.bf16.xpose.msra.mxu0 0
      %1441 = vmatpush.bf16.xpose.msra.mxu0 0
      %1442 = vmatpush.bf16.xpose.msra.mxu0 0
      %1443 = vmatpush.bf16.xpose.msra.mxu0 %v1434
      %1444 = vmatmul.bf16.gmra.mxu0 %v1431
      %v1445 = vpop.f32.mrf.mxu0
      %v1446 = vadd.f32 0.0, %v1445
      %v1447 = vpop.f32.mrf.mxu0
      %1448 = vdwg.mxu0
      %v1451 = vunpack.c.l.b16 %v422
      %v1452 = vunpack.c.l.b16 %v423
      %v1453 = vpack.c.b16 %v1452, %v1451
      %v1455 = vsel %vm613, %v323, 0
      %v1458 = vsel %vm613, %v1453, 0
      %1460 = vmatpush.bf16.xpose.msra.mxu0 0
      %1461 = vmatpush.bf16.xpose.msra.mxu0 0
      %1462 = vmatpush.bf16.xpose.msra.mxu0 0
      %1463 = vmatpush.bf16.xpose.msra.mxu0 0
      %1464 = vmatpush.bf16.xpose.msra.mxu0 0
      %1465 = vmatpush.bf16.xpose.msra.mxu0 0
      %1466 = vmatpush.bf16.xpose.msra.mxu0 0
      %1467 = vmatpush.bf16.xpose.msra.mxu0 %v1458
      %1468 = vmatmul.bf16.gmra.mxu0 %v1455
      %v1469 = vpop.f32.mrf.mxu0
      %v1470 = vadd.f32 0.0, %v1469
      %v1471 = vpop.f32.mrf.mxu0
      %1472 = vdwg.mxu0
      %v1475 = vunpack.c.l.b16 %v424
      %v1476 = vunpack.c.l.b16 %v425
      %v1477 = vpack.c.b16 %v1476, %v1475
      %v1479 = vsel %vm613, %v324, 0
      %v1482 = vsel %vm613, %v1477, 0
      %1484 = vmatpush.bf16.xpose.msra.mxu0 0
      %1485 = vmatpush.bf16.xpose.msra.mxu0 0
      %1486 = vmatpush.bf16.xpose.msra.mxu0 0
      %1487 = vmatpush.bf16.xpose.msra.mxu0 0
      %1488 = vmatpush.bf16.xpose.msra.mxu0 0
      %1489 = vmatpush.bf16.xpose.msra.mxu0 0
      %1490 = vmatpush.bf16.xpose.msra.mxu0 0
      %1491 = vmatpush.bf16.xpose.msra.mxu0 %v1482
      %1492 = vmatmul.bf16.gmra.mxu0 %v1479
      %v1493 = vpop.f32.mrf.mxu0
      %v1494 = vadd.f32 0.0, %v1493
      %v1495 = vpop.f32.mrf.mxu0
      %1496 = vdwg.mxu0
      %v1499 = vunpack.c.l.b16 %v426
      %v1500 = vunpack.c.l.b16 %v427
      %v1501 = vpack.c.b16 %v1500, %v1499
      %v1503 = vsel %vm613, %v325, 0
      %v1506 = vsel %vm613, %v1501, 0
      %1508 = vmatpush.bf16.xpose.msra.mxu0 0
      %1509 = vmatpush.bf16.xpose.msra.mxu0 0
      %1510 = vmatpush.bf16.xpose.msra.mxu0 0
      %1511 = vmatpush.bf16.xpose.msra.mxu0 0
      %1512 = vmatpush.bf16.xpose.msra.mxu0 0
      %1513 = vmatpush.bf16.xpose.msra.mxu0 0
      %1514 = vmatpush.bf16.xpose.msra.mxu0 0
      %1515 = vmatpush.bf16.xpose.msra.mxu0 %v1506
      %1516 = vmatmul.bf16.gmra.mxu0 %v1503
      %v1517 = vpop.f32.mrf.mxu0
      %v1518 = vadd.f32 0.0, %v1517
      %v1519 = vpop.f32.mrf.mxu0
      %1520 = vdwg.mxu0
      %v1523 = vunpack.c.l.b16 %v428
      %v1524 = vunpack.c.l.b16 %v429
      %v1525 = vpack.c.b16 %v1524, %v1523
      %v1527 = vsel %vm613, %v326, 0
      %v1530 = vsel %vm613, %v1525, 0
      %1532 = vmatpush.bf16.xpose.msra.mxu0 0
      %1533 = vmatpush.bf16.xpose.msra.mxu0 0
      %1534 = vmatpush.bf16.xpose.msra.mxu0 0
      %1535 = vmatpush.bf16.xpose.msra.mxu0 0
      %1536 = vmatpush.bf16.xpose.msra.mxu0 0
      %1537 = vmatpush.bf16.xpose.msra.mxu0 0
      %1538 = vmatpush.bf16.xpose.msra.mxu0 0
      %1539 = vmatpush.bf16.xpose.msra.mxu0 %v1530
      %1540 = vmatmul.bf16.gmra.mxu0 %v1527
      %v1541 = vpop.f32.mrf.mxu0
      %v1542 = vadd.f32 0.0, %v1541
      %v1543 = vpop.f32.mrf.mxu0
      %1544 = vdwg.mxu0
      %v1547 = vunpack.c.l.b16 %v430
      %v1548 = vunpack.c.l.b16 %v431
      %v1549 = vpack.c.b16 %v1548, %v1547
      %v1551 = vsel %vm613, %v327, 0
      %v1554 = vsel %vm613, %v1549, 0
      %1556 = vmatpush.bf16.xpose.msra.mxu0 0
      %1557 = vmatpush.bf16.xpose.msra.mxu0 0
      %1558 = vmatpush.bf16.xpose.msra.mxu0 0
      %1559 = vmatpush.bf16.xpose.msra.mxu0 0
      %1560 = vmatpush.bf16.xpose.msra.mxu0 0
      %1561 = vmatpush.bf16.xpose.msra.mxu0 0
      %1562 = vmatpush.bf16.xpose.msra.mxu0 0
      %1563 = vmatpush.bf16.xpose.msra.mxu0 %v1554
      %1564 = vmatmul.bf16.gmra.mxu0 %v1551
      %v1565 = vpop.f32.mrf.mxu0
      %v1566 = vadd.f32 0.0, %v1565
      %v1567 = vpop.f32.mrf.mxu0
      %1568 = vdwg.mxu0
      %v1571 = vunpack.c.l.b16 %v432
      %v1572 = vunpack.c.l.b16 %v433
      %v1573 = vpack.c.b16 %v1572, %v1571
      %v1575 = vsel %vm613, %v328, 0
      %v1578 = vsel %vm613, %v1573, 0
      %1580 = vmatpush.bf16.xpose.msra.mxu0 0
      %1581 = vmatpush.bf16.xpose.msra.mxu0 0
      %1582 = vmatpush.bf16.xpose.msra.mxu0 0
      %1583 = vmatpush.bf16.xpose.msra.mxu0 0
      %1584 = vmatpush.bf16.xpose.msra.mxu0 0
      %1585 = vmatpush.bf16.xpose.msra.mxu0 0
      %1586 = vmatpush.bf16.xpose.msra.mxu0 0
      %1587 = vmatpush.bf16.xpose.msra.mxu0 %v1578
      %1588 = vmatmul.bf16.gmra.mxu0 %v1575
      %v1589 = vpop.f32.mrf.mxu0
      %v1590 = vadd.f32 0.0, %v1589
      %v1591 = vpop.f32.mrf.mxu0
      %1592 = vdwg.mxu0
      %v1595 = vunpack.c.l.b16 %v434
      %v1596 = vunpack.c.l.b16 %v435
      %v1597 = vpack.c.b16 %v1596, %v1595
      %v1599 = vsel %vm613, %v329, 0
      %v1602 = vsel %vm613, %v1597, 0
      %1604 = vmatpush.bf16.xpose.msra.mxu0 0
      %1605 = vmatpush.bf16.xpose.msra.mxu0 0
      %1606 = vmatpush.bf16.xpose.msra.mxu0 0
      %1607 = vmatpush.bf16.xpose.msra.mxu0 0
      %1608 = vmatpush.bf16.xpose.msra.mxu0 0
      %1609 = vmatpush.bf16.xpose.msra.mxu0 0
      %1610 = vmatpush.bf16.xpose.msra.mxu0 0
      %1611 = vmatpush.bf16.xpose.msra.mxu0 %v1602
      %1612 = vmatmul.bf16.gmra.mxu0 %v1599
      %v1613 = vpop.f32.mrf.mxu0
      %v1614 = vadd.f32 0.0, %v1613
      %v1615 = vpop.f32.mrf.mxu0
      %1616 = vdwg.mxu0
      %v1619 = vunpack.c.l.b16 %v436
      %v1620 = vunpack.c.l.b16 %v437
      %v1621 = vpack.c.b16 %v1620, %v1619
      %v1623 = vsel %vm613, %v330, 0
      %v1626 = vsel %vm613, %v1621, 0
      %1628 = vmatpush.bf16.xpose.msra.mxu0 0
      %1629 = vmatpush.bf16.xpose.msra.mxu0 0
      %1630 = vmatpush.bf16.xpose.msra.mxu0 0
      %1631 = vmatpush.bf16.xpose.msra.mxu0 0
      %1632 = vmatpush.bf16.xpose.msra.mxu0 0
      %1633 = vmatpush.bf16.xpose.msra.mxu0 0
      %1634 = vmatpush.bf16.xpose.msra.mxu0 0
      %1635 = vmatpush.bf16.xpose.msra.mxu0 %v1626
      %1636 = vmatmul.bf16.gmra.mxu0 %v1623
      %v1637 = vpop.f32.mrf.mxu0
      %v1638 = vadd.f32 0.0, %v1637
      %v1639 = vpop.f32.mrf.mxu0
      %1640 = vdwg.mxu0
      %v1643 = vunpack.c.l.b16 %v438
      %v1644 = vunpack.c.l.b16 %v439
      %v1645 = vpack.c.b16 %v1644, %v1643
      %v1647 = vsel %vm613, %v331, 0
      %v1650 = vsel %vm613, %v1645, 0
      %1652 = vmatpush.bf16.xpose.msra.mxu0 0
      %1653 = vmatpush.bf16.xpose.msra.mxu0 0
      %1654 = vmatpush.bf16.xpose.msra.mxu0 0
      %1655 = vmatpush.bf16.xpose.msra.mxu0 0
      %1656 = vmatpush.bf16.xpose.msra.mxu0 0
      %1657 = vmatpush.bf16.xpose.msra.mxu0 0
      %1658 = vmatpush.bf16.xpose.msra.mxu0 0
      %1659 = vmatpush.bf16.xpose.msra.mxu0 %v1650
      %1660 = vmatmul.bf16.gmra.mxu0 %v1647
      %v1661 = vpop.f32.mrf.mxu0
      %v1662 = vadd.f32 0.0, %v1661
      %v1663 = vpop.f32.mrf.mxu0
      %1664 = vdwg.mxu0
      %v1667 = vunpack.c.l.b16 %v440
      %v1668 = vunpack.c.l.b16 %v441
      %v1669 = vpack.c.b16 %v1668, %v1667
      %v1671 = vsel %vm613, %v332, 0
      %v1674 = vsel %vm613, %v1669, 0
      %1676 = vmatpush.bf16.xpose.msra.mxu0 0
      %1677 = vmatpush.bf16.xpose.msra.mxu0 0
      %1678 = vmatpush.bf16.xpose.msra.mxu0 0
      %1679 = vmatpush.bf16.xpose.msra.mxu0 0
      %1680 = vmatpush.bf16.xpose.msra.mxu0 0
      %1681 = vmatpush.bf16.xpose.msra.mxu0 0
      %1682 = vmatpush.bf16.xpose.msra.mxu0 0
      %1683 = vmatpush.bf16.xpose.msra.mxu0 %v1674
      %1684 = vmatmul.bf16.gmra.mxu0 %v1671
      %v1685 = vpop.f32.mrf.mxu0
      %v1686 = vadd.f32 0.0, %v1685
      %v1687 = vpop.f32.mrf.mxu0
      %1688 = vdwg.mxu0
      %v1691 = vunpack.c.l.b16 %v442
      %v1692 = vunpack.c.l.b16 %v443
      %v1693 = vpack.c.b16 %v1692, %v1691
      %v1695 = vsel %vm613, %v333, 0
      %v1698 = vsel %vm613, %v1693, 0
      %1700 = vmatpush.bf16.xpose.msra.mxu0 0
      %1701 = vmatpush.bf16.xpose.msra.mxu0 0
      %1702 = vmatpush.bf16.xpose.msra.mxu0 0
      %1703 = vmatpush.bf16.xpose.msra.mxu0 0
      %1704 = vmatpush.bf16.xpose.msra.mxu0 0
      %1705 = vmatpush.bf16.xpose.msra.mxu0 0
      %1706 = vmatpush.bf16.xpose.msra.mxu0 0
      %1707 = vmatpush.bf16.xpose.msra.mxu0 %v1698
      %1708 = vmatmul.bf16.gmra.mxu0 %v1695
      %v1709 = vpop.f32.mrf.mxu0
      %v1710 = vadd.f32 0.0, %v1709
      %v1711 = vpop.f32.mrf.mxu0
      %1712 = vdwg.mxu0
      %v1715 = vunpack.c.l.b16 %v444
      %v1716 = vunpack.c.l.b16 %v445
      %v1717 = vpack.c.b16 %v1716, %v1715
      %v1719 = vsel %vm613, %v334, 0
      %v1722 = vsel %vm613, %v1717, 0
      %1724 = vmatpush.bf16.xpose.msra.mxu0 0
      %1725 = vmatpush.bf16.xpose.msra.mxu0 0
      %1726 = vmatpush.bf16.xpose.msra.mxu0 0
      %1727 = vmatpush.bf16.xpose.msra.mxu0 0
      %1728 = vmatpush.bf16.xpose.msra.mxu0 0
      %1729 = vmatpush.bf16.xpose.msra.mxu0 0
      %1730 = vmatpush.bf16.xpose.msra.mxu0 0
      %1731 = vmatpush.bf16.xpose.msra.mxu0 %v1722
      %1732 = vmatmul.bf16.gmra.mxu0 %v1719
      %v1733 = vpop.f32.mrf.mxu0
      %v1734 = vadd.f32 0.0, %v1733
      %v1735 = vpop.f32.mrf.mxu0
      %1736 = vdwg.mxu0
      %v1739 = vunpack.c.l.b16 %v446
      %v1740 = vunpack.c.l.b16 %v447
      %v1741 = vpack.c.b16 %v1740, %v1739
      %v1743 = vsel %vm613, %v335, 0
      %v1746 = vsel %vm613, %v1741, 0
      %1748 = vmatpush.bf16.xpose.msra.mxu0 0
      %1749 = vmatpush.bf16.xpose.msra.mxu0 0
      %1750 = vmatpush.bf16.xpose.msra.mxu0 0
      %1751 = vmatpush.bf16.xpose.msra.mxu0 0
      %1752 = vmatpush.bf16.xpose.msra.mxu0 0
      %1753 = vmatpush.bf16.xpose.msra.mxu0 0
      %1754 = vmatpush.bf16.xpose.msra.mxu0 0
      %1755 = vmatpush.bf16.xpose.msra.mxu0 %v1746
      %1756 = vmatmul.bf16.gmra.mxu0 %v1743
      %v1757 = vpop.f32.mrf.mxu0
      %v1758 = vadd.f32 0.0, %v1757
      %v1759 = vpop.f32.mrf.mxu0
      %1760 = vdwg.mxu0
      %v1763 = vunpack.c.l.b16 %v448
      %v1764 = vunpack.c.l.b16 %v449
      %v1765 = vpack.c.b16 %v1764, %v1763
      %v1767 = vsel %vm613, %v336, 0
      %v1770 = vsel %vm613, %v1765, 0
      %1772 = vmatpush.bf16.xpose.msra.mxu0 0
      %1773 = vmatpush.bf16.xpose.msra.mxu0 0
      %1774 = vmatpush.bf16.xpose.msra.mxu0 0
      %1775 = vmatpush.bf16.xpose.msra.mxu0 0
      %1776 = vmatpush.bf16.xpose.msra.mxu0 0
      %1777 = vmatpush.bf16.xpose.msra.mxu0 0
      %1778 = vmatpush.bf16.xpose.msra.mxu0 0
      %1779 = vmatpush.bf16.xpose.msra.mxu0 %v1770
      %1780 = vmatmul.bf16.gmra.mxu0 %v1767
      %v1781 = vpop.f32.mrf.mxu0
      %v1782 = vadd.f32 0.0, %v1781
      %v1783 = vpop.f32.mrf.mxu0
      %1784 = vdwg.mxu0
      %v1787 = vunpack.c.l.b16 %v450
      %v1788 = vunpack.c.l.b16 %v451
      %v1789 = vpack.c.b16 %v1788, %v1787
      %v1791 = vsel %vm613, %v337, 0
      %v1794 = vsel %vm613, %v1789, 0
      %1796 = vmatpush.bf16.xpose.msra.mxu0 0
      %1797 = vmatpush.bf16.xpose.msra.mxu0 0
      %1798 = vmatpush.bf16.xpose.msra.mxu0 0
      %1799 = vmatpush.bf16.xpose.msra.mxu0 0
      %1800 = vmatpush.bf16.xpose.msra.mxu0 0
      %1801 = vmatpush.bf16.xpose.msra.mxu0 0
      %1802 = vmatpush.bf16.xpose.msra.mxu0 0
      %1803 = vmatpush.bf16.xpose.msra.mxu0 %v1794
      %1804 = vmatmul.bf16.gmra.mxu0 %v1791
      %v1805 = vpop.f32.mrf.mxu0
      %v1806 = vadd.f32 0.0, %v1805
      %v1807 = vpop.f32.mrf.mxu0
      %1808 = vdwg.mxu0
      %v1811 = vunpack.c.l.b16 %v452
      %v1812 = vunpack.c.l.b16 %v453
      %v1813 = vpack.c.b16 %v1812, %v1811
      %v1815 = vsel %vm613, %v338, 0
      %v1818 = vsel %vm613, %v1813, 0
      %1820 = vmatpush.bf16.xpose.msra.mxu0 0
      %1821 = vmatpush.bf16.xpose.msra.mxu0 0
      %1822 = vmatpush.bf16.xpose.msra.mxu0 0
      %1823 = vmatpush.bf16.xpose.msra.mxu0 0
      %1824 = vmatpush.bf16.xpose.msra.mxu0 0
      %1825 = vmatpush.bf16.xpose.msra.mxu0 0
      %1826 = vmatpush.bf16.xpose.msra.mxu0 0
      %1827 = vmatpush.bf16.xpose.msra.mxu0 %v1818
      %1828 = vmatmul.bf16.gmra.mxu0 %v1815
      %v1829 = vpop.f32.mrf.mxu0
      %v1830 = vadd.f32 0.0, %v1829
      %v1831 = vpop.f32.mrf.mxu0
      %1832 = vdwg.mxu0
      %v1835 = vunpack.c.l.b16 %v454
      %v1836 = vunpack.c.l.b16 %v455
      %v1837 = vpack.c.b16 %v1836, %v1835
      %v1839 = vsel %vm613, %v339, 0
      %v1842 = vsel %vm613, %v1837, 0
      %1844 = vmatpush.bf16.xpose.msra.mxu0 0
      %1845 = vmatpush.bf16.xpose.msra.mxu0 0
      %1846 = vmatpush.bf16.xpose.msra.mxu0 0
      %1847 = vmatpush.bf16.xpose.msra.mxu0 0
      %1848 = vmatpush.bf16.xpose.msra.mxu0 0
      %1849 = vmatpush.bf16.xpose.msra.mxu0 0
      %1850 = vmatpush.bf16.xpose.msra.mxu0 0
      %1851 = vmatpush.bf16.xpose.msra.mxu0 %v1842
      %1852 = vmatmul.bf16.gmra.mxu0 %v1839
      %v1853 = vpop.f32.mrf.mxu0
      %v1854 = vadd.f32 0.0, %v1853
      %v1855 = vpop.f32.mrf.mxu0
      %1856 = vdwg.mxu0
      %v1859 = vunpack.c.l.b16 %v456
      %v1860 = vunpack.c.l.b16 %v457
      %v1861 = vpack.c.b16 %v1860, %v1859
      %v1863 = vsel %vm613, %v340, 0
      %v1866 = vsel %vm613, %v1861, 0
      %1868 = vmatpush.bf16.xpose.msra.mxu0 0
      %1869 = vmatpush.bf16.xpose.msra.mxu0 0
      %1870 = vmatpush.bf16.xpose.msra.mxu0 0
      %1871 = vmatpush.bf16.xpose.msra.mxu0 0
      %1872 = vmatpush.bf16.xpose.msra.mxu0 0
      %1873 = vmatpush.bf16.xpose.msra.mxu0 0
      %1874 = vmatpush.bf16.xpose.msra.mxu0 0
      %1875 = vmatpush.bf16.xpose.msra.mxu0 %v1866
      %1876 = vmatmul.bf16.gmra.mxu0 %v1863
      %v1877 = vpop.f32.mrf.mxu0
      %v1878 = vadd.f32 0.0, %v1877
      %v1879 = vpop.f32.mrf.mxu0
      %1880 = vdwg.mxu0
      %v1883 = vunpack.c.l.b16 %v458
      %v1884 = vunpack.c.l.b16 %v459
      %v1885 = vpack.c.b16 %v1884, %v1883
      %v1887 = vsel %vm613, %v341, 0
      %v1890 = vsel %vm613, %v1885, 0
      %1892 = vmatpush.bf16.xpose.msra.mxu0 0
      %1893 = vmatpush.bf16.xpose.msra.mxu0 0
      %1894 = vmatpush.bf16.xpose.msra.mxu0 0
      %1895 = vmatpush.bf16.xpose.msra.mxu0 0
      %1896 = vmatpush.bf16.xpose.msra.mxu0 0
      %1897 = vmatpush.bf16.xpose.msra.mxu0 0
      %1898 = vmatpush.bf16.xpose.msra.mxu0 0
      %1899 = vmatpush.bf16.xpose.msra.mxu0 %v1890
      %1900 = vmatmul.bf16.gmra.mxu0 %v1887
      %v1901 = vpop.f32.mrf.mxu0
      %v1902 = vadd.f32 0.0, %v1901
      %v1903 = vpop.f32.mrf.mxu0
      %1904 = vdwg.mxu0
      %v1907 = vunpack.c.l.b16 %v460
      %v1908 = vunpack.c.l.b16 %v461
      %v1909 = vpack.c.b16 %v1908, %v1907
      %v1911 = vsel %vm613, %v342, 0
      %v1914 = vsel %vm613, %v1909, 0
      %1916 = vmatpush.bf16.xpose.msra.mxu0 0
      %1917 = vmatpush.bf16.xpose.msra.mxu0 0
      %1918 = vmatpush.bf16.xpose.msra.mxu0 0
      %1919 = vmatpush.bf16.xpose.msra.mxu0 0
      %1920 = vmatpush.bf16.xpose.msra.mxu0 0
      %1921 = vmatpush.bf16.xpose.msra.mxu0 0
      %1922 = vmatpush.bf16.xpose.msra.mxu0 0
      %1923 = vmatpush.bf16.xpose.msra.mxu0 %v1914
      %1924 = vmatmul.bf16.gmra.mxu0 %v1911
      %v1925 = vpop.f32.mrf.mxu0
      %v1926 = vadd.f32 0.0, %v1925
      %v1927 = vpop.f32.mrf.mxu0
      %1928 = vdwg.mxu0
      %v1931 = vunpack.c.l.b16 %v462
      %v1932 = vunpack.c.l.b16 %v463
      %v1933 = vpack.c.b16 %v1932, %v1931
      %v1935 = vsel %vm613, %v343, 0
      %v1938 = vsel %vm613, %v1933, 0
      %1940 = vmatpush.bf16.xpose.msra.mxu0 0
      %1941 = vmatpush.bf16.xpose.msra.mxu0 0
      %1942 = vmatpush.bf16.xpose.msra.mxu0 0
      %1943 = vmatpush.bf16.xpose.msra.mxu0 0
      %1944 = vmatpush.bf16.xpose.msra.mxu0 0
      %1945 = vmatpush.bf16.xpose.msra.mxu0 0
      %1946 = vmatpush.bf16.xpose.msra.mxu0 0
      %1947 = vmatpush.bf16.xpose.msra.mxu0 %v1938
      %1948 = vmatmul.bf16.gmra.mxu0 %v1935
      %v1949 = vpop.f32.mrf.mxu0
      %v1950 = vadd.f32 0.0, %v1949
      %v1951 = vpop.f32.mrf.mxu0
      %1952 = vdwg.mxu0
      %v1955 = vunpack.c.l.b16 %v464
      %v1956 = vunpack.c.l.b16 %v465
      %v1957 = vpack.c.b16 %v1956, %v1955
      %v1959 = vsel %vm613, %v344, 0
      %v1962 = vsel %vm613, %v1957, 0
      %1964 = vmatpush.bf16.xpose.msra.mxu0 0
      %1965 = vmatpush.bf16.xpose.msra.mxu0 0
      %1966 = vmatpush.bf16.xpose.msra.mxu0 0
      %1967 = vmatpush.bf16.xpose.msra.mxu0 0
      %1968 = vmatpush.bf16.xpose.msra.mxu0 0
      %1969 = vmatpush.bf16.xpose.msra.mxu0 0
      %1970 = vmatpush.bf16.xpose.msra.mxu0 0
      %1971 = vmatpush.bf16.xpose.msra.mxu0 %v1962
      %1972 = vmatmul.bf16.gmra.mxu0 %v1959
      %v1973 = vpop.f32.mrf.mxu0
      %v1974 = vadd.f32 0.0, %v1973
      %v1975 = vpop.f32.mrf.mxu0
      %1976 = vdwg.mxu0
      %v1979 = vunpack.c.l.b16 %v466
      %v1980 = vunpack.c.l.b16 %v467
      %v1981 = vpack.c.b16 %v1980, %v1979
      %v1983 = vsel %vm613, %v345, 0
      %v1986 = vsel %vm613, %v1981, 0
      %1988 = vmatpush.bf16.xpose.msra.mxu0 0
      %1989 = vmatpush.bf16.xpose.msra.mxu0 0
      %1990 = vmatpush.bf16.xpose.msra.mxu0 0
      %1991 = vmatpush.bf16.xpose.msra.mxu0 0
      %1992 = vmatpush.bf16.xpose.msra.mxu0 0
      %1993 = vmatpush.bf16.xpose.msra.mxu0 0
      %1994 = vmatpush.bf16.xpose.msra.mxu0 0
      %1995 = vmatpush.bf16.xpose.msra.mxu0 %v1986
      %1996 = vmatmul.bf16.gmra.mxu0 %v1983
      %v1997 = vpop.f32.mrf.mxu0
      %v1998 = vadd.f32 0.0, %v1997
      %v1999 = vpop.f32.mrf.mxu0
      %2000 = vdwg.mxu0
      %v2003 = vunpack.c.l.b16 %v468
      %v2004 = vunpack.c.l.b16 %v469
      %v2005 = vpack.c.b16 %v2004, %v2003
      %v2007 = vsel %vm613, %v346, 0
      %v2010 = vsel %vm613, %v2005, 0
      %2012 = vmatpush.bf16.xpose.msra.mxu0 0
      %2013 = vmatpush.bf16.xpose.msra.mxu0 0
      %2014 = vmatpush.bf16.xpose.msra.mxu0 0
      %2015 = vmatpush.bf16.xpose.msra.mxu0 0
      %2016 = vmatpush.bf16.xpose.msra.mxu0 0
      %2017 = vmatpush.bf16.xpose.msra.mxu0 0
      %2018 = vmatpush.bf16.xpose.msra.mxu0 0
      %2019 = vmatpush.bf16.xpose.msra.mxu0 %v2010
      %2020 = vmatmul.bf16.gmra.mxu0 %v2007
      %v2021 = vpop.f32.mrf.mxu0
      %v2022 = vadd.f32 0.0, %v2021
      %v2023 = vpop.f32.mrf.mxu0
      %2024 = vdwg.mxu0
      %v2027 = vunpack.c.l.b16 %v470
      %v2028 = vunpack.c.l.b16 %v471
      %v2029 = vpack.c.b16 %v2028, %v2027
      %v2031 = vsel %vm613, %v347, 0
      %v2034 = vsel %vm613, %v2029, 0
      %2036 = vmatpush.bf16.xpose.msra.mxu0 0
      %2037 = vmatpush.bf16.xpose.msra.mxu0 0
      %2038 = vmatpush.bf16.xpose.msra.mxu0 0
      %2039 = vmatpush.bf16.xpose.msra.mxu0 0
      %2040 = vmatpush.bf16.xpose.msra.mxu0 0
      %2041 = vmatpush.bf16.xpose.msra.mxu0 0
      %2042 = vmatpush.bf16.xpose.msra.mxu0 0
      %2043 = vmatpush.bf16.xpose.msra.mxu0 %v2034
      %2044 = vmatmul.bf16.gmra.mxu0 %v2031
      %v2045 = vpop.f32.mrf.mxu0
      %v2046 = vadd.f32 0.0, %v2045
      %v2047 = vpop.f32.mrf.mxu0
      %2048 = vdwg.mxu0
      %v2051 = vunpack.c.l.b16 %v472
      %v2052 = vunpack.c.l.b16 %v473
      %v2053 = vpack.c.b16 %v2052, %v2051
      %v2055 = vsel %vm613, %v348, 0
      %v2058 = vsel %vm613, %v2053, 0
      %2060 = vmatpush.bf16.xpose.msra.mxu0 0
      %2061 = vmatpush.bf16.xpose.msra.mxu0 0
      %2062 = vmatpush.bf16.xpose.msra.mxu0 0
      %2063 = vmatpush.bf16.xpose.msra.mxu0 0
      %2064 = vmatpush.bf16.xpose.msra.mxu0 0
      %2065 = vmatpush.bf16.xpose.msra.mxu0 0
      %2066 = vmatpush.bf16.xpose.msra.mxu0 0
      %2067 = vmatpush.bf16.xpose.msra.mxu0 %v2058
      %2068 = vmatmul.bf16.gmra.mxu0 %v2055
      %v2069 = vpop.f32.mrf.mxu0
      %v2070 = vadd.f32 0.0, %v2069
      %v2071 = vpop.f32.mrf.mxu0
      %2072 = vdwg.mxu0
      %v2075 = vunpack.c.l.b16 %v474
      %v2076 = vunpack.c.l.b16 %v475
      %v2077 = vpack.c.b16 %v2076, %v2075
      %v2079 = vsel %vm613, %v349, 0
      %v2082 = vsel %vm613, %v2077, 0
      %2084 = vmatpush.bf16.xpose.msra.mxu0 0
      %2085 = vmatpush.bf16.xpose.msra.mxu0 0
      %2086 = vmatpush.bf16.xpose.msra.mxu0 0
      %2087 = vmatpush.bf16.xpose.msra.mxu0 0
      %2088 = vmatpush.bf16.xpose.msra.mxu0 0
      %2089 = vmatpush.bf16.xpose.msra.mxu0 0
      %2090 = vmatpush.bf16.xpose.msra.mxu0 0
      %2091 = vmatpush.bf16.xpose.msra.mxu0 %v2082
      %2092 = vmatmul.bf16.gmra.mxu0 %v2079
      %v2093 = vpop.f32.mrf.mxu0
      %v2094 = vadd.f32 0.0, %v2093
      %v2095 = vpop.f32.mrf.mxu0
      %2096 = vdwg.mxu0
      %v2099 = vunpack.c.l.b16 %v476
      %v2100 = vunpack.c.l.b16 %v477
      %v2101 = vpack.c.b16 %v2100, %v2099
      %v2103 = vsel %vm613, %v350, 0
      %v2106 = vsel %vm613, %v2101, 0
      %2108 = vmatpush.bf16.xpose.msra.mxu0 0
      %2109 = vmatpush.bf16.xpose.msra.mxu0 0
      %2110 = vmatpush.bf16.xpose.msra.mxu0 0
      %2111 = vmatpush.bf16.xpose.msra.mxu0 0
      %2112 = vmatpush.bf16.xpose.msra.mxu0 0
      %2113 = vmatpush.bf16.xpose.msra.mxu0 0
      %2114 = vmatpush.bf16.xpose.msra.mxu0 0
      %2115 = vmatpush.bf16.xpose.msra.mxu0 %v2106
      %2116 = vmatmul.bf16.gmra.mxu0 %v2103
      %v2117 = vpop.f32.mrf.mxu0
      %v2118 = vadd.f32 0.0, %v2117
      %v2119 = vpop.f32.mrf.mxu0
      %2120 = vdwg.mxu0
      %v2123 = vunpack.c.l.b16 %v478
      %v2124 = vunpack.c.l.b16 %v479
      %v2125 = vpack.c.b16 %v2124, %v2123
      %v2127 = vsel %vm613, %v351, 0
      %v2130 = vsel %vm613, %v2125, 0
      %2132 = vmatpush.bf16.xpose.msra.mxu0 0
      %2133 = vmatpush.bf16.xpose.msra.mxu0 0
      %2134 = vmatpush.bf16.xpose.msra.mxu0 0
      %2135 = vmatpush.bf16.xpose.msra.mxu0 0
      %2136 = vmatpush.bf16.xpose.msra.mxu0 0
      %2137 = vmatpush.bf16.xpose.msra.mxu0 0
      %2138 = vmatpush.bf16.xpose.msra.mxu0 0
      %2139 = vmatpush.bf16.xpose.msra.mxu0 %v2130
      %2140 = vmatmul.bf16.gmra.mxu0 %v2127
      %v2141 = vpop.f32.mrf.mxu0
      %v2142 = vadd.f32 0.0, %v2141
      %v2143 = vpop.f32.mrf.mxu0
      %2144 = vdwg.mxu0
      %v2145 = vmul.f32 %v630, 0.17677669
      %v2146 = vmul.f32 %v654, 0.17677669
      %v2147 = vmul.f32 %v678, 0.17677669
      %v2148 = vmul.f32 %v702, 0.17677669
      %v2149 = vmul.f32 %v726, 0.17677669
      %v2150 = vmul.f32 %v750, 0.17677669
      %v2151 = vmul.f32 %v774, 0.17677669
      %v2152 = vmul.f32 %v798, 0.17677669
      %v2153 = vmul.f32 %v822, 0.17677669
      %v2154 = vmul.f32 %v846, 0.17677669
      %v2155 = vmul.f32 %v870, 0.17677669
      %v2156 = vmul.f32 %v894, 0.17677669
      %v2157 = vmul.f32 %v918, 0.17677669
      %v2158 = vmul.f32 %v942, 0.17677669
      %v2159 = vmul.f32 %v966, 0.17677669
      %v2160 = vmul.f32 %v990, 0.17677669
      %v2161 = vmul.f32 %v1014, 0.17677669
      %v2162 = vmul.f32 %v1038, 0.17677669
      %v2163 = vmul.f32 %v1062, 0.17677669
      %v2164 = vmul.f32 %v1086, 0.17677669
      %v2165 = vmul.f32 %v1110, 0.17677669
      %v2166 = vmul.f32 %v1134, 0.17677669
      %v2167 = vmul.f32 %v1158, 0.17677669
      %v2168 = vmul.f32 %v1182, 0.17677669
      %v2169 = vmul.f32 %v1206, 0.17677669
      %v2170 = vmul.f32 %v1230, 0.17677669
      %v2171 = vmul.f32 %v1254, 0.17677669
      %v2172 = vmul.f32 %v1278, 0.17677669
      %v2173 = vmul.f32 %v1302, 0.17677669
      %v2174 = vmul.f32 %v1326, 0.17677669
      %v2175 = vmul.f32 %v1350, 0.17677669
      %v2176 = vmul.f32 %v1374, 0.17677669
      %v2177 = vmul.f32 %v1398, 0.17677669
      %v2178 = vmul.f32 %v1422, 0.17677669
      %v2179 = vmul.f32 %v1446, 0.17677669
      %v2180 = vmul.f32 %v1470, 0.17677669
      %v2181 = vmul.f32 %v1494, 0.17677669
      %v2182 = vmul.f32 %v1518, 0.17677669
      %v2183 = vmul.f32 %v1542, 0.17677669
      %v2184 = vmul.f32 %v1566, 0.17677669
      %v2185 = vmul.f32 %v1590, 0.17677669
      %v2186 = vmul.f32 %v1614, 0.17677669
      %v2187 = vmul.f32 %v1638, 0.17677669
      %v2188 = vmul.f32 %v1662, 0.17677669
      %v2189 = vmul.f32 %v1686, 0.17677669
      %v2190 = vmul.f32 %v1710, 0.17677669
      %v2191 = vmul.f32 %v1734, 0.17677669
      %v2192 = vmul.f32 %v1758, 0.17677669
      %v2193 = vmul.f32 %v1782, 0.17677669
      %v2194 = vmul.f32 %v1806, 0.17677669
      %v2195 = vmul.f32 %v1830, 0.17677669
      %v2196 = vmul.f32 %v1854, 0.17677669
      %v2197 = vmul.f32 %v1878, 0.17677669
      %v2198 = vmul.f32 %v1902, 0.17677669
      %v2199 = vmul.f32 %v1926, 0.17677669
      %v2200 = vmul.f32 %v1950, 0.17677669
      %v2201 = vmul.f32 %v1974, 0.17677669
      %v2202 = vmul.f32 %v1998, 0.17677669
      %v2203 = vmul.f32 %v2022, 0.17677669
      %v2204 = vmul.f32 %v2046, 0.17677669
      %v2205 = vmul.f32 %v2070, 0.17677669
      %v2206 = vmul.f32 %v2094, 0.17677669
      %v2207 = vmul.f32 %v2118, 0.17677669
      %v2208 = vmul.f32 %v2142, 0.17677669
      %v2209 = vadd.f32 %v2145, %v544
      %v2210 = vadd.f32 %v2146, %v545
      %v2211 = vadd.f32 %v2147, %v546
      %v2212 = vadd.f32 %v2148, %v547
      %v2213 = vadd.f32 %v2149, %v548
      %v2214 = vadd.f32 %v2150, %v549
      %v2215 = vadd.f32 %v2151, %v550
      %v2216 = vadd.f32 %v2152, %v551
      %v2217 = vadd.f32 %v2153, %v552
      %v2218 = vadd.f32 %v2154, %v553
      %v2219 = vadd.f32 %v2155, %v554
      %v2220 = vadd.f32 %v2156, %v555
      %v2221 = vadd.f32 %v2157, %v556
      %v2222 = vadd.f32 %v2158, %v557
      %v2223 = vadd.f32 %v2159, %v558
      %v2224 = vadd.f32 %v2160, %v559
      %v2225 = vadd.f32 %v2161, %v560
      %v2226 = vadd.f32 %v2162, %v561
      %v2227 = vadd.f32 %v2163, %v562
      %v2228 = vadd.f32 %v2164, %v563
      %v2229 = vadd.f32 %v2165, %v564
      %v2230 = vadd.f32 %v2166, %v565
      %v2231 = vadd.f32 %v2167, %v566
      %v2232 = vadd.f32 %v2168, %v567
      %v2233 = vadd.f32 %v2169, %v568
      %v2234 = vadd.f32 %v2170, %v569
      %v2235 = vadd.f32 %v2171, %v570
      %v2236 = vadd.f32 %v2172, %v571
      %v2237 = vadd.f32 %v2173, %v572
      %v2238 = vadd.f32 %v2174, %v573
      %v2239 = vadd.f32 %v2175, %v574
      %v2240 = vadd.f32 %v2176, %v575
      %v2241 = vadd.f32 %v2177, %v576
      %v2242 = vadd.f32 %v2178, %v577
      %v2243 = vadd.f32 %v2179, %v578
      %v2244 = vadd.f32 %v2180, %v579
      %v2245 = vadd.f32 %v2181, %v580
      %v2246 = vadd.f32 %v2182, %v581
      %v2247 = vadd.f32 %v2183, %v582
      %v2248 = vadd.f32 %v2184, %v583
      %v2249 = vadd.f32 %v2185, %v584
      %v2250 = vadd.f32 %v2186, %v585
      %v2251 = vadd.f32 %v2187, %v586
      %v2252 = vadd.f32 %v2188, %v587
      %v2253 = vadd.f32 %v2189, %v588
      %v2254 = vadd.f32 %v2190, %v589
      %v2255 = vadd.f32 %v2191, %v590
      %v2256 = vadd.f32 %v2192, %v591
      %v2257 = vadd.f32 %v2193, %v592
      %v2258 = vadd.f32 %v2194, %v593
      %v2259 = vadd.f32 %v2195, %v594
      %v2260 = vadd.f32 %v2196, %v595
      %v2261 = vadd.f32 %v2197, %v596
      %v2262 = vadd.f32 %v2198, %v597
      %v2263 = vadd.f32 %v2199, %v598
      %v2264 = vadd.f32 %v2200, %v599
      %v2265 = vadd.f32 %v2201, %v600
      %v2266 = vadd.f32 %v2202, %v601
      %v2267 = vadd.f32 %v2203, %v602
      %v2268 = vadd.f32 %v2204, %v603
      %v2269 = vadd.f32 %v2205, %v604
      %v2270 = vadd.f32 %v2206, %v605
      %v2271 = vadd.f32 %v2207, %v606
      %v2272 = vadd.f32 %v2208, %v607
      %vm2273 = vcmask 125952
      %v2274 = vsel %vm2273, %v2209, -inf
      %2275 = vmax.xlane.f32.xlu0 %v2274
      %v2276 = vpop.xlane.xlu0 %2275
      %v2277 = vsel %vm2273, %v2210, -inf
      %2278 = vmax.xlane.f32.xlu0 %v2277
      %v2279 = vpop.xlane.xlu0 %2278
      %v2280 = vsel %vm2273, %v2211, -inf
      %2281 = vmax.xlane.f32.xlu0 %v2280
      %v2282 = vpop.xlane.xlu0 %2281
      %v2283 = vsel %vm2273, %v2212, -inf
      %2284 = vmax.xlane.f32.xlu0 %v2283
      %v2285 = vpop.xlane.xlu0 %2284
      %v2286 = vsel %vm2273, %v2213, -inf
      %2287 = vmax.xlane.f32.xlu0 %v2286
      %v2288 = vpop.xlane.xlu0 %2287
      %v2289 = vsel %vm2273, %v2214, -inf
      %2290 = vmax.xlane.f32.xlu0 %v2289
      %v2291 = vpop.xlane.xlu0 %2290
      %v2292 = vsel %vm2273, %v2215, -inf
      %2293 = vmax.xlane.f32.xlu0 %v2292
      %v2294 = vpop.xlane.xlu0 %2293
      %v2295 = vsel %vm2273, %v2216, -inf
      %2296 = vmax.xlane.f32.xlu0 %v2295
      %v2297 = vpop.xlane.xlu0 %2296
      %v2298 = vsel %vm2273, %v2217, -inf
      %2299 = vmax.xlane.f32.xlu0 %v2298
      %v2300 = vpop.xlane.xlu0 %2299
      %v2301 = vsel %vm2273, %v2218, -inf
      %2302 = vmax.xlane.f32.xlu0 %v2301
      %v2303 = vpop.xlane.xlu0 %2302
      %v2304 = vsel %vm2273, %v2219, -inf
      %2305 = vmax.xlane.f32.xlu0 %v2304
      %v2306 = vpop.xlane.xlu0 %2305
      %v2307 = vsel %vm2273, %v2220, -inf
      %2308 = vmax.xlane.f32.xlu0 %v2307
      %v2309 = vpop.xlane.xlu0 %2308
      %v2310 = vsel %vm2273, %v2221, -inf
      %2311 = vmax.xlane.f32.xlu0 %v2310
      %v2312 = vpop.xlane.xlu0 %2311
      %v2313 = vsel %vm2273, %v2222, -inf
      %2314 = vmax.xlane.f32.xlu0 %v2313
      %v2315 = vpop.xlane.xlu0 %2314
      %v2316 = vsel %vm2273, %v2223, -inf
      %2317 = vmax.xlane.f32.xlu0 %v2316
      %v2318 = vpop.xlane.xlu0 %2317
      %v2319 = vsel %vm2273, %v2224, -inf
      %2320 = vmax.xlane.f32.xlu0 %v2319
      %v2321 = vpop.xlane.xlu0 %2320
      %v2322 = vsel %vm2273, %v2225, -inf
      %2323 = vmax.xlane.f32.xlu0 %v2322
      %v2324 = vpop.xlane.xlu0 %2323
      %v2325 = vsel %vm2273, %v2226, -inf
      %2326 = vmax.xlane.f32.xlu0 %v2325
      %v2327 = vpop.xlane.xlu0 %2326
      %v2328 = vsel %vm2273, %v2227, -inf
      %2329 = vmax.xlane.f32.xlu0 %v2328
      %v2330 = vpop.xlane.xlu0 %2329
      %v2331 = vsel %vm2273, %v2228, -inf
      %2332 = vmax.xlane.f32.xlu0 %v2331
      %v2333 = vpop.xlane.xlu0 %2332
      %v2334 = vsel %vm2273, %v2229, -inf
      %2335 = vmax.xlane.f32.xlu0 %v2334
      %v2336 = vpop.xlane.xlu0 %2335
      %v2337 = vsel %vm2273, %v2230, -inf
      %2338 = vmax.xlane.f32.xlu0 %v2337
      %v2339 = vpop.xlane.xlu0 %2338
      %v2340 = vsel %vm2273, %v2231, -inf
      %2341 = vmax.xlane.f32.xlu0 %v2340
      %v2342 = vpop.xlane.xlu0 %2341
      %v2343 = vsel %vm2273, %v2232, -inf
      %2344 = vmax.xlane.f32.xlu0 %v2343
      %v2345 = vpop.xlane.xlu0 %2344
      %v2346 = vsel %vm2273, %v2233, -inf
      %2347 = vmax.xlane.f32.xlu0 %v2346
      %v2348 = vpop.xlane.xlu0 %2347
      %v2349 = vsel %vm2273, %v2234, -inf
      %2350 = vmax.xlane.f32.xlu0 %v2349
      %v2351 = vpop.xlane.xlu0 %2350
      %v2352 = vsel %vm2273, %v2235, -inf
      %2353 = vmax.xlane.f32.xlu0 %v2352
      %v2354 = vpop.xlane.xlu0 %2353
      %v2355 = vsel %vm2273, %v2236, -inf
      %2356 = vmax.xlane.f32.xlu0 %v2355
      %v2357 = vpop.xlane.xlu0 %2356
      %v2358 = vsel %vm2273, %v2237, -inf
      %2359 = vmax.xlane.f32.xlu0 %v2358
      %v2360 = vpop.xlane.xlu0 %2359
      %v2361 = vsel %vm2273, %v2238, -inf
      %2362 = vmax.xlane.f32.xlu0 %v2361
      %v2363 = vpop.xlane.xlu0 %2362
      %v2364 = vsel %vm2273, %v2239, -inf
      %2365 = vmax.xlane.f32.xlu0 %v2364
      %v2366 = vpop.xlane.xlu0 %2365
      %v2367 = vsel %vm2273, %v2240, -inf
      %2368 = vmax.xlane.f32.xlu0 %v2367
      %v2369 = vpop.xlane.xlu0 %2368
      %v2370 = vsel %vm2273, %v2241, -inf
      %2371 = vmax.xlane.f32.xlu0 %v2370
      %v2372 = vpop.xlane.xlu0 %2371
      %v2373 = vsel %vm2273, %v2242, -inf
      %2374 = vmax.xlane.f32.xlu0 %v2373
      %v2375 = vpop.xlane.xlu0 %2374
      %v2376 = vsel %vm2273, %v2243, -inf
      %2377 = vmax.xlane.f32.xlu0 %v2376
      %v2378 = vpop.xlane.xlu0 %2377
      %v2379 = vsel %vm2273, %v2244, -inf
      %2380 = vmax.xlane.f32.xlu0 %v2379
      %v2381 = vpop.xlane.xlu0 %2380
      %v2382 = vsel %vm2273, %v2245, -inf
      %2383 = vmax.xlane.f32.xlu0 %v2382
      %v2384 = vpop.xlane.xlu0 %2383
      %v2385 = vsel %vm2273, %v2246, -inf
      %2386 = vmax.xlane.f32.xlu0 %v2385
      %v2387 = vpop.xlane.xlu0 %2386
      %v2388 = vsel %vm2273, %v2247, -inf
      %2389 = vmax.xlane.f32.xlu0 %v2388
      %v2390 = vpop.xlane.xlu0 %2389
      %v2391 = vsel %vm2273, %v2248, -inf
      %2392 = vmax.xlane.f32.xlu0 %v2391
      %v2393 = vpop.xlane.xlu0 %2392
      %v2394 = vsel %vm2273, %v2249, -inf
      %2395 = vmax.xlane.f32.xlu0 %v2394
      %v2396 = vpop.xlane.xlu0 %2395
      %v2397 = vsel %vm2273, %v2250, -inf
      %2398 = vmax.xlane.f32.xlu0 %v2397
      %v2399 = vpop.xlane.xlu0 %2398
      %v2400 = vsel %vm2273, %v2251, -inf
      %2401 = vmax.xlane.f32.xlu0 %v2400
      %v2402 = vpop.xlane.xlu0 %2401
      %v2403 = vsel %vm2273, %v2252, -inf
      %2404 = vmax.xlane.f32.xlu0 %v2403
      %v2405 = vpop.xlane.xlu0 %2404
      %v2406 = vsel %vm2273, %v2253, -inf
      %2407 = vmax.xlane.f32.xlu0 %v2406
      %v2408 = vpop.xlane.xlu0 %2407
      %v2409 = vsel %vm2273, %v2254, -inf
      %2410 = vmax.xlane.f32.xlu0 %v2409
      %v2411 = vpop.xlane.xlu0 %2410
      %v2412 = vsel %vm2273, %v2255, -inf
      %2413 = vmax.xlane.f32.xlu0 %v2412
      %v2414 = vpop.xlane.xlu0 %2413
      %v2415 = vsel %vm2273, %v2256, -inf
      %2416 = vmax.xlane.f32.xlu0 %v2415
      %v2417 = vpop.xlane.xlu0 %2416
      %v2418 = vsel %vm2273, %v2257, -inf
      %2419 = vmax.xlane.f32.xlu0 %v2418
      %v2420 = vpop.xlane.xlu0 %2419
      %v2421 = vsel %vm2273, %v2258, -inf
      %2422 = vmax.xlane.f32.xlu0 %v2421
      %v2423 = vpop.xlane.xlu0 %2422
      %v2424 = vsel %vm2273, %v2259, -inf
      %2425 = vmax.xlane.f32.xlu0 %v2424
      %v2426 = vpop.xlane.xlu0 %2425
      %v2427 = vsel %vm2273, %v2260, -inf
      %2428 = vmax.xlane.f32.xlu0 %v2427
      %v2429 = vpop.xlane.xlu0 %2428
      %v2430 = vsel %vm2273, %v2261, -inf
      %2431 = vmax.xlane.f32.xlu0 %v2430
      %v2432 = vpop.xlane.xlu0 %2431
      %v2433 = vsel %vm2273, %v2262, -inf
      %2434 = vmax.xlane.f32.xlu0 %v2433
      %v2435 = vpop.xlane.xlu0 %2434
      %v2436 = vsel %vm2273, %v2263, -inf
      %2437 = vmax.xlane.f32.xlu0 %v2436
      %v2438 = vpop.xlane.xlu0 %2437
      %v2439 = vsel %vm2273, %v2264, -inf
      %2440 = vmax.xlane.f32.xlu0 %v2439
      %v2441 = vpop.xlane.xlu0 %2440
      %v2442 = vsel %vm2273, %v2265, -inf
      %2443 = vmax.xlane.f32.xlu0 %v2442
      %v2444 = vpop.xlane.xlu0 %2443
      %v2445 = vsel %vm2273, %v2266, -inf
      %2446 = vmax.xlane.f32.xlu0 %v2445
      %v2447 = vpop.xlane.xlu0 %2446
      %v2448 = vsel %vm2273, %v2267, -inf
      %2449 = vmax.xlane.f32.xlu0 %v2448
      %v2450 = vpop.xlane.xlu0 %2449
      %v2451 = vsel %vm2273, %v2268, -inf
      %2452 = vmax.xlane.f32.xlu0 %v2451
      %v2453 = vpop.xlane.xlu0 %2452
      %v2454 = vsel %vm2273, %v2269, -inf
      %2455 = vmax.xlane.f32.xlu0 %v2454
      %v2456 = vpop.xlane.xlu0 %2455
      %v2457 = vsel %vm2273, %v2270, -inf
      %2458 = vmax.xlane.f32.xlu0 %v2457
      %v2459 = vpop.xlane.xlu0 %2458
      %v2460 = vsel %vm2273, %v2271, -inf
      %2461 = vmax.xlane.f32.xlu0 %v2460
      %v2462 = vpop.xlane.xlu0 %2461
      %v2463 = vsel %vm2273, %v2272, -inf
      %2464 = vmax.xlane.f32.xlu0 %v2463
      %v2465 = vpop.xlane.xlu0 %2464
      %v2466 = vsub.f32 %v2209, %v2276
      %v2467 = vsub.f32 %v2210, %v2279
      %v2468 = vsub.f32 %v2211, %v2282
      %v2469 = vsub.f32 %v2212, %v2285
      %v2470 = vsub.f32 %v2213, %v2288
      %v2471 = vsub.f32 %v2214, %v2291
      %v2472 = vsub.f32 %v2215, %v2294
      %v2473 = vsub.f32 %v2216, %v2297
      %v2474 = vsub.f32 %v2217, %v2300
      %v2475 = vsub.f32 %v2218, %v2303
      %v2476 = vsub.f32 %v2219, %v2306
      %v2477 = vsub.f32 %v2220, %v2309
      %v2478 = vsub.f32 %v2221, %v2312
      %v2479 = vsub.f32 %v2222, %v2315
      %v2480 = vsub.f32 %v2223, %v2318
      %v2481 = vsub.f32 %v2224, %v2321
      %v2482 = vsub.f32 %v2225, %v2324
      %v2483 = vsub.f32 %v2226, %v2327
      %v2484 = vsub.f32 %v2227, %v2330
      %v2485 = vsub.f32 %v2228, %v2333
      %v2486 = vsub.f32 %v2229, %v2336
      %v2487 = vsub.f32 %v2230, %v2339
      %v2488 = vsub.f32 %v2231, %v2342
      %v2489 = vsub.f32 %v2232, %v2345
      %v2490 = vsub.f32 %v2233, %v2348
      %v2491 = vsub.f32 %v2234, %v2351
      %v2492 = vsub.f32 %v2235, %v2354
      %v2493 = vsub.f32 %v2236, %v2357
      %v2494 = vsub.f32 %v2237, %v2360
      %v2495 = vsub.f32 %v2238, %v2363
      %v2496 = vsub.f32 %v2239, %v2366
      %v2497 = vsub.f32 %v2240, %v2369
      %v2498 = vsub.f32 %v2241, %v2372
      %v2499 = vsub.f32 %v2242, %v2375
      %v2500 = vsub.f32 %v2243, %v2378
      %v2501 = vsub.f32 %v2244, %v2381
      %v2502 = vsub.f32 %v2245, %v2384
      %v2503 = vsub.f32 %v2246, %v2387
      %v2504 = vsub.f32 %v2247, %v2390
      %v2505 = vsub.f32 %v2248, %v2393
      %v2506 = vsub.f32 %v2249, %v2396
      %v2507 = vsub.f32 %v2250, %v2399
      %v2508 = vsub.f32 %v2251, %v2402
      %v2509 = vsub.f32 %v2252, %v2405
      %v2510 = vsub.f32 %v2253, %v2408
      %v2511 = vsub.f32 %v2254, %v2411
      %v2512 = vsub.f32 %v2255, %v2414
      %v2513 = vsub.f32 %v2256, %v2417
      %v2514 = vsub.f32 %v2257, %v2420
      %v2515 = vsub.f32 %v2258, %v2423
      %v2516 = vsub.f32 %v2259, %v2426
      %v2517 = vsub.f32 %v2260, %v2429
      %v2518 = vsub.f32 %v2261, %v2432
      %v2519 = vsub.f32 %v2262, %v2435
      %v2520 = vsub.f32 %v2263, %v2438
      %v2521 = vsub.f32 %v2264, %v2441
      %v2522 = vsub.f32 %v2265, %v2444
      %v2523 = vsub.f32 %v2266, %v2447
      %v2524 = vsub.f32 %v2267, %v2450
      %v2525 = vsub.f32 %v2268, %v2453
      %v2526 = vsub.f32 %v2269, %v2456
      %v2527 = vsub.f32 %v2270, %v2459
      %v2528 = vsub.f32 %v2271, %v2462
      %v2529 = vsub.f32 %v2272, %v2465
      %v2530 = vmul.f32 %v2466, 1.442695
      %v2531 = vpow.pop %v2530
      %v2532 = vmul.f32 %v2467, 1.442695
      %v2533 = vpow.pop %v2532
      %v2534 = vmul.f32 %v2468, 1.442695
      %v2535 = vpow.pop %v2534
      %v2536 = vmul.f32 %v2469, 1.442695
      %v2537 = vpow.pop %v2536
      %v2538 = vmul.f32 %v2470, 1.442695
      %v2539 = vpow.pop %v2538
      %v2540 = vmul.f32 %v2471, 1.442695
      %v2541 = vpow.pop %v2540
      %v2542 = vmul.f32 %v2472, 1.442695
      %v2543 = vpow.pop %v2542
      %v2544 = vmul.f32 %v2473, 1.442695
      %v2545 = vpow.pop %v2544
      %v2546 = vmul.f32 %v2474, 1.442695
      %v2547 = vpow.pop %v2546
      %v2548 = vmul.f32 %v2475, 1.442695
      %v2549 = vpow.pop %v2548
      %v2550 = vmul.f32 %v2476, 1.442695
      %v2551 = vpow.pop %v2550
      %v2552 = vmul.f32 %v2477, 1.442695
      %v2553 = vpow.pop %v2552
      %v2554 = vmul.f32 %v2478, 1.442695
      %v2555 = vpow.pop %v2554
      %v2556 = vmul.f32 %v2479, 1.442695
      %v2557 = vpow.pop %v2556
      %v2558 = vmul.f32 %v2480, 1.442695
      %v2559 = vpow.pop %v2558
      %v2560 = vmul.f32 %v2481, 1.442695
      %v2561 = vpow.pop %v2560
      %v2562 = vmul.f32 %v2482, 1.442695
      %v2563 = vpow.pop %v2562
      %v2564 = vmul.f32 %v2483, 1.442695
      %v2565 = vpow.pop %v2564
      %v2566 = vmul.f32 %v2484, 1.442695
      %v2567 = vpow.pop %v2566
      %v2568 = vmul.f32 %v2485, 1.442695
      %v2569 = vpow.pop %v2568
      %v2570 = vmul.f32 %v2486, 1.442695
      %v2571 = vpow.pop %v2570
      %v2572 = vmul.f32 %v2487, 1.442695
      %v2573 = vpow.pop %v2572
      %v2574 = vmul.f32 %v2488, 1.442695
      %v2575 = vpow.pop %v2574
      %v2576 = vmul.f32 %v2489, 1.442695
      %v2577 = vpow.pop %v2576
      %v2578 = vmul.f32 %v2490, 1.442695
      %v2579 = vpow.pop %v2578
      %v2580 = vmul.f32 %v2491, 1.442695
      %v2581 = vpow.pop %v2580
      %v2582 = vmul.f32 %v2492, 1.442695
      %v2583 = vpow.pop %v2582
      %v2584 = vmul.f32 %v2493, 1.442695
      %v2585 = vpow.pop %v2584
      %v2586 = vmul.f32 %v2494, 1.442695
      %v2587 = vpow.pop %v2586
      %v2588 = vmul.f32 %v2495, 1.442695
      %v2589 = vpow.pop %v2588
      %v2590 = vmul.f32 %v2496, 1.442695
      %v2591 = vpow.pop %v2590
      %v2592 = vmul.f32 %v2497, 1.442695
      %v2593 = vpow.pop %v2592
      %v2594 = vmul.f32 %v2498, 1.442695
      %v2595 = vpow.pop %v2594
      %v2596 = vmul.f32 %v2499, 1.442695
      %v2597 = vpow.pop %v2596
      %v2598 = vmul.f32 %v2500, 1.442695
      %v2599 = vpow.pop %v2598
      %v2600 = vmul.f32 %v2501, 1.442695
      %v2601 = vpow.pop %v2600
      %v2602 = vmul.f32 %v2502, 1.442695
      %v2603 = vpow.pop %v2602
      %v2604 = vmul.f32 %v2503, 1.442695
      %v2605 = vpow.pop %v2604
      %v2606 = vmul.f32 %v2504, 1.442695
      %v2607 = vpow.pop %v2606
      %v2608 = vmul.f32 %v2505, 1.442695
      %v2609 = vpow.pop %v2608
      %v2610 = vmul.f32 %v2506, 1.442695
      %v2611 = vpow.pop %v2610
      %v2612 = vmul.f32 %v2507, 1.442695
      %v2613 = vpow.pop %v2612
      %v2614 = vmul.f32 %v2508, 1.442695
      %v2615 = vpow.pop %v2614
      %v2616 = vmul.f32 %v2509, 1.442695
      %v2617 = vpow.pop %v2616
      %v2618 = vmul.f32 %v2510, 1.442695
      %v2619 = vpow.pop %v2618
      %v2620 = vmul.f32 %v2511, 1.442695
      %v2621 = vpow.pop %v2620
      %v2622 = vmul.f32 %v2512, 1.442695
      %v2623 = vpow.pop %v2622
      %v2624 = vmul.f32 %v2513, 1.442695
      %v2625 = vpow.pop %v2624
      %v2626 = vmul.f32 %v2514, 1.442695
      %v2627 = vpow.pop %v2626
      %v2628 = vmul.f32 %v2515, 1.442695
      %v2629 = vpow.pop %v2628
      %v2630 = vmul.f32 %v2516, 1.442695
      %v2631 = vpow.pop %v2630
      %v2632 = vmul.f32 %v2517, 1.442695
      %v2633 = vpow.pop %v2632
      %v2634 = vmul.f32 %v2518, 1.442695
      %v2635 = vpow.pop %v2634
      %v2636 = vmul.f32 %v2519, 1.442695
      %v2637 = vpow.pop %v2636
      %v2638 = vmul.f32 %v2520, 1.442695
      %v2639 = vpow.pop %v2638
      %v2640 = vmul.f32 %v2521, 1.442695
      %v2641 = vpow.pop %v2640
      %v2642 = vmul.f32 %v2522, 1.442695
      %v2643 = vpow.pop %v2642
      %v2644 = vmul.f32 %v2523, 1.442695
      %v2645 = vpow.pop %v2644
      %v2646 = vmul.f32 %v2524, 1.442695
      %v2647 = vpow.pop %v2646
      %v2648 = vmul.f32 %v2525, 1.442695
      %v2649 = vpow.pop %v2648
      %v2650 = vmul.f32 %v2526, 1.442695
      %v2651 = vpow.pop %v2650
      %v2652 = vmul.f32 %v2527, 1.442695
      %v2653 = vpow.pop %v2652
      %v2654 = vmul.f32 %v2528, 1.442695
      %v2655 = vpow.pop %v2654
      %v2656 = vmul.f32 %v2529, 1.442695
      %v2657 = vpow.pop %v2656
      %v2658 = vsel %vm2273, %v2531, 0.0
      %2659 = vadd.xlane.f32.xlu0 %v2658
      %v2660 = vpop.xlane.xlu0 %2659
      %v2661 = vsel %vm2273, %v2533, 0.0
      %2662 = vadd.xlane.f32.xlu0 %v2661
      %v2663 = vpop.xlane.xlu0 %2662
      %v2664 = vsel %vm2273, %v2535, 0.0
      %2665 = vadd.xlane.f32.xlu0 %v2664
      %v2666 = vpop.xlane.xlu0 %2665
      %v2667 = vsel %vm2273, %v2537, 0.0
      %2668 = vadd.xlane.f32.xlu0 %v2667
      %v2669 = vpop.xlane.xlu0 %2668
      %v2670 = vsel %vm2273, %v2539, 0.0
      %2671 = vadd.xlane.f32.xlu0 %v2670
      %v2672 = vpop.xlane.xlu0 %2671
      %v2673 = vsel %vm2273, %v2541, 0.0
      %2674 = vadd.xlane.f32.xlu0 %v2673
      %v2675 = vpop.xlane.xlu0 %2674
      %v2676 = vsel %vm2273, %v2543, 0.0
      %2677 = vadd.xlane.f32.xlu0 %v2676
      %v2678 = vpop.xlane.xlu0 %2677
      %v2679 = vsel %vm2273, %v2545, 0.0
      %2680 = vadd.xlane.f32.xlu0 %v2679
      %v2681 = vpop.xlane.xlu0 %2680
      %v2682 = vsel %vm2273, %v2547, 0.0
      %2683 = vadd.xlane.f32.xlu0 %v2682
      %v2684 = vpop.xlane.xlu0 %2683
      %v2685 = vsel %vm2273, %v2549, 0.0
      %2686 = vadd.xlane.f32.xlu0 %v2685
      %v2687 = vpop.xlane.xlu0 %2686
      %v2688 = vsel %vm2273, %v2551, 0.0
      %2689 = vadd.xlane.f32.xlu0 %v2688
      %v2690 = vpop.xlane.xlu0 %2689
      %v2691 = vsel %vm2273, %v2553, 0.0
      %2692 = vadd.xlane.f32.xlu0 %v2691
      %v2693 = vpop.xlane.xlu0 %2692
      %v2694 = vsel %vm2273, %v2555, 0.0
      %2695 = vadd.xlane.f32.xlu0 %v2694
      %v2696 = vpop.xlane.xlu0 %2695
      %v2697 = vsel %vm2273, %v2557, 0.0
      %2698 = vadd.xlane.f32.xlu0 %v2697
      %v2699 = vpop.xlane.xlu0 %2698
      %v2700 = vsel %vm2273, %v2559, 0.0
      %2701 = vadd.xlane.f32.xlu0 %v2700
      %v2702 = vpop.xlane.xlu0 %2701
      %v2703 = vsel %vm2273, %v2561, 0.0
      %2704 = vadd.xlane.f32.xlu0 %v2703
      %v2705 = vpop.xlane.xlu0 %2704
      %v2706 = vsel %vm2273, %v2563, 0.0
      %2707 = vadd.xlane.f32.xlu0 %v2706
      %v2708 = vpop.xlane.xlu0 %2707
      %v2709 = vsel %vm2273, %v2565, 0.0
      %2710 = vadd.xlane.f32.xlu0 %v2709
      %v2711 = vpop.xlane.xlu0 %2710
      %v2712 = vsel %vm2273, %v2567, 0.0
      %2713 = vadd.xlane.f32.xlu0 %v2712
      %v2714 = vpop.xlane.xlu0 %2713
      %v2715 = vsel %vm2273, %v2569, 0.0
      %2716 = vadd.xlane.f32.xlu0 %v2715
      %v2717 = vpop.xlane.xlu0 %2716
      %v2718 = vsel %vm2273, %v2571, 0.0
      %2719 = vadd.xlane.f32.xlu0 %v2718
      %v2720 = vpop.xlane.xlu0 %2719
      %v2721 = vsel %vm2273, %v2573, 0.0
      %2722 = vadd.xlane.f32.xlu0 %v2721
      %v2723 = vpop.xlane.xlu0 %2722
      %v2724 = vsel %vm2273, %v2575, 0.0
      %2725 = vadd.xlane.f32.xlu0 %v2724
      %v2726 = vpop.xlane.xlu0 %2725
      %v2727 = vsel %vm2273, %v2577, 0.0
      %2728 = vadd.xlane.f32.xlu0 %v2727
      %v2729 = vpop.xlane.xlu0 %2728
      %v2730 = vsel %vm2273, %v2579, 0.0
      %2731 = vadd.xlane.f32.xlu0 %v2730
      %v2732 = vpop.xlane.xlu0 %2731
      %v2733 = vsel %vm2273, %v2581, 0.0
      %2734 = vadd.xlane.f32.xlu0 %v2733
      %v2735 = vpop.xlane.xlu0 %2734
      %v2736 = vsel %vm2273, %v2583, 0.0
      %2737 = vadd.xlane.f32.xlu0 %v2736
      %v2738 = vpop.xlane.xlu0 %2737
      %v2739 = vsel %vm2273, %v2585, 0.0
      %2740 = vadd.xlane.f32.xlu0 %v2739
      %v2741 = vpop.xlane.xlu0 %2740
      %v2742 = vsel %vm2273, %v2587, 0.0
      %2743 = vadd.xlane.f32.xlu0 %v2742
      %v2744 = vpop.xlane.xlu0 %2743
      %v2745 = vsel %vm2273, %v2589, 0.0
      %2746 = vadd.xlane.f32.xlu0 %v2745
      %v2747 = vpop.xlane.xlu0 %2746
      %v2748 = vsel %vm2273, %v2591, 0.0
      %2749 = vadd.xlane.f32.xlu0 %v2748
      %v2750 = vpop.xlane.xlu0 %2749
      %v2751 = vsel %vm2273, %v2593, 0.0
      %2752 = vadd.xlane.f32.xlu0 %v2751
      %v2753 = vpop.xlane.xlu0 %2752
      %v2754 = vsel %vm2273, %v2595, 0.0
      %2755 = vadd.xlane.f32.xlu0 %v2754
      %v2756 = vpop.xlane.xlu0 %2755
      %v2757 = vsel %vm2273, %v2597, 0.0
      %2758 = vadd.xlane.f32.xlu0 %v2757
      %v2759 = vpop.xlane.xlu0 %2758
      %v2760 = vsel %vm2273, %v2599, 0.0
      %2761 = vadd.xlane.f32.xlu0 %v2760
      %v2762 = vpop.xlane.xlu0 %2761
      %v2763 = vsel %vm2273, %v2601, 0.0
      %2764 = vadd.xlane.f32.xlu0 %v2763
      %v2765 = vpop.xlane.xlu0 %2764
      %v2766 = vsel %vm2273, %v2603, 0.0
      %2767 = vadd.xlane.f32.xlu0 %v2766
      %v2768 = vpop.xlane.xlu0 %2767
      %v2769 = vsel %vm2273, %v2605, 0.0
      %2770 = vadd.xlane.f32.xlu0 %v2769
      %v2771 = vpop.xlane.xlu0 %2770
      %v2772 = vsel %vm2273, %v2607, 0.0
      %2773 = vadd.xlane.f32.xlu0 %v2772
      %v2774 = vpop.xlane.xlu0 %2773
      %v2775 = vsel %vm2273, %v2609, 0.0
      %2776 = vadd.xlane.f32.xlu0 %v2775
      %v2777 = vpop.xlane.xlu0 %2776
      %v2778 = vsel %vm2273, %v2611, 0.0
      %2779 = vadd.xlane.f32.xlu0 %v2778
      %v2780 = vpop.xlane.xlu0 %2779
      %v2781 = vsel %vm2273, %v2613, 0.0
      %2782 = vadd.xlane.f32.xlu0 %v2781
      %v2783 = vpop.xlane.xlu0 %2782
      %v2784 = vsel %vm2273, %v2615, 0.0
      %2785 = vadd.xlane.f32.xlu0 %v2784
      %v2786 = vpop.xlane.xlu0 %2785
      %v2787 = vsel %vm2273, %v2617, 0.0
      %2788 = vadd.xlane.f32.xlu0 %v2787
      %v2789 = vpop.xlane.xlu0 %2788
      %v2790 = vsel %vm2273, %v2619, 0.0
      %2791 = vadd.xlane.f32.xlu0 %v2790
      %v2792 = vpop.xlane.xlu0 %2791
      %v2793 = vsel %vm2273, %v2621, 0.0
      %2794 = vadd.xlane.f32.xlu0 %v2793
      %v2795 = vpop.xlane.xlu0 %2794
      %v2796 = vsel %vm2273, %v2623, 0.0
      %2797 = vadd.xlane.f32.xlu0 %v2796
      %v2798 = vpop.xlane.xlu0 %2797
      %v2799 = vsel %vm2273, %v2625, 0.0
      %2800 = vadd.xlane.f32.xlu0 %v2799
      %v2801 = vpop.xlane.xlu0 %2800
      %v2802 = vsel %vm2273, %v2627, 0.0
      %2803 = vadd.xlane.f32.xlu0 %v2802
      %v2804 = vpop.xlane.xlu0 %2803
      %v2805 = vsel %vm2273, %v2629, 0.0
      %2806 = vadd.xlane.f32.xlu0 %v2805
      %v2807 = vpop.xlane.xlu0 %2806
      %v2808 = vsel %vm2273, %v2631, 0.0
      %2809 = vadd.xlane.f32.xlu0 %v2808
      %v2810 = vpop.xlane.xlu0 %2809
      %v2811 = vsel %vm2273, %v2633, 0.0
      %2812 = vadd.xlane.f32.xlu0 %v2811
      %v2813 = vpop.xlane.xlu0 %2812
      %v2814 = vsel %vm2273, %v2635, 0.0
      %2815 = vadd.xlane.f32.xlu0 %v2814
      %v2816 = vpop.xlane.xlu0 %2815
      %v2817 = vsel %vm2273, %v2637, 0.0
      %2818 = vadd.xlane.f32.xlu0 %v2817
      %v2819 = vpop.xlane.xlu0 %2818
      %v2820 = vsel %vm2273, %v2639, 0.0
      %2821 = vadd.xlane.f32.xlu0 %v2820
      %v2822 = vpop.xlane.xlu0 %2821
      %v2823 = vsel %vm2273, %v2641, 0.0
      %2824 = vadd.xlane.f32.xlu0 %v2823
      %v2825 = vpop.xlane.xlu0 %2824
      %v2826 = vsel %vm2273, %v2643, 0.0
      %2827 = vadd.xlane.f32.xlu0 %v2826
      %v2828 = vpop.xlane.xlu0 %2827
      %v2829 = vsel %vm2273, %v2645, 0.0
      %2830 = vadd.xlane.f32.xlu0 %v2829
      %v2831 = vpop.xlane.xlu0 %2830
      %v2832 = vsel %vm2273, %v2647, 0.0
      %2833 = vadd.xlane.f32.xlu0 %v2832
      %v2834 = vpop.xlane.xlu0 %2833
      %v2835 = vsel %vm2273, %v2649, 0.0
      %2836 = vadd.xlane.f32.xlu0 %v2835
      %v2837 = vpop.xlane.xlu0 %2836
      %v2838 = vsel %vm2273, %v2651, 0.0
      %2839 = vadd.xlane.f32.xlu0 %v2838
      %v2840 = vpop.xlane.xlu0 %2839
      %v2841 = vsel %vm2273, %v2653, 0.0
      %2842 = vadd.xlane.f32.xlu0 %v2841
      %v2843 = vpop.xlane.xlu0 %2842
      %v2844 = vsel %vm2273, %v2655, 0.0
      %2845 = vadd.xlane.f32.xlu0 %v2844
      %v2846 = vpop.xlane.xlu0 %2845
      %v2847 = vsel %vm2273, %v2657, 0.0
      %2848 = vadd.xlane.f32.xlu0 %v2847
      %v2849 = vpop.xlane.xlu0 %2848
      %v2850 = vpack.c.bf16 %v2531, %v2531
      %v2851 = vpack.c.bf16 %v2533, %v2533
      %v2852 = vpack.c.bf16 %v2535, %v2535
      %v2853 = vpack.c.bf16 %v2537, %v2537
      %v2854 = vpack.c.bf16 %v2539, %v2539
      %v2855 = vpack.c.bf16 %v2541, %v2541
      %v2856 = vpack.c.bf16 %v2543, %v2543
      %v2857 = vpack.c.bf16 %v2545, %v2545
      %v2858 = vpack.c.bf16 %v2547, %v2547
      %v2859 = vpack.c.bf16 %v2549, %v2549
      %v2860 = vpack.c.bf16 %v2551, %v2551
      %v2861 = vpack.c.bf16 %v2553, %v2553
      %v2862 = vpack.c.bf16 %v2555, %v2555
      %v2863 = vpack.c.bf16 %v2557, %v2557
      %v2864 = vpack.c.bf16 %v2559, %v2559
      %v2865 = vpack.c.bf16 %v2561, %v2561
      %v2866 = vpack.c.bf16 %v2563, %v2563
      %v2867 = vpack.c.bf16 %v2565, %v2565
      %v2868 = vpack.c.bf16 %v2567, %v2567
      %v2869 = vpack.c.bf16 %v2569, %v2569
      %v2870 = vpack.c.bf16 %v2571, %v2571
      %v2871 = vpack.c.bf16 %v2573, %v2573
      %v2872 = vpack.c.bf16 %v2575, %v2575
      %v2873 = vpack.c.bf16 %v2577, %v2577
      %v2874 = vpack.c.bf16 %v2579, %v2579
      %v2875 = vpack.c.bf16 %v2581, %v2581
      %v2876 = vpack.c.bf16 %v2583, %v2583
      %v2877 = vpack.c.bf16 %v2585, %v2585
      %v2878 = vpack.c.bf16 %v2587, %v2587
      %v2879 = vpack.c.bf16 %v2589, %v2589
      %v2880 = vpack.c.bf16 %v2591, %v2591
      %v2881 = vpack.c.bf16 %v2593, %v2593
      %v2882 = vpack.c.bf16 %v2595, %v2595
      %v2883 = vpack.c.bf16 %v2597, %v2597
      %v2884 = vpack.c.bf16 %v2599, %v2599
      %v2885 = vpack.c.bf16 %v2601, %v2601
      %v2886 = vpack.c.bf16 %v2603, %v2603
      %v2887 = vpack.c.bf16 %v2605, %v2605
      %v2888 = vpack.c.bf16 %v2607, %v2607
      %v2889 = vpack.c.bf16 %v2609, %v2609
      %v2890 = vpack.c.bf16 %v2611, %v2611
      %v2891 = vpack.c.bf16 %v2613, %v2613
      %v2892 = vpack.c.bf16 %v2615, %v2615
      %v2893 = vpack.c.bf16 %v2617, %v2617
      %v2894 = vpack.c.bf16 %v2619, %v2619
      %v2895 = vpack.c.bf16 %v2621, %v2621
      %v2896 = vpack.c.bf16 %v2623, %v2623
      %v2897 = vpack.c.bf16 %v2625, %v2625
      %v2898 = vpack.c.bf16 %v2627, %v2627
      %v2899 = vpack.c.bf16 %v2629, %v2629
      %v2900 = vpack.c.bf16 %v2631, %v2631
      %v2901 = vpack.c.bf16 %v2633, %v2633
      %v2902 = vpack.c.bf16 %v2635, %v2635
      %v2903 = vpack.c.bf16 %v2637, %v2637
      %v2904 = vpack.c.bf16 %v2639, %v2639
      %v2905 = vpack.c.bf16 %v2641, %v2641
      %v2906 = vpack.c.bf16 %v2643, %v2643
      %v2907 = vpack.c.bf16 %v2645, %v2645
      %v2908 = vpack.c.bf16 %v2647, %v2647
      %v2909 = vpack.c.bf16 %v2649, %v2649
      %v2910 = vpack.c.bf16 %v2651, %v2651
      %v2911 = vpack.c.bf16 %v2653, %v2653
      %v2912 = vpack.c.bf16 %v2655, %v2655
      %v2913 = vpack.c.bf16 %v2657, %v2657
      %2914 = vrot.lane.b32.xlu0 %v612, 64
      %v2915 = vpop.permute.xlu0 %2914
      %vm2917 = vcmask 130048
      %v2919 = vsel %vm2917, %v2850, 0
      %2921 = vmatpush.bf16.msra.mxu0 0
      %2922 = vmatpush.bf16.msra.mxu0 0
      %2923 = vmatpush.bf16.msra.mxu0 0
      %2924 = vmatpush.bf16.msra.mxu0 0
      %2925 = vmatpush.bf16.msra.mxu0 0
      %2926 = vmatpush.bf16.msra.mxu0 0
      %2927 = vmatpush.bf16.msra.mxu0 0
      %2928 = vmatpush.bf16.msra.mxu0 %v2915
      %2929 = vmatmul.bf16.gmra.mxu0 %v2919
      %v2930 = vpop.f32.mrf.mxu0
      %v2931 = vadd.f32 0.0, %v2930
      %v2932 = vpop.f32.mrf.mxu0
      %2933 = vdwg.mxu0
      %2934 = vrot.lane.b32.xlu0 %v637, 64
      %v2935 = vpop.permute.xlu0 %2934
      %v2938 = vsel %vm2917, %v2851, 0
      %2940 = vmatpush.bf16.msra.mxu0 0
      %2941 = vmatpush.bf16.msra.mxu0 0
      %2942 = vmatpush.bf16.msra.mxu0 0
      %2943 = vmatpush.bf16.msra.mxu0 0
      %2944 = vmatpush.bf16.msra.mxu0 0
      %2945 = vmatpush.bf16.msra.mxu0 0
      %2946 = vmatpush.bf16.msra.mxu0 0
      %2947 = vmatpush.bf16.msra.mxu0 %v2935
      %2948 = vmatmul.bf16.gmra.mxu0 %v2938
      %v2949 = vpop.f32.mrf.mxu0
      %v2950 = vadd.f32 0.0, %v2949
      %v2951 = vpop.f32.mrf.mxu0
      %2952 = vdwg.mxu0
      %2953 = vrot.lane.b32.xlu0 %v661, 64
      %v2954 = vpop.permute.xlu0 %2953
      %v2957 = vsel %vm2917, %v2852, 0
      %2959 = vmatpush.bf16.msra.mxu0 0
      %2960 = vmatpush.bf16.msra.mxu0 0
      %2961 = vmatpush.bf16.msra.mxu0 0
      %2962 = vmatpush.bf16.msra.mxu0 0
      %2963 = vmatpush.bf16.msra.mxu0 0
      %2964 = vmatpush.bf16.msra.mxu0 0
      %2965 = vmatpush.bf16.msra.mxu0 0
      %2966 = vmatpush.bf16.msra.mxu0 %v2954
      %2967 = vmatmul.bf16.gmra.mxu0 %v2957
      %v2968 = vpop.f32.mrf.mxu0
      %v2969 = vadd.f32 0.0, %v2968
      %v2970 = vpop.f32.mrf.mxu0
      %2971 = vdwg.mxu0
      %2972 = vrot.lane.b32.xlu0 %v685, 64
      %v2973 = vpop.permute.xlu0 %2972
      %v2976 = vsel %vm2917, %v2853, 0
      %2978 = vmatpush.bf16.msra.mxu0 0
      %2979 = vmatpush.bf16.msra.mxu0 0
      %2980 = vmatpush.bf16.msra.mxu0 0
      %2981 = vmatpush.bf16.msra.mxu0 0
      %2982 = vmatpush.bf16.msra.mxu0 0
      %2983 = vmatpush.bf16.msra.mxu0 0
      %2984 = vmatpush.bf16.msra.mxu0 0
      %2985 = vmatpush.bf16.msra.mxu0 %v2973
      %2986 = vmatmul.bf16.gmra.mxu0 %v2976
      %v2987 = vpop.f32.mrf.mxu0
      %v2988 = vadd.f32 0.0, %v2987
      %v2989 = vpop.f32.mrf.mxu0
      %2990 = vdwg.mxu0
      %2991 = vrot.lane.b32.xlu0 %v709, 64
      %v2992 = vpop.permute.xlu0 %2991
      %v2995 = vsel %vm2917, %v2854, 0
      %2997 = vmatpush.bf16.msra.mxu0 0
      %2998 = vmatpush.bf16.msra.mxu0 0
      %2999 = vmatpush.bf16.msra.mxu0 0
      %3000 = vmatpush.bf16.msra.mxu0 0
      %3001 = vmatpush.bf16.msra.mxu0 0
      %3002 = vmatpush.bf16.msra.mxu0 0
      %3003 = vmatpush.bf16.msra.mxu0 0
      %3004 = vmatpush.bf16.msra.mxu0 %v2992
      %3005 = vmatmul.bf16.gmra.mxu0 %v2995
      %v3006 = vpop.f32.mrf.mxu0
      %v3007 = vadd.f32 0.0, %v3006
      %v3008 = vpop.f32.mrf.mxu0
      %3009 = vdwg.mxu0
      %3010 = vrot.lane.b32.xlu0 %v733, 64
      %v3011 = vpop.permute.xlu0 %3010
      %v3014 = vsel %vm2917, %v2855, 0
      %3016 = vmatpush.bf16.msra.mxu0 0
      %3017 = vmatpush.bf16.msra.mxu0 0
      %3018 = vmatpush.bf16.msra.mxu0 0
      %3019 = vmatpush.bf16.msra.mxu0 0
      %3020 = vmatpush.bf16.msra.mxu0 0
      %3021 = vmatpush.bf16.msra.mxu0 0
      %3022 = vmatpush.bf16.msra.mxu0 0
      %3023 = vmatpush.bf16.msra.mxu0 %v3011
      %3024 = vmatmul.bf16.gmra.mxu0 %v3014
      %v3025 = vpop.f32.mrf.mxu0
      %v3026 = vadd.f32 0.0, %v3025
      %v3027 = vpop.f32.mrf.mxu0
      %3028 = vdwg.mxu0
      %3029 = vrot.lane.b32.xlu0 %v757, 64
      %v3030 = vpop.permute.xlu0 %3029
      %v3033 = vsel %vm2917, %v2856, 0
      %3035 = vmatpush.bf16.msra.mxu0 0
      %3036 = vmatpush.bf16.msra.mxu0 0
      %3037 = vmatpush.bf16.msra.mxu0 0
      %3038 = vmatpush.bf16.msra.mxu0 0
      %3039 = vmatpush.bf16.msra.mxu0 0
      %3040 = vmatpush.bf16.msra.mxu0 0
      %3041 = vmatpush.bf16.msra.mxu0 0
      %3042 = vmatpush.bf16.msra.mxu0 %v3030
      %3043 = vmatmul.bf16.gmra.mxu0 %v3033
      %v3044 = vpop.f32.mrf.mxu0
      %v3045 = vadd.f32 0.0, %v3044
      %v3046 = vpop.f32.mrf.mxu0
      %3047 = vdwg.mxu0
      %3048 = vrot.lane.b32.xlu0 %v781, 64
      %v3049 = vpop.permute.xlu0 %3048
      %v3052 = vsel %vm2917, %v2857, 0
      %3054 = vmatpush.bf16.msra.mxu0 0
      %3055 = vmatpush.bf16.msra.mxu0 0
      %3056 = vmatpush.bf16.msra.mxu0 0
      %3057 = vmatpush.bf16.msra.mxu0 0
      %3058 = vmatpush.bf16.msra.mxu0 0
      %3059 = vmatpush.bf16.msra.mxu0 0
      %3060 = vmatpush.bf16.msra.mxu0 0
      %3061 = vmatpush.bf16.msra.mxu0 %v3049
      %3062 = vmatmul.bf16.gmra.mxu0 %v3052
      %v3063 = vpop.f32.mrf.mxu0
      %v3064 = vadd.f32 0.0, %v3063
      %v3065 = vpop.f32.mrf.mxu0
      %3066 = vdwg.mxu0
      %3067 = vrot.lane.b32.xlu0 %v805, 64
      %v3068 = vpop.permute.xlu0 %3067
      %v3071 = vsel %vm2917, %v2858, 0
      %3073 = vmatpush.bf16.msra.mxu0 0
      %3074 = vmatpush.bf16.msra.mxu0 0
      %3075 = vmatpush.bf16.msra.mxu0 0
      %3076 = vmatpush.bf16.msra.mxu0 0
      %3077 = vmatpush.bf16.msra.mxu0 0
      %3078 = vmatpush.bf16.msra.mxu0 0
      %3079 = vmatpush.bf16.msra.mxu0 0
      %3080 = vmatpush.bf16.msra.mxu0 %v3068
      %3081 = vmatmul.bf16.gmra.mxu0 %v3071
      %v3082 = vpop.f32.mrf.mxu0
      %v3083 = vadd.f32 0.0, %v3082
      %v3084 = vpop.f32.mrf.mxu0
      %3085 = vdwg.mxu0
      %3086 = vrot.lane.b32.xlu0 %v829, 64
      %v3087 = vpop.permute.xlu0 %3086
      %v3090 = vsel %vm2917, %v2859, 0
      %3092 = vmatpush.bf16.msra.mxu0 0
      %3093 = vmatpush.bf16.msra.mxu0 0
      %3094 = vmatpush.bf16.msra.mxu0 0
      %3095 = vmatpush.bf16.msra.mxu0 0
      %3096 = vmatpush.bf16.msra.mxu0 0
      %3097 = vmatpush.bf16.msra.mxu0 0
      %3098 = vmatpush.bf16.msra.mxu0 0
      %3099 = vmatpush.bf16.msra.mxu0 %v3087
      %3100 = vmatmul.bf16.gmra.mxu0 %v3090
      %v3101 = vpop.f32.mrf.mxu0
      %v3102 = vadd.f32 0.0, %v3101
      %v3103 = vpop.f32.mrf.mxu0
      %3104 = vdwg.mxu0
      %3105 = vrot.lane.b32.xlu0 %v853, 64
      %v3106 = vpop.permute.xlu0 %3105
      %v3109 = vsel %vm2917, %v2860, 0
      %3111 = vmatpush.bf16.msra.mxu0 0
      %3112 = vmatpush.bf16.msra.mxu0 0
      %3113 = vmatpush.bf16.msra.mxu0 0
      %3114 = vmatpush.bf16.msra.mxu0 0
      %3115 = vmatpush.bf16.msra.mxu0 0
      %3116 = vmatpush.bf16.msra.mxu0 0
      %3117 = vmatpush.bf16.msra.mxu0 0
      %3118 = vmatpush.bf16.msra.mxu0 %v3106
      %3119 = vmatmul.bf16.gmra.mxu0 %v3109
      %v3120 = vpop.f32.mrf.mxu0
      %v3121 = vadd.f32 0.0, %v3120
      %v3122 = vpop.f32.mrf.mxu0
      %3123 = vdwg.mxu0
      %3124 = vrot.lane.b32.xlu0 %v877, 64
      %v3125 = vpop.permute.xlu0 %3124
      %v3128 = vsel %vm2917, %v2861, 0
      %3130 = vmatpush.bf16.msra.mxu0 0
      %3131 = vmatpush.bf16.msra.mxu0 0
      %3132 = vmatpush.bf16.msra.mxu0 0
      %3133 = vmatpush.bf16.msra.mxu0 0
      %3134 = vmatpush.bf16.msra.mxu0 0
      %3135 = vmatpush.bf16.msra.mxu0 0
      %3136 = vmatpush.bf16.msra.mxu0 0
      %3137 = vmatpush.bf16.msra.mxu0 %v3125
      %3138 = vmatmul.bf16.gmra.mxu0 %v3128
      %v3139 = vpop.f32.mrf.mxu0
      %v3140 = vadd.f32 0.0, %v3139
      %v3141 = vpop.f32.mrf.mxu0
      %3142 = vdwg.mxu0
      %3143 = vrot.lane.b32.xlu0 %v901, 64
      %v3144 = vpop.permute.xlu0 %3143
      %v3147 = vsel %vm2917, %v2862, 0
      %3149 = vmatpush.bf16.msra.mxu0 0
      %3150 = vmatpush.bf16.msra.mxu0 0
      %3151 = vmatpush.bf16.msra.mxu0 0
      %3152 = vmatpush.bf16.msra.mxu0 0
      %3153 = vmatpush.bf16.msra.mxu0 0
      %3154 = vmatpush.bf16.msra.mxu0 0
      %3155 = vmatpush.bf16.msra.mxu0 0
      %3156 = vmatpush.bf16.msra.mxu0 %v3144
      %3157 = vmatmul.bf16.gmra.mxu0 %v3147
      %v3158 = vpop.f32.mrf.mxu0
      %v3159 = vadd.f32 0.0, %v3158
      %v3160 = vpop.f32.mrf.mxu0
      %3161 = vdwg.mxu0
      %3162 = vrot.lane.b32.xlu0 %v925, 64
      %v3163 = vpop.permute.xlu0 %3162
      %v3166 = vsel %vm2917, %v2863, 0
      %3168 = vmatpush.bf16.msra.mxu0 0
      %3169 = vmatpush.bf16.msra.mxu0 0
      %3170 = vmatpush.bf16.msra.mxu0 0
      %3171 = vmatpush.bf16.msra.mxu0 0
      %3172 = vmatpush.bf16.msra.mxu0 0
      %3173 = vmatpush.bf16.msra.mxu0 0
      %3174 = vmatpush.bf16.msra.mxu0 0
      %3175 = vmatpush.bf16.msra.mxu0 %v3163
      %3176 = vmatmul.bf16.gmra.mxu0 %v3166
      %v3177 = vpop.f32.mrf.mxu0
      %v3178 = vadd.f32 0.0, %v3177
      %v3179 = vpop.f32.mrf.mxu0
      %3180 = vdwg.mxu0
      %3181 = vrot.lane.b32.xlu0 %v949, 64
      %v3182 = vpop.permute.xlu0 %3181
      %v3185 = vsel %vm2917, %v2864, 0
      %3187 = vmatpush.bf16.msra.mxu0 0
      %3188 = vmatpush.bf16.msra.mxu0 0
      %3189 = vmatpush.bf16.msra.mxu0 0
      %3190 = vmatpush.bf16.msra.mxu0 0
      %3191 = vmatpush.bf16.msra.mxu0 0
      %3192 = vmatpush.bf16.msra.mxu0 0
      %3193 = vmatpush.bf16.msra.mxu0 0
      %3194 = vmatpush.bf16.msra.mxu0 %v3182
      %3195 = vmatmul.bf16.gmra.mxu0 %v3185
      %v3196 = vpop.f32.mrf.mxu0
      %v3197 = vadd.f32 0.0, %v3196
      %v3198 = vpop.f32.mrf.mxu0
      %3199 = vdwg.mxu0
      %3200 = vrot.lane.b32.xlu0 %v973, 64
      %v3201 = vpop.permute.xlu0 %3200
      %v3204 = vsel %vm2917, %v2865, 0
      %3206 = vmatpush.bf16.msra.mxu0 0
      %3207 = vmatpush.bf16.msra.mxu0 0
      %3208 = vmatpush.bf16.msra.mxu0 0
      %3209 = vmatpush.bf16.msra.mxu0 0
      %3210 = vmatpush.bf16.msra.mxu0 0
      %3211 = vmatpush.bf16.msra.mxu0 0
      %3212 = vmatpush.bf16.msra.mxu0 0
      %3213 = vmatpush.bf16.msra.mxu0 %v3201
      %3214 = vmatmul.bf16.gmra.mxu0 %v3204
      %v3215 = vpop.f32.mrf.mxu0
      %v3216 = vadd.f32 0.0, %v3215
      %v3217 = vpop.f32.mrf.mxu0
      %3218 = vdwg.mxu0
      %3219 = vrot.lane.b32.xlu0 %v997, 64
      %v3220 = vpop.permute.xlu0 %3219
      %v3223 = vsel %vm2917, %v2866, 0
      %3225 = vmatpush.bf16.msra.mxu0 0
      %3226 = vmatpush.bf16.msra.mxu0 0
      %3227 = vmatpush.bf16.msra.mxu0 0
      %3228 = vmatpush.bf16.msra.mxu0 0
      %3229 = vmatpush.bf16.msra.mxu0 0
      %3230 = vmatpush.bf16.msra.mxu0 0
      %3231 = vmatpush.bf16.msra.mxu0 0
      %3232 = vmatpush.bf16.msra.mxu0 %v3220
      %3233 = vmatmul.bf16.gmra.mxu0 %v3223
      %v3234 = vpop.f32.mrf.mxu0
      %v3235 = vadd.f32 0.0, %v3234
      %v3236 = vpop.f32.mrf.mxu0
      %3237 = vdwg.mxu0
      %3238 = vrot.lane.b32.xlu0 %v1021, 64
      %v3239 = vpop.permute.xlu0 %3238
      %v3242 = vsel %vm2917, %v2867, 0
      %3244 = vmatpush.bf16.msra.mxu0 0
      %3245 = vmatpush.bf16.msra.mxu0 0
      %3246 = vmatpush.bf16.msra.mxu0 0
      %3247 = vmatpush.bf16.msra.mxu0 0
      %3248 = vmatpush.bf16.msra.mxu0 0
      %3249 = vmatpush.bf16.msra.mxu0 0
      %3250 = vmatpush.bf16.msra.mxu0 0
      %3251 = vmatpush.bf16.msra.mxu0 %v3239
      %3252 = vmatmul.bf16.gmra.mxu0 %v3242
      %v3253 = vpop.f32.mrf.mxu0
      %v3254 = vadd.f32 0.0, %v3253
      %v3255 = vpop.f32.mrf.mxu0
      %3256 = vdwg.mxu0
      %3257 = vrot.lane.b32.xlu0 %v1045, 64
      %v3258 = vpop.permute.xlu0 %3257
      %v3261 = vsel %vm2917, %v2868, 0
      %3263 = vmatpush.bf16.msra.mxu0 0
      %3264 = vmatpush.bf16.msra.mxu0 0
      %3265 = vmatpush.bf16.msra.mxu0 0
      %3266 = vmatpush.bf16.msra.mxu0 0
      %3267 = vmatpush.bf16.msra.mxu0 0
      %3268 = vmatpush.bf16.msra.mxu0 0
      %3269 = vmatpush.bf16.msra.mxu0 0
      %3270 = vmatpush.bf16.msra.mxu0 %v3258
      %3271 = vmatmul.bf16.gmra.mxu0 %v3261
      %v3272 = vpop.f32.mrf.mxu0
      %v3273 = vadd.f32 0.0, %v3272
      %v3274 = vpop.f32.mrf.mxu0
      %3275 = vdwg.mxu0
      %3276 = vrot.lane.b32.xlu0 %v1069, 64
      %v3277 = vpop.permute.xlu0 %3276
      %v3280 = vsel %vm2917, %v2869, 0
      %3282 = vmatpush.bf16.msra.mxu0 0
      %3283 = vmatpush.bf16.msra.mxu0 0
      %3284 = vmatpush.bf16.msra.mxu0 0
      %3285 = vmatpush.bf16.msra.mxu0 0
      %3286 = vmatpush.bf16.msra.mxu0 0
      %3287 = vmatpush.bf16.msra.mxu0 0
      %3288 = vmatpush.bf16.msra.mxu0 0
      %3289 = vmatpush.bf16.msra.mxu0 %v3277
      %3290 = vmatmul.bf16.gmra.mxu0 %v3280
      %v3291 = vpop.f32.mrf.mxu0
      %v3292 = vadd.f32 0.0, %v3291
      %v3293 = vpop.f32.mrf.mxu0
      %3294 = vdwg.mxu0
      %3295 = vrot.lane.b32.xlu0 %v1093, 64
      %v3296 = vpop.permute.xlu0 %3295
      %v3299 = vsel %vm2917, %v2870, 0
      %3301 = vmatpush.bf16.msra.mxu0 0
      %3302 = vmatpush.bf16.msra.mxu0 0
      %3303 = vmatpush.bf16.msra.mxu0 0
      %3304 = vmatpush.bf16.msra.mxu0 0
      %3305 = vmatpush.bf16.msra.mxu0 0
      %3306 = vmatpush.bf16.msra.mxu0 0
      %3307 = vmatpush.bf16.msra.mxu0 0
      %3308 = vmatpush.bf16.msra.mxu0 %v3296
      %3309 = vmatmul.bf16.gmra.mxu0 %v3299
      %v3310 = vpop.f32.mrf.mxu0
      %v3311 = vadd.f32 0.0, %v3310
      %v3312 = vpop.f32.mrf.mxu0
      %3313 = vdwg.mxu0
      %3314 = vrot.lane.b32.xlu0 %v1117, 64
      %v3315 = vpop.permute.xlu0 %3314
      %v3318 = vsel %vm2917, %v2871, 0
      %3320 = vmatpush.bf16.msra.mxu0 0
      %3321 = vmatpush.bf16.msra.mxu0 0
      %3322 = vmatpush.bf16.msra.mxu0 0
      %3323 = vmatpush.bf16.msra.mxu0 0
      %3324 = vmatpush.bf16.msra.mxu0 0
      %3325 = vmatpush.bf16.msra.mxu0 0
      %3326 = vmatpush.bf16.msra.mxu0 0
      %3327 = vmatpush.bf16.msra.mxu0 %v3315
      %3328 = vmatmul.bf16.gmra.mxu0 %v3318
      %v3329 = vpop.f32.mrf.mxu0
      %v3330 = vadd.f32 0.0, %v3329
      %v3331 = vpop.f32.mrf.mxu0
      %3332 = vdwg.mxu0
      %3333 = vrot.lane.b32.xlu0 %v1141, 64
      %v3334 = vpop.permute.xlu0 %3333
      %v3337 = vsel %vm2917, %v2872, 0
      %3339 = vmatpush.bf16.msra.mxu0 0
      %3340 = vmatpush.bf16.msra.mxu0 0
      %3341 = vmatpush.bf16.msra.mxu0 0
      %3342 = vmatpush.bf16.msra.mxu0 0
      %3343 = vmatpush.bf16.msra.mxu0 0
      %3344 = vmatpush.bf16.msra.mxu0 0
      %3345 = vmatpush.bf16.msra.mxu0 0
      %3346 = vmatpush.bf16.msra.mxu0 %v3334
      %3347 = vmatmul.bf16.gmra.mxu0 %v3337
      %v3348 = vpop.f32.mrf.mxu0
      %v3349 = vadd.f32 0.0, %v3348
      %v3350 = vpop.f32.mrf.mxu0
      %3351 = vdwg.mxu0
      %3352 = vrot.lane.b32.xlu0 %v1165, 64
      %v3353 = vpop.permute.xlu0 %3352
      %v3356 = vsel %vm2917, %v2873, 0
      %3358 = vmatpush.bf16.msra.mxu0 0
      %3359 = vmatpush.bf16.msra.mxu0 0
      %3360 = vmatpush.bf16.msra.mxu0 0
      %3361 = vmatpush.bf16.msra.mxu0 0
      %3362 = vmatpush.bf16.msra.mxu0 0
      %3363 = vmatpush.bf16.msra.mxu0 0
      %3364 = vmatpush.bf16.msra.mxu0 0
      %3365 = vmatpush.bf16.msra.mxu0 %v3353
      %3366 = vmatmul.bf16.gmra.mxu0 %v3356
      %v3367 = vpop.f32.mrf.mxu0
      %v3368 = vadd.f32 0.0, %v3367
      %v3369 = vpop.f32.mrf.mxu0
      %3370 = vdwg.mxu0
      %3371 = vrot.lane.b32.xlu0 %v1189, 64
      %v3372 = vpop.permute.xlu0 %3371
      %v3375 = vsel %vm2917, %v2874, 0
      %3377 = vmatpush.bf16.msra.mxu0 0
      %3378 = vmatpush.bf16.msra.mxu0 0
      %3379 = vmatpush.bf16.msra.mxu0 0
      %3380 = vmatpush.bf16.msra.mxu0 0
      %3381 = vmatpush.bf16.msra.mxu0 0
      %3382 = vmatpush.bf16.msra.mxu0 0
      %3383 = vmatpush.bf16.msra.mxu0 0
      %3384 = vmatpush.bf16.msra.mxu0 %v3372
      %3385 = vmatmul.bf16.gmra.mxu0 %v3375
      %v3386 = vpop.f32.mrf.mxu0
      %v3387 = vadd.f32 0.0, %v3386
      %v3388 = vpop.f32.mrf.mxu0
      %3389 = vdwg.mxu0
      %3390 = vrot.lane.b32.xlu0 %v1213, 64
      %v3391 = vpop.permute.xlu0 %3390
      %v3394 = vsel %vm2917, %v2875, 0
      %3396 = vmatpush.bf16.msra.mxu0 0
      %3397 = vmatpush.bf16.msra.mxu0 0
      %3398 = vmatpush.bf16.msra.mxu0 0
      %3399 = vmatpush.bf16.msra.mxu0 0
      %3400 = vmatpush.bf16.msra.mxu0 0
      %3401 = vmatpush.bf16.msra.mxu0 0
      %3402 = vmatpush.bf16.msra.mxu0 0
      %3403 = vmatpush.bf16.msra.mxu0 %v3391
      %3404 = vmatmul.bf16.gmra.mxu0 %v3394
      %v3405 = vpop.f32.mrf.mxu0
      %v3406 = vadd.f32 0.0, %v3405
      %v3407 = vpop.f32.mrf.mxu0
      %3408 = vdwg.mxu0
      %3409 = vrot.lane.b32.xlu0 %v1237, 64
      %v3410 = vpop.permute.xlu0 %3409
      %v3413 = vsel %vm2917, %v2876, 0
      %3415 = vmatpush.bf16.msra.mxu0 0
      %3416 = vmatpush.bf16.msra.mxu0 0
      %3417 = vmatpush.bf16.msra.mxu0 0
      %3418 = vmatpush.bf16.msra.mxu0 0
      %3419 = vmatpush.bf16.msra.mxu0 0
      %3420 = vmatpush.bf16.msra.mxu0 0
      %3421 = vmatpush.bf16.msra.mxu0 0
      %3422 = vmatpush.bf16.msra.mxu0 %v3410
      %3423 = vmatmul.bf16.gmra.mxu0 %v3413
      %v3424 = vpop.f32.mrf.mxu0
      %v3425 = vadd.f32 0.0, %v3424
      %v3426 = vpop.f32.mrf.mxu0
      %3427 = vdwg.mxu0
      %3428 = vrot.lane.b32.xlu0 %v1261, 64
      %v3429 = vpop.permute.xlu0 %3428
      %v3432 = vsel %vm2917, %v2877, 0
      %3434 = vmatpush.bf16.msra.mxu0 0
      %3435 = vmatpush.bf16.msra.mxu0 0
      %3436 = vmatpush.bf16.msra.mxu0 0
      %3437 = vmatpush.bf16.msra.mxu0 0
      %3438 = vmatpush.bf16.msra.mxu0 0
      %3439 = vmatpush.bf16.msra.mxu0 0
      %3440 = vmatpush.bf16.msra.mxu0 0
      %3441 = vmatpush.bf16.msra.mxu0 %v3429
      %3442 = vmatmul.bf16.gmra.mxu0 %v3432
      %v3443 = vpop.f32.mrf.mxu0
      %v3444 = vadd.f32 0.0, %v3443
      %v3445 = vpop.f32.mrf.mxu0
      %3446 = vdwg.mxu0
      %3447 = vrot.lane.b32.xlu0 %v1285, 64
      %v3448 = vpop.permute.xlu0 %3447
      %v3451 = vsel %vm2917, %v2878, 0
      %3453 = vmatpush.bf16.msra.mxu0 0
      %3454 = vmatpush.bf16.msra.mxu0 0
      %3455 = vmatpush.bf16.msra.mxu0 0
      %3456 = vmatpush.bf16.msra.mxu0 0
      %3457 = vmatpush.bf16.msra.mxu0 0
      %3458 = vmatpush.bf16.msra.mxu0 0
      %3459 = vmatpush.bf16.msra.mxu0 0
      %3460 = vmatpush.bf16.msra.mxu0 %v3448
      %3461 = vmatmul.bf16.gmra.mxu0 %v3451
      %v3462 = vpop.f32.mrf.mxu0
      %v3463 = vadd.f32 0.0, %v3462
      %v3464 = vpop.f32.mrf.mxu0
      %3465 = vdwg.mxu0
      %3466 = vrot.lane.b32.xlu0 %v1309, 64
      %v3467 = vpop.permute.xlu0 %3466
      %v3470 = vsel %vm2917, %v2879, 0
      %3472 = vmatpush.bf16.msra.mxu0 0
      %3473 = vmatpush.bf16.msra.mxu0 0
      %3474 = vmatpush.bf16.msra.mxu0 0
      %3475 = vmatpush.bf16.msra.mxu0 0
      %3476 = vmatpush.bf16.msra.mxu0 0
      %3477 = vmatpush.bf16.msra.mxu0 0
      %3478 = vmatpush.bf16.msra.mxu0 0
      %3479 = vmatpush.bf16.msra.mxu0 %v3467
      %3480 = vmatmul.bf16.gmra.mxu0 %v3470
      %v3481 = vpop.f32.mrf.mxu0
      %v3482 = vadd.f32 0.0, %v3481
      %v3483 = vpop.f32.mrf.mxu0
      %3484 = vdwg.mxu0
      %3485 = vrot.lane.b32.xlu0 %v1333, 64
      %v3486 = vpop.permute.xlu0 %3485
      %v3489 = vsel %vm2917, %v2880, 0
      %3491 = vmatpush.bf16.msra.mxu0 0
      %3492 = vmatpush.bf16.msra.mxu0 0
      %3493 = vmatpush.bf16.msra.mxu0 0
      %3494 = vmatpush.bf16.msra.mxu0 0
      %3495 = vmatpush.bf16.msra.mxu0 0
      %3496 = vmatpush.bf16.msra.mxu0 0
      %3497 = vmatpush.bf16.msra.mxu0 0
      %3498 = vmatpush.bf16.msra.mxu0 %v3486
      %3499 = vmatmul.bf16.gmra.mxu0 %v3489
      %v3500 = vpop.f32.mrf.mxu0
      %v3501 = vadd.f32 0.0, %v3500
      %v3502 = vpop.f32.mrf.mxu0
      %3503 = vdwg.mxu0
      %3504 = vrot.lane.b32.xlu0 %v1357, 64
      %v3505 = vpop.permute.xlu0 %3504
      %v3508 = vsel %vm2917, %v2881, 0
      %3510 = vmatpush.bf16.msra.mxu0 0
      %3511 = vmatpush.bf16.msra.mxu0 0
      %3512 = vmatpush.bf16.msra.mxu0 0
      %3513 = vmatpush.bf16.msra.mxu0 0
      %3514 = vmatpush.bf16.msra.mxu0 0
      %3515 = vmatpush.bf16.msra.mxu0 0
      %3516 = vmatpush.bf16.msra.mxu0 0
      %3517 = vmatpush.bf16.msra.mxu0 %v3505
      %3518 = vmatmul.bf16.gmra.mxu0 %v3508
      %v3519 = vpop.f32.mrf.mxu0
      %v3520 = vadd.f32 0.0, %v3519
      %v3521 = vpop.f32.mrf.mxu0
      %3522 = vdwg.mxu0
      %3523 = vrot.lane.b32.xlu0 %v1381, 64
      %v3524 = vpop.permute.xlu0 %3523
      %v3527 = vsel %vm2917, %v2882, 0
      %3529 = vmatpush.bf16.msra.mxu0 0
      %3530 = vmatpush.bf16.msra.mxu0 0
      %3531 = vmatpush.bf16.msra.mxu0 0
      %3532 = vmatpush.bf16.msra.mxu0 0
      %3533 = vmatpush.bf16.msra.mxu0 0
      %3534 = vmatpush.bf16.msra.mxu0 0
      %3535 = vmatpush.bf16.msra.mxu0 0
      %3536 = vmatpush.bf16.msra.mxu0 %v3524
      %3537 = vmatmul.bf16.gmra.mxu0 %v3527
      %v3538 = vpop.f32.mrf.mxu0
      %v3539 = vadd.f32 0.0, %v3538
      %v3540 = vpop.f32.mrf.mxu0
      %3541 = vdwg.mxu0
      %3542 = vrot.lane.b32.xlu0 %v1405, 64
      %v3543 = vpop.permute.xlu0 %3542
      %v3546 = vsel %vm2917, %v2883, 0
      %3548 = vmatpush.bf16.msra.mxu0 0
      %3549 = vmatpush.bf16.msra.mxu0 0
      %3550 = vmatpush.bf16.msra.mxu0 0
      %3551 = vmatpush.bf16.msra.mxu0 0
      %3552 = vmatpush.bf16.msra.mxu0 0
      %3553 = vmatpush.bf16.msra.mxu0 0
      %3554 = vmatpush.bf16.msra.mxu0 0
      %3555 = vmatpush.bf16.msra.mxu0 %v3543
      %3556 = vmatmul.bf16.gmra.mxu0 %v3546
      %v3557 = vpop.f32.mrf.mxu0
      %v3558 = vadd.f32 0.0, %v3557
      %v3559 = vpop.f32.mrf.mxu0
      %3560 = vdwg.mxu0
      %3561 = vrot.lane.b32.xlu0 %v1429, 64
      %v3562 = vpop.permute.xlu0 %3561
      %v3565 = vsel %vm2917, %v2884, 0
      %3567 = vmatpush.bf16.msra.mxu0 0
      %3568 = vmatpush.bf16.msra.mxu0 0
      %3569 = vmatpush.bf16.msra.mxu0 0
      %3570 = vmatpush.bf16.msra.mxu0 0
      %3571 = vmatpush.bf16.msra.mxu0 0
      %3572 = vmatpush.bf16.msra.mxu0 0
      %3573 = vmatpush.bf16.msra.mxu0 0
      %3574 = vmatpush.bf16.msra.mxu0 %v3562
      %3575 = vmatmul.bf16.gmra.mxu0 %v3565
      %v3576 = vpop.f32.mrf.mxu0
      %v3577 = vadd.f32 0.0, %v3576
      %v3578 = vpop.f32.mrf.mxu0
      %3579 = vdwg.mxu0
      %3580 = vrot.lane.b32.xlu0 %v1453, 64
      %v3581 = vpop.permute.xlu0 %3580
      %v3584 = vsel %vm2917, %v2885, 0
      %3586 = vmatpush.bf16.msra.mxu0 0
      %3587 = vmatpush.bf16.msra.mxu0 0
      %3588 = vmatpush.bf16.msra.mxu0 0
      %3589 = vmatpush.bf16.msra.mxu0 0
      %3590 = vmatpush.bf16.msra.mxu0 0
      %3591 = vmatpush.bf16.msra.mxu0 0
      %3592 = vmatpush.bf16.msra.mxu0 0
      %3593 = vmatpush.bf16.msra.mxu0 %v3581
      %3594 = vmatmul.bf16.gmra.mxu0 %v3584
      %v3595 = vpop.f32.mrf.mxu0
      %v3596 = vadd.f32 0.0, %v3595
      %v3597 = vpop.f32.mrf.mxu0
      %3598 = vdwg.mxu0
      %3599 = vrot.lane.b32.xlu0 %v1477, 64
      %v3600 = vpop.permute.xlu0 %3599
      %v3603 = vsel %vm2917, %v2886, 0
      %3605 = vmatpush.bf16.msra.mxu0 0
      %3606 = vmatpush.bf16.msra.mxu0 0
      %3607 = vmatpush.bf16.msra.mxu0 0
      %3608 = vmatpush.bf16.msra.mxu0 0
      %3609 = vmatpush.bf16.msra.mxu0 0
      %3610 = vmatpush.bf16.msra.mxu0 0
      %3611 = vmatpush.bf16.msra.mxu0 0
      %3612 = vmatpush.bf16.msra.mxu0 %v3600
      %3613 = vmatmul.bf16.gmra.mxu0 %v3603
      %v3614 = vpop.f32.mrf.mxu0
      %v3615 = vadd.f32 0.0, %v3614
      %v3616 = vpop.f32.mrf.mxu0
      %3617 = vdwg.mxu0
      %3618 = vrot.lane.b32.xlu0 %v1501, 64
      %v3619 = vpop.permute.xlu0 %3618
      %v3622 = vsel %vm2917, %v2887, 0
      %3624 = vmatpush.bf16.msra.mxu0 0
      %3625 = vmatpush.bf16.msra.mxu0 0
      %3626 = vmatpush.bf16.msra.mxu0 0
      %3627 = vmatpush.bf16.msra.mxu0 0
      %3628 = vmatpush.bf16.msra.mxu0 0
      %3629 = vmatpush.bf16.msra.mxu0 0
      %3630 = vmatpush.bf16.msra.mxu0 0
      %3631 = vmatpush.bf16.msra.mxu0 %v3619
      %3632 = vmatmul.bf16.gmra.mxu0 %v3622
      %v3633 = vpop.f32.mrf.mxu0
      %v3634 = vadd.f32 0.0, %v3633
      %v3635 = vpop.f32.mrf.mxu0
      %3636 = vdwg.mxu0
      %3637 = vrot.lane.b32.xlu0 %v1525, 64
      %v3638 = vpop.permute.xlu0 %3637
      %v3641 = vsel %vm2917, %v2888, 0
      %3643 = vmatpush.bf16.msra.mxu0 0
      %3644 = vmatpush.bf16.msra.mxu0 0
      %3645 = vmatpush.bf16.msra.mxu0 0
      %3646 = vmatpush.bf16.msra.mxu0 0
      %3647 = vmatpush.bf16.msra.mxu0 0
      %3648 = vmatpush.bf16.msra.mxu0 0
      %3649 = vmatpush.bf16.msra.mxu0 0
      %3650 = vmatpush.bf16.msra.mxu0 %v3638
      %3651 = vmatmul.bf16.gmra.mxu0 %v3641
      %v3652 = vpop.f32.mrf.mxu0
      %v3653 = vadd.f32 0.0, %v3652
      %v3654 = vpop.f32.mrf.mxu0
      %3655 = vdwg.mxu0
      %3656 = vrot.lane.b32.xlu0 %v1549, 64
      %v3657 = vpop.permute.xlu0 %3656
      %v3660 = vsel %vm2917, %v2889, 0
      %3662 = vmatpush.bf16.msra.mxu0 0
      %3663 = vmatpush.bf16.msra.mxu0 0
      %3664 = vmatpush.bf16.msra.mxu0 0
      %3665 = vmatpush.bf16.msra.mxu0 0
      %3666 = vmatpush.bf16.msra.mxu0 0
      %3667 = vmatpush.bf16.msra.mxu0 0
      %3668 = vmatpush.bf16.msra.mxu0 0
      %3669 = vmatpush.bf16.msra.mxu0 %v3657
      %3670 = vmatmul.bf16.gmra.mxu0 %v3660
      %v3671 = vpop.f32.mrf.mxu0
      %v3672 = vadd.f32 0.0, %v3671
      %v3673 = vpop.f32.mrf.mxu0
      %3674 = vdwg.mxu0
      %3675 = vrot.lane.b32.xlu0 %v1573, 64
      %v3676 = vpop.permute.xlu0 %3675
      %v3679 = vsel %vm2917, %v2890, 0
      %3681 = vmatpush.bf16.msra.mxu0 0
      %3682 = vmatpush.bf16.msra.mxu0 0
      %3683 = vmatpush.bf16.msra.mxu0 0
      %3684 = vmatpush.bf16.msra.mxu0 0
      %3685 = vmatpush.bf16.msra.mxu0 0
      %3686 = vmatpush.bf16.msra.mxu0 0
      %3687 = vmatpush.bf16.msra.mxu0 0
      %3688 = vmatpush.bf16.msra.mxu0 %v3676
      %3689 = vmatmul.bf16.gmra.mxu0 %v3679
      %v3690 = vpop.f32.mrf.mxu0
      %v3691 = vadd.f32 0.0, %v3690
      %v3692 = vpop.f32.mrf.mxu0
      %3693 = vdwg.mxu0
      %3694 = vrot.lane.b32.xlu0 %v1597, 64
      %v3695 = vpop.permute.xlu0 %3694
      %v3698 = vsel %vm2917, %v2891, 0
      %3700 = vmatpush.bf16.msra.mxu0 0
      %3701 = vmatpush.bf16.msra.mxu0 0
      %3702 = vmatpush.bf16.msra.mxu0 0
      %3703 = vmatpush.bf16.msra.mxu0 0
      %3704 = vmatpush.bf16.msra.mxu0 0
      %3705 = vmatpush.bf16.msra.mxu0 0
      %3706 = vmatpush.bf16.msra.mxu0 0
      %3707 = vmatpush.bf16.msra.mxu0 %v3695
      %3708 = vmatmul.bf16.gmra.mxu0 %v3698
      %v3709 = vpop.f32.mrf.mxu0
      %v3710 = vadd.f32 0.0, %v3709
      %v3711 = vpop.f32.mrf.mxu0
      %3712 = vdwg.mxu0
      %3713 = vrot.lane.b32.xlu0 %v1621, 64
      %v3714 = vpop.permute.xlu0 %3713
      %v3717 = vsel %vm2917, %v2892, 0
      %3719 = vmatpush.bf16.msra.mxu0 0
      %3720 = vmatpush.bf16.msra.mxu0 0
      %3721 = vmatpush.bf16.msra.mxu0 0
      %3722 = vmatpush.bf16.msra.mxu0 0
      %3723 = vmatpush.bf16.msra.mxu0 0
      %3724 = vmatpush.bf16.msra.mxu0 0
      %3725 = vmatpush.bf16.msra.mxu0 0
      %3726 = vmatpush.bf16.msra.mxu0 %v3714
      %3727 = vmatmul.bf16.gmra.mxu0 %v3717
      %v3728 = vpop.f32.mrf.mxu0
      %v3729 = vadd.f32 0.0, %v3728
      %v3730 = vpop.f32.mrf.mxu0
      %3731 = vdwg.mxu0
      %3732 = vrot.lane.b32.xlu0 %v1645, 64
      %v3733 = vpop.permute.xlu0 %3732
      %v3736 = vsel %vm2917, %v2893, 0
      %3738 = vmatpush.bf16.msra.mxu0 0
      %3739 = vmatpush.bf16.msra.mxu0 0
      %3740 = vmatpush.bf16.msra.mxu0 0
      %3741 = vmatpush.bf16.msra.mxu0 0
      %3742 = vmatpush.bf16.msra.mxu0 0
      %3743 = vmatpush.bf16.msra.mxu0 0
      %3744 = vmatpush.bf16.msra.mxu0 0
      %3745 = vmatpush.bf16.msra.mxu0 %v3733
      %3746 = vmatmul.bf16.gmra.mxu0 %v3736
      %v3747 = vpop.f32.mrf.mxu0
      %v3748 = vadd.f32 0.0, %v3747
      %v3749 = vpop.f32.mrf.mxu0
      %3750 = vdwg.mxu0
      %3751 = vrot.lane.b32.xlu0 %v1669, 64
      %v3752 = vpop.permute.xlu0 %3751
      %v3755 = vsel %vm2917, %v2894, 0
      %3757 = vmatpush.bf16.msra.mxu0 0
      %3758 = vmatpush.bf16.msra.mxu0 0
      %3759 = vmatpush.bf16.msra.mxu0 0
      %3760 = vmatpush.bf16.msra.mxu0 0
      %3761 = vmatpush.bf16.msra.mxu0 0
      %3762 = vmatpush.bf16.msra.mxu0 0
      %3763 = vmatpush.bf16.msra.mxu0 0
      %3764 = vmatpush.bf16.msra.mxu0 %v3752
      %3765 = vmatmul.bf16.gmra.mxu0 %v3755
      %v3766 = vpop.f32.mrf.mxu0
      %v3767 = vadd.f32 0.0, %v3766
      %v3768 = vpop.f32.mrf.mxu0
      %3769 = vdwg.mxu0
      %3770 = vrot.lane.b32.xlu0 %v1693, 64
      %v3771 = vpop.permute.xlu0 %3770
      %v3774 = vsel %vm2917, %v2895, 0
      %3776 = vmatpush.bf16.msra.mxu0 0
      %3777 = vmatpush.bf16.msra.mxu0 0
      %3778 = vmatpush.bf16.msra.mxu0 0
      %3779 = vmatpush.bf16.msra.mxu0 0
      %3780 = vmatpush.bf16.msra.mxu0 0
      %3781 = vmatpush.bf16.msra.mxu0 0
      %3782 = vmatpush.bf16.msra.mxu0 0
      %3783 = vmatpush.bf16.msra.mxu0 %v3771
      %3784 = vmatmul.bf16.gmra.mxu0 %v3774
      %v3785 = vpop.f32.mrf.mxu0
      %v3786 = vadd.f32 0.0, %v3785
      %v3787 = vpop.f32.mrf.mxu0
      %3788 = vdwg.mxu0
      %3789 = vrot.lane.b32.xlu0 %v1717, 64
      %v3790 = vpop.permute.xlu0 %3789
      %v3793 = vsel %vm2917, %v2896, 0
      %3795 = vmatpush.bf16.msra.mxu0 0
      %3796 = vmatpush.bf16.msra.mxu0 0
      %3797 = vmatpush.bf16.msra.mxu0 0
      %3798 = vmatpush.bf16.msra.mxu0 0
      %3799 = vmatpush.bf16.msra.mxu0 0
      %3800 = vmatpush.bf16.msra.mxu0 0
      %3801 = vmatpush.bf16.msra.mxu0 0
      %3802 = vmatpush.bf16.msra.mxu0 %v3790
      %3803 = vmatmul.bf16.gmra.mxu0 %v3793
      %v3804 = vpop.f32.mrf.mxu0
      %v3805 = vadd.f32 0.0, %v3804
      %v3806 = vpop.f32.mrf.mxu0
      %3807 = vdwg.mxu0
      %3808 = vrot.lane.b32.xlu0 %v1741, 64
      %v3809 = vpop.permute.xlu0 %3808
      %v3812 = vsel %vm2917, %v2897, 0
      %3814 = vmatpush.bf16.msra.mxu0 0
      %3815 = vmatpush.bf16.msra.mxu0 0
      %3816 = vmatpush.bf16.msra.mxu0 0
      %3817 = vmatpush.bf16.msra.mxu0 0
      %3818 = vmatpush.bf16.msra.mxu0 0
      %3819 = vmatpush.bf16.msra.mxu0 0
      %3820 = vmatpush.bf16.msra.mxu0 0
      %3821 = vmatpush.bf16.msra.mxu0 %v3809
      %3822 = vmatmul.bf16.gmra.mxu0 %v3812
      %v3823 = vpop.f32.mrf.mxu0
      %v3824 = vadd.f32 0.0, %v3823
      %v3825 = vpop.f32.mrf.mxu0
      %3826 = vdwg.mxu0
      %3827 = vrot.lane.b32.xlu0 %v1765, 64
      %v3828 = vpop.permute.xlu0 %3827
      %v3831 = vsel %vm2917, %v2898, 0
      %3833 = vmatpush.bf16.msra.mxu0 0
      %3834 = vmatpush.bf16.msra.mxu0 0
      %3835 = vmatpush.bf16.msra.mxu0 0
      %3836 = vmatpush.bf16.msra.mxu0 0
      %3837 = vmatpush.bf16.msra.mxu0 0
      %3838 = vmatpush.bf16.msra.mxu0 0
      %3839 = vmatpush.bf16.msra.mxu0 0
      %3840 = vmatpush.bf16.msra.mxu0 %v3828
      %3841 = vmatmul.bf16.gmra.mxu0 %v3831
      %v3842 = vpop.f32.mrf.mxu0
      %v3843 = vadd.f32 0.0, %v3842
      %v3844 = vpop.f32.mrf.mxu0
      %3845 = vdwg.mxu0
      %3846 = vrot.lane.b32.xlu0 %v1789, 64
      %v3847 = vpop.permute.xlu0 %3846
      %v3850 = vsel %vm2917, %v2899, 0
      %3852 = vmatpush.bf16.msra.mxu0 0
      %3853 = vmatpush.bf16.msra.mxu0 0
      %3854 = vmatpush.bf16.msra.mxu0 0
      %3855 = vmatpush.bf16.msra.mxu0 0
      %3856 = vmatpush.bf16.msra.mxu0 0
      %3857 = vmatpush.bf16.msra.mxu0 0
      %3858 = vmatpush.bf16.msra.mxu0 0
      %3859 = vmatpush.bf16.msra.mxu0 %v3847
      %3860 = vmatmul.bf16.gmra.mxu0 %v3850
      %v3861 = vpop.f32.mrf.mxu0
      %v3862 = vadd.f32 0.0, %v3861
      %v3863 = vpop.f32.mrf.mxu0
      %3864 = vdwg.mxu0
      %3865 = vrot.lane.b32.xlu0 %v1813, 64
      %v3866 = vpop.permute.xlu0 %3865
      %v3869 = vsel %vm2917, %v2900, 0
      %3871 = vmatpush.bf16.msra.mxu0 0
      %3872 = vmatpush.bf16.msra.mxu0 0
      %3873 = vmatpush.bf16.msra.mxu0 0
      %3874 = vmatpush.bf16.msra.mxu0 0
      %3875 = vmatpush.bf16.msra.mxu0 0
      %3876 = vmatpush.bf16.msra.mxu0 0
      %3877 = vmatpush.bf16.msra.mxu0 0
      %3878 = vmatpush.bf16.msra.mxu0 %v3866
      %3879 = vmatmul.bf16.gmra.mxu0 %v3869
      %v3880 = vpop.f32.mrf.mxu0
      %v3881 = vadd.f32 0.0, %v3880
      %v3882 = vpop.f32.mrf.mxu0
      %3883 = vdwg.mxu0
      %3884 = vrot.lane.b32.xlu0 %v1837, 64
      %v3885 = vpop.permute.xlu0 %3884
      %v3888 = vsel %vm2917, %v2901, 0
      %3890 = vmatpush.bf16.msra.mxu0 0
      %3891 = vmatpush.bf16.msra.mxu0 0
      %3892 = vmatpush.bf16.msra.mxu0 0
      %3893 = vmatpush.bf16.msra.mxu0 0
      %3894 = vmatpush.bf16.msra.mxu0 0
      %3895 = vmatpush.bf16.msra.mxu0 0
      %3896 = vmatpush.bf16.msra.mxu0 0
      %3897 = vmatpush.bf16.msra.mxu0 %v3885
      %3898 = vmatmul.bf16.gmra.mxu0 %v3888
      %v3899 = vpop.f32.mrf.mxu0
      %v3900 = vadd.f32 0.0, %v3899
      %v3901 = vpop.f32.mrf.mxu0
      %3902 = vdwg.mxu0
      %3903 = vrot.lane.b32.xlu0 %v1861, 64
      %v3904 = vpop.permute.xlu0 %3903
      %v3907 = vsel %vm2917, %v2902, 0
      %3909 = vmatpush.bf16.msra.mxu0 0
      %3910 = vmatpush.bf16.msra.mxu0 0
      %3911 = vmatpush.bf16.msra.mxu0 0
      %3912 = vmatpush.bf16.msra.mxu0 0
      %3913 = vmatpush.bf16.msra.mxu0 0
      %3914 = vmatpush.bf16.msra.mxu0 0
      %3915 = vmatpush.bf16.msra.mxu0 0
      %3916 = vmatpush.bf16.msra.mxu0 %v3904
      %3917 = vmatmul.bf16.gmra.mxu0 %v3907
      %v3918 = vpop.f32.mrf.mxu0
      %v3919 = vadd.f32 0.0, %v3918
      %v3920 = vpop.f32.mrf.mxu0
      %3921 = vdwg.mxu0
      %3922 = vrot.lane.b32.xlu0 %v1885, 64
      %v3923 = vpop.permute.xlu0 %3922
      %v3926 = vsel %vm2917, %v2903, 0
      %3928 = vmatpush.bf16.msra.mxu0 0
      %3929 = vmatpush.bf16.msra.mxu0 0
      %3930 = vmatpush.bf16.msra.mxu0 0
      %3931 = vmatpush.bf16.msra.mxu0 0
      %3932 = vmatpush.bf16.msra.mxu0 0
      %3933 = vmatpush.bf16.msra.mxu0 0
      %3934 = vmatpush.bf16.msra.mxu0 0
      %3935 = vmatpush.bf16.msra.mxu0 %v3923
      %3936 = vmatmul.bf16.gmra.mxu0 %v3926
      %v3937 = vpop.f32.mrf.mxu0
      %v3938 = vadd.f32 0.0, %v3937
      %v3939 = vpop.f32.mrf.mxu0
      %3940 = vdwg.mxu0
      %3941 = vrot.lane.b32.xlu0 %v1909, 64
      %v3942 = vpop.permute.xlu0 %3941
      %v3945 = vsel %vm2917, %v2904, 0
      %3947 = vmatpush.bf16.msra.mxu0 0
      %3948 = vmatpush.bf16.msra.mxu0 0
      %3949 = vmatpush.bf16.msra.mxu0 0
      %3950 = vmatpush.bf16.msra.mxu0 0
      %3951 = vmatpush.bf16.msra.mxu0 0
      %3952 = vmatpush.bf16.msra.mxu0 0
      %3953 = vmatpush.bf16.msra.mxu0 0
      %3954 = vmatpush.bf16.msra.mxu0 %v3942
      %3955 = vmatmul.bf16.gmra.mxu0 %v3945
      %v3956 = vpop.f32.mrf.mxu0
      %v3957 = vadd.f32 0.0, %v3956
      %v3958 = vpop.f32.mrf.mxu0
      %3959 = vdwg.mxu0
      %3960 = vrot.lane.b32.xlu0 %v1933, 64
      %v3961 = vpop.permute.xlu0 %3960
      %v3964 = vsel %vm2917, %v2905, 0
      %3966 = vmatpush.bf16.msra.mxu0 0
      %3967 = vmatpush.bf16.msra.mxu0 0
      %3968 = vmatpush.bf16.msra.mxu0 0
      %3969 = vmatpush.bf16.msra.mxu0 0
      %3970 = vmatpush.bf16.msra.mxu0 0
      %3971 = vmatpush.bf16.msra.mxu0 0
      %3972 = vmatpush.bf16.msra.mxu0 0
      %3973 = vmatpush.bf16.msra.mxu0 %v3961
      %3974 = vmatmul.bf16.gmra.mxu0 %v3964
      %v3975 = vpop.f32.mrf.mxu0
      %v3976 = vadd.f32 0.0, %v3975
      %v3977 = vpop.f32.mrf.mxu0
      %3978 = vdwg.mxu0
      %3979 = vrot.lane.b32.xlu0 %v1957, 64
      %v3980 = vpop.permute.xlu0 %3979
      %v3983 = vsel %vm2917, %v2906, 0
      %3985 = vmatpush.bf16.msra.mxu0 0
      %3986 = vmatpush.bf16.msra.mxu0 0
      %3987 = vmatpush.bf16.msra.mxu0 0
      %3988 = vmatpush.bf16.msra.mxu0 0
      %3989 = vmatpush.bf16.msra.mxu0 0
      %3990 = vmatpush.bf16.msra.mxu0 0
      %3991 = vmatpush.bf16.msra.mxu0 0
      %3992 = vmatpush.bf16.msra.mxu0 %v3980
      %3993 = vmatmul.bf16.gmra.mxu0 %v3983
      %v3994 = vpop.f32.mrf.mxu0
      %v3995 = vadd.f32 0.0, %v3994
      %v3996 = vpop.f32.mrf.mxu0
      %3997 = vdwg.mxu0
      %3998 = vrot.lane.b32.xlu0 %v1981, 64
      %v3999 = vpop.permute.xlu0 %3998
      %v4002 = vsel %vm2917, %v2907, 0
      %4004 = vmatpush.bf16.msra.mxu0 0
      %4005 = vmatpush.bf16.msra.mxu0 0
      %4006 = vmatpush.bf16.msra.mxu0 0
      %4007 = vmatpush.bf16.msra.mxu0 0
      %4008 = vmatpush.bf16.msra.mxu0 0
      %4009 = vmatpush.bf16.msra.mxu0 0
      %4010 = vmatpush.bf16.msra.mxu0 0
      %4011 = vmatpush.bf16.msra.mxu0 %v3999
      %4012 = vmatmul.bf16.gmra.mxu0 %v4002
      %v4013 = vpop.f32.mrf.mxu0
      %v4014 = vadd.f32 0.0, %v4013
      %v4015 = vpop.f32.mrf.mxu0
      %4016 = vdwg.mxu0
      %4017 = vrot.lane.b32.xlu0 %v2005, 64
      %v4018 = vpop.permute.xlu0 %4017
      %v4021 = vsel %vm2917, %v2908, 0
      %4023 = vmatpush.bf16.msra.mxu0 0
      %4024 = vmatpush.bf16.msra.mxu0 0
      %4025 = vmatpush.bf16.msra.mxu0 0
      %4026 = vmatpush.bf16.msra.mxu0 0
      %4027 = vmatpush.bf16.msra.mxu0 0
      %4028 = vmatpush.bf16.msra.mxu0 0
      %4029 = vmatpush.bf16.msra.mxu0 0
      %4030 = vmatpush.bf16.msra.mxu0 %v4018
      %4031 = vmatmul.bf16.gmra.mxu0 %v4021
      %v4032 = vpop.f32.mrf.mxu0
      %v4033 = vadd.f32 0.0, %v4032
      %v4034 = vpop.f32.mrf.mxu0
      %4035 = vdwg.mxu0
      %4036 = vrot.lane.b32.xlu0 %v2029, 64
      %v4037 = vpop.permute.xlu0 %4036
      %v4040 = vsel %vm2917, %v2909, 0
      %4042 = vmatpush.bf16.msra.mxu0 0
      %4043 = vmatpush.bf16.msra.mxu0 0
      %4044 = vmatpush.bf16.msra.mxu0 0
      %4045 = vmatpush.bf16.msra.mxu0 0
      %4046 = vmatpush.bf16.msra.mxu0 0
      %4047 = vmatpush.bf16.msra.mxu0 0
      %4048 = vmatpush.bf16.msra.mxu0 0
      %4049 = vmatpush.bf16.msra.mxu0 %v4037
      %4050 = vmatmul.bf16.gmra.mxu0 %v4040
      %v4051 = vpop.f32.mrf.mxu0
      %v4052 = vadd.f32 0.0, %v4051
      %v4053 = vpop.f32.mrf.mxu0
      %4054 = vdwg.mxu0
      %4055 = vrot.lane.b32.xlu0 %v2053, 64
      %v4056 = vpop.permute.xlu0 %4055
      %v4059 = vsel %vm2917, %v2910, 0
      %4061 = vmatpush.bf16.msra.mxu0 0
      %4062 = vmatpush.bf16.msra.mxu0 0
      %4063 = vmatpush.bf16.msra.mxu0 0
      %4064 = vmatpush.bf16.msra.mxu0 0
      %4065 = vmatpush.bf16.msra.mxu0 0
      %4066 = vmatpush.bf16.msra.mxu0 0
      %4067 = vmatpush.bf16.msra.mxu0 0
      %4068 = vmatpush.bf16.msra.mxu0 %v4056
      %4069 = vmatmul.bf16.gmra.mxu0 %v4059
      %v4070 = vpop.f32.mrf.mxu0
      %v4071 = vadd.f32 0.0, %v4070
      %v4072 = vpop.f32.mrf.mxu0
      %4073 = vdwg.mxu0
      %4074 = vrot.lane.b32.xlu0 %v2077, 64
      %v4075 = vpop.permute.xlu0 %4074
      %v4078 = vsel %vm2917, %v2911, 0
      %4080 = vmatpush.bf16.msra.mxu0 0
      %4081 = vmatpush.bf16.msra.mxu0 0
      %4082 = vmatpush.bf16.msra.mxu0 0
      %4083 = vmatpush.bf16.msra.mxu0 0
      %4084 = vmatpush.bf16.msra.mxu0 0
      %4085 = vmatpush.bf16.msra.mxu0 0
      %4086 = vmatpush.bf16.msra.mxu0 0
      %4087 = vmatpush.bf16.msra.mxu0 %v4075
      %4088 = vmatmul.bf16.gmra.mxu0 %v4078
      %v4089 = vpop.f32.mrf.mxu0
      %v4090 = vadd.f32 0.0, %v4089
      %v4091 = vpop.f32.mrf.mxu0
      %4092 = vdwg.mxu0
      %4093 = vrot.lane.b32.xlu0 %v2101, 64
      %v4094 = vpop.permute.xlu0 %4093
      %v4097 = vsel %vm2917, %v2912, 0
      %4099 = vmatpush.bf16.msra.mxu0 0
      %4100 = vmatpush.bf16.msra.mxu0 0
      %4101 = vmatpush.bf16.msra.mxu0 0
      %4102 = vmatpush.bf16.msra.mxu0 0
      %4103 = vmatpush.bf16.msra.mxu0 0
      %4104 = vmatpush.bf16.msra.mxu0 0
      %4105 = vmatpush.bf16.msra.mxu0 0
      %4106 = vmatpush.bf16.msra.mxu0 %v4094
      %4107 = vmatmul.bf16.gmra.mxu0 %v4097
      %v4108 = vpop.f32.mrf.mxu0
      %v4109 = vadd.f32 0.0, %v4108
      %v4110 = vpop.f32.mrf.mxu0
      %4111 = vdwg.mxu0
      %4112 = vrot.lane.b32.xlu0 %v2125, 64
      %v4113 = vpop.permute.xlu0 %4112
      %v4116 = vsel %vm2917, %v2913, 0
      %4118 = vmatpush.bf16.msra.mxu0 0
      %4119 = vmatpush.bf16.msra.mxu0 0
      %4120 = vmatpush.bf16.msra.mxu0 0
      %4121 = vmatpush.bf16.msra.mxu0 0
      %4122 = vmatpush.bf16.msra.mxu0 0
      %4123 = vmatpush.bf16.msra.mxu0 0
      %4124 = vmatpush.bf16.msra.mxu0 0
      %4125 = vmatpush.bf16.msra.mxu0 %v4113
      %4126 = vmatmul.bf16.gmra.mxu0 %v4116
      %v4127 = vpop.f32.mrf.mxu0
      %v4128 = vadd.f32 0.0, %v4127
      %v4129 = vpop.f32.mrf.mxu0
      %4130 = vdwg.mxu0
      %v4131 = vrcp.pop %v2660
      %v4132 = vmul.f32 %v2660, %v4131
      %v4133 = vsub.f32 1.0, %v4132
      %v4134 = vmul.f32 %v4131, %v4133
      %v4135 = vadd.f32 %v4131, %v4134
      %vm4136 = vweird.f32 %v2660
      %vm4137 = vweird.f32 %v4131
      %vm4138 = vmor %vm4136, %vm4137
      %v4139 = vsel %vm4138, %v4131, %v4135
      %v4140 = vand.u32 2147483647, %v2660
      %vm4141 = vcmp.eq.f32.partialorder %v4140, 8.507059e+37
      %v4142 = vand.u32 %v2660, 2147483648
      %v4143 = vor.u32 1.1754944e-38, %v4142
      %v4144 = vsel %vm4141, %v4143, %v4139
      %v4145 = vmul.f32 1.0, %v4144
      %v4146 = vrcp.pop %v2663
      %v4147 = vmul.f32 %v2663, %v4146
      %v4148 = vsub.f32 1.0, %v4147
      %v4149 = vmul.f32 %v4146, %v4148
      %v4150 = vadd.f32 %v4146, %v4149
      %vm4151 = vweird.f32 %v2663
      %vm4152 = vweird.f32 %v4146
      %vm4153 = vmor %vm4151, %vm4152
      %v4154 = vsel %vm4153, %v4146, %v4150
      %v4155 = vand.u32 2147483647, %v2663
      %vm4156 = vcmp.eq.f32.partialorder %v4155, 8.507059e+37
      %v4157 = vand.u32 %v2663, 2147483648
      %v4158 = vor.u32 1.1754944e-38, %v4157
      %v4159 = vsel %vm4156, %v4158, %v4154
      %v4160 = vmul.f32 1.0, %v4159
      %v4161 = vrcp.pop %v2666
      %v4162 = vmul.f32 %v2666, %v4161
      %v4163 = vsub.f32 1.0, %v4162
      %v4164 = vmul.f32 %v4161, %v4163
      %v4165 = vadd.f32 %v4161, %v4164
      %vm4166 = vweird.f32 %v2666
      %vm4167 = vweird.f32 %v4161
      %vm4168 = vmor %vm4166, %vm4167
      %v4169 = vsel %vm4168, %v4161, %v4165
      %v4170 = vand.u32 2147483647, %v2666
      %vm4171 = vcmp.eq.f32.partialorder %v4170, 8.507059e+37
      %v4172 = vand.u32 %v2666, 2147483648
      %v4173 = vor.u32 1.1754944e-38, %v4172
      %v4174 = vsel %vm4171, %v4173, %v4169
      %v4175 = vmul.f32 1.0, %v4174
      %v4176 = vrcp.pop %v2669
      %v4177 = vmul.f32 %v2669, %v4176
      %v4178 = vsub.f32 1.0, %v4177
      %v4179 = vmul.f32 %v4176, %v4178
      %v4180 = vadd.f32 %v4176, %v4179
      %vm4181 = vweird.f32 %v2669
      %vm4182 = vweird.f32 %v4176
      %vm4183 = vmor %vm4181, %vm4182
      %v4184 = vsel %vm4183, %v4176, %v4180
      %v4185 = vand.u32 2147483647, %v2669
      %vm4186 = vcmp.eq.f32.partialorder %v4185, 8.507059e+37
      %v4187 = vand.u32 %v2669, 2147483648
      %v4188 = vor.u32 1.1754944e-38, %v4187
      %v4189 = vsel %vm4186, %v4188, %v4184
      %v4190 = vmul.f32 1.0, %v4189
      %v4191 = vrcp.pop %v2672
      %v4192 = vmul.f32 %v2672, %v4191
      %v4193 = vsub.f32 1.0, %v4192
      %v4194 = vmul.f32 %v4191, %v4193
      %v4195 = vadd.f32 %v4191, %v4194
      %vm4196 = vweird.f32 %v2672
      %vm4197 = vweird.f32 %v4191
      %vm4198 = vmor %vm4196, %vm4197
      %v4199 = vsel %vm4198, %v4191, %v4195
      %v4200 = vand.u32 2147483647, %v2672
      %vm4201 = vcmp.eq.f32.partialorder %v4200, 8.507059e+37
      %v4202 = vand.u32 %v2672, 2147483648
      %v4203 = vor.u32 1.1754944e-38, %v4202
      %v4204 = vsel %vm4201, %v4203, %v4199
      %v4205 = vmul.f32 1.0, %v4204
      %v4206 = vrcp.pop %v2675
      %v4207 = vmul.f32 %v2675, %v4206
      %v4208 = vsub.f32 1.0, %v4207
      %v4209 = vmul.f32 %v4206, %v4208
      %v4210 = vadd.f32 %v4206, %v4209
      %vm4211 = vweird.f32 %v2675
      %vm4212 = vweird.f32 %v4206
      %vm4213 = vmor %vm4211, %vm4212
      %v4214 = vsel %vm4213, %v4206, %v4210
      %v4215 = vand.u32 2147483647, %v2675
      %vm4216 = vcmp.eq.f32.partialorder %v4215, 8.507059e+37
      %v4217 = vand.u32 %v2675, 2147483648
      %v4218 = vor.u32 1.1754944e-38, %v4217
      %v4219 = vsel %vm4216, %v4218, %v4214
      %v4220 = vmul.f32 1.0, %v4219
      %v4221 = vrcp.pop %v2678
      %v4222 = vmul.f32 %v2678, %v4221
      %v4223 = vsub.f32 1.0, %v4222
      %v4224 = vmul.f32 %v4221, %v4223
      %v4225 = vadd.f32 %v4221, %v4224
      %vm4226 = vweird.f32 %v2678
      %vm4227 = vweird.f32 %v4221
      %vm4228 = vmor %vm4226, %vm4227
      %v4229 = vsel %vm4228, %v4221, %v4225
      %v4230 = vand.u32 2147483647, %v2678
      %vm4231 = vcmp.eq.f32.partialorder %v4230, 8.507059e+37
      %v4232 = vand.u32 %v2678, 2147483648
      %v4233 = vor.u32 1.1754944e-38, %v4232
      %v4234 = vsel %vm4231, %v4233, %v4229
      %v4235 = vmul.f32 1.0, %v4234
      %v4236 = vrcp.pop %v2681
      %v4237 = vmul.f32 %v2681, %v4236
      %v4238 = vsub.f32 1.0, %v4237
      %v4239 = vmul.f32 %v4236, %v4238
      %v4240 = vadd.f32 %v4236, %v4239
      %vm4241 = vweird.f32 %v2681
      %vm4242 = vweird.f32 %v4236
      %vm4243 = vmor %vm4241, %vm4242
      %v4244 = vsel %vm4243, %v4236, %v4240
      %v4245 = vand.u32 2147483647, %v2681
      %vm4246 = vcmp.eq.f32.partialorder %v4245, 8.507059e+37
      %v4247 = vand.u32 %v2681, 2147483648
      %v4248 = vor.u32 1.1754944e-38, %v4247
      %v4249 = vsel %vm4246, %v4248, %v4244
      %v4250 = vmul.f32 1.0, %v4249
      %v4251 = vrcp.pop %v2684
      %v4252 = vmul.f32 %v2684, %v4251
      %v4253 = vsub.f32 1.0, %v4252
      %v4254 = vmul.f32 %v4251, %v4253
      %v4255 = vadd.f32 %v4251, %v4254
      %vm4256 = vweird.f32 %v2684
      %vm4257 = vweird.f32 %v4251
      %vm4258 = vmor %vm4256, %vm4257
      %v4259 = vsel %vm4258, %v4251, %v4255
      %v4260 = vand.u32 2147483647, %v2684
      %vm4261 = vcmp.eq.f32.partialorder %v4260, 8.507059e+37
      %v4262 = vand.u32 %v2684, 2147483648
      %v4263 = vor.u32 1.1754944e-38, %v4262
      %v4264 = vsel %vm4261, %v4263, %v4259
      %v4265 = vmul.f32 1.0, %v4264
      %v4266 = vrcp.pop %v2687
      %v4267 = vmul.f32 %v2687, %v4266
      %v4268 = vsub.f32 1.0, %v4267
      %v4269 = vmul.f32 %v4266, %v4268
      %v4270 = vadd.f32 %v4266, %v4269
      %vm4271 = vweird.f32 %v2687
      %vm4272 = vweird.f32 %v4266
      %vm4273 = vmor %vm4271, %vm4272
      %v4274 = vsel %vm4273, %v4266, %v4270
      %v4275 = vand.u32 2147483647, %v2687
      %vm4276 = vcmp.eq.f32.partialorder %v4275, 8.507059e+37
      %v4277 = vand.u32 %v2687, 2147483648
      %v4278 = vor.u32 1.1754944e-38, %v4277
      %v4279 = vsel %vm4276, %v4278, %v4274
      %v4280 = vmul.f32 1.0, %v4279
      %v4281 = vrcp.pop %v2690
      %v4282 = vmul.f32 %v2690, %v4281
      %v4283 = vsub.f32 1.0, %v4282
      %v4284 = vmul.f32 %v4281, %v4283
      %v4285 = vadd.f32 %v4281, %v4284
      %vm4286 = vweird.f32 %v2690
      %vm4287 = vweird.f32 %v4281
      %vm4288 = vmor %vm4286, %vm4287
      %v4289 = vsel %vm4288, %v4281, %v4285
      %v4290 = vand.u32 2147483647, %v2690
      %vm4291 = vcmp.eq.f32.partialorder %v4290, 8.507059e+37
      %v4292 = vand.u32 %v2690, 2147483648
      %v4293 = vor.u32 1.1754944e-38, %v4292
      %v4294 = vsel %vm4291, %v4293, %v4289
      %v4295 = vmul.f32 1.0, %v4294
      %v4296 = vrcp.pop %v2693
      %v4297 = vmul.f32 %v2693, %v4296
      %v4298 = vsub.f32 1.0, %v4297
      %v4299 = vmul.f32 %v4296, %v4298
      %v4300 = vadd.f32 %v4296, %v4299
      %vm4301 = vweird.f32 %v2693
      %vm4302 = vweird.f32 %v4296
      %vm4303 = vmor %vm4301, %vm4302
      %v4304 = vsel %vm4303, %v4296, %v4300
      %v4305 = vand.u32 2147483647, %v2693
      %vm4306 = vcmp.eq.f32.partialorder %v4305, 8.507059e+37
      %v4307 = vand.u32 %v2693, 2147483648
      %v4308 = vor.u32 1.1754944e-38, %v4307
      %v4309 = vsel %vm4306, %v4308, %v4304
      %v4310 = vmul.f32 1.0, %v4309
      %v4311 = vrcp.pop %v2696
      %v4312 = vmul.f32 %v2696, %v4311
      %v4313 = vsub.f32 1.0, %v4312
      %v4314 = vmul.f32 %v4311, %v4313
      %v4315 = vadd.f32 %v4311, %v4314
      %vm4316 = vweird.f32 %v2696
      %vm4317 = vweird.f32 %v4311
      %vm4318 = vmor %vm4316, %vm4317
      %v4319 = vsel %vm4318, %v4311, %v4315
      %v4320 = vand.u32 2147483647, %v2696
      %vm4321 = vcmp.eq.f32.partialorder %v4320, 8.507059e+37
      %v4322 = vand.u32 %v2696, 2147483648
      %v4323 = vor.u32 1.1754944e-38, %v4322
      %v4324 = vsel %vm4321, %v4323, %v4319
      %v4325 = vmul.f32 1.0, %v4324
      %v4326 = vrcp.pop %v2699
      %v4327 = vmul.f32 %v2699, %v4326
      %v4328 = vsub.f32 1.0, %v4327
      %v4329 = vmul.f32 %v4326, %v4328
      %v4330 = vadd.f32 %v4326, %v4329
      %vm4331 = vweird.f32 %v2699
      %vm4332 = vweird.f32 %v4326
      %vm4333 = vmor %vm4331, %vm4332
      %v4334 = vsel %vm4333, %v4326, %v4330
      %v4335 = vand.u32 2147483647, %v2699
      %vm4336 = vcmp.eq.f32.partialorder %v4335, 8.507059e+37
      %v4337 = vand.u32 %v2699, 2147483648
      %v4338 = vor.u32 1.1754944e-38, %v4337
      %v4339 = vsel %vm4336, %v4338, %v4334
      %v4340 = vmul.f32 1.0, %v4339
      %v4341 = vrcp.pop %v2702
      %v4342 = vmul.f32 %v2702, %v4341
      %v4343 = vsub.f32 1.0, %v4342
      %v4344 = vmul.f32 %v4341, %v4343
      %v4345 = vadd.f32 %v4341, %v4344
      %vm4346 = vweird.f32 %v2702
      %vm4347 = vweird.f32 %v4341
      %vm4348 = vmor %vm4346, %vm4347
      %v4349 = vsel %vm4348, %v4341, %v4345
      %v4350 = vand.u32 2147483647, %v2702
      %vm4351 = vcmp.eq.f32.partialorder %v4350, 8.507059e+37
      %v4352 = vand.u32 %v2702, 2147483648
      %v4353 = vor.u32 1.1754944e-38, %v4352
      %v4354 = vsel %vm4351, %v4353, %v4349
      %v4355 = vmul.f32 1.0, %v4354
      %v4356 = vrcp.pop %v2705
      %v4357 = vmul.f32 %v2705, %v4356
      %v4358 = vsub.f32 1.0, %v4357
      %v4359 = vmul.f32 %v4356, %v4358
      %v4360 = vadd.f32 %v4356, %v4359
      %vm4361 = vweird.f32 %v2705
      %vm4362 = vweird.f32 %v4356
      %vm4363 = vmor %vm4361, %vm4362
      %v4364 = vsel %vm4363, %v4356, %v4360
      %v4365 = vand.u32 2147483647, %v2705
      %vm4366 = vcmp.eq.f32.partialorder %v4365, 8.507059e+37
      %v4367 = vand.u32 %v2705, 2147483648
      %v4368 = vor.u32 1.1754944e-38, %v4367
      %v4369 = vsel %vm4366, %v4368, %v4364
      %v4370 = vmul.f32 1.0, %v4369
      %v4371 = vrcp.pop %v2708
      %v4372 = vmul.f32 %v2708, %v4371
      %v4373 = vsub.f32 1.0, %v4372
      %v4374 = vmul.f32 %v4371, %v4373
      %v4375 = vadd.f32 %v4371, %v4374
      %vm4376 = vweird.f32 %v2708
      %vm4377 = vweird.f32 %v4371
      %vm4378 = vmor %vm4376, %vm4377
      %v4379 = vsel %vm4378, %v4371, %v4375
      %v4380 = vand.u32 2147483647, %v2708
      %vm4381 = vcmp.eq.f32.partialorder %v4380, 8.507059e+37
      %v4382 = vand.u32 %v2708, 2147483648
      %v4383 = vor.u32 1.1754944e-38, %v4382
      %v4384 = vsel %vm4381, %v4383, %v4379
      %v4385 = vmul.f32 1.0, %v4384
      %v4386 = vrcp.pop %v2711
      %v4387 = vmul.f32 %v2711, %v4386
      %v4388 = vsub.f32 1.0, %v4387
      %v4389 = vmul.f32 %v4386, %v4388
      %v4390 = vadd.f32 %v4386, %v4389
      %vm4391 = vweird.f32 %v2711
      %vm4392 = vweird.f32 %v4386
      %vm4393 = vmor %vm4391, %vm4392
      %v4394 = vsel %vm4393, %v4386, %v4390
      %v4395 = vand.u32 2147483647, %v2711
      %vm4396 = vcmp.eq.f32.partialorder %v4395, 8.507059e+37
      %v4397 = vand.u32 %v2711, 2147483648
      %v4398 = vor.u32 1.1754944e-38, %v4397
      %v4399 = vsel %vm4396, %v4398, %v4394
      %v4400 = vmul.f32 1.0, %v4399
      %v4401 = vrcp.pop %v2714
      %v4402 = vmul.f32 %v2714, %v4401
      %v4403 = vsub.f32 1.0, %v4402
      %v4404 = vmul.f32 %v4401, %v4403
      %v4405 = vadd.f32 %v4401, %v4404
      %vm4406 = vweird.f32 %v2714
      %vm4407 = vweird.f32 %v4401
      %vm4408 = vmor %vm4406, %vm4407
      %v4409 = vsel %vm4408, %v4401, %v4405
      %v4410 = vand.u32 2147483647, %v2714
      %vm4411 = vcmp.eq.f32.partialorder %v4410, 8.507059e+37
      %v4412 = vand.u32 %v2714, 2147483648
      %v4413 = vor.u32 1.1754944e-38, %v4412
      %v4414 = vsel %vm4411, %v4413, %v4409
      %v4415 = vmul.f32 1.0, %v4414
      %v4416 = vrcp.pop %v2717
      %v4417 = vmul.f32 %v2717, %v4416
      %v4418 = vsub.f32 1.0, %v4417
      %v4419 = vmul.f32 %v4416, %v4418
      %v4420 = vadd.f32 %v4416, %v4419
      %vm4421 = vweird.f32 %v2717
      %vm4422 = vweird.f32 %v4416
      %vm4423 = vmor %vm4421, %vm4422
      %v4424 = vsel %vm4423, %v4416, %v4420
      %v4425 = vand.u32 2147483647, %v2717
      %vm4426 = vcmp.eq.f32.partialorder %v4425, 8.507059e+37
      %v4427 = vand.u32 %v2717, 2147483648
      %v4428 = vor.u32 1.1754944e-38, %v4427
      %v4429 = vsel %vm4426, %v4428, %v4424
      %v4430 = vmul.f32 1.0, %v4429
      %v4431 = vrcp.pop %v2720
      %v4432 = vmul.f32 %v2720, %v4431
      %v4433 = vsub.f32 1.0, %v4432
      %v4434 = vmul.f32 %v4431, %v4433
      %v4435 = vadd.f32 %v4431, %v4434
      %vm4436 = vweird.f32 %v2720
      %vm4437 = vweird.f32 %v4431
      %vm4438 = vmor %vm4436, %vm4437
      %v4439 = vsel %vm4438, %v4431, %v4435
      %v4440 = vand.u32 2147483647, %v2720
      %vm4441 = vcmp.eq.f32.partialorder %v4440, 8.507059e+37
      %v4442 = vand.u32 %v2720, 2147483648
      %v4443 = vor.u32 1.1754944e-38, %v4442
      %v4444 = vsel %vm4441, %v4443, %v4439
      %v4445 = vmul.f32 1.0, %v4444
      %v4446 = vrcp.pop %v2723
      %v4447 = vmul.f32 %v2723, %v4446
      %v4448 = vsub.f32 1.0, %v4447
      %v4449 = vmul.f32 %v4446, %v4448
      %v4450 = vadd.f32 %v4446, %v4449
      %vm4451 = vweird.f32 %v2723
      %vm4452 = vweird.f32 %v4446
      %vm4453 = vmor %vm4451, %vm4452
      %v4454 = vsel %vm4453, %v4446, %v4450
      %v4455 = vand.u32 2147483647, %v2723
      %vm4456 = vcmp.eq.f32.partialorder %v4455, 8.507059e+37
      %v4457 = vand.u32 %v2723, 2147483648
      %v4458 = vor.u32 1.1754944e-38, %v4457
      %v4459 = vsel %vm4456, %v4458, %v4454
      %v4460 = vmul.f32 1.0, %v4459
      %v4461 = vrcp.pop %v2726
      %v4462 = vmul.f32 %v2726, %v4461
      %v4463 = vsub.f32 1.0, %v4462
      %v4464 = vmul.f32 %v4461, %v4463
      %v4465 = vadd.f32 %v4461, %v4464
      %vm4466 = vweird.f32 %v2726
      %vm4467 = vweird.f32 %v4461
      %vm4468 = vmor %vm4466, %vm4467
      %v4469 = vsel %vm4468, %v4461, %v4465
      %v4470 = vand.u32 2147483647, %v2726
      %vm4471 = vcmp.eq.f32.partialorder %v4470, 8.507059e+37
      %v4472 = vand.u32 %v2726, 2147483648
      %v4473 = vor.u32 1.1754944e-38, %v4472
      %v4474 = vsel %vm4471, %v4473, %v4469
      %v4475 = vmul.f32 1.0, %v4474
      %v4476 = vrcp.pop %v2729
      %v4477 = vmul.f32 %v2729, %v4476
      %v4478 = vsub.f32 1.0, %v4477
      %v4479 = vmul.f32 %v4476, %v4478
      %v4480 = vadd.f32 %v4476, %v4479
      %vm4481 = vweird.f32 %v2729
      %vm4482 = vweird.f32 %v4476
      %vm4483 = vmor %vm4481, %vm4482
      %v4484 = vsel %vm4483, %v4476, %v4480
      %v4485 = vand.u32 2147483647, %v2729
      %vm4486 = vcmp.eq.f32.partialorder %v4485, 8.507059e+37
      %v4487 = vand.u32 %v2729, 2147483648
      %v4488 = vor.u32 1.1754944e-38, %v4487
      %v4489 = vsel %vm4486, %v4488, %v4484
      %v4490 = vmul.f32 1.0, %v4489
      %v4491 = vrcp.pop %v2732
      %v4492 = vmul.f32 %v2732, %v4491
      %v4493 = vsub.f32 1.0, %v4492
      %v4494 = vmul.f32 %v4491, %v4493
      %v4495 = vadd.f32 %v4491, %v4494
      %vm4496 = vweird.f32 %v2732
      %vm4497 = vweird.f32 %v4491
      %vm4498 = vmor %vm4496, %vm4497
      %v4499 = vsel %vm4498, %v4491, %v4495
      %v4500 = vand.u32 2147483647, %v2732
      %vm4501 = vcmp.eq.f32.partialorder %v4500, 8.507059e+37
      %v4502 = vand.u32 %v2732, 2147483648
      %v4503 = vor.u32 1.1754944e-38, %v4502
      %v4504 = vsel %vm4501, %v4503, %v4499
      %v4505 = vmul.f32 1.0, %v4504
      %v4506 = vrcp.pop %v2735
      %v4507 = vmul.f32 %v2735, %v4506
      %v4508 = vsub.f32 1.0, %v4507
      %v4509 = vmul.f32 %v4506, %v4508
      %v4510 = vadd.f32 %v4506, %v4509
      %vm4511 = vweird.f32 %v2735
      %vm4512 = vweird.f32 %v4506
      %vm4513 = vmor %vm4511, %vm4512
      %v4514 = vsel %vm4513, %v4506, %v4510
      %v4515 = vand.u32 2147483647, %v2735
      %vm4516 = vcmp.eq.f32.partialorder %v4515, 8.507059e+37
      %v4517 = vand.u32 %v2735, 2147483648
      %v4518 = vor.u32 1.1754944e-38, %v4517
      %v4519 = vsel %vm4516, %v4518, %v4514
      %v4520 = vmul.f32 1.0, %v4519
      %v4521 = vrcp.pop %v2738
      %v4522 = vmul.f32 %v2738, %v4521
      %v4523 = vsub.f32 1.0, %v4522
      %v4524 = vmul.f32 %v4521, %v4523
      %v4525 = vadd.f32 %v4521, %v4524
      %vm4526 = vweird.f32 %v2738
      %vm4527 = vweird.f32 %v4521
      %vm4528 = vmor %vm4526, %vm4527
      %v4529 = vsel %vm4528, %v4521, %v4525
      %v4530 = vand.u32 2147483647, %v2738
      %vm4531 = vcmp.eq.f32.partialorder %v4530, 8.507059e+37
      %v4532 = vand.u32 %v2738, 2147483648
      %v4533 = vor.u32 1.1754944e-38, %v4532
      %v4534 = vsel %vm4531, %v4533, %v4529
      %v4535 = vmul.f32 1.0, %v4534
      %v4536 = vrcp.pop %v2741
      %v4537 = vmul.f32 %v2741, %v4536
      %v4538 = vsub.f32 1.0, %v4537
      %v4539 = vmul.f32 %v4536, %v4538
      %v4540 = vadd.f32 %v4536, %v4539
      %vm4541 = vweird.f32 %v2741
      %vm4542 = vweird.f32 %v4536
      %vm4543 = vmor %vm4541, %vm4542
      %v4544 = vsel %vm4543, %v4536, %v4540
      %v4545 = vand.u32 2147483647, %v2741
      %vm4546 = vcmp.eq.f32.partialorder %v4545, 8.507059e+37
      %v4547 = vand.u32 %v2741, 2147483648
      %v4548 = vor.u32 1.1754944e-38, %v4547
      %v4549 = vsel %vm4546, %v4548, %v4544
      %v4550 = vmul.f32 1.0, %v4549
      %v4551 = vrcp.pop %v2744
      %v4552 = vmul.f32 %v2744, %v4551
      %v4553 = vsub.f32 1.0, %v4552
      %v4554 = vmul.f32 %v4551, %v4553
      %v4555 = vadd.f32 %v4551, %v4554
      %vm4556 = vweird.f32 %v2744
      %vm4557 = vweird.f32 %v4551
      %vm4558 = vmor %vm4556, %vm4557
      %v4559 = vsel %vm4558, %v4551, %v4555
      %v4560 = vand.u32 2147483647, %v2744
      %vm4561 = vcmp.eq.f32.partialorder %v4560, 8.507059e+37
      %v4562 = vand.u32 %v2744, 2147483648
      %v4563 = vor.u32 1.1754944e-38, %v4562
      %v4564 = vsel %vm4561, %v4563, %v4559
      %v4565 = vmul.f32 1.0, %v4564
      %v4566 = vrcp.pop %v2747
      %v4567 = vmul.f32 %v2747, %v4566
      %v4568 = vsub.f32 1.0, %v4567
      %v4569 = vmul.f32 %v4566, %v4568
      %v4570 = vadd.f32 %v4566, %v4569
      %vm4571 = vweird.f32 %v2747
      %vm4572 = vweird.f32 %v4566
      %vm4573 = vmor %vm4571, %vm4572
      %v4574 = vsel %vm4573, %v4566, %v4570
      %v4575 = vand.u32 2147483647, %v2747
      %vm4576 = vcmp.eq.f32.partialorder %v4575, 8.507059e+37
      %v4577 = vand.u32 %v2747, 2147483648
      %v4578 = vor.u32 1.1754944e-38, %v4577
      %v4579 = vsel %vm4576, %v4578, %v4574
      %v4580 = vmul.f32 1.0, %v4579
      %v4581 = vrcp.pop %v2750
      %v4582 = vmul.f32 %v2750, %v4581
      %v4583 = vsub.f32 1.0, %v4582
      %v4584 = vmul.f32 %v4581, %v4583
      %v4585 = vadd.f32 %v4581, %v4584
      %vm4586 = vweird.f32 %v2750
      %vm4587 = vweird.f32 %v4581
      %vm4588 = vmor %vm4586, %vm4587
      %v4589 = vsel %vm4588, %v4581, %v4585
      %v4590 = vand.u32 2147483647, %v2750
      %vm4591 = vcmp.eq.f32.partialorder %v4590, 8.507059e+37
      %v4592 = vand.u32 %v2750, 2147483648
      %v4593 = vor.u32 1.1754944e-38, %v4592
      %v4594 = vsel %vm4591, %v4593, %v4589
      %v4595 = vmul.f32 1.0, %v4594
      %v4596 = vrcp.pop %v2753
      %v4597 = vmul.f32 %v2753, %v4596
      %v4598 = vsub.f32 1.0, %v4597
      %v4599 = vmul.f32 %v4596, %v4598
      %v4600 = vadd.f32 %v4596, %v4599
      %vm4601 = vweird.f32 %v2753
      %vm4602 = vweird.f32 %v4596
      %vm4603 = vmor %vm4601, %vm4602
      %v4604 = vsel %vm4603, %v4596, %v4600
      %v4605 = vand.u32 2147483647, %v2753
      %vm4606 = vcmp.eq.f32.partialorder %v4605, 8.507059e+37
      %v4607 = vand.u32 %v2753, 2147483648
      %v4608 = vor.u32 1.1754944e-38, %v4607
      %v4609 = vsel %vm4606, %v4608, %v4604
      %v4610 = vmul.f32 1.0, %v4609
      %v4611 = vrcp.pop %v2756
      %v4612 = vmul.f32 %v2756, %v4611
      %v4613 = vsub.f32 1.0, %v4612
      %v4614 = vmul.f32 %v4611, %v4613
      %v4615 = vadd.f32 %v4611, %v4614
      %vm4616 = vweird.f32 %v2756
      %vm4617 = vweird.f32 %v4611
      %vm4618 = vmor %vm4616, %vm4617
      %v4619 = vsel %vm4618, %v4611, %v4615
      %v4620 = vand.u32 2147483647, %v2756
      %vm4621 = vcmp.eq.f32.partialorder %v4620, 8.507059e+37
      %v4622 = vand.u32 %v2756, 2147483648
      %v4623 = vor.u32 1.1754944e-38, %v4622
      %v4624 = vsel %vm4621, %v4623, %v4619
      %v4625 = vmul.f32 1.0, %v4624
      %v4626 = vrcp.pop %v2759
      %v4627 = vmul.f32 %v2759, %v4626
      %v4628 = vsub.f32 1.0, %v4627
      %v4629 = vmul.f32 %v4626, %v4628
      %v4630 = vadd.f32 %v4626, %v4629
      %vm4631 = vweird.f32 %v2759
      %vm4632 = vweird.f32 %v4626
      %vm4633 = vmor %vm4631, %vm4632
      %v4634 = vsel %vm4633, %v4626, %v4630
      %v4635 = vand.u32 2147483647, %v2759
      %vm4636 = vcmp.eq.f32.partialorder %v4635, 8.507059e+37
      %v4637 = vand.u32 %v2759, 2147483648
      %v4638 = vor.u32 1.1754944e-38, %v4637
      %v4639 = vsel %vm4636, %v4638, %v4634
      %v4640 = vmul.f32 1.0, %v4639
      %v4641 = vrcp.pop %v2762
      %v4642 = vmul.f32 %v2762, %v4641
      %v4643 = vsub.f32 1.0, %v4642
      %v4644 = vmul.f32 %v4641, %v4643
      %v4645 = vadd.f32 %v4641, %v4644
      %vm4646 = vweird.f32 %v2762
      %vm4647 = vweird.f32 %v4641
      %vm4648 = vmor %vm4646, %vm4647
      %v4649 = vsel %vm4648, %v4641, %v4645
      %v4650 = vand.u32 2147483647, %v2762
      %vm4651 = vcmp.eq.f32.partialorder %v4650, 8.507059e+37
      %v4652 = vand.u32 %v2762, 2147483648
      %v4653 = vor.u32 1.1754944e-38, %v4652
      %v4654 = vsel %vm4651, %v4653, %v4649
      %v4655 = vmul.f32 1.0, %v4654
      %v4656 = vrcp.pop %v2765
      %v4657 = vmul.f32 %v2765, %v4656
      %v4658 = vsub.f32 1.0, %v4657
      %v4659 = vmul.f32 %v4656, %v4658
      %v4660 = vadd.f32 %v4656, %v4659
      %vm4661 = vweird.f32 %v2765
      %vm4662 = vweird.f32 %v4656
      %vm4663 = vmor %vm4661, %vm4662
      %v4664 = vsel %vm4663, %v4656, %v4660
      %v4665 = vand.u32 2147483647, %v2765
      %vm4666 = vcmp.eq.f32.partialorder %v4665, 8.507059e+37
      %v4667 = vand.u32 %v2765, 2147483648
      %v4668 = vor.u32 1.1754944e-38, %v4667
      %v4669 = vsel %vm4666, %v4668, %v4664
      %v4670 = vmul.f32 1.0, %v4669
      %v4671 = vrcp.pop %v2768
      %v4672 = vmul.f32 %v2768, %v4671
      %v4673 = vsub.f32 1.0, %v4672
      %v4674 = vmul.f32 %v4671, %v4673
      %v4675 = vadd.f32 %v4671, %v4674
      %vm4676 = vweird.f32 %v2768
      %vm4677 = vweird.f32 %v4671
      %vm4678 = vmor %vm4676, %vm4677
      %v4679 = vsel %vm4678, %v4671, %v4675
      %v4680 = vand.u32 2147483647, %v2768
      %vm4681 = vcmp.eq.f32.partialorder %v4680, 8.507059e+37
      %v4682 = vand.u32 %v2768, 2147483648
      %v4683 = vor.u32 1.1754944e-38, %v4682
      %v4684 = vsel %vm4681, %v4683, %v4679
      %v4685 = vmul.f32 1.0, %v4684
      %v4686 = vrcp.pop %v2771
      %v4687 = vmul.f32 %v2771, %v4686
      %v4688 = vsub.f32 1.0, %v4687
      %v4689 = vmul.f32 %v4686, %v4688
      %v4690 = vadd.f32 %v4686, %v4689
      %vm4691 = vweird.f32 %v2771
      %vm4692 = vweird.f32 %v4686
      %vm4693 = vmor %vm4691, %vm4692
      %v4694 = vsel %vm4693, %v4686, %v4690
      %v4695 = vand.u32 2147483647, %v2771
      %vm4696 = vcmp.eq.f32.partialorder %v4695, 8.507059e+37
      %v4697 = vand.u32 %v2771, 2147483648
      %v4698 = vor.u32 1.1754944e-38, %v4697
      %v4699 = vsel %vm4696, %v4698, %v4694
      %v4700 = vmul.f32 1.0, %v4699
      %v4701 = vrcp.pop %v2774
      %v4702 = vmul.f32 %v2774, %v4701
      %v4703 = vsub.f32 1.0, %v4702
      %v4704 = vmul.f32 %v4701, %v4703
      %v4705 = vadd.f32 %v4701, %v4704
      %vm4706 = vweird.f32 %v2774
      %vm4707 = vweird.f32 %v4701
      %vm4708 = vmor %vm4706, %vm4707
      %v4709 = vsel %vm4708, %v4701, %v4705
      %v4710 = vand.u32 2147483647, %v2774
      %vm4711 = vcmp.eq.f32.partialorder %v4710, 8.507059e+37
      %v4712 = vand.u32 %v2774, 2147483648
      %v4713 = vor.u32 1.1754944e-38, %v4712
      %v4714 = vsel %vm4711, %v4713, %v4709
      %v4715 = vmul.f32 1.0, %v4714
      %v4716 = vrcp.pop %v2777
      %v4717 = vmul.f32 %v2777, %v4716
      %v4718 = vsub.f32 1.0, %v4717
      %v4719 = vmul.f32 %v4716, %v4718
      %v4720 = vadd.f32 %v4716, %v4719
      %vm4721 = vweird.f32 %v2777
      %vm4722 = vweird.f32 %v4716
      %vm4723 = vmor %vm4721, %vm4722
      %v4724 = vsel %vm4723, %v4716, %v4720
      %v4725 = vand.u32 2147483647, %v2777
      %vm4726 = vcmp.eq.f32.partialorder %v4725, 8.507059e+37
      %v4727 = vand.u32 %v2777, 2147483648
      %v4728 = vor.u32 1.1754944e-38, %v4727
      %v4729 = vsel %vm4726, %v4728, %v4724
      %v4730 = vmul.f32 1.0, %v4729
      %v4731 = vrcp.pop %v2780
      %v4732 = vmul.f32 %v2780, %v4731
      %v4733 = vsub.f32 1.0, %v4732
      %v4734 = vmul.f32 %v4731, %v4733
      %v4735 = vadd.f32 %v4731, %v4734
      %vm4736 = vweird.f32 %v2780
      %vm4737 = vweird.f32 %v4731
      %vm4738 = vmor %vm4736, %vm4737
      %v4739 = vsel %vm4738, %v4731, %v4735
      %v4740 = vand.u32 2147483647, %v2780
      %vm4741 = vcmp.eq.f32.partialorder %v4740, 8.507059e+37
      %v4742 = vand.u32 %v2780, 2147483648
      %v4743 = vor.u32 1.1754944e-38, %v4742
      %v4744 = vsel %vm4741, %v4743, %v4739
      %v4745 = vmul.f32 1.0, %v4744
      %v4746 = vrcp.pop %v2783
      %v4747 = vmul.f32 %v2783, %v4746
      %v4748 = vsub.f32 1.0, %v4747
      %v4749 = vmul.f32 %v4746, %v4748
      %v4750 = vadd.f32 %v4746, %v4749
      %vm4751 = vweird.f32 %v2783
      %vm4752 = vweird.f32 %v4746
      %vm4753 = vmor %vm4751, %vm4752
      %v4754 = vsel %vm4753, %v4746, %v4750
      %v4755 = vand.u32 2147483647, %v2783
      %vm4756 = vcmp.eq.f32.partialorder %v4755, 8.507059e+37
      %v4757 = vand.u32 %v2783, 2147483648
      %v4758 = vor.u32 1.1754944e-38, %v4757
      %v4759 = vsel %vm4756, %v4758, %v4754
      %v4760 = vmul.f32 1.0, %v4759
      %v4761 = vrcp.pop %v2786
      %v4762 = vmul.f32 %v2786, %v4761
      %v4763 = vsub.f32 1.0, %v4762
      %v4764 = vmul.f32 %v4761, %v4763
      %v4765 = vadd.f32 %v4761, %v4764
      %vm4766 = vweird.f32 %v2786
      %vm4767 = vweird.f32 %v4761
      %vm4768 = vmor %vm4766, %vm4767
      %v4769 = vsel %vm4768, %v4761, %v4765
      %v4770 = vand.u32 2147483647, %v2786
      %vm4771 = vcmp.eq.f32.partialorder %v4770, 8.507059e+37
      %v4772 = vand.u32 %v2786, 2147483648
      %v4773 = vor.u32 1.1754944e-38, %v4772
      %v4774 = vsel %vm4771, %v4773, %v4769
      %v4775 = vmul.f32 1.0, %v4774
      %v4776 = vrcp.pop %v2789
      %v4777 = vmul.f32 %v2789, %v4776
      %v4778 = vsub.f32 1.0, %v4777
      %v4779 = vmul.f32 %v4776, %v4778
      %v4780 = vadd.f32 %v4776, %v4779
      %vm4781 = vweird.f32 %v2789
      %vm4782 = vweird.f32 %v4776
      %vm4783 = vmor %vm4781, %vm4782
      %v4784 = vsel %vm4783, %v4776, %v4780
      %v4785 = vand.u32 2147483647, %v2789
      %vm4786 = vcmp.eq.f32.partialorder %v4785, 8.507059e+37
      %v4787 = vand.u32 %v2789, 2147483648
      %v4788 = vor.u32 1.1754944e-38, %v4787
      %v4789 = vsel %vm4786, %v4788, %v4784
      %v4790 = vmul.f32 1.0, %v4789
      %v4791 = vrcp.pop %v2792
      %v4792 = vmul.f32 %v2792, %v4791
      %v4793 = vsub.f32 1.0, %v4792
      %v4794 = vmul.f32 %v4791, %v4793
      %v4795 = vadd.f32 %v4791, %v4794
      %vm4796 = vweird.f32 %v2792
      %vm4797 = vweird.f32 %v4791
      %vm4798 = vmor %vm4796, %vm4797
      %v4799 = vsel %vm4798, %v4791, %v4795
      %v4800 = vand.u32 2147483647, %v2792
      %vm4801 = vcmp.eq.f32.partialorder %v4800, 8.507059e+37
      %v4802 = vand.u32 %v2792, 2147483648
      %v4803 = vor.u32 1.1754944e-38, %v4802
      %v4804 = vsel %vm4801, %v4803, %v4799
      %v4805 = vmul.f32 1.0, %v4804
      %v4806 = vrcp.pop %v2795
      %v4807 = vmul.f32 %v2795, %v4806
      %v4808 = vsub.f32 1.0, %v4807
      %v4809 = vmul.f32 %v4806, %v4808
      %v4810 = vadd.f32 %v4806, %v4809
      %vm4811 = vweird.f32 %v2795
      %vm4812 = vweird.f32 %v4806
      %vm4813 = vmor %vm4811, %vm4812
      %v4814 = vsel %vm4813, %v4806, %v4810
      %v4815 = vand.u32 2147483647, %v2795
      %vm4816 = vcmp.eq.f32.partialorder %v4815, 8.507059e+37
      %v4817 = vand.u32 %v2795, 2147483648
      %v4818 = vor.u32 1.1754944e-38, %v4817
      %v4819 = vsel %vm4816, %v4818, %v4814
      %v4820 = vmul.f32 1.0, %v4819
      %v4821 = vrcp.pop %v2798
      %v4822 = vmul.f32 %v2798, %v4821
      %v4823 = vsub.f32 1.0, %v4822
      %v4824 = vmul.f32 %v4821, %v4823
      %v4825 = vadd.f32 %v4821, %v4824
      %vm4826 = vweird.f32 %v2798
      %vm4827 = vweird.f32 %v4821
      %vm4828 = vmor %vm4826, %vm4827
      %v4829 = vsel %vm4828, %v4821, %v4825
      %v4830 = vand.u32 2147483647, %v2798
      %vm4831 = vcmp.eq.f32.partialorder %v4830, 8.507059e+37
      %v4832 = vand.u32 %v2798, 2147483648
      %v4833 = vor.u32 1.1754944e-38, %v4832
      %v4834 = vsel %vm4831, %v4833, %v4829
      %v4835 = vmul.f32 1.0, %v4834
      %v4836 = vrcp.pop %v2801
      %v4837 = vmul.f32 %v2801, %v4836
      %v4838 = vsub.f32 1.0, %v4837
      %v4839 = vmul.f32 %v4836, %v4838
      %v4840 = vadd.f32 %v4836, %v4839
      %vm4841 = vweird.f32 %v2801
      %vm4842 = vweird.f32 %v4836
      %vm4843 = vmor %vm4841, %vm4842
      %v4844 = vsel %vm4843, %v4836, %v4840
      %v4845 = vand.u32 2147483647, %v2801
      %vm4846 = vcmp.eq.f32.partialorder %v4845, 8.507059e+37
      %v4847 = vand.u32 %v2801, 2147483648
      %v4848 = vor.u32 1.1754944e-38, %v4847
      %v4849 = vsel %vm4846, %v4848, %v4844
      %v4850 = vmul.f32 1.0, %v4849
      %v4851 = vrcp.pop %v2804
      %v4852 = vmul.f32 %v2804, %v4851
      %v4853 = vsub.f32 1.0, %v4852
      %v4854 = vmul.f32 %v4851, %v4853
      %v4855 = vadd.f32 %v4851, %v4854
      %vm4856 = vweird.f32 %v2804
      %vm4857 = vweird.f32 %v4851
      %vm4858 = vmor %vm4856, %vm4857
      %v4859 = vsel %vm4858, %v4851, %v4855
      %v4860 = vand.u32 2147483647, %v2804
      %vm4861 = vcmp.eq.f32.partialorder %v4860, 8.507059e+37
      %v4862 = vand.u32 %v2804, 2147483648
      %v4863 = vor.u32 1.1754944e-38, %v4862
      %v4864 = vsel %vm4861, %v4863, %v4859
      %v4865 = vmul.f32 1.0, %v4864
      %v4866 = vrcp.pop %v2807
      %v4867 = vmul.f32 %v2807, %v4866
      %v4868 = vsub.f32 1.0, %v4867
      %v4869 = vmul.f32 %v4866, %v4868
      %v4870 = vadd.f32 %v4866, %v4869
      %vm4871 = vweird.f32 %v2807
      %vm4872 = vweird.f32 %v4866
      %vm4873 = vmor %vm4871, %vm4872
      %v4874 = vsel %vm4873, %v4866, %v4870
      %v4875 = vand.u32 2147483647, %v2807
      %vm4876 = vcmp.eq.f32.partialorder %v4875, 8.507059e+37
      %v4877 = vand.u32 %v2807, 2147483648
      %v4878 = vor.u32 1.1754944e-38, %v4877
      %v4879 = vsel %vm4876, %v4878, %v4874
      %v4880 = vmul.f32 1.0, %v4879
      %v4881 = vrcp.pop %v2810
      %v4882 = vmul.f32 %v2810, %v4881
      %v4883 = vsub.f32 1.0, %v4882
      %v4884 = vmul.f32 %v4881, %v4883
      %v4885 = vadd.f32 %v4881, %v4884
      %vm4886 = vweird.f32 %v2810
      %vm4887 = vweird.f32 %v4881
      %vm4888 = vmor %vm4886, %vm4887
      %v4889 = vsel %vm4888, %v4881, %v4885
      %v4890 = vand.u32 2147483647, %v2810
      %vm4891 = vcmp.eq.f32.partialorder %v4890, 8.507059e+37
      %v4892 = vand.u32 %v2810, 2147483648
      %v4893 = vor.u32 1.1754944e-38, %v4892
      %v4894 = vsel %vm4891, %v4893, %v4889
      %v4895 = vmul.f32 1.0, %v4894
      %v4896 = vrcp.pop %v2813
      %v4897 = vmul.f32 %v2813, %v4896
      %v4898 = vsub.f32 1.0, %v4897
      %v4899 = vmul.f32 %v4896, %v4898
      %v4900 = vadd.f32 %v4896, %v4899
      %vm4901 = vweird.f32 %v2813
      %vm4902 = vweird.f32 %v4896
      %vm4903 = vmor %vm4901, %vm4902
      %v4904 = vsel %vm4903, %v4896, %v4900
      %v4905 = vand.u32 2147483647, %v2813
      %vm4906 = vcmp.eq.f32.partialorder %v4905, 8.507059e+37
      %v4907 = vand.u32 %v2813, 2147483648
      %v4908 = vor.u32 1.1754944e-38, %v4907
      %v4909 = vsel %vm4906, %v4908, %v4904
      %v4910 = vmul.f32 1.0, %v4909
      %v4911 = vrcp.pop %v2816
      %v4912 = vmul.f32 %v2816, %v4911
      %v4913 = vsub.f32 1.0, %v4912
      %v4914 = vmul.f32 %v4911, %v4913
      %v4915 = vadd.f32 %v4911, %v4914
      %vm4916 = vweird.f32 %v2816
      %vm4917 = vweird.f32 %v4911
      %vm4918 = vmor %vm4916, %vm4917
      %v4919 = vsel %vm4918, %v4911, %v4915
      %v4920 = vand.u32 2147483647, %v2816
      %vm4921 = vcmp.eq.f32.partialorder %v4920, 8.507059e+37
      %v4922 = vand.u32 %v2816, 2147483648
      %v4923 = vor.u32 1.1754944e-38, %v4922
      %v4924 = vsel %vm4921, %v4923, %v4919
      %v4925 = vmul.f32 1.0, %v4924
      %v4926 = vrcp.pop %v2819
      %v4927 = vmul.f32 %v2819, %v4926
      %v4928 = vsub.f32 1.0, %v4927
      %v4929 = vmul.f32 %v4926, %v4928
      %v4930 = vadd.f32 %v4926, %v4929
      %vm4931 = vweird.f32 %v2819
      %vm4932 = vweird.f32 %v4926
      %vm4933 = vmor %vm4931, %vm4932
      %v4934 = vsel %vm4933, %v4926, %v4930
      %v4935 = vand.u32 2147483647, %v2819
      %vm4936 = vcmp.eq.f32.partialorder %v4935, 8.507059e+37
      %v4937 = vand.u32 %v2819, 2147483648
      %v4938 = vor.u32 1.1754944e-38, %v4937
      %v4939 = vsel %vm4936, %v4938, %v4934
      %v4940 = vmul.f32 1.0, %v4939
      %v4941 = vrcp.pop %v2822
      %v4942 = vmul.f32 %v2822, %v4941
      %v4943 = vsub.f32 1.0, %v4942
      %v4944 = vmul.f32 %v4941, %v4943
      %v4945 = vadd.f32 %v4941, %v4944
      %vm4946 = vweird.f32 %v2822
      %vm4947 = vweird.f32 %v4941
      %vm4948 = vmor %vm4946, %vm4947
      %v4949 = vsel %vm4948, %v4941, %v4945
      %v4950 = vand.u32 2147483647, %v2822
      %vm4951 = vcmp.eq.f32.partialorder %v4950, 8.507059e+37
      %v4952 = vand.u32 %v2822, 2147483648
      %v4953 = vor.u32 1.1754944e-38, %v4952
      %v4954 = vsel %vm4951, %v4953, %v4949
      %v4955 = vmul.f32 1.0, %v4954
      %v4956 = vrcp.pop %v2825
      %v4957 = vmul.f32 %v2825, %v4956
      %v4958 = vsub.f32 1.0, %v4957
      %v4959 = vmul.f32 %v4956, %v4958
      %v4960 = vadd.f32 %v4956, %v4959
      %vm4961 = vweird.f32 %v2825
      %vm4962 = vweird.f32 %v4956
      %vm4963 = vmor %vm4961, %vm4962
      %v4964 = vsel %vm4963, %v4956, %v4960
      %v4965 = vand.u32 2147483647, %v2825
      %vm4966 = vcmp.eq.f32.partialorder %v4965, 8.507059e+37
      %v4967 = vand.u32 %v2825, 2147483648
      %v4968 = vor.u32 1.1754944e-38, %v4967
      %v4969 = vsel %vm4966, %v4968, %v4964
      %v4970 = vmul.f32 1.0, %v4969
      %v4971 = vrcp.pop %v2828
      %v4972 = vmul.f32 %v2828, %v4971
      %v4973 = vsub.f32 1.0, %v4972
      %v4974 = vmul.f32 %v4971, %v4973
      %v4975 = vadd.f32 %v4971, %v4974
      %vm4976 = vweird.f32 %v2828
      %vm4977 = vweird.f32 %v4971
      %vm4978 = vmor %vm4976, %vm4977
      %v4979 = vsel %vm4978, %v4971, %v4975
      %v4980 = vand.u32 2147483647, %v2828
      %vm4981 = vcmp.eq.f32.partialorder %v4980, 8.507059e+37
      %v4982 = vand.u32 %v2828, 2147483648
      %v4983 = vor.u32 1.1754944e-38, %v4982
      %v4984 = vsel %vm4981, %v4983, %v4979
      %v4985 = vmul.f32 1.0, %v4984
      %v4986 = vrcp.pop %v2831
      %v4987 = vmul.f32 %v2831, %v4986
      %v4988 = vsub.f32 1.0, %v4987
      %v4989 = vmul.f32 %v4986, %v4988
      %v4990 = vadd.f32 %v4986, %v4989
      %vm4991 = vweird.f32 %v2831
      %vm4992 = vweird.f32 %v4986
      %vm4993 = vmor %vm4991, %vm4992
      %v4994 = vsel %vm4993, %v4986, %v4990
      %v4995 = vand.u32 2147483647, %v2831
      %vm4996 = vcmp.eq.f32.partialorder %v4995, 8.507059e+37
      %v4997 = vand.u32 %v2831, 2147483648
      %v4998 = vor.u32 1.1754944e-38, %v4997
      %v4999 = vsel %vm4996, %v4998, %v4994
      %v5000 = vmul.f32 1.0, %v4999
      %v5001 = vrcp.pop %v2834
      %v5002 = vmul.f32 %v2834, %v5001
      %v5003 = vsub.f32 1.0, %v5002
      %v5004 = vmul.f32 %v5001, %v5003
      %v5005 = vadd.f32 %v5001, %v5004
      %vm5006 = vweird.f32 %v2834
      %vm5007 = vweird.f32 %v5001
      %vm5008 = vmor %vm5006, %vm5007
      %v5009 = vsel %vm5008, %v5001, %v5005
      %v5010 = vand.u32 2147483647, %v2834
      %vm5011 = vcmp.eq.f32.partialorder %v5010, 8.507059e+37
      %v5012 = vand.u32 %v2834, 2147483648
      %v5013 = vor.u32 1.1754944e-38, %v5012
      %v5014 = vsel %vm5011, %v5013, %v5009
      %v5015 = vmul.f32 1.0, %v5014
      %v5016 = vrcp.pop %v2837
      %v5017 = vmul.f32 %v2837, %v5016
      %v5018 = vsub.f32 1.0, %v5017
      %v5019 = vmul.f32 %v5016, %v5018
      %v5020 = vadd.f32 %v5016, %v5019
      %vm5021 = vweird.f32 %v2837
      %vm5022 = vweird.f32 %v5016
      %vm5023 = vmor %vm5021, %vm5022
      %v5024 = vsel %vm5023, %v5016, %v5020
      %v5025 = vand.u32 2147483647, %v2837
      %vm5026 = vcmp.eq.f32.partialorder %v5025, 8.507059e+37
      %v5027 = vand.u32 %v2837, 2147483648
      %v5028 = vor.u32 1.1754944e-38, %v5027
      %v5029 = vsel %vm5026, %v5028, %v5024
      %v5030 = vmul.f32 1.0, %v5029
      %v5031 = vrcp.pop %v2840
      %v5032 = vmul.f32 %v2840, %v5031
      %v5033 = vsub.f32 1.0, %v5032
      %v5034 = vmul.f32 %v5031, %v5033
      %v5035 = vadd.f32 %v5031, %v5034
      %vm5036 = vweird.f32 %v2840
      %vm5037 = vweird.f32 %v5031
      %vm5038 = vmor %vm5036, %vm5037
      %v5039 = vsel %vm5038, %v5031, %v5035
      %v5040 = vand.u32 2147483647, %v2840
      %vm5041 = vcmp.eq.f32.partialorder %v5040, 8.507059e+37
      %v5042 = vand.u32 %v2840, 2147483648
      %v5043 = vor.u32 1.1754944e-38, %v5042
      %v5044 = vsel %vm5041, %v5043, %v5039
      %v5045 = vmul.f32 1.0, %v5044
      %v5046 = vrcp.pop %v2843
      %v5047 = vmul.f32 %v2843, %v5046
      %v5048 = vsub.f32 1.0, %v5047
      %v5049 = vmul.f32 %v5046, %v5048
      %v5050 = vadd.f32 %v5046, %v5049
      %vm5051 = vweird.f32 %v2843
      %vm5052 = vweird.f32 %v5046
      %vm5053 = vmor %vm5051, %vm5052
      %v5054 = vsel %vm5053, %v5046, %v5050
      %v5055 = vand.u32 2147483647, %v2843
      %vm5056 = vcmp.eq.f32.partialorder %v5055, 8.507059e+37
      %v5057 = vand.u32 %v2843, 2147483648
      %v5058 = vor.u32 1.1754944e-38, %v5057
      %v5059 = vsel %vm5056, %v5058, %v5054
      %v5060 = vmul.f32 1.0, %v5059
      %v5061 = vrcp.pop %v2846
      %v5062 = vmul.f32 %v2846, %v5061
      %v5063 = vsub.f32 1.0, %v5062
      %v5064 = vmul.f32 %v5061, %v5063
      %v5065 = vadd.f32 %v5061, %v5064
      %vm5066 = vweird.f32 %v2846
      %vm5067 = vweird.f32 %v5061
      %vm5068 = vmor %vm5066, %vm5067
      %v5069 = vsel %vm5068, %v5061, %v5065
      %v5070 = vand.u32 2147483647, %v2846
      %vm5071 = vcmp.eq.f32.partialorder %v5070, 8.507059e+37
      %v5072 = vand.u32 %v2846, 2147483648
      %v5073 = vor.u32 1.1754944e-38, %v5072
      %v5074 = vsel %vm5071, %v5073, %v5069
      %v5075 = vmul.f32 1.0, %v5074
      %v5076 = vrcp.pop %v2849
      %v5077 = vmul.f32 %v2849, %v5076
      %v5078 = vsub.f32 1.0, %v5077
      %v5079 = vmul.f32 %v5076, %v5078
      %v5080 = vadd.f32 %v5076, %v5079
      %vm5081 = vweird.f32 %v2849
      %vm5082 = vweird.f32 %v5076
      %vm5083 = vmor %vm5081, %vm5082
      %v5084 = vsel %vm5083, %v5076, %v5080
      %v5085 = vand.u32 2147483647, %v2849
      %vm5086 = vcmp.eq.f32.partialorder %v5085, 8.507059e+37
      %v5087 = vand.u32 %v2849, 2147483648
      %v5088 = vor.u32 1.1754944e-38, %v5087
      %v5089 = vsel %vm5086, %v5088, %v5084
      %v5090 = vmul.f32 1.0, %v5089
      %v5091 = vmul.f32 %v2931, %v4145
      %v5092 = vmul.f32 %v2950, %v4160
      %v5093 = vmul.f32 %v2969, %v4175
      %v5094 = vmul.f32 %v2988, %v4190
      %v5095 = vmul.f32 %v3007, %v4205
      %v5096 = vmul.f32 %v3026, %v4220
      %v5097 = vmul.f32 %v3045, %v4235
      %v5098 = vmul.f32 %v3064, %v4250
      %v5099 = vmul.f32 %v3083, %v4265
      %v5100 = vmul.f32 %v3102, %v4280
      %v5101 = vmul.f32 %v3121, %v4295
      %v5102 = vmul.f32 %v3140, %v4310
      %v5103 = vmul.f32 %v3159, %v4325
      %v5104 = vmul.f32 %v3178, %v4340
      %v5105 = vmul.f32 %v3197, %v4355
      %v5106 = vmul.f32 %v3216, %v4370
      %v5107 = vmul.f32 %v3235, %v4385
      %v5108 = vmul.f32 %v3254, %v4400
      %v5109 = vmul.f32 %v3273, %v4415
      %v5110 = vmul.f32 %v3292, %v4430
      %v5111 = vmul.f32 %v3311, %v4445
      %v5112 = vmul.f32 %v3330, %v4460
      %v5113 = vmul.f32 %v3349, %v4475
      %v5114 = vmul.f32 %v3368, %v4490
      %v5115 = vmul.f32 %v3387, %v4505
      %v5116 = vmul.f32 %v3406, %v4520
      %v5117 = vmul.f32 %v3425, %v4535
      %v5118 = vmul.f32 %v3444, %v4550
      %v5119 = vmul.f32 %v3463, %v4565
      %v5120 = vmul.f32 %v3482, %v4580
      %v5121 = vmul.f32 %v3501, %v4595
      %v5122 = vmul.f32 %v3520, %v4610
      %v5123 = vmul.f32 %v3539, %v4625
      %v5124 = vmul.f32 %v3558, %v4640
      %v5125 = vmul.f32 %v3577, %v4655
      %v5126 = vmul.f32 %v3596, %v4670
      %v5127 = vmul.f32 %v3615, %v4685
      %v5128 = vmul.f32 %v3634, %v4700
      %v5129 = vmul.f32 %v3653, %v4715
      %v5130 = vmul.f32 %v3672, %v4730
      %v5131 = vmul.f32 %v3691, %v4745
      %v5132 = vmul.f32 %v3710, %v4760
      %v5133 = vmul.f32 %v3729, %v4775
      %v5134 = vmul.f32 %v3748, %v4790
      %v5135 = vmul.f32 %v3767, %v4805
      %v5136 = vmul.f32 %v3786, %v4820
      %v5137 = vmul.f32 %v3805, %v4835
      %v5138 = vmul.f32 %v3824, %v4850
      %v5139 = vmul.f32 %v3843, %v4865
      %v5140 = vmul.f32 %v3862, %v4880
      %v5141 = vmul.f32 %v3881, %v4895
      %v5142 = vmul.f32 %v3900, %v4910
      %v5143 = vmul.f32 %v3919, %v4925
      %v5144 = vmul.f32 %v3938, %v4940
      %v5145 = vmul.f32 %v3957, %v4955
      %v5146 = vmul.f32 %v3976, %v4970
      %v5147 = vmul.f32 %v3995, %v4985
      %v5148 = vmul.f32 %v4014, %v5000
      %v5149 = vmul.f32 %v4033, %v5015
      %v5150 = vmul.f32 %v4052, %v5030
      %v5151 = vmul.f32 %v4071, %v5045
      %v5152 = vmul.f32 %v4090, %v5060
      %v5153 = vmul.f32 %v4109, %v5075
      %v5154 = vmul.f32 %v4128, %v5090
      %5155 = vst [vmem:[#allocation1] ss:$4 sm:$0xff] %v288
      %v5156 = vld.sshfl [vmem:[#allocation1] sm:$0xff pattern:$0x73625140]
      %5158 = vrot.lane.b32.xlu0 %v5156, 96
      %v5159 = vpop.permute.xlu0 %5158
      %5160 = vrot.lane.b32.xlu0 %v612, 96
      %v5161 = vpop.permute.xlu0 %5160
      %v5163 = vsel %vm613, %v5159, 0
      %v5166 = vsel %vm613, %v5161, 0
      %5168 = vmatpush.bf16.xpose.msra.mxu0 0
      %5169 = vmatpush.bf16.xpose.msra.mxu0 0
      %5170 = vmatpush.bf16.xpose.msra.mxu0 0
      %5171 = vmatpush.bf16.xpose.msra.mxu0 0
      %5172 = vmatpush.bf16.xpose.msra.mxu0 0
      %5173 = vmatpush.bf16.xpose.msra.mxu0 0
      %5174 = vmatpush.bf16.xpose.msra.mxu0 0
      %5175 = vmatpush.bf16.xpose.msra.mxu0 %v5166
      %5176 = vmatmul.bf16.gmra.mxu0 %v5163
      %v5177 = vpop.f32.mrf.mxu0
      %v5178 = vadd.f32 0.0, %v5177
      %v5179 = vpop.f32.mrf.mxu0
      %5180 = vdwg.mxu0
      %5181 = vst [vmem:[#allocation1] ss:$4 sm:$0xff] %v289
      %v5182 = vld.sshfl [vmem:[#allocation1] sm:$0xff pattern:$0x73625140]
      %5184 = vrot.lane.b32.xlu0 %v5182, 96
      %v5185 = vpop.permute.xlu0 %5184
      %5186 = vrot.lane.b32.xlu0 %v637, 96
      %v5187 = vpop.permute.xlu0 %5186
      %v5189 = vsel %vm613, %v5185, 0
      %v5192 = vsel %vm613, %v5187, 0
      %5194 = vmatpush.bf16.xpose.msra.mxu0 0
      %5195 = vmatpush.bf16.xpose.msra.mxu0 0
      %5196 = vmatpush.bf16.xpose.msra.mxu0 0
      %5197 = vmatpush.bf16.xpose.msra.mxu0 0
      %5198 = vmatpush.bf16.xpose.msra.mxu0 0
      %5199 = vmatpush.bf16.xpose.msra.mxu0 0
      %5200 = vmatpush.bf16.xpose.msra.mxu0 0
      %5201 = vmatpush.bf16.xpose.msra.mxu0 %v5192
      %5202 = vmatmul.bf16.gmra.mxu0 %v5189
      %v5203 = vpop.f32.mrf.mxu0
      %v5204 = vadd.f32 0.0, %v5203
      %v5205 = vpop.f32.mrf.mxu0
      %5206 = vdwg.mxu0
      %5207 = vst [vmem:[#allocation1] ss:$4 sm:$0xff] %v290
      %v5208 = vld.sshfl [vmem:[#allocation1] sm:$0xff pattern:$0x73625140]
      %5210 = vrot.lane.b32.xlu0 %v5208, 96
      %v5211 = vpop.permute.xlu0 %5210
      %5212 = vrot.lane.b32.xlu0 %v661, 96
      %v5213 = vpop.permute.xlu0 %5212
      %v5215 = vsel %vm613, %v5211, 0
      %v5218 = vsel %vm613, %v5213, 0
      %5220 = vmatpush.bf16.xpose.msra.mxu0 0
      %5221 = vmatpush.bf16.xpose.msra.mxu0 0
      %5222 = vmatpush.bf16.xpose.msra.mxu0 0
      %5223 = vmatpush.bf16.xpose.msra.mxu0 0
      %5224 = vmatpush.bf16.xpose.msra.mxu0 0
      %5225 = vmatpush.bf16.xpose.msra.mxu0 0
      %5226 = vmatpush.bf16.xpose.msra.mxu0 0
      %5227 = vmatpush.bf16.xpose.msra.mxu0 %v5218
      %5228 = vmatmul.bf16.gmra.mxu0 %v5215
      %v5229 = vpop.f32.mrf.mxu0
      %v5230 = vadd.f32 0.0, %v5229
      %v5231 = vpop.f32.mrf.mxu0
      %5232 = vdwg.mxu0
      %5233 = vst [vmem:[#allocation1] ss:$4 sm:$0xff] %v291
      %v5234 = vld.sshfl [vmem:[#allocation1] sm:$0xff pattern:$0x73625140]
      %5236 = vrot.lane.b32.xlu0 %v5234, 96
      %v5237 = vpop.permute.xlu0 %5236
      %5238 = vrot.lane.b32.xlu0 %v685, 96
      %v5239 = vpop.permute.xlu0 %5238
      %v5241 = vsel %vm613, %v5237, 0
      %v5244 = vsel %vm613, %v5239, 0
      %5246 = vmatpush.bf16.xpose.msra.mxu0 0
      %5247 = vmatpush.bf16.xpose.msra.mxu0 0
      %5248 = vmatpush.bf16.xpose.msra.mxu0 0
      %5249 = vmatpush.bf16.xpose.msra.mxu0 0
      %5250 = vmatpush.bf16.xpose.msra.mxu0 0
      %5251 = vmatpush.bf16.xpose.msra.mxu0 0
      %5252 = vmatpush.bf16.xpose.msra.mxu0 0
      %5253 = vmatpush.bf16.xpose.msra.mxu0 %v5244
      %5254 = vmatmul.bf16.gmra.mxu0 %v5241
      %v5255 = vpop.f32.mrf.mxu0
      %v5256 = vadd.f32 0.0, %v5255
      %v5257 = vpop.f32.mrf.mxu0
      %5258 = vdwg.mxu0
      %5259 = vst [vmem:[#allocation1] ss:$4 sm:$0xff] %v292
      %v5260 = vld.sshfl [vmem:[#allocation1] sm:$0xff pattern:$0x73625140]
      %5262 = vrot.lane.b32.xlu0 %v5260, 96
      %v5263 = vpop.permute.xlu0 %5262
      %5264 = vrot.lane.b32.xlu0 %v709, 96
      %v5265 = vpop.permute.xlu0 %5264
      %v5267 = vsel %vm613, %v5263, 0
      %v5270 = vsel %vm613, %v5265, 0
      %5272 = vmatpush.bf16.xpose.msra.mxu0 0
      %5273 = vmatpush.bf16.xpose.msra.mxu0 0
      %5274 = vmatpush.bf16.xpose.msra.mxu0 0
      %5275 = vmatpush.bf16.xpose.msra.mxu0 0
      %5276 = vmatpush.bf16.xpose.msra.mxu0 0
      %5277 = vmatpush.bf16.xpose.msra.mxu0 0
      %5278 = vmatpush.bf16.xpose.msra.mxu0 0
      %5279 = vmatpush.bf16.xpose.msra.mxu0 %v5270
      %5280 = vmatmul.bf16.gmra.mxu0 %v5267
      %v5281 = vpop.f32.mrf.mxu0
      %v5282 = vadd.f32 0.0, %v5281
      %v5283 = vpop.f32.mrf.mxu0
      %5284 = vdwg.mxu0
      %5285 = vst [vmem:[#allocation1] ss:$4 sm:$0xff] %v293
      %v5286 = vld.sshfl [vmem:[#allocation1] sm:$0xff pattern:$0x73625140]
      %5288 = vrot.lane.b32.xlu0 %v5286, 96
      %v5289 = vpop.permute.xlu0 %5288
      %5290 = vrot.lane.b32.xlu0 %v733, 96
      %v5291 = vpop.permute.xlu0 %5290
      %v5293 = vsel %vm613, %v5289, 0
      %v5296 = vsel %vm613, %v5291, 0
      %5298 = vmatpush.bf16.xpose.msra.mxu0 0
      %5299 = vmatpush.bf16.xpose.msra.mxu0 0
      %5300 = vmatpush.bf16.xpose.msra.mxu0 0
      %5301 = vmatpush.bf16.xpose.msra.mxu0 0
      %5302 = vmatpush.bf16.xpose.msra.mxu0 0
      %5303 = vmatpush.bf16.xpose.msra.mxu0 0
      %5304 = vmatpush.bf16.xpose.msra.mxu0 0
      %5305 = vmatpush.bf16.xpose.msra.mxu0 %v5296
      %5306 = vmatmul.bf16.gmra.mxu0 %v5293
      %v5307 = vpop.f32.mrf.mxu0
      %v5308 = vadd.f32 0.0, %v5307
      %v5309 = vpop.f32.mrf.mxu0
      %5310 = vdwg.mxu0
      %5311 = vst [vmem:[#allocation1] ss:$4 sm:$0xff] %v294
      %v5312 = vld.sshfl [vmem:[#allocation1] sm:$0xff pattern:$0x73625140]
      %5314 = vrot.lane.b32.xlu0 %v5312, 96
      %v5315 = vpop.permute.xlu0 %5314
      %5316 = vrot.lane.b32.xlu0 %v757, 96
      %v5317 = vpop.permute.xlu0 %5316
      %v5319 = vsel %vm613, %v5315, 0
      %v5322 = vsel %vm613, %v5317, 0
      %5324 = vmatpush.bf16.xpose.msra.mxu0 0
      %5325 = vmatpush.bf16.xpose.msra.mxu0 0
      %5326 = vmatpush.bf16.xpose.msra.mxu0 0
      %5327 = vmatpush.bf16.xpose.msra.mxu0 0
      %5328 = vmatpush.bf16.xpose.msra.mxu0 0
      %5329 = vmatpush.bf16.xpose.msra.mxu0 0
      %5330 = vmatpush.bf16.xpose.msra.mxu0 0
      %5331 = vmatpush.bf16.xpose.msra.mxu0 %v5322
      %5332 = vmatmul.bf16.gmra.mxu0 %v5319
      %v5333 = vpop.f32.mrf.mxu0
      %v5334 = vadd.f32 0.0, %v5333
      %v5335 = vpop.f32.mrf.mxu0
      %5336 = vdwg.mxu0
      %5337 = vst [vmem:[#allocation1] ss:$4 sm:$0xff] %v295
      %v5338 = vld.sshfl [vmem:[#allocation1] sm:$0xff pattern:$0x73625140]
      %5340 = vrot.lane.b32.xlu0 %v5338, 96
      %v5341 = vpop.permute.xlu0 %5340
      %5342 = vrot.lane.b32.xlu0 %v781, 96
      %v5343 = vpop.permute.xlu0 %5342
      %v5345 = vsel %vm613, %v5341, 0
      %v5348 = vsel %vm613, %v5343, 0
      %5350 = vmatpush.bf16.xpose.msra.mxu0 0
      %5351 = vmatpush.bf16.xpose.msra.mxu0 0
      %5352 = vmatpush.bf16.xpose.msra.mxu0 0
      %5353 = vmatpush.bf16.xpose.msra.mxu0 0
      %5354 = vmatpush.bf16.xpose.msra.mxu0 0
      %5355 = vmatpush.bf16.xpose.msra.mxu0 0
      %5356 = vmatpush.bf16.xpose.msra.mxu0 0
      %5357 = vmatpush.bf16.xpose.msra.mxu0 %v5348
      %5358 = vmatmul.bf16.gmra.mxu0 %v5345
      %v5359 = vpop.f32.mrf.mxu0
      %v5360 = vadd.f32 0.0, %v5359
      %v5361 = vpop.f32.mrf.mxu0
      %5362 = vdwg.mxu0
      %5363 = vst [vmem:[#allocation1] ss:$4 sm:$0xff] %v296
      %v5364 = vld.sshfl [vmem:[#allocation1] sm:$0xff pattern:$0x73625140]
      %5366 = vrot.lane.b32.xlu0 %v5364, 96
      %v5367 = vpop.permute.xlu0 %5366
      %5368 = vrot.lane.b32.xlu0 %v805, 96
      %v5369 = vpop.permute.xlu0 %5368
      %v5371 = vsel %vm613, %v5367, 0
      %v5374 = vsel %vm613, %v5369, 0
      %5376 = vmatpush.bf16.xpose.msra.mxu0 0
      %5377 = vmatpush.bf16.xpose.msra.mxu0 0
      %5378 = vmatpush.bf16.xpose.msra.mxu0 0
      %5379 = vmatpush.bf16.xpose.msra.mxu0 0
      %5380 = vmatpush.bf16.xpose.msra.mxu0 0
      %5381 = vmatpush.bf16.xpose.msra.mxu0 0
      %5382 = vmatpush.bf16.xpose.msra.mxu0 0
      %5383 = vmatpush.bf16.xpose.msra.mxu0 %v5374
      %5384 = vmatmul.bf16.gmra.mxu0 %v5371
      %v5385 = vpop.f32.mrf.mxu0
      %v5386 = vadd.f32 0.0, %v5385
      %v5387 = vpop.f32.mrf.mxu0
      %5388 = vdwg.mxu0
      %5389 = vst [vmem:[#allocation1] ss:$4 sm:$0xff] %v297
      %v5390 = vld.sshfl [vmem:[#allocation1] sm:$0xff pattern:$0x73625140]
      %5392 = vrot.lane.b32.xlu0 %v5390, 96
      %v5393 = vpop.permute.xlu0 %5392
      %5394 = vrot.lane.b32.xlu0 %v829, 96
      %v5395 = vpop.permute.xlu0 %5394
      %v5397 = vsel %vm613, %v5393, 0
      %v5400 = vsel %vm613, %v5395, 0
      %5402 = vmatpush.bf16.xpose.msra.mxu0 0
      %5403 = vmatpush.bf16.xpose.msra.mxu0 0
      %5404 = vmatpush.bf16.xpose.msra.mxu0 0
      %5405 = vmatpush.bf16.xpose.msra.mxu0 0
      %5406 = vmatpush.bf16.xpose.msra.mxu0 0
      %5407 = vmatpush.bf16.xpose.msra.mxu0 0
      %5408 = vmatpush.bf16.xpose.msra.mxu0 0
      %5409 = vmatpush.bf16.xpose.msra.mxu0 %v5400
      %5410 = vmatmul.bf16.gmra.mxu0 %v5397
      %v5411 = vpop.f32.mrf.mxu0
      %v5412 = vadd.f32 0.0, %v5411
      %v5413 = vpop.f32.mrf.mxu0
      %5414 = vdwg.mxu0
      %5415 = vst [vmem:[#allocation1] ss:$4 sm:$0xff] %v298
      %v5416 = vld.sshfl [vmem:[#allocation1] sm:$0xff pattern:$0x73625140]
      %5418 = vrot.lane.b32.xlu0 %v5416, 96
      %v5419 = vpop.permute.xlu0 %5418
      %5420 = vrot.lane.b32.xlu0 %v853, 96
      %v5421 = vpop.permute.xlu0 %5420
      %v5423 = vsel %vm613, %v5419, 0
      %v5426 = vsel %vm613, %v5421, 0
      %5428 = vmatpush.bf16.xpose.msra.mxu0 0
      %5429 = vmatpush.bf16.xpose.msra.mxu0 0
      %5430 = vmatpush.bf16.xpose.msra.mxu0 0
      %5431 = vmatpush.bf16.xpose.msra.mxu0 0
      %5432 = vmatpush.bf16.xpose.msra.mxu0 0
      %5433 = vmatpush.bf16.xpose.msra.mxu0 0
      %5434 = vmatpush.bf16.xpose.msra.mxu0 0
      %5435 = vmatpush.bf16.xpose.msra.mxu0 %v5426
      %5436 = vmatmul.bf16.gmra.mxu0 %v5423
      %v5437 = vpop.f32.mrf.mxu0
      %v5438 = vadd.f32 0.0, %v5437
      %v5439 = vpop.f32.mrf.mxu0
      %5440 = vdwg.mxu0
      %5441 = vst [vmem:[#allocation1] ss:$4 sm:$0xff] %v299
      %v5442 = vld.sshfl [vmem:[#allocation1] sm:$0xff pattern:$0x73625140]
      %5444 = vrot.lane.b32.xlu0 %v5442, 96
      %v5445 = vpop.permute.xlu0 %5444
      %5446 = vrot.lane.b32.xlu0 %v877, 96
      %v5447 = vpop.permute.xlu0 %5446
      %v5449 = vsel %vm613, %v5445, 0
      %v5452 = vsel %vm613, %v5447, 0
      %5454 = vmatpush.bf16.xpose.msra.mxu0 0
      %5455 = vmatpush.bf16.xpose.msra.mxu0 0
      %5456 = vmatpush.bf16.xpose.msra.mxu0 0
      %5457 = vmatpush.bf16.xpose.msra.mxu0 0
      %5458 = vmatpush.bf16.xpose.msra.mxu0 0
      %5459 = vmatpush.bf16.xpose.msra.mxu0 0
      %5460 = vmatpush.bf16.xpose.msra.mxu0 0
      %5461 = vmatpush.bf16.xpose.msra.mxu0 %v5452
      %5462 = vmatmul.bf16.gmra.mxu0 %v5449
      %v5463 = vpop.f32.mrf.mxu0
      %v5464 = vadd.f32 0.0, %v5463
      %v5465 = vpop.f32.mrf.mxu0
      %5466 = vdwg.mxu0
      %5467 = vst [vmem:[#allocation1] ss:$4 sm:$0xff] %v300
      %v5468 = vld.sshfl [vmem:[#allocation1] sm:$0xff pattern:$0x73625140]
      %5470 = vrot.lane.b32.xlu0 %v5468, 96
      %v5471 = vpop.permute.xlu0 %5470
      %5472 = vrot.lane.b32.xlu0 %v901, 96
      %v5473 = vpop.permute.xlu0 %5472
      %v5475 = vsel %vm613, %v5471, 0
      %v5478 = vsel %vm613, %v5473, 0
      %5480 = vmatpush.bf16.xpose.msra.mxu0 0
      %5481 = vmatpush.bf16.xpose.msra.mxu0 0
      %5482 = vmatpush.bf16.xpose.msra.mxu0 0
      %5483 = vmatpush.bf16.xpose.msra.mxu0 0
      %5484 = vmatpush.bf16.xpose.msra.mxu0 0
      %5485 = vmatpush.bf16.xpose.msra.mxu0 0
      %5486 = vmatpush.bf16.xpose.msra.mxu0 0
      %5487 = vmatpush.bf16.xpose.msra.mxu0 %v5478
      %5488 = vmatmul.bf16.gmra.mxu0 %v5475
      %v5489 = vpop.f32.mrf.mxu0
      %v5490 = vadd.f32 0.0, %v5489
      %v5491 = vpop.f32.mrf.mxu0
      %5492 = vdwg.mxu0
      %5493 = vst [vmem:[#allocation1] ss:$4 sm:$0xff] %v301
      %v5494 = vld.sshfl [vmem:[#allocation1] sm:$0xff pattern:$0x73625140]
      %5496 = vrot.lane.b32.xlu0 %v5494, 96
      %v5497 = vpop.permute.xlu0 %5496
      %5498 = vrot.lane.b32.xlu0 %v925, 96
      %v5499 = vpop.permute.xlu0 %5498
      %v5501 = vsel %vm613, %v5497, 0
      %v5504 = vsel %vm613, %v5499, 0
      %5506 = vmatpush.bf16.xpose.msra.mxu0 0
      %5507 = vmatpush.bf16.xpose.msra.mxu0 0
      %5508 = vmatpush.bf16.xpose.msra.mxu0 0
      %5509 = vmatpush.bf16.xpose.msra.mxu0 0
      %5510 = vmatpush.bf16.xpose.msra.mxu0 0
      %5511 = vmatpush.bf16.xpose.msra.mxu0 0
      %5512 = vmatpush.bf16.xpose.msra.mxu0 0
      %5513 = vmatpush.bf16.xpose.msra.mxu0 %v5504
      %5514 = vmatmul.bf16.gmra.mxu0 %v5501
      %v5515 = vpop.f32.mrf.mxu0
      %v5516 = vadd.f32 0.0, %v5515
      %v5517 = vpop.f32.mrf.mxu0
      %5518 = vdwg.mxu0
      %5519 = vst [vmem:[#allocation1] ss:$4 sm:$0xff] %v302
      %v5520 = vld.sshfl [vmem:[#allocation1] sm:$0xff pattern:$0x73625140]
      %5522 = vrot.lane.b32.xlu0 %v5520, 96
      %v5523 = vpop.permute.xlu0 %5522
      %5524 = vrot.lane.b32.xlu0 %v949, 96
      %v5525 = vpop.permute.xlu0 %5524
      %v5527 = vsel %vm613, %v5523, 0
      %v5530 = vsel %vm613, %v5525, 0
      %5532 = vmatpush.bf16.xpose.msra.mxu0 0
      %5533 = vmatpush.bf16.xpose.msra.mxu0 0
      %5534 = vmatpush.bf16.xpose.msra.mxu0 0
      %5535 = vmatpush.bf16.xpose.msra.mxu0 0
      %5536 = vmatpush.bf16.xpose.msra.mxu0 0
      %5537 = vmatpush.bf16.xpose.msra.mxu0 0
      %5538 = vmatpush.bf16.xpose.msra.mxu0 0
      %5539 = vmatpush.bf16.xpose.msra.mxu0 %v5530
      %5540 = vmatmul.bf16.gmra.mxu0 %v5527
      %v5541 = vpop.f32.mrf.mxu0
      %v5542 = vadd.f32 0.0, %v5541
      %v5543 = vpop.f32.mrf.mxu0
      %5544 = vdwg.mxu0
      %5545 = vst [vmem:[#allocation1] ss:$4 sm:$0xff] %v303
      %v5546 = vld.sshfl [vmem:[#allocation1] sm:$0xff pattern:$0x73625140]
      %5548 = vrot.lane.b32.xlu0 %v5546, 96
      %v5549 = vpop.permute.xlu0 %5548
      %5550 = vrot.lane.b32.xlu0 %v973, 96
      %v5551 = vpop.permute.xlu0 %5550
      %v5553 = vsel %vm613, %v5549, 0
      %v5556 = vsel %vm613, %v5551, 0
      %5558 = vmatpush.bf16.xpose.msra.mxu0 0
      %5559 = vmatpush.bf16.xpose.msra.mxu0 0
      %5560 = vmatpush.bf16.xpose.msra.mxu0 0
      %5561 = vmatpush.bf16.xpose.msra.mxu0 0
      %5562 = vmatpush.bf16.xpose.msra.mxu0 0
      %5563 = vmatpush.bf16.xpose.msra.mxu0 0
      %5564 = vmatpush.bf16.xpose.msra.mxu0 0
      %5565 = vmatpush.bf16.xpose.msra.mxu0 %v5556
      %5566 = vmatmul.bf16.gmra.mxu0 %v5553
      %v5567 = vpop.f32.mrf.mxu0
      %v5568 = vadd.f32 0.0, %v5567
      %v5569 = vpop.f32.mrf.mxu0
      %5570 = vdwg.mxu0
      %5571 = vst [vmem:[#allocation1] ss:$4 sm:$0xff] %v304
      %v5572 = vld.sshfl [vmem:[#allocation1] sm:$0xff pattern:$0x73625140]
      %5574 = vrot.lane.b32.xlu0 %v5572, 96
      %v5575 = vpop.permute.xlu0 %5574
      %5576 = vrot.lane.b32.xlu0 %v997, 96
      %v5577 = vpop.permute.xlu0 %5576
      %v5579 = vsel %vm613, %v5575, 0
      %v5582 = vsel %vm613, %v5577, 0
      %5584 = vmatpush.bf16.xpose.msra.mxu0 0
      %5585 = vmatpush.bf16.xpose.msra.mxu0 0
      %5586 = vmatpush.bf16.xpose.msra.mxu0 0
      %5587 = vmatpush.bf16.xpose.msra.mxu0 0
      %5588 = vmatpush.bf16.xpose.msra.mxu0 0
      %5589 = vmatpush.bf16.xpose.msra.mxu0 0
      %5590 = vmatpush.bf16.xpose.msra.mxu0 0
      %5591 = vmatpush.bf16.xpose.msra.mxu0 %v5582
      %5592 = vmatmul.bf16.gmra.mxu0 %v5579
      %v5593 = vpop.f32.mrf.mxu0
      %v5594 = vadd.f32 0.0, %v5593
      %v5595 = vpop.f32.mrf.mxu0
      %5596 = vdwg.mxu0
      %5597 = vst [vmem:[#allocation1] ss:$4 sm:$0xff] %v305
      %v5598 = vld.sshfl [vmem:[#allocation1] sm:$0xff pattern:$0x73625140]
      %5600 = vrot.lane.b32.xlu0 %v5598, 96
      %v5601 = vpop.permute.xlu0 %5600
      %5602 = vrot.lane.b32.xlu0 %v1021, 96
      %v5603 = vpop.permute.xlu0 %5602
      %v5605 = vsel %vm613, %v5601, 0
      %v5608 = vsel %vm613, %v5603, 0
      %5610 = vmatpush.bf16.xpose.msra.mxu0 0
      %5611 = vmatpush.bf16.xpose.msra.mxu0 0
      %5612 = vmatpush.bf16.xpose.msra.mxu0 0
      %5613 = vmatpush.bf16.xpose.msra.mxu0 0
      %5614 = vmatpush.bf16.xpose.msra.mxu0 0
      %5615 = vmatpush.bf16.xpose.msra.mxu0 0
      %5616 = vmatpush.bf16.xpose.msra.mxu0 0
      %5617 = vmatpush.bf16.xpose.msra.mxu0 %v5608
      %5618 = vmatmul.bf16.gmra.mxu0 %v5605
      %v5619 = vpop.f32.mrf.mxu0
      %v5620 = vadd.f32 0.0, %v5619
      %v5621 = vpop.f32.mrf.mxu0
      %5622 = vdwg.mxu0
      %5623 = vst [vmem:[#allocation1] ss:$4 sm:$0xff] %v306
      %v5624 = vld.sshfl [vmem:[#allocation1] sm:$0xff pattern:$0x73625140]
      %5626 = vrot.lane.b32.xlu0 %v5624, 96
      %v5627 = vpop.permute.xlu0 %5626
      %5628 = vrot.lane.b32.xlu0 %v1045, 96
      %v5629 = vpop.permute.xlu0 %5628
      %v5631 = vsel %vm613, %v5627, 0
      %v5634 = vsel %vm613, %v5629, 0
      %5636 = vmatpush.bf16.xpose.msra.mxu0 0
      %5637 = vmatpush.bf16.xpose.msra.mxu0 0
      %5638 = vmatpush.bf16.xpose.msra.mxu0 0
      %5639 = vmatpush.bf16.xpose.msra.mxu0 0
      %5640 = vmatpush.bf16.xpose.msra.mxu0 0
      %5641 = vmatpush.bf16.xpose.msra.mxu0 0
      %5642 = vmatpush.bf16.xpose.msra.mxu0 0
      %5643 = vmatpush.bf16.xpose.msra.mxu0 %v5634
      %5644 = vmatmul.bf16.gmra.mxu0 %v5631
      %v5645 = vpop.f32.mrf.mxu0
      %v5646 = vadd.f32 0.0, %v5645
      %v5647 = vpop.f32.mrf.mxu0
      %5648 = vdwg.mxu0
      %5649 = vst [vmem:[#allocation1] ss:$4 sm:$0xff] %v307
      %v5650 = vld.sshfl [vmem:[#allocation1] sm:$0xff pattern:$0x73625140]
      %5652 = vrot.lane.b32.xlu0 %v5650, 96
      %v5653 = vpop.permute.xlu0 %5652
      %5654 = vrot.lane.b32.xlu0 %v1069, 96
      %v5655 = vpop.permute.xlu0 %5654
      %v5657 = vsel %vm613, %v5653, 0
      %v5660 = vsel %vm613, %v5655, 0
      %5662 = vmatpush.bf16.xpose.msra.mxu0 0
      %5663 = vmatpush.bf16.xpose.msra.mxu0 0
      %5664 = vmatpush.bf16.xpose.msra.mxu0 0
      %5665 = vmatpush.bf16.xpose.msra.mxu0 0
      %5666 = vmatpush.bf16.xpose.msra.mxu0 0
      %5667 = vmatpush.bf16.xpose.msra.mxu0 0
      %5668 = vmatpush.bf16.xpose.msra.mxu0 0
      %5669 = vmatpush.bf16.xpose.msra.mxu0 %v5660
      %5670 = vmatmul.bf16.gmra.mxu0 %v5657
      %v5671 = vpop.f32.mrf.mxu0
      %v5672 = vadd.f32 0.0, %v5671
      %v5673 = vpop.f32.mrf.mxu0
      %5674 = vdwg.mxu0
      %5675 = vst [vmem:[#allocation1] ss:$4 sm:$0xff] %v308
      %v5676 = vld.sshfl [vmem:[#allocation1] sm:$0xff pattern:$0x73625140]
      %5678 = vrot.lane.b32.xlu0 %v5676, 96
      %v5679 = vpop.permute.xlu0 %5678
      %5680 = vrot.lane.b32.xlu0 %v1093, 96
      %v5681 = vpop.permute.xlu0 %5680
      %v5683 = vsel %vm613, %v5679, 0
      %v5686 = vsel %vm613, %v5681, 0
      %5688 = vmatpush.bf16.xpose.msra.mxu0 0
      %5689 = vmatpush.bf16.xpose.msra.mxu0 0
      %5690 = vmatpush.bf16.xpose.msra.mxu0 0
      %5691 = vmatpush.bf16.xpose.msra.mxu0 0
      %5692 = vmatpush.bf16.xpose.msra.mxu0 0
      %5693 = vmatpush.bf16.xpose.msra.mxu0 0
      %5694 = vmatpush.bf16.xpose.msra.mxu0 0
      %5695 = vmatpush.bf16.xpose.msra.mxu0 %v5686
      %5696 = vmatmul.bf16.gmra.mxu0 %v5683
      %v5697 = vpop.f32.mrf.mxu0
      %v5698 = vadd.f32 0.0, %v5697
      %v5699 = vpop.f32.mrf.mxu0
      %5700 = vdwg.mxu0
      %5701 = vst [vmem:[#allocation1] ss:$4 sm:$0xff] %v309
      %v5702 = vld.sshfl [vmem:[#allocation1] sm:$0xff pattern:$0x73625140]
      %5704 = vrot.lane.b32.xlu0 %v5702, 96
      %v5705 = vpop.permute.xlu0 %5704
      %5706 = vrot.lane.b32.xlu0 %v1117, 96
      %v5707 = vpop.permute.xlu0 %5706
      %v5709 = vsel %vm613, %v5705, 0
      %v5712 = vsel %vm613, %v5707, 0
      %5714 = vmatpush.bf16.xpose.msra.mxu0 0
      %5715 = vmatpush.bf16.xpose.msra.mxu0 0
      %5716 = vmatpush.bf16.xpose.msra.mxu0 0
      %5717 = vmatpush.bf16.xpose.msra.mxu0 0
      %5718 = vmatpush.bf16.xpose.msra.mxu0 0
      %5719 = vmatpush.bf16.xpose.msra.mxu0 0
      %5720 = vmatpush.bf16.xpose.msra.mxu0 0
      %5721 = vmatpush.bf16.xpose.msra.mxu0 %v5712
      %5722 = vmatmul.bf16.gmra.mxu0 %v5709
      %v5723 = vpop.f32.mrf.mxu0
      %v5724 = vadd.f32 0.0, %v5723
      %v5725 = vpop.f32.mrf.mxu0
      %5726 = vdwg.mxu0
      %5727 = vst [vmem:[#allocation1] ss:$4 sm:$0xff] %v310
      %v5728 = vld.sshfl [vmem:[#allocation1] sm:$0xff pattern:$0x73625140]
      %5730 = vrot.lane.b32.xlu0 %v5728, 96
      %v5731 = vpop.permute.xlu0 %5730
      %5732 = vrot.lane.b32.xlu0 %v1141, 96
      %v5733 = vpop.permute.xlu0 %5732
      %v5735 = vsel %vm613, %v5731, 0
      %v5738 = vsel %vm613, %v5733, 0
      %5740 = vmatpush.bf16.xpose.msra.mxu0 0
      %5741 = vmatpush.bf16.xpose.msra.mxu0 0
      %5742 = vmatpush.bf16.xpose.msra.mxu0 0
      %5743 = vmatpush.bf16.xpose.msra.mxu0 0
      %5744 = vmatpush.bf16.xpose.msra.mxu0 0
      %5745 = vmatpush.bf16.xpose.msra.mxu0 0
      %5746 = vmatpush.bf16.xpose.msra.mxu0 0
      %5747 = vmatpush.bf16.xpose.msra.mxu0 %v5738
      %5748 = vmatmul.bf16.gmra.mxu0 %v5735
      %v5749 = vpop.f32.mrf.mxu0
      %v5750 = vadd.f32 0.0, %v5749
      %v5751 = vpop.f32.mrf.mxu0
      %5752 = vdwg.mxu0
      %5753 = vst [vmem:[#allocation1] ss:$4 sm:$0xff] %v311
      %v5754 = vld.sshfl [vmem:[#allocation1] sm:$0xff pattern:$0x73625140]
      %5756 = vrot.lane.b32.xlu0 %v5754, 96
      %v5757 = vpop.permute.xlu0 %5756
      %5758 = vrot.lane.b32.xlu0 %v1165, 96
      %v5759 = vpop.permute.xlu0 %5758
      %v5761 = vsel %vm613, %v5757, 0
      %v5764 = vsel %vm613, %v5759, 0
      %5766 = vmatpush.bf16.xpose.msra.mxu0 0
      %5767 = vmatpush.bf16.xpose.msra.mxu0 0
      %5768 = vmatpush.bf16.xpose.msra.mxu0 0
      %5769 = vmatpush.bf16.xpose.msra.mxu0 0
      %5770 = vmatpush.bf16.xpose.msra.mxu0 0
      %5771 = vmatpush.bf16.xpose.msra.mxu0 0
      %5772 = vmatpush.bf16.xpose.msra.mxu0 0
      %5773 = vmatpush.bf16.xpose.msra.mxu0 %v5764
      %5774 = vmatmul.bf16.gmra.mxu0 %v5761
      %v5775 = vpop.f32.mrf.mxu0
      %v5776 = vadd.f32 0.0, %v5775
      %v5777 = vpop.f32.mrf.mxu0
      %5778 = vdwg.mxu0
      %5779 = vst [vmem:[#allocation1] ss:$4 sm:$0xff] %v312
      %v5780 = vld.sshfl [vmem:[#allocation1] sm:$0xff pattern:$0x73625140]
      %5782 = vrot.lane.b32.xlu0 %v5780, 96
      %v5783 = vpop.permute.xlu0 %5782
      %5784 = vrot.lane.b32.xlu0 %v1189, 96
      %v5785 = vpop.permute.xlu0 %5784
      %v5787 = vsel %vm613, %v5783, 0
      %v5790 = vsel %vm613, %v5785, 0
      %5792 = vmatpush.bf16.xpose.msra.mxu0 0
      %5793 = vmatpush.bf16.xpose.msra.mxu0 0
      %5794 = vmatpush.bf16.xpose.msra.mxu0 0
      %5795 = vmatpush.bf16.xpose.msra.mxu0 0
      %5796 = vmatpush.bf16.xpose.msra.mxu0 0
      %5797 = vmatpush.bf16.xpose.msra.mxu0 0
      %5798 = vmatpush.bf16.xpose.msra.mxu0 0
      %5799 = vmatpush.bf16.xpose.msra.mxu0 %v5790
      %5800 = vmatmul.bf16.gmra.mxu0 %v5787
      %v5801 = vpop.f32.mrf.mxu0
      %v5802 = vadd.f32 0.0, %v5801
      %v5803 = vpop.f32.mrf.mxu0
      %5804 = vdwg.mxu0
      %5805 = vst [vmem:[#allocation1] ss:$4 sm:$0xff] %v313
      %v5806 = vld.sshfl [vmem:[#allocation1] sm:$0xff pattern:$0x73625140]
      %5808 = vrot.lane.b32.xlu0 %v5806, 96
      %v5809 = vpop.permute.xlu0 %5808
      %5810 = vrot.lane.b32.xlu0 %v1213, 96
      %v5811 = vpop.permute.xlu0 %5810
      %v5813 = vsel %vm613, %v5809, 0
      %v5816 = vsel %vm613, %v5811, 0
      %5818 = vmatpush.bf16.xpose.msra.mxu0 0
      %5819 = vmatpush.bf16.xpose.msra.mxu0 0
      %5820 = vmatpush.bf16.xpose.msra.mxu0 0
      %5821 = vmatpush.bf16.xpose.msra.mxu0 0
      %5822 = vmatpush.bf16.xpose.msra.mxu0 0
      %5823 = vmatpush.bf16.xpose.msra.mxu0 0
      %5824 = vmatpush.bf16.xpose.msra.mxu0 0
      %5825 = vmatpush.bf16.xpose.msra.mxu0 %v5816
      %5826 = vmatmul.bf16.gmra.mxu0 %v5813
      %v5827 = vpop.f32.mrf.mxu0
      %v5828 = vadd.f32 0.0, %v5827
      %v5829 = vpop.f32.mrf.mxu0
      %5830 = vdwg.mxu0
      %5831 = vst [vmem:[#allocation1] ss:$4 sm:$0xff] %v314
      %v5832 = vld.sshfl [vmem:[#allocation1] sm:$0xff pattern:$0x73625140]
      %5834 = vrot.lane.b32.xlu0 %v5832, 96
      %v5835 = vpop.permute.xlu0 %5834
      %5836 = vrot.lane.b32.xlu0 %v1237, 96
      %v5837 = vpop.permute.xlu0 %5836
      %v5839 = vsel %vm613, %v5835, 0
      %v5842 = vsel %vm613, %v5837, 0
      %5844 = vmatpush.bf16.xpose.msra.mxu0 0
      %5845 = vmatpush.bf16.xpose.msra.mxu0 0
      %5846 = vmatpush.bf16.xpose.msra.mxu0 0
      %5847 = vmatpush.bf16.xpose.msra.mxu0 0
      %5848 = vmatpush.bf16.xpose.msra.mxu0 0
      %5849 = vmatpush.bf16.xpose.msra.mxu0 0
      %5850 = vmatpush.bf16.xpose.msra.mxu0 0
      %5851 = vmatpush.bf16.xpose.msra.mxu0 %v5842
      %5852 = vmatmul.bf16.gmra.mxu0 %v5839
      %v5853 = vpop.f32.mrf.mxu0
      %v5854 = vadd.f32 0.0, %v5853
      %v5855 = vpop.f32.mrf.mxu0
      %5856 = vdwg.mxu0
      %5857 = vst [vmem:[#allocation1] ss:$4 sm:$0xff] %v315
      %v5858 = vld.sshfl [vmem:[#allocation1] sm:$0xff pattern:$0x73625140]
      %5860 = vrot.lane.b32.xlu0 %v5858, 96
      %v5861 = vpop.permute.xlu0 %5860
      %5862 = vrot.lane.b32.xlu0 %v1261, 96
      %v5863 = vpop.permute.xlu0 %5862
      %v5865 = vsel %vm613, %v5861, 0
      %v5868 = vsel %vm613, %v5863, 0
      %5870 = vmatpush.bf16.xpose.msra.mxu0 0
      %5871 = vmatpush.bf16.xpose.msra.mxu0 0
      %5872 = vmatpush.bf16.xpose.msra.mxu0 0
      %5873 = vmatpush.bf16.xpose.msra.mxu0 0
      %5874 = vmatpush.bf16.xpose.msra.mxu0 0
      %5875 = vmatpush.bf16.xpose.msra.mxu0 0
      %5876 = vmatpush.bf16.xpose.msra.mxu0 0
      %5877 = vmatpush.bf16.xpose.msra.mxu0 %v5868
      %5878 = vmatmul.bf16.gmra.mxu0 %v5865
      %v5879 = vpop.f32.mrf.mxu0
      %v5880 = vadd.f32 0.0, %v5879
      %v5881 = vpop.f32.mrf.mxu0
      %5882 = vdwg.mxu0
      %5883 = vst [vmem:[#allocation1] ss:$4 sm:$0xff] %v316
      %v5884 = vld.sshfl [vmem:[#allocation1] sm:$0xff pattern:$0x73625140]
      %5886 = vrot.lane.b32.xlu0 %v5884, 96
      %v5887 = vpop.permute.xlu0 %5886
      %5888 = vrot.lane.b32.xlu0 %v1285, 96
      %v5889 = vpop.permute.xlu0 %5888
      %v5891 = vsel %vm613, %v5887, 0
      %v5894 = vsel %vm613, %v5889, 0
      %5896 = vmatpush.bf16.xpose.msra.mxu0 0
      %5897 = vmatpush.bf16.xpose.msra.mxu0 0
      %5898 = vmatpush.bf16.xpose.msra.mxu0 0
      %5899 = vmatpush.bf16.xpose.msra.mxu0 0
      %5900 = vmatpush.bf16.xpose.msra.mxu0 0
      %5901 = vmatpush.bf16.xpose.msra.mxu0 0
      %5902 = vmatpush.bf16.xpose.msra.mxu0 0
      %5903 = vmatpush.bf16.xpose.msra.mxu0 %v5894
      %5904 = vmatmul.bf16.gmra.mxu0 %v5891
      %v5905 = vpop.f32.mrf.mxu0
      %v5906 = vadd.f32 0.0, %v5905
      %v5907 = vpop.f32.mrf.mxu0
      %5908 = vdwg.mxu0
      %5909 = vst [vmem:[#allocation1] ss:$4 sm:$0xff] %v317
      %v5910 = vld.sshfl [vmem:[#allocation1] sm:$0xff pattern:$0x73625140]
      %5912 = vrot.lane.b32.xlu0 %v5910, 96
      %v5913 = vpop.permute.xlu0 %5912
      %5914 = vrot.lane.b32.xlu0 %v1309, 96
      %v5915 = vpop.permute.xlu0 %5914
      %v5917 = vsel %vm613, %v5913, 0
      %v5920 = vsel %vm613, %v5915, 0
      %5922 = vmatpush.bf16.xpose.msra.mxu0 0
      %5923 = vmatpush.bf16.xpose.msra.mxu0 0
      %5924 = vmatpush.bf16.xpose.msra.mxu0 0
      %5925 = vmatpush.bf16.xpose.msra.mxu0 0
      %5926 = vmatpush.bf16.xpose.msra.mxu0 0
      %5927 = vmatpush.bf16.xpose.msra.mxu0 0
      %5928 = vmatpush.bf16.xpose.msra.mxu0 0
      %5929 = vmatpush.bf16.xpose.msra.mxu0 %v5920
      %5930 = vmatmul.bf16.gmra.mxu0 %v5917
      %v5931 = vpop.f32.mrf.mxu0
      %v5932 = vadd.f32 0.0, %v5931
      %v5933 = vpop.f32.mrf.mxu0
      %5934 = vdwg.mxu0
      %5935 = vst [vmem:[#allocation1] ss:$4 sm:$0xff] %v318
      %v5936 = vld.sshfl [vmem:[#allocation1] sm:$0xff pattern:$0x73625140]
      %5938 = vrot.lane.b32.xlu0 %v5936, 96
      %v5939 = vpop.permute.xlu0 %5938
      %5940 = vrot.lane.b32.xlu0 %v1333, 96
      %v5941 = vpop.permute.xlu0 %5940
      %v5943 = vsel %vm613, %v5939, 0
      %v5946 = vsel %vm613, %v5941, 0
      %5948 = vmatpush.bf16.xpose.msra.mxu0 0
      %5949 = vmatpush.bf16.xpose.msra.mxu0 0
      %5950 = vmatpush.bf16.xpose.msra.mxu0 0
      %5951 = vmatpush.bf16.xpose.msra.mxu0 0
      %5952 = vmatpush.bf16.xpose.msra.mxu0 0
      %5953 = vmatpush.bf16.xpose.msra.mxu0 0
      %5954 = vmatpush.bf16.xpose.msra.mxu0 0
      %5955 = vmatpush.bf16.xpose.msra.mxu0 %v5946
      %5956 = vmatmul.bf16.gmra.mxu0 %v5943
      %v5957 = vpop.f32.mrf.mxu0
      %v5958 = vadd.f32 0.0, %v5957
      %v5959 = vpop.f32.mrf.mxu0
      %5960 = vdwg.mxu0
      %5961 = vst [vmem:[#allocation1] ss:$4 sm:$0xff] %v319
      %v5962 = vld.sshfl [vmem:[#allocation1] sm:$0xff pattern:$0x73625140]
      %5964 = vrot.lane.b32.xlu0 %v5962, 96
      %v5965 = vpop.permute.xlu0 %5964
      %5966 = vrot.lane.b32.xlu0 %v1357, 96
      %v5967 = vpop.permute.xlu0 %5966
      %v5969 = vsel %vm613, %v5965, 0
      %v5972 = vsel %vm613, %v5967, 0
      %5974 = vmatpush.bf16.xpose.msra.mxu0 0
      %5975 = vmatpush.bf16.xpose.msra.mxu0 0
      %5976 = vmatpush.bf16.xpose.msra.mxu0 0
      %5977 = vmatpush.bf16.xpose.msra.mxu0 0
      %5978 = vmatpush.bf16.xpose.msra.mxu0 0
      %5979 = vmatpush.bf16.xpose.msra.mxu0 0
      %5980 = vmatpush.bf16.xpose.msra.mxu0 0
      %5981 = vmatpush.bf16.xpose.msra.mxu0 %v5972
      %5982 = vmatmul.bf16.gmra.mxu0 %v5969
      %v5983 = vpop.f32.mrf.mxu0
      %v5984 = vadd.f32 0.0, %v5983
      %v5985 = vpop.f32.mrf.mxu0
      %5986 = vdwg.mxu0
      %5987 = vst [vmem:[#allocation1] ss:$4 sm:$0xff] %v320
      %v5988 = vld.sshfl [vmem:[#allocation1] sm:$0xff pattern:$0x73625140]
      %5990 = vrot.lane.b32.xlu0 %v5988, 96
      %v5991 = vpop.permute.xlu0 %5990
      %5992 = vrot.lane.b32.xlu0 %v1381, 96
      %v5993 = vpop.permute.xlu0 %5992
      %v5995 = vsel %vm613, %v5991, 0
      %v5998 = vsel %vm613, %v5993, 0
      %6000 = vmatpush.bf16.xpose.msra.mxu0 0
      %6001 = vmatpush.bf16.xpose.msra.mxu0 0
      %6002 = vmatpush.bf16.xpose.msra.mxu0 0
      %6003 = vmatpush.bf16.xpose.msra.mxu0 0
      %6004 = vmatpush.bf16.xpose.msra.mxu0 0
      %6005 = vmatpush.bf16.xpose.msra.mxu0 0
      %6006 = vmatpush.bf16.xpose.msra.mxu0 0
      %6007 = vmatpush.bf16.xpose.msra.mxu0 %v5998
      %6008 = vmatmul.bf16.gmra.mxu0 %v5995
      %v6009 = vpop.f32.mrf.mxu0
      %v6010 = vadd.f32 0.0, %v6009
      %v6011 = vpop.f32.mrf.mxu0
      %6012 = vdwg.mxu0
      %6013 = vst [vmem:[#allocation1] ss:$4 sm:$0xff] %v321
      %v6014 = vld.sshfl [vmem:[#allocation1] sm:$0xff pattern:$0x73625140]
      %6016 = vrot.lane.b32.xlu0 %v6014, 96
      %v6017 = vpop.permute.xlu0 %6016
      %6018 = vrot.lane.b32.xlu0 %v1405, 96
      %v6019 = vpop.permute.xlu0 %6018
      %v6021 = vsel %vm613, %v6017, 0
      %v6024 = vsel %vm613, %v6019, 0
      %6026 = vmatpush.bf16.xpose.msra.mxu0 0
      %6027 = vmatpush.bf16.xpose.msra.mxu0 0
      %6028 = vmatpush.bf16.xpose.msra.mxu0 0
      %6029 = vmatpush.bf16.xpose.msra.mxu0 0
      %6030 = vmatpush.bf16.xpose.msra.mxu0 0
      %6031 = vmatpush.bf16.xpose.msra.mxu0 0
      %6032 = vmatpush.bf16.xpose.msra.mxu0 0
      %6033 = vmatpush.bf16.xpose.msra.mxu0 %v6024
      %6034 = vmatmul.bf16.gmra.mxu0 %v6021
      %v6035 = vpop.f32.mrf.mxu0
      %v6036 = vadd.f32 0.0, %v6035
      %v6037 = vpop.f32.mrf.mxu0
      %6038 = vdwg.mxu0
      %6039 = vst [vmem:[#allocation1] ss:$4 sm:$0xff] %v322
      %v6040 = vld.sshfl [vmem:[#allocation1] sm:$0xff pattern:$0x73625140]
      %6042 = vrot.lane.b32.xlu0 %v6040, 96
      %v6043 = vpop.permute.xlu0 %6042
      %6044 = vrot.lane.b32.xlu0 %v1429, 96
      %v6045 = vpop.permute.xlu0 %6044
      %v6047 = vsel %vm613, %v6043, 0
      %v6050 = vsel %vm613, %v6045, 0
      %6052 = vmatpush.bf16.xpose.msra.mxu0 0
      %6053 = vmatpush.bf16.xpose.msra.mxu0 0
      %6054 = vmatpush.bf16.xpose.msra.mxu0 0
      %6055 = vmatpush.bf16.xpose.msra.mxu0 0
      %6056 = vmatpush.bf16.xpose.msra.mxu0 0
      %6057 = vmatpush.bf16.xpose.msra.mxu0 0
      %6058 = vmatpush.bf16.xpose.msra.mxu0 0
      %6059 = vmatpush.bf16.xpose.msra.mxu0 %v6050
      %6060 = vmatmul.bf16.gmra.mxu0 %v6047
      %v6061 = vpop.f32.mrf.mxu0
      %v6062 = vadd.f32 0.0, %v6061
      %v6063 = vpop.f32.mrf.mxu0
      %6064 = vdwg.mxu0
      %6065 = vst [vmem:[#allocation1] ss:$4 sm:$0xff] %v323
      %v6066 = vld.sshfl [vmem:[#allocation1] sm:$0xff pattern:$0x73625140]
      %6068 = vrot.lane.b32.xlu0 %v6066, 96
      %v6069 = vpop.permute.xlu0 %6068
      %6070 = vrot.lane.b32.xlu0 %v1453, 96
      %v6071 = vpop.permute.xlu0 %6070
      %v6073 = vsel %vm613, %v6069, 0
      %v6076 = vsel %vm613, %v6071, 0
      %6078 = vmatpush.bf16.xpose.msra.mxu0 0
      %6079 = vmatpush.bf16.xpose.msra.mxu0 0
      %6080 = vmatpush.bf16.xpose.msra.mxu0 0
      %6081 = vmatpush.bf16.xpose.msra.mxu0 0
      %6082 = vmatpush.bf16.xpose.msra.mxu0 0
      %6083 = vmatpush.bf16.xpose.msra.mxu0 0
      %6084 = vmatpush.bf16.xpose.msra.mxu0 0
      %6085 = vmatpush.bf16.xpose.msra.mxu0 %v6076
      %6086 = vmatmul.bf16.gmra.mxu0 %v6073
      %v6087 = vpop.f32.mrf.mxu0
      %v6088 = vadd.f32 0.0, %v6087
      %v6089 = vpop.f32.mrf.mxu0
      %6090 = vdwg.mxu0
      %6091 = vst [vmem:[#allocation1] ss:$4 sm:$0xff] %v324
      %v6092 = vld.sshfl [vmem:[#allocation1] sm:$0xff pattern:$0x73625140]
      %6094 = vrot.lane.b32.xlu0 %v6092, 96
      %v6095 = vpop.permute.xlu0 %6094
      %6096 = vrot.lane.b32.xlu0 %v1477, 96
      %v6097 = vpop.permute.xlu0 %6096
      %v6099 = vsel %vm613, %v6095, 0
      %v6102 = vsel %vm613, %v6097, 0
      %6104 = vmatpush.bf16.xpose.msra.mxu0 0
      %6105 = vmatpush.bf16.xpose.msra.mxu0 0
      %6106 = vmatpush.bf16.xpose.msra.mxu0 0
      %6107 = vmatpush.bf16.xpose.msra.mxu0 0
      %6108 = vmatpush.bf16.xpose.msra.mxu0 0
      %6109 = vmatpush.bf16.xpose.msra.mxu0 0
      %6110 = vmatpush.bf16.xpose.msra.mxu0 0
      %6111 = vmatpush.bf16.xpose.msra.mxu0 %v6102
      %6112 = vmatmul.bf16.gmra.mxu0 %v6099
      %v6113 = vpop.f32.mrf.mxu0
      %v6114 = vadd.f32 0.0, %v6113
      %v6115 = vpop.f32.mrf.mxu0
      %6116 = vdwg.mxu0
      %6117 = vst [vmem:[#allocation1] ss:$4 sm:$0xff] %v325
      %v6118 = vld.sshfl [vmem:[#allocation1] sm:$0xff pattern:$0x73625140]
      %6120 = vrot.lane.b32.xlu0 %v6118, 96
      %v6121 = vpop.permute.xlu0 %6120
      %6122 = vrot.lane.b32.xlu0 %v1501, 96
      %v6123 = vpop.permute.xlu0 %6122
      %v6125 = vsel %vm613, %v6121, 0
      %v6128 = vsel %vm613, %v6123, 0
      %6130 = vmatpush.bf16.xpose.msra.mxu0 0
      %6131 = vmatpush.bf16.xpose.msra.mxu0 0
      %6132 = vmatpush.bf16.xpose.msra.mxu0 0
      %6133 = vmatpush.bf16.xpose.msra.mxu0 0
      %6134 = vmatpush.bf16.xpose.msra.mxu0 0
      %6135 = vmatpush.bf16.xpose.msra.mxu0 0
      %6136 = vmatpush.bf16.xpose.msra.mxu0 0
      %6137 = vmatpush.bf16.xpose.msra.mxu0 %v6128
      %6138 = vmatmul.bf16.gmra.mxu0 %v6125
      %v6139 = vpop.f32.mrf.mxu0
      %v6140 = vadd.f32 0.0, %v6139
      %v6141 = vpop.f32.mrf.mxu0
      %6142 = vdwg.mxu0
      %6143 = vst [vmem:[#allocation1] ss:$4 sm:$0xff] %v326
      %v6144 = vld.sshfl [vmem:[#allocation1] sm:$0xff pattern:$0x73625140]
      %6146 = vrot.lane.b32.xlu0 %v6144, 96
      %v6147 = vpop.permute.xlu0 %6146
      %6148 = vrot.lane.b32.xlu0 %v1525, 96
      %v6149 = vpop.permute.xlu0 %6148
      %v6151 = vsel %vm613, %v6147, 0
      %v6154 = vsel %vm613, %v6149, 0
      %6156 = vmatpush.bf16.xpose.msra.mxu0 0
      %6157 = vmatpush.bf16.xpose.msra.mxu0 0
      %6158 = vmatpush.bf16.xpose.msra.mxu0 0
      %6159 = vmatpush.bf16.xpose.msra.mxu0 0
      %6160 = vmatpush.bf16.xpose.msra.mxu0 0
      %6161 = vmatpush.bf16.xpose.msra.mxu0 0
      %6162 = vmatpush.bf16.xpose.msra.mxu0 0
      %6163 = vmatpush.bf16.xpose.msra.mxu0 %v6154
      %6164 = vmatmul.bf16.gmra.mxu0 %v6151
      %v6165 = vpop.f32.mrf.mxu0
      %v6166 = vadd.f32 0.0, %v6165
      %v6167 = vpop.f32.mrf.mxu0
      %6168 = vdwg.mxu0
      %6169 = vst [vmem:[#allocation1] ss:$4 sm:$0xff] %v327
      %v6170 = vld.sshfl [vmem:[#allocation1] sm:$0xff pattern:$0x73625140]
      %6172 = vrot.lane.b32.xlu0 %v6170, 96
      %v6173 = vpop.permute.xlu0 %6172
      %6174 = vrot.lane.b32.xlu0 %v1549, 96
      %v6175 = vpop.permute.xlu0 %6174
      %v6177 = vsel %vm613, %v6173, 0
      %v6180 = vsel %vm613, %v6175, 0
      %6182 = vmatpush.bf16.xpose.msra.mxu0 0
      %6183 = vmatpush.bf16.xpose.msra.mxu0 0
      %6184 = vmatpush.bf16.xpose.msra.mxu0 0
      %6185 = vmatpush.bf16.xpose.msra.mxu0 0
      %6186 = vmatpush.bf16.xpose.msra.mxu0 0
      %6187 = vmatpush.bf16.xpose.msra.mxu0 0
      %6188 = vmatpush.bf16.xpose.msra.mxu0 0
      %6189 = vmatpush.bf16.xpose.msra.mxu0 %v6180
      %6190 = vmatmul.bf16.gmra.mxu0 %v6177
      %v6191 = vpop.f32.mrf.mxu0
      %v6192 = vadd.f32 0.0, %v6191
      %v6193 = vpop.f32.mrf.mxu0
      %6194 = vdwg.mxu0
      %6195 = vst [vmem:[#allocation1] ss:$4 sm:$0xff] %v328
      %v6196 = vld.sshfl [vmem:[#allocation1] sm:$0xff pattern:$0x73625140]
      %6198 = vrot.lane.b32.xlu0 %v6196, 96
      %v6199 = vpop.permute.xlu0 %6198
      %6200 = vrot.lane.b32.xlu0 %v1573, 96
      %v6201 = vpop.permute.xlu0 %6200
      %v6203 = vsel %vm613, %v6199, 0
      %v6206 = vsel %vm613, %v6201, 0
      %6208 = vmatpush.bf16.xpose.msra.mxu0 0
      %6209 = vmatpush.bf16.xpose.msra.mxu0 0
      %6210 = vmatpush.bf16.xpose.msra.mxu0 0
      %6211 = vmatpush.bf16.xpose.msra.mxu0 0
      %6212 = vmatpush.bf16.xpose.msra.mxu0 0
      %6213 = vmatpush.bf16.xpose.msra.mxu0 0
      %6214 = vmatpush.bf16.xpose.msra.mxu0 0
      %6215 = vmatpush.bf16.xpose.msra.mxu0 %v6206
      %6216 = vmatmul.bf16.gmra.mxu0 %v6203
      %v6217 = vpop.f32.mrf.mxu0
      %v6218 = vadd.f32 0.0, %v6217
      %v6219 = vpop.f32.mrf.mxu0
      %6220 = vdwg.mxu0
      %6221 = vst [vmem:[#allocation1] ss:$4 sm:$0xff] %v329
      %v6222 = vld.sshfl [vmem:[#allocation1] sm:$0xff pattern:$0x73625140]
      %6224 = vrot.lane.b32.xlu0 %v6222, 96
      %v6225 = vpop.permute.xlu0 %6224
      %6226 = vrot.lane.b32.xlu0 %v1597, 96
      %v6227 = vpop.permute.xlu0 %6226
      %v6229 = vsel %vm613, %v6225, 0
      %v6232 = vsel %vm613, %v6227, 0
      %6234 = vmatpush.bf16.xpose.msra.mxu0 0
      %6235 = vmatpush.bf16.xpose.msra.mxu0 0
      %6236 = vmatpush.bf16.xpose.msra.mxu0 0
      %6237 = vmatpush.bf16.xpose.msra.mxu0 0
      %6238 = vmatpush.bf16.xpose.msra.mxu0 0
      %6239 = vmatpush.bf16.xpose.msra.mxu0 0
      %6240 = vmatpush.bf16.xpose.msra.mxu0 0
      %6241 = vmatpush.bf16.xpose.msra.mxu0 %v6232
      %6242 = vmatmul.bf16.gmra.mxu0 %v6229
      %v6243 = vpop.f32.mrf.mxu0
      %v6244 = vadd.f32 0.0, %v6243
      %v6245 = vpop.f32.mrf.mxu0
      %6246 = vdwg.mxu0
      %6247 = vst [vmem:[#allocation1] ss:$4 sm:$0xff] %v330
      %v6248 = vld.sshfl [vmem:[#allocation1] sm:$0xff pattern:$0x73625140]
      %6250 = vrot.lane.b32.xlu0 %v6248, 96
      %v6251 = vpop.permute.xlu0 %6250
      %6252 = vrot.lane.b32.xlu0 %v1621, 96
      %v6253 = vpop.permute.xlu0 %6252
      %v6255 = vsel %vm613, %v6251, 0
      %v6258 = vsel %vm613, %v6253, 0
      %6260 = vmatpush.bf16.xpose.msra.mxu0 0
      %6261 = vmatpush.bf16.xpose.msra.mxu0 0
      %6262 = vmatpush.bf16.xpose.msra.mxu0 0
      %6263 = vmatpush.bf16.xpose.msra.mxu0 0
      %6264 = vmatpush.bf16.xpose.msra.mxu0 0
      %6265 = vmatpush.bf16.xpose.msra.mxu0 0
      %6266 = vmatpush.bf16.xpose.msra.mxu0 0
      %6267 = vmatpush.bf16.xpose.msra.mxu0 %v6258
      %6268 = vmatmul.bf16.gmra.mxu0 %v6255
      %v6269 = vpop.f32.mrf.mxu0
      %v6270 = vadd.f32 0.0, %v6269
      %v6271 = vpop.f32.mrf.mxu0
      %6272 = vdwg.mxu0
      %6273 = vst [vmem:[#allocation1] ss:$4 sm:$0xff] %v331
      %v6274 = vld.sshfl [vmem:[#allocation1] sm:$0xff pattern:$0x73625140]
      %6276 = vrot.lane.b32.xlu0 %v6274, 96
      %v6277 = vpop.permute.xlu0 %6276
      %6278 = vrot.lane.b32.xlu0 %v1645, 96
      %v6279 = vpop.permute.xlu0 %6278
      %v6281 = vsel %vm613, %v6277, 0
      %v6284 = vsel %vm613, %v6279, 0
      %6286 = vmatpush.bf16.xpose.msra.mxu0 0
      %6287 = vmatpush.bf16.xpose.msra.mxu0 0
      %6288 = vmatpush.bf16.xpose.msra.mxu0 0
      %6289 = vmatpush.bf16.xpose.msra.mxu0 0
      %6290 = vmatpush.bf16.xpose.msra.mxu0 0
      %6291 = vmatpush.bf16.xpose.msra.mxu0 0
      %6292 = vmatpush.bf16.xpose.msra.mxu0 0
      %6293 = vmatpush.bf16.xpose.msra.mxu0 %v6284
      %6294 = vmatmul.bf16.gmra.mxu0 %v6281
      %v6295 = vpop.f32.mrf.mxu0
      %v6296 = vadd.f32 0.0, %v6295
      %v6297 = vpop.f32.mrf.mxu0
      %6298 = vdwg.mxu0
      %6299 = vst [vmem:[#allocation1] ss:$4 sm:$0xff] %v332
      %v6300 = vld.sshfl [vmem:[#allocation1] sm:$0xff pattern:$0x73625140]
      %6302 = vrot.lane.b32.xlu0 %v6300, 96
      %v6303 = vpop.permute.xlu0 %6302
      %6304 = vrot.lane.b32.xlu0 %v1669, 96
      %v6305 = vpop.permute.xlu0 %6304
      %v6307 = vsel %vm613, %v6303, 0
      %v6310 = vsel %vm613, %v6305, 0
      %6312 = vmatpush.bf16.xpose.msra.mxu0 0
      %6313 = vmatpush.bf16.xpose.msra.mxu0 0
      %6314 = vmatpush.bf16.xpose.msra.mxu0 0
      %6315 = vmatpush.bf16.xpose.msra.mxu0 0
      %6316 = vmatpush.bf16.xpose.msra.mxu0 0
      %6317 = vmatpush.bf16.xpose.msra.mxu0 0
      %6318 = vmatpush.bf16.xpose.msra.mxu0 0
      %6319 = vmatpush.bf16.xpose.msra.mxu0 %v6310
      %6320 = vmatmul.bf16.gmra.mxu0 %v6307
      %v6321 = vpop.f32.mrf.mxu0
      %v6322 = vadd.f32 0.0, %v6321
      %v6323 = vpop.f32.mrf.mxu0
      %6324 = vdwg.mxu0
      %6325 = vst [vmem:[#allocation1] ss:$4 sm:$0xff] %v333
      %v6326 = vld.sshfl [vmem:[#allocation1] sm:$0xff pattern:$0x73625140]
      %6328 = vrot.lane.b32.xlu0 %v6326, 96
      %v6329 = vpop.permute.xlu0 %6328
      %6330 = vrot.lane.b32.xlu0 %v1693, 96
      %v6331 = vpop.permute.xlu0 %6330
      %v6333 = vsel %vm613, %v6329, 0
      %v6336 = vsel %vm613, %v6331, 0
      %6338 = vmatpush.bf16.xpose.msra.mxu0 0
      %6339 = vmatpush.bf16.xpose.msra.mxu0 0
      %6340 = vmatpush.bf16.xpose.msra.mxu0 0
      %6341 = vmatpush.bf16.xpose.msra.mxu0 0
      %6342 = vmatpush.bf16.xpose.msra.mxu0 0
      %6343 = vmatpush.bf16.xpose.msra.mxu0 0
      %6344 = vmatpush.bf16.xpose.msra.mxu0 0
      %6345 = vmatpush.bf16.xpose.msra.mxu0 %v6336
      %6346 = vmatmul.bf16.gmra.mxu0 %v6333
      %v6347 = vpop.f32.mrf.mxu0
      %v6348 = vadd.f32 0.0, %v6347
      %v6349 = vpop.f32.mrf.mxu0
      %6350 = vdwg.mxu0
      %6351 = vst [vmem:[#allocation1] ss:$4 sm:$0xff] %v334
      %v6352 = vld.sshfl [vmem:[#allocation1] sm:$0xff pattern:$0x73625140]
      %6354 = vrot.lane.b32.xlu0 %v6352, 96
      %v6355 = vpop.permute.xlu0 %6354
      %6356 = vrot.lane.b32.xlu0 %v1717, 96
      %v6357 = vpop.permute.xlu0 %6356
      %v6359 = vsel %vm613, %v6355, 0
      %v6362 = vsel %vm613, %v6357, 0
      %6364 = vmatpush.bf16.xpose.msra.mxu0 0
      %6365 = vmatpush.bf16.xpose.msra.mxu0 0
      %6366 = vmatpush.bf16.xpose.msra.mxu0 0
      %6367 = vmatpush.bf16.xpose.msra.mxu0 0
      %6368 = vmatpush.bf16.xpose.msra.mxu0 0
      %6369 = vmatpush.bf16.xpose.msra.mxu0 0
      %6370 = vmatpush.bf16.xpose.msra.mxu0 0
      %6371 = vmatpush.bf16.xpose.msra.mxu0 %v6362
      %6372 = vmatmul.bf16.gmra.mxu0 %v6359
      %v6373 = vpop.f32.mrf.mxu0
      %v6374 = vadd.f32 0.0, %v6373
      %v6375 = vpop.f32.mrf.mxu0
      %6376 = vdwg.mxu0
      %6377 = vst [vmem:[#allocation1] ss:$4 sm:$0xff] %v335
      %v6378 = vld.sshfl [vmem:[#allocation1] sm:$0xff pattern:$0x73625140]
      %6380 = vrot.lane.b32.xlu0 %v6378, 96
      %v6381 = vpop.permute.xlu0 %6380
      %6382 = vrot.lane.b32.xlu0 %v1741, 96
      %v6383 = vpop.permute.xlu0 %6382
      %v6385 = vsel %vm613, %v6381, 0
      %v6388 = vsel %vm613, %v6383, 0
      %6390 = vmatpush.bf16.xpose.msra.mxu0 0
      %6391 = vmatpush.bf16.xpose.msra.mxu0 0
      %6392 = vmatpush.bf16.xpose.msra.mxu0 0
      %6393 = vmatpush.bf16.xpose.msra.mxu0 0
      %6394 = vmatpush.bf16.xpose.msra.mxu0 0
      %6395 = vmatpush.bf16.xpose.msra.mxu0 0
      %6396 = vmatpush.bf16.xpose.msra.mxu0 0
      %6397 = vmatpush.bf16.xpose.msra.mxu0 %v6388
      %6398 = vmatmul.bf16.gmra.mxu0 %v6385
      %v6399 = vpop.f32.mrf.mxu0
      %v6400 = vadd.f32 0.0, %v6399
      %v6401 = vpop.f32.mrf.mxu0
      %6402 = vdwg.mxu0
      %6403 = vst [vmem:[#allocation1] ss:$4 sm:$0xff] %v336
      %v6404 = vld.sshfl [vmem:[#allocation1] sm:$0xff pattern:$0x73625140]
      %6406 = vrot.lane.b32.xlu0 %v6404, 96
      %v6407 = vpop.permute.xlu0 %6406
      %6408 = vrot.lane.b32.xlu0 %v1765, 96
      %v6409 = vpop.permute.xlu0 %6408
      %v6411 = vsel %vm613, %v6407, 0
      %v6414 = vsel %vm613, %v6409, 0
      %6416 = vmatpush.bf16.xpose.msra.mxu0 0
      %6417 = vmatpush.bf16.xpose.msra.mxu0 0
      %6418 = vmatpush.bf16.xpose.msra.mxu0 0
      %6419 = vmatpush.bf16.xpose.msra.mxu0 0
      %6420 = vmatpush.bf16.xpose.msra.mxu0 0
      %6421 = vmatpush.bf16.xpose.msra.mxu0 0
      %6422 = vmatpush.bf16.xpose.msra.mxu0 0
      %6423 = vmatpush.bf16.xpose.msra.mxu0 %v6414
      %6424 = vmatmul.bf16.gmra.mxu0 %v6411
      %v6425 = vpop.f32.mrf.mxu0
      %v6426 = vadd.f32 0.0, %v6425
      %v6427 = vpop.f32.mrf.mxu0
      %6428 = vdwg.mxu0
      %6429 = vst [vmem:[#allocation1] ss:$4 sm:$0xff] %v337
      %v6430 = vld.sshfl [vmem:[#allocation1] sm:$0xff pattern:$0x73625140]
      %6432 = vrot.lane.b32.xlu0 %v6430, 96
      %v6433 = vpop.permute.xlu0 %6432
      %6434 = vrot.lane.b32.xlu0 %v1789, 96
      %v6435 = vpop.permute.xlu0 %6434
      %v6437 = vsel %vm613, %v6433, 0
      %v6440 = vsel %vm613, %v6435, 0
      %6442 = vmatpush.bf16.xpose.msra.mxu0 0
      %6443 = vmatpush.bf16.xpose.msra.mxu0 0
      %6444 = vmatpush.bf16.xpose.msra.mxu0 0
      %6445 = vmatpush.bf16.xpose.msra.mxu0 0
      %6446 = vmatpush.bf16.xpose.msra.mxu0 0
      %6447 = vmatpush.bf16.xpose.msra.mxu0 0
      %6448 = vmatpush.bf16.xpose.msra.mxu0 0
      %6449 = vmatpush.bf16.xpose.msra.mxu0 %v6440
      %6450 = vmatmul.bf16.gmra.mxu0 %v6437
      %v6451 = vpop.f32.mrf.mxu0
      %v6452 = vadd.f32 0.0, %v6451
      %v6453 = vpop.f32.mrf.mxu0
      %6454 = vdwg.mxu0
      %6455 = vst [vmem:[#allocation1] ss:$4 sm:$0xff] %v338
      %v6456 = vld.sshfl [vmem:[#allocation1] sm:$0xff pattern:$0x73625140]
      %6458 = vrot.lane.b32.xlu0 %v6456, 96
      %v6459 = vpop.permute.xlu0 %6458
      %6460 = vrot.lane.b32.xlu0 %v1813, 96
      %v6461 = vpop.permute.xlu0 %6460
      %v6463 = vsel %vm613, %v6459, 0
      %v6466 = vsel %vm613, %v6461, 0
      %6468 = vmatpush.bf16.xpose.msra.mxu0 0
      %6469 = vmatpush.bf16.xpose.msra.mxu0 0
      %6470 = vmatpush.bf16.xpose.msra.mxu0 0
      %6471 = vmatpush.bf16.xpose.msra.mxu0 0
      %6472 = vmatpush.bf16.xpose.msra.mxu0 0
      %6473 = vmatpush.bf16.xpose.msra.mxu0 0
      %6474 = vmatpush.bf16.xpose.msra.mxu0 0
      %6475 = vmatpush.bf16.xpose.msra.mxu0 %v6466
      %6476 = vmatmul.bf16.gmra.mxu0 %v6463
      %v6477 = vpop.f32.mrf.mxu0
      %v6478 = vadd.f32 0.0, %v6477
      %v6479 = vpop.f32.mrf.mxu0
      %6480 = vdwg.mxu0
      %6481 = vst [vmem:[#allocation1] ss:$4 sm:$0xff] %v339
      %v6482 = vld.sshfl [vmem:[#allocation1] sm:$0xff pattern:$0x73625140]
      %6484 = vrot.lane.b32.xlu0 %v6482, 96
      %v6485 = vpop.permute.xlu0 %6484
      %6486 = vrot.lane.b32.xlu0 %v1837, 96
      %v6487 = vpop.permute.xlu0 %6486
      %v6489 = vsel %vm613, %v6485, 0
      %v6492 = vsel %vm613, %v6487, 0
      %6494 = vmatpush.bf16.xpose.msra.mxu0 0
      %6495 = vmatpush.bf16.xpose.msra.mxu0 0
      %6496 = vmatpush.bf16.xpose.msra.mxu0 0
      %6497 = vmatpush.bf16.xpose.msra.mxu0 0
      %6498 = vmatpush.bf16.xpose.msra.mxu0 0
      %6499 = vmatpush.bf16.xpose.msra.mxu0 0
      %6500 = vmatpush.bf16.xpose.msra.mxu0 0
      %6501 = vmatpush.bf16.xpose.msra.mxu0 %v6492
      %6502 = vmatmul.bf16.gmra.mxu0 %v6489
      %v6503 = vpop.f32.mrf.mxu0
      %v6504 = vadd.f32 0.0, %v6503
      %v6505 = vpop.f32.mrf.mxu0
      %6506 = vdwg.mxu0
      %6507 = vst [vmem:[#allocation1] ss:$4 sm:$0xff] %v340
      %v6508 = vld.sshfl [vmem:[#allocation1] sm:$0xff pattern:$0x73625140]
      %6510 = vrot.lane.b32.xlu0 %v6508, 96
      %v6511 = vpop.permute.xlu0 %6510
      %6512 = vrot.lane.b32.xlu0 %v1861, 96
      %v6513 = vpop.permute.xlu0 %6512
      %v6515 = vsel %vm613, %v6511, 0
      %v6518 = vsel %vm613, %v6513, 0
      %6520 = vmatpush.bf16.xpose.msra.mxu0 0
      %6521 = vmatpush.bf16.xpose.msra.mxu0 0
      %6522 = vmatpush.bf16.xpose.msra.mxu0 0
      %6523 = vmatpush.bf16.xpose.msra.mxu0 0
      %6524 = vmatpush.bf16.xpose.msra.mxu0 0
      %6525 = vmatpush.bf16.xpose.msra.mxu0 0
      %6526 = vmatpush.bf16.xpose.msra.mxu0 0
      %6527 = vmatpush.bf16.xpose.msra.mxu0 %v6518
      %6528 = vmatmul.bf16.gmra.mxu0 %v6515
      %v6529 = vpop.f32.mrf.mxu0
      %v6530 = vadd.f32 0.0, %v6529
      %v6531 = vpop.f32.mrf.mxu0
      %6532 = vdwg.mxu0
      %6533 = vst [vmem:[#allocation1] ss:$4 sm:$0xff] %v341
      %v6534 = vld.sshfl [vmem:[#allocation1] sm:$0xff pattern:$0x73625140]
      %6536 = vrot.lane.b32.xlu0 %v6534, 96
      %v6537 = vpop.permute.xlu0 %6536
      %6538 = vrot.lane.b32.xlu0 %v1885, 96
      %v6539 = vpop.permute.xlu0 %6538
      %v6541 = vsel %vm613, %v6537, 0
      %v6544 = vsel %vm613, %v6539, 0
      %6546 = vmatpush.bf16.xpose.msra.mxu0 0
      %6547 = vmatpush.bf16.xpose.msra.mxu0 0
      %6548 = vmatpush.bf16.xpose.msra.mxu0 0
      %6549 = vmatpush.bf16.xpose.msra.mxu0 0
      %6550 = vmatpush.bf16.xpose.msra.mxu0 0
      %6551 = vmatpush.bf16.xpose.msra.mxu0 0
      %6552 = vmatpush.bf16.xpose.msra.mxu0 0
      %6553 = vmatpush.bf16.xpose.msra.mxu0 %v6544
      %6554 = vmatmul.bf16.gmra.mxu0 %v6541
      %v6555 = vpop.f32.mrf.mxu0
      %v6556 = vadd.f32 0.0, %v6555
      %v6557 = vpop.f32.mrf.mxu0
      %6558 = vdwg.mxu0
      %6559 = vst [vmem:[#allocation1] ss:$4 sm:$0xff] %v342
      %v6560 = vld.sshfl [vmem:[#allocation1] sm:$0xff pattern:$0x73625140]
      %6562 = vrot.lane.b32.xlu0 %v6560, 96
      %v6563 = vpop.permute.xlu0 %6562
      %6564 = vrot.lane.b32.xlu0 %v1909, 96
      %v6565 = vpop.permute.xlu0 %6564
      %v6567 = vsel %vm613, %v6563, 0
      %v6570 = vsel %vm613, %v6565, 0
      %6572 = vmatpush.bf16.xpose.msra.mxu0 0
      %6573 = vmatpush.bf16.xpose.msra.mxu0 0
      %6574 = vmatpush.bf16.xpose.msra.mxu0 0
      %6575 = vmatpush.bf16.xpose.msra.mxu0 0
      %6576 = vmatpush.bf16.xpose.msra.mxu0 0
      %6577 = vmatpush.bf16.xpose.msra.mxu0 0
      %6578 = vmatpush.bf16.xpose.msra.mxu0 0
      %6579 = vmatpush.bf16.xpose.msra.mxu0 %v6570
      %6580 = vmatmul.bf16.gmra.mxu0 %v6567
      %v6581 = vpop.f32.mrf.mxu0
      %v6582 = vadd.f32 0.0, %v6581
      %v6583 = vpop.f32.mrf.mxu0
      %6584 = vdwg.mxu0
      %6585 = vst [vmem:[#allocation1] ss:$4 sm:$0xff] %v343
      %v6586 = vld.sshfl [vmem:[#allocation1] sm:$0xff pattern:$0x73625140]
      %6588 = vrot.lane.b32.xlu0 %v6586, 96
      %v6589 = vpop.permute.xlu0 %6588
      %6590 = vrot.lane.b32.xlu0 %v1933, 96
      %v6591 = vpop.permute.xlu0 %6590
      %v6593 = vsel %vm613, %v6589, 0
      %v6596 = vsel %vm613, %v6591, 0
      %6598 = vmatpush.bf16.xpose.msra.mxu0 0
      %6599 = vmatpush.bf16.xpose.msra.mxu0 0
      %6600 = vmatpush.bf16.xpose.msra.mxu0 0
      %6601 = vmatpush.bf16.xpose.msra.mxu0 0
      %6602 = vmatpush.bf16.xpose.msra.mxu0 0
      %6603 = vmatpush.bf16.xpose.msra.mxu0 0
      %6604 = vmatpush.bf16.xpose.msra.mxu0 0
      %6605 = vmatpush.bf16.xpose.msra.mxu0 %v6596
      %6606 = vmatmul.bf16.gmra.mxu0 %v6593
      %v6607 = vpop.f32.mrf.mxu0
      %v6608 = vadd.f32 0.0, %v6607
      %v6609 = vpop.f32.mrf.mxu0
      %6610 = vdwg.mxu0
      %6611 = vst [vmem:[#allocation1] ss:$4 sm:$0xff] %v344
      %v6612 = vld.sshfl [vmem:[#allocation1] sm:$0xff pattern:$0x73625140]
      %6614 = vrot.lane.b32.xlu0 %v6612, 96
      %v6615 = vpop.permute.xlu0 %6614
      %6616 = vrot.lane.b32.xlu0 %v1957, 96
      %v6617 = vpop.permute.xlu0 %6616
      %v6619 = vsel %vm613, %v6615, 0
      %v6622 = vsel %vm613, %v6617, 0
      %6624 = vmatpush.bf16.xpose.msra.mxu0 0
      %6625 = vmatpush.bf16.xpose.msra.mxu0 0
      %6626 = vmatpush.bf16.xpose.msra.mxu0 0
      %6627 = vmatpush.bf16.xpose.msra.mxu0 0
      %6628 = vmatpush.bf16.xpose.msra.mxu0 0
      %6629 = vmatpush.bf16.xpose.msra.mxu0 0
      %6630 = vmatpush.bf16.xpose.msra.mxu0 0
      %6631 = vmatpush.bf16.xpose.msra.mxu0 %v6622
      %6632 = vmatmul.bf16.gmra.mxu0 %v6619
      %v6633 = vpop.f32.mrf.mxu0
      %v6634 = vadd.f32 0.0, %v6633
      %v6635 = vpop.f32.mrf.mxu0
      %6636 = vdwg.mxu0
      %6637 = vst [vmem:[#allocation1] ss:$4 sm:$0xff] %v345
      %v6638 = vld.sshfl [vmem:[#allocation1] sm:$0xff pattern:$0x73625140]
      %6640 = vrot.lane.b32.xlu0 %v6638, 96
      %v6641 = vpop.permute.xlu0 %6640
      %6642 = vrot.lane.b32.xlu0 %v1981, 96
      %v6643 = vpop.permute.xlu0 %6642
      %v6645 = vsel %vm613, %v6641, 0
      %v6648 = vsel %vm613, %v6643, 0
      %6650 = vmatpush.bf16.xpose.msra.mxu0 0
      %6651 = vmatpush.bf16.xpose.msra.mxu0 0
      %6652 = vmatpush.bf16.xpose.msra.mxu0 0
      %6653 = vmatpush.bf16.xpose.msra.mxu0 0
      %6654 = vmatpush.bf16.xpose.msra.mxu0 0
      %6655 = vmatpush.bf16.xpose.msra.mxu0 0
      %6656 = vmatpush.bf16.xpose.msra.mxu0 0
      %6657 = vmatpush.bf16.xpose.msra.mxu0 %v6648
      %6658 = vmatmul.bf16.gmra.mxu0 %v6645
      %v6659 = vpop.f32.mrf.mxu0
      %v6660 = vadd.f32 0.0, %v6659
      %v6661 = vpop.f32.mrf.mxu0
      %6662 = vdwg.mxu0
      %6663 = vst [vmem:[#allocation1] ss:$4 sm:$0xff] %v346
      %v6664 = vld.sshfl [vmem:[#allocation1] sm:$0xff pattern:$0x73625140]
      %6666 = vrot.lane.b32.xlu0 %v6664, 96
      %v6667 = vpop.permute.xlu0 %6666
      %6668 = vrot.lane.b32.xlu0 %v2005, 96
      %v6669 = vpop.permute.xlu0 %6668
      %v6671 = vsel %vm613, %v6667, 0
      %v6674 = vsel %vm613, %v6669, 0
      %6676 = vmatpush.bf16.xpose.msra.mxu0 0
      %6677 = vmatpush.bf16.xpose.msra.mxu0 0
      %6678 = vmatpush.bf16.xpose.msra.mxu0 0
      %6679 = vmatpush.bf16.xpose.msra.mxu0 0
      %6680 = vmatpush.bf16.xpose.msra.mxu0 0
      %6681 = vmatpush.bf16.xpose.msra.mxu0 0
      %6682 = vmatpush.bf16.xpose.msra.mxu0 0
      %6683 = vmatpush.bf16.xpose.msra.mxu0 %v6674
      %6684 = vmatmul.bf16.gmra.mxu0 %v6671
      %v6685 = vpop.f32.mrf.mxu0
      %v6686 = vadd.f32 0.0, %v6685
      %v6687 = vpop.f32.mrf.mxu0
      %6688 = vdwg.mxu0
      %6689 = vst [vmem:[#allocation1] ss:$4 sm:$0xff] %v347
      %v6690 = vld.sshfl [vmem:[#allocation1] sm:$0xff pattern:$0x73625140]
      %6692 = vrot.lane.b32.xlu0 %v6690, 96
      %v6693 = vpop.permute.xlu0 %6692
      %6694 = vrot.lane.b32.xlu0 %v2029, 96
      %v6695 = vpop.permute.xlu0 %6694
      %v6697 = vsel %vm613, %v6693, 0
      %v6700 = vsel %vm613, %v6695, 0
      %6702 = vmatpush.bf16.xpose.msra.mxu0 0
      %6703 = vmatpush.bf16.xpose.msra.mxu0 0
      %6704 = vmatpush.bf16.xpose.msra.mxu0 0
      %6705 = vmatpush.bf16.xpose.msra.mxu0 0
      %6706 = vmatpush.bf16.xpose.msra.mxu0 0
      %6707 = vmatpush.bf16.xpose.msra.mxu0 0
      %6708 = vmatpush.bf16.xpose.msra.mxu0 0
      %6709 = vmatpush.bf16.xpose.msra.mxu0 %v6700
      %6710 = vmatmul.bf16.gmra.mxu0 %v6697
      %v6711 = vpop.f32.mrf.mxu0
      %v6712 = vadd.f32 0.0, %v6711
      %v6713 = vpop.f32.mrf.mxu0
      %6714 = vdwg.mxu0
      %6715 = vst [vmem:[#allocation1] ss:$4 sm:$0xff] %v348
      %v6716 = vld.sshfl [vmem:[#allocation1] sm:$0xff pattern:$0x73625140]
      %6718 = vrot.lane.b32.xlu0 %v6716, 96
      %v6719 = vpop.permute.xlu0 %6718
      %6720 = vrot.lane.b32.xlu0 %v2053, 96
      %v6721 = vpop.permute.xlu0 %6720
      %v6723 = vsel %vm613, %v6719, 0
      %v6726 = vsel %vm613, %v6721, 0
      %6728 = vmatpush.bf16.xpose.msra.mxu0 0
      %6729 = vmatpush.bf16.xpose.msra.mxu0 0
      %6730 = vmatpush.bf16.xpose.msra.mxu0 0
      %6731 = vmatpush.bf16.xpose.msra.mxu0 0
      %6732 = vmatpush.bf16.xpose.msra.mxu0 0
      %6733 = vmatpush.bf16.xpose.msra.mxu0 0
      %6734 = vmatpush.bf16.xpose.msra.mxu0 0
      %6735 = vmatpush.bf16.xpose.msra.mxu0 %v6726
      %6736 = vmatmul.bf16.gmra.mxu0 %v6723
      %v6737 = vpop.f32.mrf.mxu0
      %v6738 = vadd.f32 0.0, %v6737
      %v6739 = vpop.f32.mrf.mxu0
      %6740 = vdwg.mxu0
      %6741 = vst [vmem:[#allocation1] ss:$4 sm:$0xff] %v349
      %v6742 = vld.sshfl [vmem:[#allocation1] sm:$0xff pattern:$0x73625140]
      %6744 = vrot.lane.b32.xlu0 %v6742, 96
      %v6745 = vpop.permute.xlu0 %6744
      %6746 = vrot.lane.b32.xlu0 %v2077, 96
      %v6747 = vpop.permute.xlu0 %6746
      %v6749 = vsel %vm613, %v6745, 0
      %v6752 = vsel %vm613, %v6747, 0
      %6754 = vmatpush.bf16.xpose.msra.mxu0 0
      %6755 = vmatpush.bf16.xpose.msra.mxu0 0
      %6756 = vmatpush.bf16.xpose.msra.mxu0 0
      %6757 = vmatpush.bf16.xpose.msra.mxu0 0
      %6758 = vmatpush.bf16.xpose.msra.mxu0 0
      %6759 = vmatpush.bf16.xpose.msra.mxu0 0
      %6760 = vmatpush.bf16.xpose.msra.mxu0 0
      %6761 = vmatpush.bf16.xpose.msra.mxu0 %v6752
      %6762 = vmatmul.bf16.gmra.mxu0 %v6749
      %v6763 = vpop.f32.mrf.mxu0
      %v6764 = vadd.f32 0.0, %v6763
      %v6765 = vpop.f32.mrf.mxu0
      %6766 = vdwg.mxu0
      %6767 = vst [vmem:[#allocation1] ss:$4 sm:$0xff] %v350
      %v6768 = vld.sshfl [vmem:[#allocation1] sm:$0xff pattern:$0x73625140]
      %6770 = vrot.lane.b32.xlu0 %v6768, 96
      %v6771 = vpop.permute.xlu0 %6770
      %6772 = vrot.lane.b32.xlu0 %v2101, 96
      %v6773 = vpop.permute.xlu0 %6772
      %v6775 = vsel %vm613, %v6771, 0
      %v6778 = vsel %vm613, %v6773, 0
      %6780 = vmatpush.bf16.xpose.msra.mxu0 0
      %6781 = vmatpush.bf16.xpose.msra.mxu0 0
      %6782 = vmatpush.bf16.xpose.msra.mxu0 0
      %6783 = vmatpush.bf16.xpose.msra.mxu0 0
      %6784 = vmatpush.bf16.xpose.msra.mxu0 0
      %6785 = vmatpush.bf16.xpose.msra.mxu0 0
      %6786 = vmatpush.bf16.xpose.msra.mxu0 0
      %6787 = vmatpush.bf16.xpose.msra.mxu0 %v6778
      %6788 = vmatmul.bf16.gmra.mxu0 %v6775
      %v6789 = vpop.f32.mrf.mxu0
      %v6790 = vadd.f32 0.0, %v6789
      %v6791 = vpop.f32.mrf.mxu0
      %6792 = vdwg.mxu0
      %6793 = vst [vmem:[#allocation1] ss:$4 sm:$0xff] %v351
      %v6794 = vld.sshfl [vmem:[#allocation1] sm:$0xff pattern:$0x73625140]
      %6796 = vrot.lane.b32.xlu0 %v6794, 96
      %v6797 = vpop.permute.xlu0 %6796
      %6798 = vrot.lane.b32.xlu0 %v2125, 96
      %v6799 = vpop.permute.xlu0 %6798
      %v6801 = vsel %vm613, %v6797, 0
      %v6804 = vsel %vm613, %v6799, 0
      %6806 = vmatpush.bf16.xpose.msra.mxu0 0
      %6807 = vmatpush.bf16.xpose.msra.mxu0 0
      %6808 = vmatpush.bf16.xpose.msra.mxu0 0
      %6809 = vmatpush.bf16.xpose.msra.mxu0 0
      %6810 = vmatpush.bf16.xpose.msra.mxu0 0
      %6811 = vmatpush.bf16.xpose.msra.mxu0 0
      %6812 = vmatpush.bf16.xpose.msra.mxu0 0
      %6813 = vmatpush.bf16.xpose.msra.mxu0 %v6804
      %6814 = vmatmul.bf16.gmra.mxu0 %v6801
      %v6815 = vpop.f32.mrf.mxu0
      %v6816 = vadd.f32 0.0, %v6815
      %v6817 = vpop.f32.mrf.mxu0
      %6818 = vdwg.mxu0
      %v6819 = vmul.f32 %v5178, 0.17677669
      %v6820 = vmul.f32 %v5204, 0.17677669
      %v6821 = vmul.f32 %v5230, 0.17677669
      %v6822 = vmul.f32 %v5256, 0.17677669
      %v6823 = vmul.f32 %v5282, 0.17677669
      %v6824 = vmul.f32 %v5308, 0.17677669
      %v6825 = vmul.f32 %v5334, 0.17677669
      %v6826 = vmul.f32 %v5360, 0.17677669
      %v6827 = vmul.f32 %v5386, 0.17677669
      %v6828 = vmul.f32 %v5412, 0.17677669
      %v6829 = vmul.f32 %v5438, 0.17677669
      %v6830 = vmul.f32 %v5464, 0.17677669
      %v6831 = vmul.f32 %v5490, 0.17677669
      %v6832 = vmul.f32 %v5516, 0.17677669
      %v6833 = vmul.f32 %v5542, 0.17677669
      %v6834 = vmul.f32 %v5568, 0.17677669
      %v6835 = vmul.f32 %v5594, 0.17677669
      %v6836 = vmul.f32 %v5620, 0.17677669
      %v6837 = vmul.f32 %v5646, 0.17677669
      %v6838 = vmul.f32 %v5672, 0.17677669
      %v6839 = vmul.f32 %v5698, 0.17677669
      %v6840 = vmul.f32 %v5724, 0.17677669
      %v6841 = vmul.f32 %v5750, 0.17677669
      %v6842 = vmul.f32 %v5776, 0.17677669
      %v6843 = vmul.f32 %v5802, 0.17677669
      %v6844 = vmul.f32 %v5828, 0.17677669
      %v6845 = vmul.f32 %v5854, 0.17677669
      %v6846 = vmul.f32 %v5880, 0.17677669
      %v6847 = vmul.f32 %v5906, 0.17677669
      %v6848 = vmul.f32 %v5932, 0.17677669
      %v6849 = vmul.f32 %v5958, 0.17677669
      %v6850 = vmul.f32 %v5984, 0.17677669
      %v6851 = vmul.f32 %v6010, 0.17677669
      %v6852 = vmul.f32 %v6036, 0.17677669
      %v6853 = vmul.f32 %v6062, 0.17677669
      %v6854 = vmul.f32 %v6088, 0.17677669
      %v6855 = vmul.f32 %v6114, 0.17677669
      %v6856 = vmul.f32 %v6140, 0.17677669
      %v6857 = vmul.f32 %v6166, 0.17677669
      %v6858 = vmul.f32 %v6192, 0.17677669
      %v6859 = vmul.f32 %v6218, 0.17677669
      %v6860 = vmul.f32 %v6244, 0.17677669
      %v6861 = vmul.f32 %v6270, 0.17677669
      %v6862 = vmul.f32 %v6296, 0.17677669
      %v6863 = vmul.f32 %v6322, 0.17677669
      %v6864 = vmul.f32 %v6348, 0.17677669
      %v6865 = vmul.f32 %v6374, 0.17677669
      %v6866 = vmul.f32 %v6400, 0.17677669
      %v6867 = vmul.f32 %v6426, 0.17677669
      %v6868 = vmul.f32 %v6452, 0.17677669
      %v6869 = vmul.f32 %v6478, 0.17677669
      %v6870 = vmul.f32 %v6504, 0.17677669
      %v6871 = vmul.f32 %v6530, 0.17677669
      %v6872 = vmul.f32 %v6556, 0.17677669
      %v6873 = vmul.f32 %v6582, 0.17677669
      %v6874 = vmul.f32 %v6608, 0.17677669
      %v6875 = vmul.f32 %v6634, 0.17677669
      %v6876 = vmul.f32 %v6660, 0.17677669
      %v6877 = vmul.f32 %v6686, 0.17677669
      %v6878 = vmul.f32 %v6712, 0.17677669
      %v6879 = vmul.f32 %v6738, 0.17677669
      %v6880 = vmul.f32 %v6764, 0.17677669
      %v6881 = vmul.f32 %v6790, 0.17677669
      %v6882 = vmul.f32 %v6816, 0.17677669
      %6947 = vst [vmem:[#allocation1] ss:$2 sm:$0xff] %v544
      %v6948 = vld.sshfl [vmem:[#allocation1] sm:$0xff pattern:$0x75316420]
      %s6949 = scalar_lea.vmem [#allocation1], 16
      %6950 = vst [vmem:[%s6949] ss:$2 sm:$0xff] %v545
      %v6951 = vld.sshfl [vmem:[#allocation1 + $0x10] sm:$0xff pattern:$0x75316420]
      %s6952 = scalar_lea.vmem [#allocation1], 32
      %6953 = vst [vmem:[%s6952] ss:$2 sm:$0xff] %v546
      %v6954 = vld.sshfl [vmem:[#allocation1 + $0x20] sm:$0xff pattern:$0x75316420]
      %s6955 = scalar_lea.vmem [#allocation1], 48
      %6956 = vst [vmem:[%s6955] ss:$2 sm:$0xff] %v547
      %v6957 = vld.sshfl [vmem:[#allocation1 + $0x30] sm:$0xff pattern:$0x75316420]
      %6958 = vst [vmem:[#allocation1] ss:$2 sm:$0xff] %v548
      %v6959 = vld.sshfl [vmem:[#allocation1] sm:$0xff pattern:$0x75316420]
      %6960 = vst [vmem:[%s6949] ss:$2 sm:$0xff] %v549
      %v6961 = vld.sshfl [vmem:[#allocation1 + $0x10] sm:$0xff pattern:$0x75316420]
      %6962 = vst [vmem:[%s6952] ss:$2 sm:$0xff] %v550
      %v6963 = vld.sshfl [vmem:[#allocation1 + $0x20] sm:$0xff pattern:$0x75316420]
      %6964 = vst [vmem:[%s6955] ss:$2 sm:$0xff] %v551
      %v6965 = vld.sshfl [vmem:[#allocation1 + $0x30] sm:$0xff pattern:$0x75316420]
      %6966 = vst [vmem:[#allocation1] ss:$2 sm:$0xff] %v552
      %v6967 = vld.sshfl [vmem:[#allocation1] sm:$0xff pattern:$0x75316420]
      %6968 = vst [vmem:[%s6949] ss:$2 sm:$0xff] %v553
      %v6969 = vld.sshfl [vmem:[#allocation1 + $0x10] sm:$0xff pattern:$0x75316420]
      %6970 = vst [vmem:[%s6952] ss:$2 sm:$0xff] %v554
      %v6971 = vld.sshfl [vmem:[#allocation1 + $0x20] sm:$0xff pattern:$0x75316420]
      %6972 = vst [vmem:[%s6955] ss:$2 sm:$0xff] %v555
      %v6973 = vld.sshfl [vmem:[#allocation1 + $0x30] sm:$0xff pattern:$0x75316420]
      %6974 = vst [vmem:[#allocation1] ss:$2 sm:$0xff] %v556
      %v6975 = vld.sshfl [vmem:[#allocation1] sm:$0xff pattern:$0x75316420]
      %6976 = vst [vmem:[%s6949] ss:$2 sm:$0xff] %v557
      %v6977 = vld.sshfl [vmem:[#allocation1 + $0x10] sm:$0xff pattern:$0x75316420]
      %6978 = vst [vmem:[%s6952] ss:$2 sm:$0xff] %v558
      %v6979 = vld.sshfl [vmem:[#allocation1 + $0x20] sm:$0xff pattern:$0x75316420]
      %6980 = vst [vmem:[%s6955] ss:$2 sm:$0xff] %v559
      %v6981 = vld.sshfl [vmem:[#allocation1 + $0x30] sm:$0xff pattern:$0x75316420]
      %6982 = vst [vmem:[#allocation1] ss:$2 sm:$0xff] %v560
      %v6983 = vld.sshfl [vmem:[#allocation1] sm:$0xff pattern:$0x75316420]
      %6984 = vst [vmem:[%s6949] ss:$2 sm:$0xff] %v561
      %v6985 = vld.sshfl [vmem:[#allocation1 + $0x10] sm:$0xff pattern:$0x75316420]
      %6986 = vst [vmem:[%s6952] ss:$2 sm:$0xff] %v562
      %v6987 = vld.sshfl [vmem:[#allocation1 + $0x20] sm:$0xff pattern:$0x75316420]
      %6988 = vst [vmem:[%s6955] ss:$2 sm:$0xff] %v563
      %v6989 = vld.sshfl [vmem:[#allocation1 + $0x30] sm:$0xff pattern:$0x75316420]
      %6990 = vst [vmem:[#allocation1] ss:$2 sm:$0xff] %v564
      %v6991 = vld.sshfl [vmem:[#allocation1] sm:$0xff pattern:$0x75316420]
      %6992 = vst [vmem:[%s6949] ss:$2 sm:$0xff] %v565
      %v6993 = vld.sshfl [vmem:[#allocation1 + $0x10] sm:$0xff pattern:$0x75316420]
      %6994 = vst [vmem:[%s6952] ss:$2 sm:$0xff] %v566
      %v6995 = vld.sshfl [vmem:[#allocation1 + $0x20] sm:$0xff pattern:$0x75316420]
      %6996 = vst [vmem:[%s6955] ss:$2 sm:$0xff] %v567
      %v6997 = vld.sshfl [vmem:[#allocation1 + $0x30] sm:$0xff pattern:$0x75316420]
      %6998 = vst [vmem:[#allocation1] ss:$2 sm:$0xff] %v568
      %v6999 = vld.sshfl [vmem:[#allocation1] sm:$0xff pattern:$0x75316420]
      %7000 = vst [vmem:[%s6949] ss:$2 sm:$0xff] %v569
      %v7001 = vld.sshfl [vmem:[#allocation1 + $0x10] sm:$0xff pattern:$0x75316420]
      %7002 = vst [vmem:[%s6952] ss:$2 sm:$0xff] %v570
      %v7003 = vld.sshfl [vmem:[#allocation1 + $0x20] sm:$0xff pattern:$0x75316420]
      %7004 = vst [vmem:[%s6955] ss:$2 sm:$0xff] %v571
      %v7005 = vld.sshfl [vmem:[#allocation1 + $0x30] sm:$0xff pattern:$0x75316420]
      %7006 = vst [vmem:[#allocation1] ss:$2 sm:$0xff] %v572
      %v7007 = vld.sshfl [vmem:[#allocation1] sm:$0xff pattern:$0x75316420]
      %7008 = vst [vmem:[%s6949] ss:$2 sm:$0xff] %v573
      %v7009 = vld.sshfl [vmem:[#allocation1 + $0x10] sm:$0xff pattern:$0x75316420]
      %7010 = vst [vmem:[%s6952] ss:$2 sm:$0xff] %v574
      %v7011 = vld.sshfl [vmem:[#allocation1 + $0x20] sm:$0xff pattern:$0x75316420]
      %7012 = vst [vmem:[%s6955] ss:$2 sm:$0xff] %v575
      %v7013 = vld.sshfl [vmem:[#allocation1 + $0x30] sm:$0xff pattern:$0x75316420]
      %7014 = vst [vmem:[#allocation1] ss:$2 sm:$0xff] %v576
      %v7015 = vld.sshfl [vmem:[#allocation1] sm:$0xff pattern:$0x75316420]
      %7016 = vst [vmem:[%s6949] ss:$2 sm:$0xff] %v577
      %v7017 = vld.sshfl [vmem:[#allocation1 + $0x10] sm:$0xff pattern:$0x75316420]
      %7018 = vst [vmem:[%s6952] ss:$2 sm:$0xff] %v578
      %v7019 = vld.sshfl [vmem:[#allocation1 + $0x20] sm:$0xff pattern:$0x75316420]
      %7020 = vst [vmem:[%s6955] ss:$2 sm:$0xff] %v579
      %v7021 = vld.sshfl [vmem:[#allocation1 + $0x30] sm:$0xff pattern:$0x75316420]
      %7022 = vst [vmem:[#allocation1] ss:$2 sm:$0xff] %v580
      %v7023 = vld.sshfl [vmem:[#allocation1] sm:$0xff pattern:$0x75316420]
      %7024 = vst [vmem:[%s6949] ss:$2 sm:$0xff] %v581
      %v7025 = vld.sshfl [vmem:[#allocation1 + $0x10] sm:$0xff pattern:$0x75316420]
      %7026 = vst [vmem:[%s6952] ss:$2 sm:$0xff] %v582
      %v7027 = vld.sshfl [vmem:[#allocation1 + $0x20] sm:$0xff pattern:$0x75316420]
      %7028 = vst [vmem:[%s6955] ss:$2 sm:$0xff] %v583
      %v7029 = vld.sshfl [vmem:[#allocation1 + $0x30] sm:$0xff pattern:$0x75316420]
      %7030 = vst [vmem:[#allocation1] ss:$2 sm:$0xff] %v584
      %v7031 = vld.sshfl [vmem:[#allocation1] sm:$0xff pattern:$0x75316420]
      %7032 = vst [vmem:[%s6949] ss:$2 sm:$0xff] %v585
      %v7033 = vld.sshfl [vmem:[#allocation1 + $0x10] sm:$0xff pattern:$0x75316420]
      %7034 = vst [vmem:[%s6952] ss:$2 sm:$0xff] %v586
      %v7035 = vld.sshfl [vmem:[#allocation1 + $0x20] sm:$0xff pattern:$0x75316420]
      %7036 = vst [vmem:[%s6955] ss:$2 sm:$0xff] %v587
      %v7037 = vld.sshfl [vmem:[#allocation1 + $0x30] sm:$0xff pattern:$0x75316420]
      %7038 = vst [vmem:[#allocation1] ss:$2 sm:$0xff] %v588
      %v7039 = vld.sshfl [vmem:[#allocation1] sm:$0xff pattern:$0x75316420]
      %7040 = vst [vmem:[%s6949] ss:$2 sm:$0xff] %v589
      %v7041 = vld.sshfl [vmem:[#allocation1 + $0x10] sm:$0xff pattern:$0x75316420]
      %7042 = vst [vmem:[%s6952] ss:$2 sm:$0xff] %v590
      %v7043 = vld.sshfl [vmem:[#allocation1 + $0x20] sm:$0xff pattern:$0x75316420]
      %7044 = vst [vmem:[%s6955] ss:$2 sm:$0xff] %v591
      %v7045 = vld.sshfl [vmem:[#allocation1 + $0x30] sm:$0xff pattern:$0x75316420]
      %7046 = vst [vmem:[#allocation1] ss:$2 sm:$0xff] %v592
      %v7047 = vld.sshfl [vmem:[#allocation1] sm:$0xff pattern:$0x75316420]
      %7048 = vst [vmem:[%s6949] ss:$2 sm:$0xff] %v593
      %v7049 = vld.sshfl [vmem:[#allocation1 + $0x10] sm:$0xff pattern:$0x75316420]
      %7050 = vst [vmem:[%s6952] ss:$2 sm:$0xff] %v594
      %v7051 = vld.sshfl [vmem:[#allocation1 + $0x20] sm:$0xff pattern:$0x75316420]
      %7052 = vst [vmem:[%s6955] ss:$2 sm:$0xff] %v595
      %v7053 = vld.sshfl [vmem:[#allocation1 + $0x30] sm:$0xff pattern:$0x75316420]
      %7054 = vst [vmem:[#allocation1] ss:$2 sm:$0xff] %v596
      %v7055 = vld.sshfl [vmem:[#allocation1] sm:$0xff pattern:$0x75316420]
      %7056 = vst [vmem:[%s6949] ss:$2 sm:$0xff] %v597
      %v7057 = vld.sshfl [vmem:[#allocation1 + $0x10] sm:$0xff pattern:$0x75316420]
      %7058 = vst [vmem:[%s6952] ss:$2 sm:$0xff] %v598
      %v7059 = vld.sshfl [vmem:[#allocation1 + $0x20] sm:$0xff pattern:$0x75316420]
      %7060 = vst [vmem:[%s6955] ss:$2 sm:$0xff] %v599
      %v7061 = vld.sshfl [vmem:[#allocation1 + $0x30] sm:$0xff pattern:$0x75316420]
      %7062 = vst [vmem:[#allocation1] ss:$2 sm:$0xff] %v600
      %v7063 = vld.sshfl [vmem:[#allocation1] sm:$0xff pattern:$0x75316420]
      %7064 = vst [vmem:[%s6949] ss:$2 sm:$0xff] %v601
      %v7065 = vld.sshfl [vmem:[#allocation1 + $0x10] sm:$0xff pattern:$0x75316420]
      %7066 = vst [vmem:[%s6952] ss:$2 sm:$0xff] %v602
      %v7067 = vld.sshfl [vmem:[#allocation1 + $0x20] sm:$0xff pattern:$0x75316420]
      %7068 = vst [vmem:[%s6955] ss:$2 sm:$0xff] %v603
      %v7069 = vld.sshfl [vmem:[#allocation1 + $0x30] sm:$0xff pattern:$0x75316420]
      %7070 = vst [vmem:[#allocation1] ss:$2 sm:$0xff] %v604
      %v7071 = vld.sshfl [vmem:[#allocation1] sm:$0xff pattern:$0x75316420]
      %7072 = vst [vmem:[%s6949] ss:$2 sm:$0xff] %v605
      %v7073 = vld.sshfl [vmem:[#allocation1 + $0x10] sm:$0xff pattern:$0x75316420]
      %7074 = vst [vmem:[%s6952] ss:$2 sm:$0xff] %v606
      %v7075 = vld.sshfl [vmem:[#allocation1 + $0x20] sm:$0xff pattern:$0x75316420]
      %7076 = vst [vmem:[%s6955] ss:$2 sm:$0xff] %v607
      %v7077 = vld.sshfl [vmem:[#allocation1 + $0x30] sm:$0xff pattern:$0x75316420]
      %7078 = vrot.lane.b32.xlu0 %v6948, 112
      %v7079 = vpop.permute.xlu0 %7078
      %7080 = vrot.lane.b32.xlu0 %v6951, 112
      %v7081 = vpop.permute.xlu0 %7080
      %7082 = vrot.lane.b32.xlu0 %v6954, 112
      %v7083 = vpop.permute.xlu0 %7082
      %7084 = vrot.lane.b32.xlu0 %v6957, 112
      %v7085 = vpop.permute.xlu0 %7084
      %7086 = vrot.lane.b32.xlu0 %v6959, 112
      %v7087 = vpop.permute.xlu0 %7086
      %7088 = vrot.lane.b32.xlu0 %v6961, 112
      %v7089 = vpop.permute.xlu0 %7088
      %7090 = vrot.lane.b32.xlu0 %v6963, 112
      %v7091 = vpop.permute.xlu0 %7090
      %7092 = vrot.lane.b32.xlu0 %v6965, 112
      %v7093 = vpop.permute.xlu0 %7092
      %7094 = vrot.lane.b32.xlu0 %v6967, 112
      %v7095 = vpop.permute.xlu0 %7094
      %7096 = vrot.lane.b32.xlu0 %v6969, 112
      %v7097 = vpop.permute.xlu0 %7096
      %7098 = vrot.lane.b32.xlu0 %v6971, 112
      %v7099 = vpop.permute.xlu0 %7098
      %7100 = vrot.lane.b32.xlu0 %v6973, 112
      %v7101 = vpop.permute.xlu0 %7100
      %7102 = vrot.lane.b32.xlu0 %v6975, 112
      %v7103 = vpop.permute.xlu0 %7102
      %7104 = vrot.lane.b32.xlu0 %v6977, 112
      %v7105 = vpop.permute.xlu0 %7104
      %7106 = vrot.lane.b32.xlu0 %v6979, 112
      %v7107 = vpop.permute.xlu0 %7106
      %7108 = vrot.lane.b32.xlu0 %v6981, 112
      %v7109 = vpop.permute.xlu0 %7108
      %7110 = vrot.lane.b32.xlu0 %v6983, 112
      %v7111 = vpop.permute.xlu0 %7110
      %7112 = vrot.lane.b32.xlu0 %v6985, 112
      %v7113 = vpop.permute.xlu0 %7112
      %7114 = vrot.lane.b32.xlu0 %v6987, 112
      %v7115 = vpop.permute.xlu0 %7114
      %7116 = vrot.lane.b32.xlu0 %v6989, 112
      %v7117 = vpop.permute.xlu0 %7116
      %7118 = vrot.lane.b32.xlu0 %v6991, 112
      %v7119 = vpop.permute.xlu0 %7118
      %7120 = vrot.lane.b32.xlu0 %v6993, 112
      %v7121 = vpop.permute.xlu0 %7120
      %7122 = vrot.lane.b32.xlu0 %v6995, 112
      %v7123 = vpop.permute.xlu0 %7122
      %7124 = vrot.lane.b32.xlu0 %v6997, 112
      %v7125 = vpop.permute.xlu0 %7124
      %7126 = vrot.lane.b32.xlu0 %v6999, 112
      %v7127 = vpop.permute.xlu0 %7126
      %7128 = vrot.lane.b32.xlu0 %v7001, 112
      %v7129 = vpop.permute.xlu0 %7128
      %7130 = vrot.lane.b32.xlu0 %v7003, 112
      %v7131 = vpop.permute.xlu0 %7130
      %7132 = vrot.lane.b32.xlu0 %v7005, 112
      %v7133 = vpop.permute.xlu0 %7132
      %7134 = vrot.lane.b32.xlu0 %v7007, 112
      %v7135 = vpop.permute.xlu0 %7134
      %7136 = vrot.lane.b32.xlu0 %v7009, 112
      %v7137 = vpop.permute.xlu0 %7136
      %7138 = vrot.lane.b32.xlu0 %v7011, 112
      %v7139 = vpop.permute.xlu0 %7138
      %7140 = vrot.lane.b32.xlu0 %v7013, 112
      %v7141 = vpop.permute.xlu0 %7140
      %7142 = vrot.lane.b32.xlu0 %v7015, 112
      %v7143 = vpop.permute.xlu0 %7142
      %7144 = vrot.lane.b32.xlu0 %v7017, 112
      %v7145 = vpop.permute.xlu0 %7144
      %7146 = vrot.lane.b32.xlu0 %v7019, 112
      %v7147 = vpop.permute.xlu0 %7146
      %7148 = vrot.lane.b32.xlu0 %v7021, 112
      %v7149 = vpop.permute.xlu0 %7148
      %7150 = vrot.lane.b32.xlu0 %v7023, 112
      %v7151 = vpop.permute.xlu0 %7150
      %7152 = vrot.lane.b32.xlu0 %v7025, 112
      %v7153 = vpop.permute.xlu0 %7152
      %7154 = vrot.lane.b32.xlu0 %v7027, 112
      %v7155 = vpop.permute.xlu0 %7154
      %7156 = vrot.lane.b32.xlu0 %v7029, 112
      %v7157 = vpop.permute.xlu0 %7156
      %7158 = vrot.lane.b32.xlu0 %v7031, 112
      %v7159 = vpop.permute.xlu0 %7158
      %7160 = vrot.lane.b32.xlu0 %v7033, 112
      %v7161 = vpop.permute.xlu0 %7160
      %7162 = vrot.lane.b32.xlu0 %v7035, 112
      %v7163 = vpop.permute.xlu0 %7162
      %7164 = vrot.lane.b32.xlu0 %v7037, 112
      %v7165 = vpop.permute.xlu0 %7164
      %7166 = vrot.lane.b32.xlu0 %v7039, 112
      %v7167 = vpop.permute.xlu0 %7166
      %7168 = vrot.lane.b32.xlu0 %v7041, 112
      %v7169 = vpop.permute.xlu0 %7168
      %7170 = vrot.lane.b32.xlu0 %v7043, 112
      %v7171 = vpop.permute.xlu0 %7170
      %7172 = vrot.lane.b32.xlu0 %v7045, 112
      %v7173 = vpop.permute.xlu0 %7172
      %7174 = vrot.lane.b32.xlu0 %v7047, 112
      %v7175 = vpop.permute.xlu0 %7174
      %7176 = vrot.lane.b32.xlu0 %v7049, 112
      %v7177 = vpop.permute.xlu0 %7176
      %7178 = vrot.lane.b32.xlu0 %v7051, 112
      %v7179 = vpop.permute.xlu0 %7178
      %7180 = vrot.lane.b32.xlu0 %v7053, 112
      %v7181 = vpop.permute.xlu0 %7180
      %7182 = vrot.lane.b32.xlu0 %v7055, 112
      %v7183 = vpop.permute.xlu0 %7182
      %7184 = vrot.lane.b32.xlu0 %v7057, 112
      %v7185 = vpop.permute.xlu0 %7184
      %7186 = vrot.lane.b32.xlu0 %v7059, 112
      %v7187 = vpop.permute.xlu0 %7186
      %7188 = vrot.lane.b32.xlu0 %v7061, 112
      %v7189 = vpop.permute.xlu0 %7188
      %7190 = vrot.lane.b32.xlu0 %v7063, 112
      %v7191 = vpop.permute.xlu0 %7190
      %7192 = vrot.lane.b32.xlu0 %v7065, 112
      %v7193 = vpop.permute.xlu0 %7192
      %7194 = vrot.lane.b32.xlu0 %v7067, 112
      %v7195 = vpop.permute.xlu0 %7194
      %7196 = vrot.lane.b32.xlu0 %v7069, 112
      %v7197 = vpop.permute.xlu0 %7196
      %7198 = vrot.lane.b32.xlu0 %v7071, 112
      %v7199 = vpop.permute.xlu0 %7198
      %7200 = vrot.lane.b32.xlu0 %v7073, 112
      %v7201 = vpop.permute.xlu0 %7200
      %7202 = vrot.lane.b32.xlu0 %v7075, 112
      %v7203 = vpop.permute.xlu0 %7202
      %7204 = vrot.lane.b32.xlu0 %v7077, 112
      %v7205 = vpop.permute.xlu0 %7204
      %v7270 = vadd.f32 %v6819, %v7079
      %v7271 = vadd.f32 %v6820, %v7081
      %v7272 = vadd.f32 %v6821, %v7083
      %v7273 = vadd.f32 %v6822, %v7085
      %v7274 = vadd.f32 %v6823, %v7087
      %v7275 = vadd.f32 %v6824, %v7089
      %v7276 = vadd.f32 %v6825, %v7091
      %v7277 = vadd.f32 %v6826, %v7093
      %v7278 = vadd.f32 %v6827, %v7095
      %v7279 = vadd.f32 %v6828, %v7097
      %v7280 = vadd.f32 %v6829, %v7099
      %v7281 = vadd.f32 %v6830, %v7101
      %v7282 = vadd.f32 %v6831, %v7103
      %v7283 = vadd.f32 %v6832, %v7105
      %v7284 = vadd.f32 %v6833, %v7107
      %v7285 = vadd.f32 %v6834, %v7109
      %v7286 = vadd.f32 %v6835, %v7111
      %v7287 = vadd.f32 %v6836, %v7113
      %v7288 = vadd.f32 %v6837, %v7115
      %v7289 = vadd.f32 %v6838, %v7117
      %v7290 = vadd.f32 %v6839, %v7119
      %v7291 = vadd.f32 %v6840, %v7121
      %v7292 = vadd.f32 %v6841, %v7123
      %v7293 = vadd.f32 %v6842, %v7125
      %v7294 = vadd.f32 %v6843, %v7127
      %v7295 = vadd.f32 %v6844, %v7129
      %v7296 = vadd.f32 %v6845, %v7131
      %v7297 = vadd.f32 %v6846, %v7133
      %v7298 = vadd.f32 %v6847, %v7135
      %v7299 = vadd.f32 %v6848, %v7137
      %v7300 = vadd.f32 %v6849, %v7139
      %v7301 = vadd.f32 %v6850, %v7141
      %v7302 = vadd.f32 %v6851, %v7143
      %v7303 = vadd.f32 %v6852, %v7145
      %v7304 = vadd.f32 %v6853, %v7147
      %v7305 = vadd.f32 %v6854, %v7149
      %v7306 = vadd.f32 %v6855, %v7151
      %v7307 = vadd.f32 %v6856, %v7153
      %v7308 = vadd.f32 %v6857, %v7155
      %v7309 = vadd.f32 %v6858, %v7157
      %v7310 = vadd.f32 %v6859, %v7159
      %v7311 = vadd.f32 %v6860, %v7161
      %v7312 = vadd.f32 %v6861, %v7163
      %v7313 = vadd.f32 %v6862, %v7165
      %v7314 = vadd.f32 %v6863, %v7167
      %v7315 = vadd.f32 %v6864, %v7169
      %v7316 = vadd.f32 %v6865, %v7171
      %v7317 = vadd.f32 %v6866, %v7173
      %v7318 = vadd.f32 %v6867, %v7175
      %v7319 = vadd.f32 %v6868, %v7177
      %v7320 = vadd.f32 %v6869, %v7179
      %v7321 = vadd.f32 %v6870, %v7181
      %v7322 = vadd.f32 %v6871, %v7183
      %v7323 = vadd.f32 %v6872, %v7185
      %v7324 = vadd.f32 %v6873, %v7187
      %v7325 = vadd.f32 %v6874, %v7189
      %v7326 = vadd.f32 %v6875, %v7191
      %v7327 = vadd.f32 %v6876, %v7193
      %v7328 = vadd.f32 %v6877, %v7195
      %v7329 = vadd.f32 %v6878, %v7197
      %v7330 = vadd.f32 %v6879, %v7199
      %v7331 = vadd.f32 %v6880, %v7201
      %v7332 = vadd.f32 %v6881, %v7203
      %v7333 = vadd.f32 %v6882, %v7205
      %v7334 = vsel %vm2273, %v7270, -inf
      %7335 = vmax.xlane.f32.xlu0 %v7334
      %v7336 = vpop.xlane.xlu0 %7335
      %v7337 = vsel %vm2273, %v7271, -inf
      %7338 = vmax.xlane.f32.xlu0 %v7337
      %v7339 = vpop.xlane.xlu0 %7338
      %v7340 = vsel %vm2273, %v7272, -inf
      %7341 = vmax.xlane.f32.xlu0 %v7340
      %v7342 = vpop.xlane.xlu0 %7341
      %v7343 = vsel %vm2273, %v7273, -inf
      %7344 = vmax.xlane.f32.xlu0 %v7343
      %v7345 = vpop.xlane.xlu0 %7344
      %v7346 = vsel %vm2273, %v7274, -inf
      %7347 = vmax.xlane.f32.xlu0 %v7346
      %v7348 = vpop.xlane.xlu0 %7347
      %v7349 = vsel %vm2273, %v7275, -inf
      %7350 = vmax.xlane.f32.xlu0 %v7349
      %v7351 = vpop.xlane.xlu0 %7350
      %v7352 = vsel %vm2273, %v7276, -inf
      %7353 = vmax.xlane.f32.xlu0 %v7352
      %v7354 = vpop.xlane.xlu0 %7353
      %v7355 = vsel %vm2273, %v7277, -inf
      %7356 = vmax.xlane.f32.xlu0 %v7355
      %v7357 = vpop.xlane.xlu0 %7356
      %v7358 = vsel %vm2273, %v7278, -inf
      %7359 = vmax.xlane.f32.xlu0 %v7358
      %v7360 = vpop.xlane.xlu0 %7359
      %v7361 = vsel %vm2273, %v7279, -inf
      %7362 = vmax.xlane.f32.xlu0 %v7361
      %v7363 = vpop.xlane.xlu0 %7362
      %v7364 = vsel %vm2273, %v7280, -inf
      %7365 = vmax.xlane.f32.xlu0 %v7364
      %v7366 = vpop.xlane.xlu0 %7365
      %v7367 = vsel %vm2273, %v7281, -inf
      %7368 = vmax.xlane.f32.xlu0 %v7367
      %v7369 = vpop.xlane.xlu0 %7368
      %v7370 = vsel %vm2273, %v7282, -inf
      %7371 = vmax.xlane.f32.xlu0 %v7370
      %v7372 = vpop.xlane.xlu0 %7371
      %v7373 = vsel %vm2273, %v7283, -inf
      %7374 = vmax.xlane.f32.xlu0 %v7373
      %v7375 = vpop.xlane.xlu0 %7374
      %v7376 = vsel %vm2273, %v7284, -inf
      %7377 = vmax.xlane.f32.xlu0 %v7376
      %v7378 = vpop.xlane.xlu0 %7377
      %v7379 = vsel %vm2273, %v7285, -inf
      %7380 = vmax.xlane.f32.xlu0 %v7379
      %v7381 = vpop.xlane.xlu0 %7380
      %v7382 = vsel %vm2273, %v7286, -inf
      %7383 = vmax.xlane.f32.xlu0 %v7382
      %v7384 = vpop.xlane.xlu0 %7383
      %v7385 = vsel %vm2273, %v7287, -inf
      %7386 = vmax.xlane.f32.xlu0 %v7385
      %v7387 = vpop.xlane.xlu0 %7386
      %v7388 = vsel %vm2273, %v7288, -inf
      %7389 = vmax.xlane.f32.xlu0 %v7388
      %v7390 = vpop.xlane.xlu0 %7389
      %v7391 = vsel %vm2273, %v7289, -inf
      %7392 = vmax.xlane.f32.xlu0 %v7391
      %v7393 = vpop.xlane.xlu0 %7392
      %v7394 = vsel %vm2273, %v7290, -inf
      %7395 = vmax.xlane.f32.xlu0 %v7394
      %v7396 = vpop.xlane.xlu0 %7395
      %v7397 = vsel %vm2273, %v7291, -inf
      %7398 = vmax.xlane.f32.xlu0 %v7397
      %v7399 = vpop.xlane.xlu0 %7398
      %v7400 = vsel %vm2273, %v7292, -inf
      %7401 = vmax.xlane.f32.xlu0 %v7400
      %v7402 = vpop.xlane.xlu0 %7401
      %v7403 = vsel %vm2273, %v7293, -inf
      %7404 = vmax.xlane.f32.xlu0 %v7403
      %v7405 = vpop.xlane.xlu0 %7404
      %v7406 = vsel %vm2273, %v7294, -inf
      %7407 = vmax.xlane.f32.xlu0 %v7406
      %v7408 = vpop.xlane.xlu0 %7407
      %v7409 = vsel %vm2273, %v7295, -inf
      %7410 = vmax.xlane.f32.xlu0 %v7409
      %v7411 = vpop.xlane.xlu0 %7410
      %v7412 = vsel %vm2273, %v7296, -inf
      %7413 = vmax.xlane.f32.xlu0 %v7412
      %v7414 = vpop.xlane.xlu0 %7413
      %v7415 = vsel %vm2273, %v7297, -inf
      %7416 = vmax.xlane.f32.xlu0 %v7415
      %v7417 = vpop.xlane.xlu0 %7416
      %v7418 = vsel %vm2273, %v7298, -inf
      %7419 = vmax.xlane.f32.xlu0 %v7418
      %v7420 = vpop.xlane.xlu0 %7419
      %v7421 = vsel %vm2273, %v7299, -inf
      %7422 = vmax.xlane.f32.xlu0 %v7421
      %v7423 = vpop.xlane.xlu0 %7422
      %v7424 = vsel %vm2273, %v7300, -inf
      %7425 = vmax.xlane.f32.xlu0 %v7424
      %v7426 = vpop.xlane.xlu0 %7425
      %v7427 = vsel %vm2273, %v7301, -inf
      %7428 = vmax.xlane.f32.xlu0 %v7427
      %v7429 = vpop.xlane.xlu0 %7428
      %v7430 = vsel %vm2273, %v7302, -inf
      %7431 = vmax.xlane.f32.xlu0 %v7430
      %v7432 = vpop.xlane.xlu0 %7431
      %v7433 = vsel %vm2273, %v7303, -inf
      %7434 = vmax.xlane.f32.xlu0 %v7433
      %v7435 = vpop.xlane.xlu0 %7434
      %v7436 = vsel %vm2273, %v7304, -inf
      %7437 = vmax.xlane.f32.xlu0 %v7436
      %v7438 = vpop.xlane.xlu0 %7437
      %v7439 = vsel %vm2273, %v7305, -inf
      %7440 = vmax.xlane.f32.xlu0 %v7439
      %v7441 = vpop.xlane.xlu0 %7440
      %v7442 = vsel %vm2273, %v7306, -inf
      %7443 = vmax.xlane.f32.xlu0 %v7442
      %v7444 = vpop.xlane.xlu0 %7443
      %v7445 = vsel %vm2273, %v7307, -inf
      %7446 = vmax.xlane.f32.xlu0 %v7445
      %v7447 = vpop.xlane.xlu0 %7446
      %v7448 = vsel %vm2273, %v7308, -inf
      %7449 = vmax.xlane.f32.xlu0 %v7448
      %v7450 = vpop.xlane.xlu0 %7449
      %v7451 = vsel %vm2273, %v7309, -inf
      %7452 = vmax.xlane.f32.xlu0 %v7451
      %v7453 = vpop.xlane.xlu0 %7452
      %v7454 = vsel %vm2273, %v7310, -inf
      %7455 = vmax.xlane.f32.xlu0 %v7454
      %v7456 = vpop.xlane.xlu0 %7455
      %v7457 = vsel %vm2273, %v7311, -inf
      %7458 = vmax.xlane.f32.xlu0 %v7457
      %v7459 = vpop.xlane.xlu0 %7458
      %v7460 = vsel %vm2273, %v7312, -inf
      %7461 = vmax.xlane.f32.xlu0 %v7460
      %v7462 = vpop.xlane.xlu0 %7461
      %v7463 = vsel %vm2273, %v7313, -inf
      %7464 = vmax.xlane.f32.xlu0 %v7463
      %v7465 = vpop.xlane.xlu0 %7464
      %v7466 = vsel %vm2273, %v7314, -inf
      %7467 = vmax.xlane.f32.xlu0 %v7466
      %v7468 = vpop.xlane.xlu0 %7467
      %v7469 = vsel %vm2273, %v7315, -inf
      %7470 = vmax.xlane.f32.xlu0 %v7469
      %v7471 = vpop.xlane.xlu0 %7470
      %v7472 = vsel %vm2273, %v7316, -inf
      %7473 = vmax.xlane.f32.xlu0 %v7472
      %v7474 = vpop.xlane.xlu0 %7473
      %v7475 = vsel %vm2273, %v7317, -inf
      %7476 = vmax.xlane.f32.xlu0 %v7475
      %v7477 = vpop.xlane.xlu0 %7476
      %v7478 = vsel %vm2273, %v7318, -inf
      %7479 = vmax.xlane.f32.xlu0 %v7478
      %v7480 = vpop.xlane.xlu0 %7479
      %v7481 = vsel %vm2273, %v7319, -inf
      %7482 = vmax.xlane.f32.xlu0 %v7481
      %v7483 = vpop.xlane.xlu0 %7482
      %v7484 = vsel %vm2273, %v7320, -inf
      %7485 = vmax.xlane.f32.xlu0 %v7484
      %v7486 = vpop.xlane.xlu0 %7485
      %v7487 = vsel %vm2273, %v7321, -inf
      %7488 = vmax.xlane.f32.xlu0 %v7487
      %v7489 = vpop.xlane.xlu0 %7488
      %v7490 = vsel %vm2273, %v7322, -inf
      %7491 = vmax.xlane.f32.xlu0 %v7490
      %v7492 = vpop.xlane.xlu0 %7491
      %v7493 = vsel %vm2273, %v7323, -inf
      %7494 = vmax.xlane.f32.xlu0 %v7493
      %v7495 = vpop.xlane.xlu0 %7494
      %v7496 = vsel %vm2273, %v7324, -inf
      %7497 = vmax.xlane.f32.xlu0 %v7496
      %v7498 = vpop.xlane.xlu0 %7497
      %v7499 = vsel %vm2273, %v7325, -inf
      %7500 = vmax.xlane.f32.xlu0 %v7499
      %v7501 = vpop.xlane.xlu0 %7500
      %v7502 = vsel %vm2273, %v7326, -inf
      %7503 = vmax.xlane.f32.xlu0 %v7502
      %v7504 = vpop.xlane.xlu0 %7503
      %v7505 = vsel %vm2273, %v7327, -inf
      %7506 = vmax.xlane.f32.xlu0 %v7505
      %v7507 = vpop.xlane.xlu0 %7506
      %v7508 = vsel %vm2273, %v7328, -inf
      %7509 = vmax.xlane.f32.xlu0 %v7508
      %v7510 = vpop.xlane.xlu0 %7509
      %v7511 = vsel %vm2273, %v7329, -inf
      %7512 = vmax.xlane.f32.xlu0 %v7511
      %v7513 = vpop.xlane.xlu0 %7512
      %v7514 = vsel %vm2273, %v7330, -inf
      %7515 = vmax.xlane.f32.xlu0 %v7514
      %v7516 = vpop.xlane.xlu0 %7515
      %v7517 = vsel %vm2273, %v7331, -inf
      %7518 = vmax.xlane.f32.xlu0 %v7517
      %v7519 = vpop.xlane.xlu0 %7518
      %v7520 = vsel %vm2273, %v7332, -inf
      %7521 = vmax.xlane.f32.xlu0 %v7520
      %v7522 = vpop.xlane.xlu0 %7521
      %v7523 = vsel %vm2273, %v7333, -inf
      %7524 = vmax.xlane.f32.xlu0 %v7523
      %v7525 = vpop.xlane.xlu0 %7524
      %v7526 = vsub.f32 %v7270, %v7336
      %v7527 = vsub.f32 %v7271, %v7339
      %v7528 = vsub.f32 %v7272, %v7342
      %v7529 = vsub.f32 %v7273, %v7345
      %v7530 = vsub.f32 %v7274, %v7348
      %v7531 = vsub.f32 %v7275, %v7351
      %v7532 = vsub.f32 %v7276, %v7354
      %v7533 = vsub.f32 %v7277, %v7357
      %v7534 = vsub.f32 %v7278, %v7360
      %v7535 = vsub.f32 %v7279, %v7363
      %v7536 = vsub.f32 %v7280, %v7366
      %v7537 = vsub.f32 %v7281, %v7369
      %v7538 = vsub.f32 %v7282, %v7372
      %v7539 = vsub.f32 %v7283, %v7375
      %v7540 = vsub.f32 %v7284, %v7378
      %v7541 = vsub.f32 %v7285, %v7381
      %v7542 = vsub.f32 %v7286, %v7384
      %v7543 = vsub.f32 %v7287, %v7387
      %v7544 = vsub.f32 %v7288, %v7390
      %v7545 = vsub.f32 %v7289, %v7393
      %v7546 = vsub.f32 %v7290, %v7396
      %v7547 = vsub.f32 %v7291, %v7399
      %v7548 = vsub.f32 %v7292, %v7402
      %v7549 = vsub.f32 %v7293, %v7405
      %v7550 = vsub.f32 %v7294, %v7408
      %v7551 = vsub.f32 %v7295, %v7411
      %v7552 = vsub.f32 %v7296, %v7414
      %v7553 = vsub.f32 %v7297, %v7417
      %v7554 = vsub.f32 %v7298, %v7420
      %v7555 = vsub.f32 %v7299, %v7423
      %v7556 = vsub.f32 %v7300, %v7426
      %v7557 = vsub.f32 %v7301, %v7429
      %v7558 = vsub.f32 %v7302, %v7432
      %v7559 = vsub.f32 %v7303, %v7435
      %v7560 = vsub.f32 %v7304, %v7438
      %v7561 = vsub.f32 %v7305, %v7441
      %v7562 = vsub.f32 %v7306, %v7444
      %v7563 = vsub.f32 %v7307, %v7447
      %v7564 = vsub.f32 %v7308, %v7450
      %v7565 = vsub.f32 %v7309, %v7453
      %v7566 = vsub.f32 %v7310, %v7456
      %v7567 = vsub.f32 %v7311, %v7459
      %v7568 = vsub.f32 %v7312, %v7462
      %v7569 = vsub.f32 %v7313, %v7465
      %v7570 = vsub.f32 %v7314, %v7468
      %v7571 = vsub.f32 %v7315, %v7471
      %v7572 = vsub.f32 %v7316, %v7474
      %v7573 = vsub.f32 %v7317, %v7477
      %v7574 = vsub.f32 %v7318, %v7480
      %v7575 = vsub.f32 %v7319, %v7483
      %v7576 = vsub.f32 %v7320, %v7486
      %v7577 = vsub.f32 %v7321, %v7489
      %v7578 = vsub.f32 %v7322, %v7492
      %v7579 = vsub.f32 %v7323, %v7495
      %v7580 = vsub.f32 %v7324, %v7498
      %v7581 = vsub.f32 %v7325, %v7501
      %v7582 = vsub.f32 %v7326, %v7504
      %v7583 = vsub.f32 %v7327, %v7507
      %v7584 = vsub.f32 %v7328, %v7510
      %v7585 = vsub.f32 %v7329, %v7513
      %v7586 = vsub.f32 %v7330, %v7516
      %v7587 = vsub.f32 %v7331, %v7519
      %v7588 = vsub.f32 %v7332, %v7522
      %v7589 = vsub.f32 %v7333, %v7525
      %v7590 = vmul.f32 %v7526, 1.442695
      %v7591 = vpow.pop %v7590
      %v7592 = vmul.f32 %v7527, 1.442695
      %v7593 = vpow.pop %v7592
      %v7594 = vmul.f32 %v7528, 1.442695
      %v7595 = vpow.pop %v7594
      %v7596 = vmul.f32 %v7529, 1.442695
      %v7597 = vpow.pop %v7596
      %v7598 = vmul.f32 %v7530, 1.442695
      %v7599 = vpow.pop %v7598
      %v7600 = vmul.f32 %v7531, 1.442695
      %v7601 = vpow.pop %v7600
      %v7602 = vmul.f32 %v7532, 1.442695
      %v7603 = vpow.pop %v7602
      %v7604 = vmul.f32 %v7533, 1.442695
      %v7605 = vpow.pop %v7604
      %v7606 = vmul.f32 %v7534, 1.442695
      %v7607 = vpow.pop %v7606
      %v7608 = vmul.f32 %v7535, 1.442695
      %v7609 = vpow.pop %v7608
      %v7610 = vmul.f32 %v7536, 1.442695
      %v7611 = vpow.pop %v7610
      %v7612 = vmul.f32 %v7537, 1.442695
      %v7613 = vpow.pop %v7612
      %v7614 = vmul.f32 %v7538, 1.442695
      %v7615 = vpow.pop %v7614
      %v7616 = vmul.f32 %v7539, 1.442695
      %v7617 = vpow.pop %v7616
      %v7618 = vmul.f32 %v7540, 1.442695
      %v7619 = vpow.pop %v7618
      %v7620 = vmul.f32 %v7541, 1.442695
      %v7621 = vpow.pop %v7620
      %v7622 = vmul.f32 %v7542, 1.442695
      %v7623 = vpow.pop %v7622
      %v7624 = vmul.f32 %v7543, 1.442695
      %v7625 = vpow.pop %v7624
      %v7626 = vmul.f32 %v7544, 1.442695
      %v7627 = vpow.pop %v7626
      %v7628 = vmul.f32 %v7545, 1.442695
      %v7629 = vpow.pop %v7628
      %v7630 = vmul.f32 %v7546, 1.442695
      %v7631 = vpow.pop %v7630
      %v7632 = vmul.f32 %v7547, 1.442695
      %v7633 = vpow.pop %v7632
      %v7634 = vmul.f32 %v7548, 1.442695
      %v7635 = vpow.pop %v7634
      %v7636 = vmul.f32 %v7549, 1.442695
      %v7637 = vpow.pop %v7636
      %v7638 = vmul.f32 %v7550, 1.442695
      %v7639 = vpow.pop %v7638
      %v7640 = vmul.f32 %v7551, 1.442695
      %v7641 = vpow.pop %v7640
      %v7642 = vmul.f32 %v7552, 1.442695
      %v7643 = vpow.pop %v7642
      %v7644 = vmul.f32 %v7553, 1.442695
      %v7645 = vpow.pop %v7644
      %v7646 = vmul.f32 %v7554, 1.442695
      %v7647 = vpow.pop %v7646
      %v7648 = vmul.f32 %v7555, 1.442695
      %v7649 = vpow.pop %v7648
      %v7650 = vmul.f32 %v7556, 1.442695
      %v7651 = vpow.pop %v7650
      %v7652 = vmul.f32 %v7557, 1.442695
      %v7653 = vpow.pop %v7652
      %v7654 = vmul.f32 %v7558, 1.442695
      %v7655 = vpow.pop %v7654
      %v7656 = vmul.f32 %v7559, 1.442695
      %v7657 = vpow.pop %v7656
      %v7658 = vmul.f32 %v7560, 1.442695
      %v7659 = vpow.pop %v7658
      %v7660 = vmul.f32 %v7561, 1.442695
      %v7661 = vpow.pop %v7660
      %v7662 = vmul.f32 %v7562, 1.442695
      %v7663 = vpow.pop %v7662
      %v7664 = vmul.f32 %v7563, 1.442695
      %v7665 = vpow.pop %v7664
      %v7666 = vmul.f32 %v7564, 1.442695
      %v7667 = vpow.pop %v7666
      %v7668 = vmul.f32 %v7565, 1.442695
      %v7669 = vpow.pop %v7668
      %v7670 = vmul.f32 %v7566, 1.442695
      %v7671 = vpow.pop %v7670
      %v7672 = vmul.f32 %v7567, 1.442695
      %v7673 = vpow.pop %v7672
      %v7674 = vmul.f32 %v7568, 1.442695
      %v7675 = vpow.pop %v7674
      %v7676 = vmul.f32 %v7569, 1.442695
      %v7677 = vpow.pop %v7676
      %v7678 = vmul.f32 %v7570, 1.442695
      %v7679 = vpow.pop %v7678
      %v7680 = vmul.f32 %v7571, 1.442695
      %v7681 = vpow.pop %v7680
      %v7682 = vmul.f32 %v7572, 1.442695
      %v7683 = vpow.pop %v7682
      %v7684 = vmul.f32 %v7573, 1.442695
      %v7685 = vpow.pop %v7684
      %v7686 = vmul.f32 %v7574, 1.442695
      %v7687 = vpow.pop %v7686
      %v7688 = vmul.f32 %v7575, 1.442695
      %v7689 = vpow.pop %v7688
      %v7690 = vmul.f32 %v7576, 1.442695
      %v7691 = vpow.pop %v7690
      %v7692 = vmul.f32 %v7577, 1.442695
      %v7693 = vpow.pop %v7692
      %v7694 = vmul.f32 %v7578, 1.442695
      %v7695 = vpow.pop %v7694
      %v7696 = vmul.f32 %v7579, 1.442695
      %v7697 = vpow.pop %v7696
      %v7698 = vmul.f32 %v7580, 1.442695
      %v7699 = vpow.pop %v7698
      %v7700 = vmul.f32 %v7581, 1.442695
      %v7701 = vpow.pop %v7700
      %v7702 = vmul.f32 %v7582, 1.442695
      %v7703 = vpow.pop %v7702
      %v7704 = vmul.f32 %v7583, 1.442695
      %v7705 = vpow.pop %v7704
      %v7706 = vmul.f32 %v7584, 1.442695
      %v7707 = vpow.pop %v7706
      %v7708 = vmul.f32 %v7585, 1.442695
      %v7709 = vpow.pop %v7708
      %v7710 = vmul.f32 %v7586, 1.442695
      %v7711 = vpow.pop %v7710
      %v7712 = vmul.f32 %v7587, 1.442695
      %v7713 = vpow.pop %v7712
      %v7714 = vmul.f32 %v7588, 1.442695
      %v7715 = vpow.pop %v7714
      %v7716 = vmul.f32 %v7589, 1.442695
      %v7717 = vpow.pop %v7716
      %v7718 = vsel %vm2273, %v7591, 0.0
      %7719 = vadd.xlane.f32.xlu0 %v7718
      %v7720 = vpop.xlane.xlu0 %7719
      %v7721 = vsel %vm2273, %v7593, 0.0
      %7722 = vadd.xlane.f32.xlu0 %v7721
      %v7723 = vpop.xlane.xlu0 %7722
      %v7724 = vsel %vm2273, %v7595, 0.0
      %7725 = vadd.xlane.f32.xlu0 %v7724
      %v7726 = vpop.xlane.xlu0 %7725
      %v7727 = vsel %vm2273, %v7597, 0.0
      %7728 = vadd.xlane.f32.xlu0 %v7727
      %v7729 = vpop.xlane.xlu0 %7728
      %v7730 = vsel %vm2273, %v7599, 0.0
      %7731 = vadd.xlane.f32.xlu0 %v7730
      %v7732 = vpop.xlane.xlu0 %7731
      %v7733 = vsel %vm2273, %v7601, 0.0
      %7734 = vadd.xlane.f32.xlu0 %v7733
      %v7735 = vpop.xlane.xlu0 %7734
      %v7736 = vsel %vm2273, %v7603, 0.0
      %7737 = vadd.xlane.f32.xlu0 %v7736
      %v7738 = vpop.xlane.xlu0 %7737
      %v7739 = vsel %vm2273, %v7605, 0.0
      %7740 = vadd.xlane.f32.xlu0 %v7739
      %v7741 = vpop.xlane.xlu0 %7740
      %v7742 = vsel %vm2273, %v7607, 0.0
      %7743 = vadd.xlane.f32.xlu0 %v7742
      %v7744 = vpop.xlane.xlu0 %7743
      %v7745 = vsel %vm2273, %v7609, 0.0
      %7746 = vadd.xlane.f32.xlu0 %v7745
      %v7747 = vpop.xlane.xlu0 %7746
      %v7748 = vsel %vm2273, %v7611, 0.0
      %7749 = vadd.xlane.f32.xlu0 %v7748
      %v7750 = vpop.xlane.xlu0 %7749
      %v7751 = vsel %vm2273, %v7613, 0.0
      %7752 = vadd.xlane.f32.xlu0 %v7751
      %v7753 = vpop.xlane.xlu0 %7752
      %v7754 = vsel %vm2273, %v7615, 0.0
      %7755 = vadd.xlane.f32.xlu0 %v7754
      %v7756 = vpop.xlane.xlu0 %7755
      %v7757 = vsel %vm2273, %v7617, 0.0
      %7758 = vadd.xlane.f32.xlu0 %v7757
      %v7759 = vpop.xlane.xlu0 %7758
      %v7760 = vsel %vm2273, %v7619, 0.0
      %7761 = vadd.xlane.f32.xlu0 %v7760
      %v7762 = vpop.xlane.xlu0 %7761
      %v7763 = vsel %vm2273, %v7621, 0.0
      %7764 = vadd.xlane.f32.xlu0 %v7763
      %v7765 = vpop.xlane.xlu0 %7764
      %v7766 = vsel %vm2273, %v7623, 0.0
      %7767 = vadd.xlane.f32.xlu0 %v7766
      %v7768 = vpop.xlane.xlu0 %7767
      %v7769 = vsel %vm2273, %v7625, 0.0
      %7770 = vadd.xlane.f32.xlu0 %v7769
      %v7771 = vpop.xlane.xlu0 %7770
      %v7772 = vsel %vm2273, %v7627, 0.0
      %7773 = vadd.xlane.f32.xlu0 %v7772
      %v7774 = vpop.xlane.xlu0 %7773
      %v7775 = vsel %vm2273, %v7629, 0.0
      %7776 = vadd.xlane.f32.xlu0 %v7775
      %v7777 = vpop.xlane.xlu0 %7776
      %v7778 = vsel %vm2273, %v7631, 0.0
      %7779 = vadd.xlane.f32.xlu0 %v7778
      %v7780 = vpop.xlane.xlu0 %7779
      %v7781 = vsel %vm2273, %v7633, 0.0
      %7782 = vadd.xlane.f32.xlu0 %v7781
      %v7783 = vpop.xlane.xlu0 %7782
      %v7784 = vsel %vm2273, %v7635, 0.0
      %7785 = vadd.xlane.f32.xlu0 %v7784
      %v7786 = vpop.xlane.xlu0 %7785
      %v7787 = vsel %vm2273, %v7637, 0.0
      %7788 = vadd.xlane.f32.xlu0 %v7787
      %v7789 = vpop.xlane.xlu0 %7788
      %v7790 = vsel %vm2273, %v7639, 0.0
      %7791 = vadd.xlane.f32.xlu0 %v7790
      %v7792 = vpop.xlane.xlu0 %7791
      %v7793 = vsel %vm2273, %v7641, 0.0
      %7794 = vadd.xlane.f32.xlu0 %v7793
      %v7795 = vpop.xlane.xlu0 %7794
      %v7796 = vsel %vm2273, %v7643, 0.0
      %7797 = vadd.xlane.f32.xlu0 %v7796
      %v7798 = vpop.xlane.xlu0 %7797
      %v7799 = vsel %vm2273, %v7645, 0.0
      %7800 = vadd.xlane.f32.xlu0 %v7799
      %v7801 = vpop.xlane.xlu0 %7800
      %v7802 = vsel %vm2273, %v7647, 0.0
      %7803 = vadd.xlane.f32.xlu0 %v7802
      %v7804 = vpop.xlane.xlu0 %7803
      %v7805 = vsel %vm2273, %v7649, 0.0
      %7806 = vadd.xlane.f32.xlu0 %v7805
      %v7807 = vpop.xlane.xlu0 %7806
      %v7808 = vsel %vm2273, %v7651, 0.0
      %7809 = vadd.xlane.f32.xlu0 %v7808
      %v7810 = vpop.xlane.xlu0 %7809
      %v7811 = vsel %vm2273, %v7653, 0.0
      %7812 = vadd.xlane.f32.xlu0 %v7811
      %v7813 = vpop.xlane.xlu0 %7812
      %v7814 = vsel %vm2273, %v7655, 0.0
      %7815 = vadd.xlane.f32.xlu0 %v7814
      %v7816 = vpop.xlane.xlu0 %7815
      %v7817 = vsel %vm2273, %v7657, 0.0
      %7818 = vadd.xlane.f32.xlu0 %v7817
      %v7819 = vpop.xlane.xlu0 %7818
      %v7820 = vsel %vm2273, %v7659, 0.0
      %7821 = vadd.xlane.f32.xlu0 %v7820
      %v7822 = vpop.xlane.xlu0 %7821
      %v7823 = vsel %vm2273, %v7661, 0.0
      %7824 = vadd.xlane.f32.xlu0 %v7823
      %v7825 = vpop.xlane.xlu0 %7824
      %v7826 = vsel %vm2273, %v7663, 0.0
      %7827 = vadd.xlane.f32.xlu0 %v7826
      %v7828 = vpop.xlane.xlu0 %7827
      %v7829 = vsel %vm2273, %v7665, 0.0
      %7830 = vadd.xlane.f32.xlu0 %v7829
      %v7831 = vpop.xlane.xlu0 %7830
      %v7832 = vsel %vm2273, %v7667, 0.0
      %7833 = vadd.xlane.f32.xlu0 %v7832
      %v7834 = vpop.xlane.xlu0 %7833
      %v7835 = vsel %vm2273, %v7669, 0.0
      %7836 = vadd.xlane.f32.xlu0 %v7835
      %v7837 = vpop.xlane.xlu0 %7836
      %v7838 = vsel %vm2273, %v7671, 0.0
      %7839 = vadd.xlane.f32.xlu0 %v7838
      %v7840 = vpop.xlane.xlu0 %7839
      %v7841 = vsel %vm2273, %v7673, 0.0
      %7842 = vadd.xlane.f32.xlu0 %v7841
      %v7843 = vpop.xlane.xlu0 %7842
      %v7844 = vsel %vm2273, %v7675, 0.0
      %7845 = vadd.xlane.f32.xlu0 %v7844
      %v7846 = vpop.xlane.xlu0 %7845
      %v7847 = vsel %vm2273, %v7677, 0.0
      %7848 = vadd.xlane.f32.xlu0 %v7847
      %v7849 = vpop.xlane.xlu0 %7848
      %v7850 = vsel %vm2273, %v7679, 0.0
      %7851 = vadd.xlane.f32.xlu0 %v7850
      %v7852 = vpop.xlane.xlu0 %7851
      %v7853 = vsel %vm2273, %v7681, 0.0
      %7854 = vadd.xlane.f32.xlu0 %v7853
      %v7855 = vpop.xlane.xlu0 %7854
      %v7856 = vsel %vm2273, %v7683, 0.0
      %7857 = vadd.xlane.f32.xlu0 %v7856
      %v7858 = vpop.xlane.xlu0 %7857
      %v7859 = vsel %vm2273, %v7685, 0.0
      %7860 = vadd.xlane.f32.xlu0 %v7859
      %v7861 = vpop.xlane.xlu0 %7860
      %v7862 = vsel %vm2273, %v7687, 0.0
      %7863 = vadd.xlane.f32.xlu0 %v7862
      %v7864 = vpop.xlane.xlu0 %7863
      %v7865 = vsel %vm2273, %v7689, 0.0
      %7866 = vadd.xlane.f32.xlu0 %v7865
      %v7867 = vpop.xlane.xlu0 %7866
      %v7868 = vsel %vm2273, %v7691, 0.0
      %7869 = vadd.xlane.f32.xlu0 %v7868
      %v7870 = vpop.xlane.xlu0 %7869
      %v7871 = vsel %vm2273, %v7693, 0.0
      %7872 = vadd.xlane.f32.xlu0 %v7871
      %v7873 = vpop.xlane.xlu0 %7872
      %v7874 = vsel %vm2273, %v7695, 0.0
      %7875 = vadd.xlane.f32.xlu0 %v7874
      %v7876 = vpop.xlane.xlu0 %7875
      %v7877 = vsel %vm2273, %v7697, 0.0
      %7878 = vadd.xlane.f32.xlu0 %v7877
      %v7879 = vpop.xlane.xlu0 %7878
      %v7880 = vsel %vm2273, %v7699, 0.0
      %7881 = vadd.xlane.f32.xlu0 %v7880
      %v7882 = vpop.xlane.xlu0 %7881
      %v7883 = vsel %vm2273, %v7701, 0.0
      %7884 = vadd.xlane.f32.xlu0 %v7883
      %v7885 = vpop.xlane.xlu0 %7884
      %v7886 = vsel %vm2273, %v7703, 0.0
      %7887 = vadd.xlane.f32.xlu0 %v7886
      %v7888 = vpop.xlane.xlu0 %7887
      %v7889 = vsel %vm2273, %v7705, 0.0
      %7890 = vadd.xlane.f32.xlu0 %v7889
      %v7891 = vpop.xlane.xlu0 %7890
      %v7892 = vsel %vm2273, %v7707, 0.0
      %7893 = vadd.xlane.f32.xlu0 %v7892
      %v7894 = vpop.xlane.xlu0 %7893
      %v7895 = vsel %vm2273, %v7709, 0.0
      %7896 = vadd.xlane.f32.xlu0 %v7895
      %v7897 = vpop.xlane.xlu0 %7896
      %v7898 = vsel %vm2273, %v7711, 0.0
      %7899 = vadd.xlane.f32.xlu0 %v7898
      %v7900 = vpop.xlane.xlu0 %7899
      %v7901 = vsel %vm2273, %v7713, 0.0
      %7902 = vadd.xlane.f32.xlu0 %v7901
      %v7903 = vpop.xlane.xlu0 %7902
      %v7904 = vsel %vm2273, %v7715, 0.0
      %7905 = vadd.xlane.f32.xlu0 %v7904
      %v7906 = vpop.xlane.xlu0 %7905
      %v7907 = vsel %vm2273, %v7717, 0.0
      %7908 = vadd.xlane.f32.xlu0 %v7907
      %v7909 = vpop.xlane.xlu0 %7908
      %v7910 = vpack.c.bf16 %v7591, %v7591
      %v7911 = vpack.c.bf16 %v7593, %v7593
      %v7912 = vpack.c.bf16 %v7595, %v7595
      %v7913 = vpack.c.bf16 %v7597, %v7597
      %v7914 = vpack.c.bf16 %v7599, %v7599
      %v7915 = vpack.c.bf16 %v7601, %v7601
      %v7916 = vpack.c.bf16 %v7603, %v7603
      %v7917 = vpack.c.bf16 %v7605, %v7605
      %v7918 = vpack.c.bf16 %v7607, %v7607
      %v7919 = vpack.c.bf16 %v7609, %v7609
      %v7920 = vpack.c.bf16 %v7611, %v7611
      %v7921 = vpack.c.bf16 %v7613, %v7613
      %v7922 = vpack.c.bf16 %v7615, %v7615
      %v7923 = vpack.c.bf16 %v7617, %v7617
      %v7924 = vpack.c.bf16 %v7619, %v7619
      %v7925 = vpack.c.bf16 %v7621, %v7621
      %v7926 = vpack.c.bf16 %v7623, %v7623
      %v7927 = vpack.c.bf16 %v7625, %v7625
      %v7928 = vpack.c.bf16 %v7627, %v7627
      %v7929 = vpack.c.bf16 %v7629, %v7629
      %v7930 = vpack.c.bf16 %v7631, %v7631
      %v7931 = vpack.c.bf16 %v7633, %v7633
      %v7932 = vpack.c.bf16 %v7635, %v7635
      %v7933 = vpack.c.bf16 %v7637, %v7637
      %v7934 = vpack.c.bf16 %v7639, %v7639
      %v7935 = vpack.c.bf16 %v7641, %v7641
      %v7936 = vpack.c.bf16 %v7643, %v7643
      %v7937 = vpack.c.bf16 %v7645, %v7645
      %v7938 = vpack.c.bf16 %v7647, %v7647
      %v7939 = vpack.c.bf16 %v7649, %v7649
      %v7940 = vpack.c.bf16 %v7651, %v7651
      %v7941 = vpack.c.bf16 %v7653, %v7653
      %v7942 = vpack.c.bf16 %v7655, %v7655
      %v7943 = vpack.c.bf16 %v7657, %v7657
      %v7944 = vpack.c.bf16 %v7659, %v7659
      %v7945 = vpack.c.bf16 %v7661, %v7661
      %v7946 = vpack.c.bf16 %v7663, %v7663
      %v7947 = vpack.c.bf16 %v7665, %v7665
      %v7948 = vpack.c.bf16 %v7667, %v7667
      %v7949 = vpack.c.bf16 %v7669, %v7669
      %v7950 = vpack.c.bf16 %v7671, %v7671
      %v7951 = vpack.c.bf16 %v7673, %v7673
      %v7952 = vpack.c.bf16 %v7675, %v7675
      %v7953 = vpack.c.bf16 %v7677, %v7677
      %v7954 = vpack.c.bf16 %v7679, %v7679
      %v7955 = vpack.c.bf16 %v7681, %v7681
      %v7956 = vpack.c.bf16 %v7683, %v7683
      %v7957 = vpack.c.bf16 %v7685, %v7685
      %v7958 = vpack.c.bf16 %v7687, %v7687
      %v7959 = vpack.c.bf16 %v7689, %v7689
      %v7960 = vpack.c.bf16 %v7691, %v7691
      %v7961 = vpack.c.bf16 %v7693, %v7693
      %v7962 = vpack.c.bf16 %v7695, %v7695
      %v7963 = vpack.c.bf16 %v7697, %v7697
      %v7964 = vpack.c.bf16 %v7699, %v7699
      %v7965 = vpack.c.bf16 %v7701, %v7701
      %v7966 = vpack.c.bf16 %v7703, %v7703
      %v7967 = vpack.c.bf16 %v7705, %v7705
      %v7968 = vpack.c.bf16 %v7707, %v7707
      %v7969 = vpack.c.bf16 %v7709, %v7709
      %v7970 = vpack.c.bf16 %v7711, %v7711
      %v7971 = vpack.c.bf16 %v7713, %v7713
      %v7972 = vpack.c.bf16 %v7715, %v7715
      %v7973 = vpack.c.bf16 %v7717, %v7717
      %7974 = vrot.lane.b32.xlu0 %v612, 32
      %v7975 = vpop.permute.xlu0 %7974
      %v7978 = vsel %vm2917, %v7910, 0
      %7980 = vmatpush.bf16.msra.mxu0 0
      %7981 = vmatpush.bf16.msra.mxu0 0
      %7982 = vmatpush.bf16.msra.mxu0 0
      %7983 = vmatpush.bf16.msra.mxu0 0
      %7984 = vmatpush.bf16.msra.mxu0 0
      %7985 = vmatpush.bf16.msra.mxu0 0
      %7986 = vmatpush.bf16.msra.mxu0 0
      %7987 = vmatpush.bf16.msra.mxu0 %v7975
      %7988 = vmatmul.bf16.gmra.mxu0 %v7978
      %v7989 = vpop.f32.mrf.mxu0
      %v7990 = vadd.f32 0.0, %v7989
      %v7991 = vpop.f32.mrf.mxu0
      %7992 = vdwg.mxu0
      %7993 = vrot.lane.b32.xlu0 %v637, 32
      %v7994 = vpop.permute.xlu0 %7993
      %v7997 = vsel %vm2917, %v7911, 0
      %7999 = vmatpush.bf16.msra.mxu0 0
      %8000 = vmatpush.bf16.msra.mxu0 0
      %8001 = vmatpush.bf16.msra.mxu0 0
      %8002 = vmatpush.bf16.msra.mxu0 0
      %8003 = vmatpush.bf16.msra.mxu0 0
      %8004 = vmatpush.bf16.msra.mxu0 0
      %8005 = vmatpush.bf16.msra.mxu0 0
      %8006 = vmatpush.bf16.msra.mxu0 %v7994
      %8007 = vmatmul.bf16.gmra.mxu0 %v7997
      %v8008 = vpop.f32.mrf.mxu0
      %v8009 = vadd.f32 0.0, %v8008
      %v8010 = vpop.f32.mrf.mxu0
      %8011 = vdwg.mxu0
      %8012 = vrot.lane.b32.xlu0 %v661, 32
      %v8013 = vpop.permute.xlu0 %8012
      %v8016 = vsel %vm2917, %v7912, 0
      %8018 = vmatpush.bf16.msra.mxu0 0
      %8019 = vmatpush.bf16.msra.mxu0 0
      %8020 = vmatpush.bf16.msra.mxu0 0
      %8021 = vmatpush.bf16.msra.mxu0 0
      %8022 = vmatpush.bf16.msra.mxu0 0
      %8023 = vmatpush.bf16.msra.mxu0 0
      %8024 = vmatpush.bf16.msra.mxu0 0
      %8025 = vmatpush.bf16.msra.mxu0 %v8013
      %8026 = vmatmul.bf16.gmra.mxu0 %v8016
      %v8027 = vpop.f32.mrf.mxu0
      %v8028 = vadd.f32 0.0, %v8027
      %v8029 = vpop.f32.mrf.mxu0
      %8030 = vdwg.mxu0
      %8031 = vrot.lane.b32.xlu0 %v685, 32
      %v8032 = vpop.permute.xlu0 %8031
      %v8035 = vsel %vm2917, %v7913, 0
      %8037 = vmatpush.bf16.msra.mxu0 0
      %8038 = vmatpush.bf16.msra.mxu0 0
      %8039 = vmatpush.bf16.msra.mxu0 0
      %8040 = vmatpush.bf16.msra.mxu0 0
      %8041 = vmatpush.bf16.msra.mxu0 0
      %8042 = vmatpush.bf16.msra.mxu0 0
      %8043 = vmatpush.bf16.msra.mxu0 0
      %8044 = vmatpush.bf16.msra.mxu0 %v8032
      %8045 = vmatmul.bf16.gmra.mxu0 %v8035
      %v8046 = vpop.f32.mrf.mxu0
      %v8047 = vadd.f32 0.0, %v8046
      %v8048 = vpop.f32.mrf.mxu0
      %8049 = vdwg.mxu0
      %8050 = vrot.lane.b32.xlu0 %v709, 32
      %v8051 = vpop.permute.xlu0 %8050
      %v8054 = vsel %vm2917, %v7914, 0
      %8056 = vmatpush.bf16.msra.mxu0 0
      %8057 = vmatpush.bf16.msra.mxu0 0
      %8058 = vmatpush.bf16.msra.mxu0 0
      %8059 = vmatpush.bf16.msra.mxu0 0
      %8060 = vmatpush.bf16.msra.mxu0 0
      %8061 = vmatpush.bf16.msra.mxu0 0
      %8062 = vmatpush.bf16.msra.mxu0 0
      %8063 = vmatpush.bf16.msra.mxu0 %v8051
      %8064 = vmatmul.bf16.gmra.mxu0 %v8054
      %v8065 = vpop.f32.mrf.mxu0
      %v8066 = vadd.f32 0.0, %v8065
      %v8067 = vpop.f32.mrf.mxu0
      %8068 = vdwg.mxu0
      %8069 = vrot.lane.b32.xlu0 %v733, 32
      %v8070 = vpop.permute.xlu0 %8069
      %v8073 = vsel %vm2917, %v7915, 0
      %8075 = vmatpush.bf16.msra.mxu0 0
      %8076 = vmatpush.bf16.msra.mxu0 0
      %8077 = vmatpush.bf16.msra.mxu0 0
      %8078 = vmatpush.bf16.msra.mxu0 0
      %8079 = vmatpush.bf16.msra.mxu0 0
      %8080 = vmatpush.bf16.msra.mxu0 0
      %8081 = vmatpush.bf16.msra.mxu0 0
      %8082 = vmatpush.bf16.msra.mxu0 %v8070
      %8083 = vmatmul.bf16.gmra.mxu0 %v8073
      %v8084 = vpop.f32.mrf.mxu0
      %v8085 = vadd.f32 0.0, %v8084
      %v8086 = vpop.f32.mrf.mxu0
      %8087 = vdwg.mxu0
      %8088 = vrot.lane.b32.xlu0 %v757, 32
      %v8089 = vpop.permute.xlu0 %8088
      %v8092 = vsel %vm2917, %v7916, 0
      %8094 = vmatpush.bf16.msra.mxu0 0
      %8095 = vmatpush.bf16.msra.mxu0 0
      %8096 = vmatpush.bf16.msra.mxu0 0
      %8097 = vmatpush.bf16.msra.mxu0 0
      %8098 = vmatpush.bf16.msra.mxu0 0
      %8099 = vmatpush.bf16.msra.mxu0 0
      %8100 = vmatpush.bf16.msra.mxu0 0
      %8101 = vmatpush.bf16.msra.mxu0 %v8089
      %8102 = vmatmul.bf16.gmra.mxu0 %v8092
      %v8103 = vpop.f32.mrf.mxu0
      %v8104 = vadd.f32 0.0, %v8103
      %v8105 = vpop.f32.mrf.mxu0
      %8106 = vdwg.mxu0
      %8107 = vrot.lane.b32.xlu0 %v781, 32
      %v8108 = vpop.permute.xlu0 %8107
      %v8111 = vsel %vm2917, %v7917, 0
      %8113 = vmatpush.bf16.msra.mxu0 0
      %8114 = vmatpush.bf16.msra.mxu0 0
      %8115 = vmatpush.bf16.msra.mxu0 0
      %8116 = vmatpush.bf16.msra.mxu0 0
      %8117 = vmatpush.bf16.msra.mxu0 0
      %8118 = vmatpush.bf16.msra.mxu0 0
      %8119 = vmatpush.bf16.msra.mxu0 0
      %8120 = vmatpush.bf16.msra.mxu0 %v8108
      %8121 = vmatmul.bf16.gmra.mxu0 %v8111
      %v8122 = vpop.f32.mrf.mxu0
      %v8123 = vadd.f32 0.0, %v8122
      %v8124 = vpop.f32.mrf.mxu0
      %8125 = vdwg.mxu0
      %8126 = vrot.lane.b32.xlu0 %v805, 32
      %v8127 = vpop.permute.xlu0 %8126
      %v8130 = vsel %vm2917, %v7918, 0
      %8132 = vmatpush.bf16.msra.mxu0 0
      %8133 = vmatpush.bf16.msra.mxu0 0
      %8134 = vmatpush.bf16.msra.mxu0 0
      %8135 = vmatpush.bf16.msra.mxu0 0
      %8136 = vmatpush.bf16.msra.mxu0 0
      %8137 = vmatpush.bf16.msra.mxu0 0
      %8138 = vmatpush.bf16.msra.mxu0 0
      %8139 = vmatpush.bf16.msra.mxu0 %v8127
      %8140 = vmatmul.bf16.gmra.mxu0 %v8130
      %v8141 = vpop.f32.mrf.mxu0
      %v8142 = vadd.f32 0.0, %v8141
      %v8143 = vpop.f32.mrf.mxu0
      %8144 = vdwg.mxu0
      %8145 = vrot.lane.b32.xlu0 %v829, 32
      %v8146 = vpop.permute.xlu0 %8145
      %v8149 = vsel %vm2917, %v7919, 0
      %8151 = vmatpush.bf16.msra.mxu0 0
      %8152 = vmatpush.bf16.msra.mxu0 0
      %8153 = vmatpush.bf16.msra.mxu0 0
      %8154 = vmatpush.bf16.msra.mxu0 0
      %8155 = vmatpush.bf16.msra.mxu0 0
      %8156 = vmatpush.bf16.msra.mxu0 0
      %8157 = vmatpush.bf16.msra.mxu0 0
      %8158 = vmatpush.bf16.msra.mxu0 %v8146
      %8159 = vmatmul.bf16.gmra.mxu0 %v8149
      %v8160 = vpop.f32.mrf.mxu0
      %v8161 = vadd.f32 0.0, %v8160
      %v8162 = vpop.f32.mrf.mxu0
      %8163 = vdwg.mxu0
      %8164 = vrot.lane.b32.xlu0 %v853, 32
      %v8165 = vpop.permute.xlu0 %8164
      %v8168 = vsel %vm2917, %v7920, 0
      %8170 = vmatpush.bf16.msra.mxu0 0
      %8171 = vmatpush.bf16.msra.mxu0 0
      %8172 = vmatpush.bf16.msra.mxu0 0
      %8173 = vmatpush.bf16.msra.mxu0 0
      %8174 = vmatpush.bf16.msra.mxu0 0
      %8175 = vmatpush.bf16.msra.mxu0 0
      %8176 = vmatpush.bf16.msra.mxu0 0
      %8177 = vmatpush.bf16.msra.mxu0 %v8165
      %8178 = vmatmul.bf16.gmra.mxu0 %v8168
      %v8179 = vpop.f32.mrf.mxu0
      %v8180 = vadd.f32 0.0, %v8179
      %v8181 = vpop.f32.mrf.mxu0
      %8182 = vdwg.mxu0
      %8183 = vrot.lane.b32.xlu0 %v877, 32
      %v8184 = vpop.permute.xlu0 %8183
      %v8187 = vsel %vm2917, %v7921, 0
      %8189 = vmatpush.bf16.msra.mxu0 0
      %8190 = vmatpush.bf16.msra.mxu0 0
      %8191 = vmatpush.bf16.msra.mxu0 0
      %8192 = vmatpush.bf16.msra.mxu0 0
      %8193 = vmatpush.bf16.msra.mxu0 0
      %8194 = vmatpush.bf16.msra.mxu0 0
      %8195 = vmatpush.bf16.msra.mxu0 0
      %8196 = vmatpush.bf16.msra.mxu0 %v8184
      %8197 = vmatmul.bf16.gmra.mxu0 %v8187
      %v8198 = vpop.f32.mrf.mxu0
      %v8199 = vadd.f32 0.0, %v8198
      %v8200 = vpop.f32.mrf.mxu0
      %8201 = vdwg.mxu0
      %8202 = vrot.lane.b32.xlu0 %v901, 32
      %v8203 = vpop.permute.xlu0 %8202
      %v8206 = vsel %vm2917, %v7922, 0
      %8208 = vmatpush.bf16.msra.mxu0 0
      %8209 = vmatpush.bf16.msra.mxu0 0
      %8210 = vmatpush.bf16.msra.mxu0 0
      %8211 = vmatpush.bf16.msra.mxu0 0
      %8212 = vmatpush.bf16.msra.mxu0 0
      %8213 = vmatpush.bf16.msra.mxu0 0
      %8214 = vmatpush.bf16.msra.mxu0 0
      %8215 = vmatpush.bf16.msra.mxu0 %v8203
      %8216 = vmatmul.bf16.gmra.mxu0 %v8206
      %v8217 = vpop.f32.mrf.mxu0
      %v8218 = vadd.f32 0.0, %v8217
      %v8219 = vpop.f32.mrf.mxu0
      %8220 = vdwg.mxu0
      %8221 = vrot.lane.b32.xlu0 %v925, 32
      %v8222 = vpop.permute.xlu0 %8221
      %v8225 = vsel %vm2917, %v7923, 0
      %8227 = vmatpush.bf16.msra.mxu0 0
      %8228 = vmatpush.bf16.msra.mxu0 0
      %8229 = vmatpush.bf16.msra.mxu0 0
      %8230 = vmatpush.bf16.msra.mxu0 0
      %8231 = vmatpush.bf16.msra.mxu0 0
      %8232 = vmatpush.bf16.msra.mxu0 0
      %8233 = vmatpush.bf16.msra.mxu0 0
      %8234 = vmatpush.bf16.msra.mxu0 %v8222
      %8235 = vmatmul.bf16.gmra.mxu0 %v8225
      %v8236 = vpop.f32.mrf.mxu0
      %v8237 = vadd.f32 0.0, %v8236
      %v8238 = vpop.f32.mrf.mxu0
      %8239 = vdwg.mxu0
      %8240 = vrot.lane.b32.xlu0 %v949, 32
      %v8241 = vpop.permute.xlu0 %8240
      %v8244 = vsel %vm2917, %v7924, 0
      %8246 = vmatpush.bf16.msra.mxu0 0
      %8247 = vmatpush.bf16.msra.mxu0 0
      %8248 = vmatpush.bf16.msra.mxu0 0
      %8249 = vmatpush.bf16.msra.mxu0 0
      %8250 = vmatpush.bf16.msra.mxu0 0
      %8251 = vmatpush.bf16.msra.mxu0 0
      %8252 = vmatpush.bf16.msra.mxu0 0
      %8253 = vmatpush.bf16.msra.mxu0 %v8241
      %8254 = vmatmul.bf16.gmra.mxu0 %v8244
      %v8255 = vpop.f32.mrf.mxu0
      %v8256 = vadd.f32 0.0, %v8255
      %v8257 = vpop.f32.mrf.mxu0
      %8258 = vdwg.mxu0
      %8259 = vrot.lane.b32.xlu0 %v973, 32
      %v8260 = vpop.permute.xlu0 %8259
      %v8263 = vsel %vm2917, %v7925, 0
      %8265 = vmatpush.bf16.msra.mxu0 0
      %8266 = vmatpush.bf16.msra.mxu0 0
      %8267 = vmatpush.bf16.msra.mxu0 0
      %8268 = vmatpush.bf16.msra.mxu0 0
      %8269 = vmatpush.bf16.msra.mxu0 0
      %8270 = vmatpush.bf16.msra.mxu0 0
      %8271 = vmatpush.bf16.msra.mxu0 0
      %8272 = vmatpush.bf16.msra.mxu0 %v8260
      %8273 = vmatmul.bf16.gmra.mxu0 %v8263
      %v8274 = vpop.f32.mrf.mxu0
      %v8275 = vadd.f32 0.0, %v8274
      %v8276 = vpop.f32.mrf.mxu0
      %8277 = vdwg.mxu0
      %8278 = vrot.lane.b32.xlu0 %v997, 32
      %v8279 = vpop.permute.xlu0 %8278
      %v8282 = vsel %vm2917, %v7926, 0
      %8284 = vmatpush.bf16.msra.mxu0 0
      %8285 = vmatpush.bf16.msra.mxu0 0
      %8286 = vmatpush.bf16.msra.mxu0 0
      %8287 = vmatpush.bf16.msra.mxu0 0
      %8288 = vmatpush.bf16.msra.mxu0 0
      %8289 = vmatpush.bf16.msra.mxu0 0
      %8290 = vmatpush.bf16.msra.mxu0 0
      %8291 = vmatpush.bf16.msra.mxu0 %v8279
      %8292 = vmatmul.bf16.gmra.mxu0 %v8282
      %v8293 = vpop.f32.mrf.mxu0
      %v8294 = vadd.f32 0.0, %v8293
      %v8295 = vpop.f32.mrf.mxu0
      %8296 = vdwg.mxu0
      %8297 = vrot.lane.b32.xlu0 %v1021, 32
      %v8298 = vpop.permute.xlu0 %8297
      %v8301 = vsel %vm2917, %v7927, 0
      %8303 = vmatpush.bf16.msra.mxu0 0
      %8304 = vmatpush.bf16.msra.mxu0 0
      %8305 = vmatpush.bf16.msra.mxu0 0
      %8306 = vmatpush.bf16.msra.mxu0 0
      %8307 = vmatpush.bf16.msra.mxu0 0
      %8308 = vmatpush.bf16.msra.mxu0 0
      %8309 = vmatpush.bf16.msra.mxu0 0
      %8310 = vmatpush.bf16.msra.mxu0 %v8298
      %8311 = vmatmul.bf16.gmra.mxu0 %v8301
      %v8312 = vpop.f32.mrf.mxu0
      %v8313 = vadd.f32 0.0, %v8312
      %v8314 = vpop.f32.mrf.mxu0
      %8315 = vdwg.mxu0
      %8316 = vrot.lane.b32.xlu0 %v1045, 32
      %v8317 = vpop.permute.xlu0 %8316
      %v8320 = vsel %vm2917, %v7928, 0
      %8322 = vmatpush.bf16.msra.mxu0 0
      %8323 = vmatpush.bf16.msra.mxu0 0
      %8324 = vmatpush.bf16.msra.mxu0 0
      %8325 = vmatpush.bf16.msra.mxu0 0
      %8326 = vmatpush.bf16.msra.mxu0 0
      %8327 = vmatpush.bf16.msra.mxu0 0
      %8328 = vmatpush.bf16.msra.mxu0 0
      %8329 = vmatpush.bf16.msra.mxu0 %v8317
      %8330 = vmatmul.bf16.gmra.mxu0 %v8320
      %v8331 = vpop.f32.mrf.mxu0
      %v8332 = vadd.f32 0.0, %v8331
      %v8333 = vpop.f32.mrf.mxu0
      %8334 = vdwg.mxu0
      %8335 = vrot.lane.b32.xlu0 %v1069, 32
      %v8336 = vpop.permute.xlu0 %8335
      %v8339 = vsel %vm2917, %v7929, 0
      %8341 = vmatpush.bf16.msra.mxu0 0
      %8342 = vmatpush.bf16.msra.mxu0 0
      %8343 = vmatpush.bf16.msra.mxu0 0
      %8344 = vmatpush.bf16.msra.mxu0 0
      %8345 = vmatpush.bf16.msra.mxu0 0
      %8346 = vmatpush.bf16.msra.mxu0 0
      %8347 = vmatpush.bf16.msra.mxu0 0
      %8348 = vmatpush.bf16.msra.mxu0 %v8336
      %8349 = vmatmul.bf16.gmra.mxu0 %v8339
      %v8350 = vpop.f32.mrf.mxu0
      %v8351 = vadd.f32 0.0, %v8350
      %v8352 = vpop.f32.mrf.mxu0
      %8353 = vdwg.mxu0
      %8354 = vrot.lane.b32.xlu0 %v1093, 32
      %v8355 = vpop.permute.xlu0 %8354
      %v8358 = vsel %vm2917, %v7930, 0
      %8360 = vmatpush.bf16.msra.mxu0 0
      %8361 = vmatpush.bf16.msra.mxu0 0
      %8362 = vmatpush.bf16.msra.mxu0 0
      %8363 = vmatpush.bf16.msra.mxu0 0
      %8364 = vmatpush.bf16.msra.mxu0 0
      %8365 = vmatpush.bf16.msra.mxu0 0
      %8366 = vmatpush.bf16.msra.mxu0 0
      %8367 = vmatpush.bf16.msra.mxu0 %v8355
      %8368 = vmatmul.bf16.gmra.mxu0 %v8358
      %v8369 = vpop.f32.mrf.mxu0
      %v8370 = vadd.f32 0.0, %v8369
      %v8371 = vpop.f32.mrf.mxu0
      %8372 = vdwg.mxu0
      %8373 = vrot.lane.b32.xlu0 %v1117, 32
      %v8374 = vpop.permute.xlu0 %8373
      %v8377 = vsel %vm2917, %v7931, 0
      %8379 = vmatpush.bf16.msra.mxu0 0
      %8380 = vmatpush.bf16.msra.mxu0 0
      %8381 = vmatpush.bf16.msra.mxu0 0
      %8382 = vmatpush.bf16.msra.mxu0 0
      %8383 = vmatpush.bf16.msra.mxu0 0
      %8384 = vmatpush.bf16.msra.mxu0 0
      %8385 = vmatpush.bf16.msra.mxu0 0
      %8386 = vmatpush.bf16.msra.mxu0 %v8374
      %8387 = vmatmul.bf16.gmra.mxu0 %v8377
      %v8388 = vpop.f32.mrf.mxu0
      %v8389 = vadd.f32 0.0, %v8388
      %v8390 = vpop.f32.mrf.mxu0
      %8391 = vdwg.mxu0
      %8392 = vrot.lane.b32.xlu0 %v1141, 32
      %v8393 = vpop.permute.xlu0 %8392
      %v8396 = vsel %vm2917, %v7932, 0
      %8398 = vmatpush.bf16.msra.mxu0 0
      %8399 = vmatpush.bf16.msra.mxu0 0
      %8400 = vmatpush.bf16.msra.mxu0 0
      %8401 = vmatpush.bf16.msra.mxu0 0
      %8402 = vmatpush.bf16.msra.mxu0 0
      %8403 = vmatpush.bf16.msra.mxu0 0
      %8404 = vmatpush.bf16.msra.mxu0 0
      %8405 = vmatpush.bf16.msra.mxu0 %v8393
      %8406 = vmatmul.bf16.gmra.mxu0 %v8396
      %v8407 = vpop.f32.mrf.mxu0
      %v8408 = vadd.f32 0.0, %v8407
      %v8409 = vpop.f32.mrf.mxu0
      %8410 = vdwg.mxu0
      %8411 = vrot.lane.b32.xlu0 %v1165, 32
      %v8412 = vpop.permute.xlu0 %8411
      %v8415 = vsel %vm2917, %v7933, 0
      %8417 = vmatpush.bf16.msra.mxu0 0
      %8418 = vmatpush.bf16.msra.mxu0 0
      %8419 = vmatpush.bf16.msra.mxu0 0
      %8420 = vmatpush.bf16.msra.mxu0 0
      %8421 = vmatpush.bf16.msra.mxu0 0
      %8422 = vmatpush.bf16.msra.mxu0 0
      %8423 = vmatpush.bf16.msra.mxu0 0
      %8424 = vmatpush.bf16.msra.mxu0 %v8412
      %8425 = vmatmul.bf16.gmra.mxu0 %v8415
      %v8426 = vpop.f32.mrf.mxu0
      %v8427 = vadd.f32 0.0, %v8426
      %v8428 = vpop.f32.mrf.mxu0
      %8429 = vdwg.mxu0
      %8430 = vrot.lane.b32.xlu0 %v1189, 32
      %v8431 = vpop.permute.xlu0 %8430
      %v8434 = vsel %vm2917, %v7934, 0
      %8436 = vmatpush.bf16.msra.mxu0 0
      %8437 = vmatpush.bf16.msra.mxu0 0
      %8438 = vmatpush.bf16.msra.mxu0 0
      %8439 = vmatpush.bf16.msra.mxu0 0
      %8440 = vmatpush.bf16.msra.mxu0 0
      %8441 = vmatpush.bf16.msra.mxu0 0
      %8442 = vmatpush.bf16.msra.mxu0 0
      %8443 = vmatpush.bf16.msra.mxu0 %v8431
      %8444 = vmatmul.bf16.gmra.mxu0 %v8434
      %v8445 = vpop.f32.mrf.mxu0
      %v8446 = vadd.f32 0.0, %v8445
      %v8447 = vpop.f32.mrf.mxu0
      %8448 = vdwg.mxu0
      %8449 = vrot.lane.b32.xlu0 %v1213, 32
      %v8450 = vpop.permute.xlu0 %8449
      %v8453 = vsel %vm2917, %v7935, 0
      %8455 = vmatpush.bf16.msra.mxu0 0
      %8456 = vmatpush.bf16.msra.mxu0 0
      %8457 = vmatpush.bf16.msra.mxu0 0
      %8458 = vmatpush.bf16.msra.mxu0 0
      %8459 = vmatpush.bf16.msra.mxu0 0
      %8460 = vmatpush.bf16.msra.mxu0 0
      %8461 = vmatpush.bf16.msra.mxu0 0
      %8462 = vmatpush.bf16.msra.mxu0 %v8450
      %8463 = vmatmul.bf16.gmra.mxu0 %v8453
      %v8464 = vpop.f32.mrf.mxu0
      %v8465 = vadd.f32 0.0, %v8464
      %v8466 = vpop.f32.mrf.mxu0
      %8467 = vdwg.mxu0
      %8468 = vrot.lane.b32.xlu0 %v1237, 32
      %v8469 = vpop.permute.xlu0 %8468
      %v8472 = vsel %vm2917, %v7936, 0
      %8474 = vmatpush.bf16.msra.mxu0 0
      %8475 = vmatpush.bf16.msra.mxu0 0
      %8476 = vmatpush.bf16.msra.mxu0 0
      %8477 = vmatpush.bf16.msra.mxu0 0
      %8478 = vmatpush.bf16.msra.mxu0 0
      %8479 = vmatpush.bf16.msra.mxu0 0
      %8480 = vmatpush.bf16.msra.mxu0 0
      %8481 = vmatpush.bf16.msra.mxu0 %v8469
      %8482 = vmatmul.bf16.gmra.mxu0 %v8472
      %v8483 = vpop.f32.mrf.mxu0
      %v8484 = vadd.f32 0.0, %v8483
      %v8485 = vpop.f32.mrf.mxu0
      %8486 = vdwg.mxu0
      %8487 = vrot.lane.b32.xlu0 %v1261, 32
      %v8488 = vpop.permute.xlu0 %8487
      %v8491 = vsel %vm2917, %v7937, 0
      %8493 = vmatpush.bf16.msra.mxu0 0
      %8494 = vmatpush.bf16.msra.mxu0 0
      %8495 = vmatpush.bf16.msra.mxu0 0
      %8496 = vmatpush.bf16.msra.mxu0 0
      %8497 = vmatpush.bf16.msra.mxu0 0
      %8498 = vmatpush.bf16.msra.mxu0 0
      %8499 = vmatpush.bf16.msra.mxu0 0
      %8500 = vmatpush.bf16.msra.mxu0 %v8488
      %8501 = vmatmul.bf16.gmra.mxu0 %v8491
      %v8502 = vpop.f32.mrf.mxu0
      %v8503 = vadd.f32 0.0, %v8502
      %v8504 = vpop.f32.mrf.mxu0
      %8505 = vdwg.mxu0
      %8506 = vrot.lane.b32.xlu0 %v1285, 32
      %v8507 = vpop.permute.xlu0 %8506
      %v8510 = vsel %vm2917, %v7938, 0
      %8512 = vmatpush.bf16.msra.mxu0 0
      %8513 = vmatpush.bf16.msra.mxu0 0
      %8514 = vmatpush.bf16.msra.mxu0 0
      %8515 = vmatpush.bf16.msra.mxu0 0
      %8516 = vmatpush.bf16.msra.mxu0 0
      %8517 = vmatpush.bf16.msra.mxu0 0
      %8518 = vmatpush.bf16.msra.mxu0 0
      %8519 = vmatpush.bf16.msra.mxu0 %v8507
      %8520 = vmatmul.bf16.gmra.mxu0 %v8510
      %v8521 = vpop.f32.mrf.mxu0
      %v8522 = vadd.f32 0.0, %v8521
      %v8523 = vpop.f32.mrf.mxu0
      %8524 = vdwg.mxu0
      %8525 = vrot.lane.b32.xlu0 %v1309, 32
      %v8526 = vpop.permute.xlu0 %8525
      %v8529 = vsel %vm2917, %v7939, 0
      %8531 = vmatpush.bf16.msra.mxu0 0
      %8532 = vmatpush.bf16.msra.mxu0 0
      %8533 = vmatpush.bf16.msra.mxu0 0
      %8534 = vmatpush.bf16.msra.mxu0 0
      %8535 = vmatpush.bf16.msra.mxu0 0
      %8536 = vmatpush.bf16.msra.mxu0 0
      %8537 = vmatpush.bf16.msra.mxu0 0
      %8538 = vmatpush.bf16.msra.mxu0 %v8526
      %8539 = vmatmul.bf16.gmra.mxu0 %v8529
      %v8540 = vpop.f32.mrf.mxu0
      %v8541 = vadd.f32 0.0, %v8540
      %v8542 = vpop.f32.mrf.mxu0
      %8543 = vdwg.mxu0
      %8544 = vrot.lane.b32.xlu0 %v1333, 32
      %v8545 = vpop.permute.xlu0 %8544
      %v8548 = vsel %vm2917, %v7940, 0
      %8550 = vmatpush.bf16.msra.mxu0 0
      %8551 = vmatpush.bf16.msra.mxu0 0
      %8552 = vmatpush.bf16.msra.mxu0 0
      %8553 = vmatpush.bf16.msra.mxu0 0
      %8554 = vmatpush.bf16.msra.mxu0 0
      %8555 = vmatpush.bf16.msra.mxu0 0
      %8556 = vmatpush.bf16.msra.mxu0 0
      %8557 = vmatpush.bf16.msra.mxu0 %v8545
      %8558 = vmatmul.bf16.gmra.mxu0 %v8548
      %v8559 = vpop.f32.mrf.mxu0
      %v8560 = vadd.f32 0.0, %v8559
      %v8561 = vpop.f32.mrf.mxu0
      %8562 = vdwg.mxu0
      %8563 = vrot.lane.b32.xlu0 %v1357, 32
      %v8564 = vpop.permute.xlu0 %8563
      %v8567 = vsel %vm2917, %v7941, 0
      %8569 = vmatpush.bf16.msra.mxu0 0
      %8570 = vmatpush.bf16.msra.mxu0 0
      %8571 = vmatpush.bf16.msra.mxu0 0
      %8572 = vmatpush.bf16.msra.mxu0 0
      %8573 = vmatpush.bf16.msra.mxu0 0
      %8574 = vmatpush.bf16.msra.mxu0 0
      %8575 = vmatpush.bf16.msra.mxu0 0
      %8576 = vmatpush.bf16.msra.mxu0 %v8564
      %8577 = vmatmul.bf16.gmra.mxu0 %v8567
      %v8578 = vpop.f32.mrf.mxu0
      %v8579 = vadd.f32 0.0, %v8578
      %v8580 = vpop.f32.mrf.mxu0
      %8581 = vdwg.mxu0
      %8582 = vrot.lane.b32.xlu0 %v1381, 32
      %v8583 = vpop.permute.xlu0 %8582
      %v8586 = vsel %vm2917, %v7942, 0
      %8588 = vmatpush.bf16.msra.mxu0 0
      %8589 = vmatpush.bf16.msra.mxu0 0
      %8590 = vmatpush.bf16.msra.mxu0 0
      %8591 = vmatpush.bf16.msra.mxu0 0
      %8592 = vmatpush.bf16.msra.mxu0 0
      %8593 = vmatpush.bf16.msra.mxu0 0
      %8594 = vmatpush.bf16.msra.mxu0 0
      %8595 = vmatpush.bf16.msra.mxu0 %v8583
      %8596 = vmatmul.bf16.gmra.mxu0 %v8586
      %v8597 = vpop.f32.mrf.mxu0
      %v8598 = vadd.f32 0.0, %v8597
      %v8599 = vpop.f32.mrf.mxu0
      %8600 = vdwg.mxu0
      %8601 = vrot.lane.b32.xlu0 %v1405, 32
      %v8602 = vpop.permute.xlu0 %8601
      %v8605 = vsel %vm2917, %v7943, 0
      %8607 = vmatpush.bf16.msra.mxu0 0
      %8608 = vmatpush.bf16.msra.mxu0 0
      %8609 = vmatpush.bf16.msra.mxu0 0
      %8610 = vmatpush.bf16.msra.mxu0 0
      %8611 = vmatpush.bf16.msra.mxu0 0
      %8612 = vmatpush.bf16.msra.mxu0 0
      %8613 = vmatpush.bf16.msra.mxu0 0
      %8614 = vmatpush.bf16.msra.mxu0 %v8602
      %8615 = vmatmul.bf16.gmra.mxu0 %v8605
      %v8616 = vpop.f32.mrf.mxu0
      %v8617 = vadd.f32 0.0, %v8616
      %v8618 = vpop.f32.mrf.mxu0
      %8619 = vdwg.mxu0
      %8620 = vrot.lane.b32.xlu0 %v1429, 32
      %v8621 = vpop.permute.xlu0 %8620
      %v8624 = vsel %vm2917, %v7944, 0
      %8626 = vmatpush.bf16.msra.mxu0 0
      %8627 = vmatpush.bf16.msra.mxu0 0
      %8628 = vmatpush.bf16.msra.mxu0 0
      %8629 = vmatpush.bf16.msra.mxu0 0
      %8630 = vmatpush.bf16.msra.mxu0 0
      %8631 = vmatpush.bf16.msra.mxu0 0
      %8632 = vmatpush.bf16.msra.mxu0 0
      %8633 = vmatpush.bf16.msra.mxu0 %v8621
      %8634 = vmatmul.bf16.gmra.mxu0 %v8624
      %v8635 = vpop.f32.mrf.mxu0
      %v8636 = vadd.f32 0.0, %v8635
      %v8637 = vpop.f32.mrf.mxu0
      %8638 = vdwg.mxu0
      %8639 = vrot.lane.b32.xlu0 %v1453, 32
      %v8640 = vpop.permute.xlu0 %8639
      %v8643 = vsel %vm2917, %v7945, 0
      %8645 = vmatpush.bf16.msra.mxu0 0
      %8646 = vmatpush.bf16.msra.mxu0 0
      %8647 = vmatpush.bf16.msra.mxu0 0
      %8648 = vmatpush.bf16.msra.mxu0 0
      %8649 = vmatpush.bf16.msra.mxu0 0
      %8650 = vmatpush.bf16.msra.mxu0 0
      %8651 = vmatpush.bf16.msra.mxu0 0
      %8652 = vmatpush.bf16.msra.mxu0 %v8640
      %8653 = vmatmul.bf16.gmra.mxu0 %v8643
      %v8654 = vpop.f32.mrf.mxu0
      %v8655 = vadd.f32 0.0, %v8654
      %v8656 = vpop.f32.mrf.mxu0
      %8657 = vdwg.mxu0
      %8658 = vrot.lane.b32.xlu0 %v1477, 32
      %v8659 = vpop.permute.xlu0 %8658
      %v8662 = vsel %vm2917, %v7946, 0
      %8664 = vmatpush.bf16.msra.mxu0 0
      %8665 = vmatpush.bf16.msra.mxu0 0
      %8666 = vmatpush.bf16.msra.mxu0 0
      %8667 = vmatpush.bf16.msra.mxu0 0
      %8668 = vmatpush.bf16.msra.mxu0 0
      %8669 = vmatpush.bf16.msra.mxu0 0
      %8670 = vmatpush.bf16.msra.mxu0 0
      %8671 = vmatpush.bf16.msra.mxu0 %v8659
      %8672 = vmatmul.bf16.gmra.mxu0 %v8662
      %v8673 = vpop.f32.mrf.mxu0
      %v8674 = vadd.f32 0.0, %v8673
      %v8675 = vpop.f32.mrf.mxu0
      %8676 = vdwg.mxu0
      %8677 = vrot.lane.b32.xlu0 %v1501, 32
      %v8678 = vpop.permute.xlu0 %8677
      %v8681 = vsel %vm2917, %v7947, 0
      %8683 = vmatpush.bf16.msra.mxu0 0
      %8684 = vmatpush.bf16.msra.mxu0 0
      %8685 = vmatpush.bf16.msra.mxu0 0
      %8686 = vmatpush.bf16.msra.mxu0 0
      %8687 = vmatpush.bf16.msra.mxu0 0
      %8688 = vmatpush.bf16.msra.mxu0 0
      %8689 = vmatpush.bf16.msra.mxu0 0
      %8690 = vmatpush.bf16.msra.mxu0 %v8678
      %8691 = vmatmul.bf16.gmra.mxu0 %v8681
      %v8692 = vpop.f32.mrf.mxu0
      %v8693 = vadd.f32 0.0, %v8692
      %v8694 = vpop.f32.mrf.mxu0
      %8695 = vdwg.mxu0
      %8696 = vrot.lane.b32.xlu0 %v1525, 32
      %v8697 = vpop.permute.xlu0 %8696
      %v8700 = vsel %vm2917, %v7948, 0
      %8702 = vmatpush.bf16.msra.mxu0 0
      %8703 = vmatpush.bf16.msra.mxu0 0
      %8704 = vmatpush.bf16.msra.mxu0 0
      %8705 = vmatpush.bf16.msra.mxu0 0
      %8706 = vmatpush.bf16.msra.mxu0 0
      %8707 = vmatpush.bf16.msra.mxu0 0
      %8708 = vmatpush.bf16.msra.mxu0 0
      %8709 = vmatpush.bf16.msra.mxu0 %v8697
      %8710 = vmatmul.bf16.gmra.mxu0 %v8700
      %v8711 = vpop.f32.mrf.mxu0
      %v8712 = vadd.f32 0.0, %v8711
      %v8713 = vpop.f32.mrf.mxu0
      %8714 = vdwg.mxu0
      %8715 = vrot.lane.b32.xlu0 %v1549, 32
      %v8716 = vpop.permute.xlu0 %8715
      %v8719 = vsel %vm2917, %v7949, 0
      %8721 = vmatpush.bf16.msra.mxu0 0
      %8722 = vmatpush.bf16.msra.mxu0 0
      %8723 = vmatpush.bf16.msra.mxu0 0
      %8724 = vmatpush.bf16.msra.mxu0 0
      %8725 = vmatpush.bf16.msra.mxu0 0
      %8726 = vmatpush.bf16.msra.mxu0 0
      %8727 = vmatpush.bf16.msra.mxu0 0
      %8728 = vmatpush.bf16.msra.mxu0 %v8716
      %8729 = vmatmul.bf16.gmra.mxu0 %v8719
      %v8730 = vpop.f32.mrf.mxu0
      %v8731 = vadd.f32 0.0, %v8730
      %v8732 = vpop.f32.mrf.mxu0
      %8733 = vdwg.mxu0
      %8734 = vrot.lane.b32.xlu0 %v1573, 32
      %v8735 = vpop.permute.xlu0 %8734
      %v8738 = vsel %vm2917, %v7950, 0
      %8740 = vmatpush.bf16.msra.mxu0 0
      %8741 = vmatpush.bf16.msra.mxu0 0
      %8742 = vmatpush.bf16.msra.mxu0 0
      %8743 = vmatpush.bf16.msra.mxu0 0
      %8744 = vmatpush.bf16.msra.mxu0 0
      %8745 = vmatpush.bf16.msra.mxu0 0
      %8746 = vmatpush.bf16.msra.mxu0 0
      %8747 = vmatpush.bf16.msra.mxu0 %v8735
      %8748 = vmatmul.bf16.gmra.mxu0 %v8738
      %v8749 = vpop.f32.mrf.mxu0
      %v8750 = vadd.f32 0.0, %v8749
      %v8751 = vpop.f32.mrf.mxu0
      %8752 = vdwg.mxu0
      %8753 = vrot.lane.b32.xlu0 %v1597, 32
      %v8754 = vpop.permute.xlu0 %8753
      %v8757 = vsel %vm2917, %v7951, 0
      %8759 = vmatpush.bf16.msra.mxu0 0
      %8760 = vmatpush.bf16.msra.mxu0 0
      %8761 = vmatpush.bf16.msra.mxu0 0
      %8762 = vmatpush.bf16.msra.mxu0 0
      %8763 = vmatpush.bf16.msra.mxu0 0
      %8764 = vmatpush.bf16.msra.mxu0 0
      %8765 = vmatpush.bf16.msra.mxu0 0
      %8766 = vmatpush.bf16.msra.mxu0 %v8754
      %8767 = vmatmul.bf16.gmra.mxu0 %v8757
      %v8768 = vpop.f32.mrf.mxu0
      %v8769 = vadd.f32 0.0, %v8768
      %v8770 = vpop.f32.mrf.mxu0
      %8771 = vdwg.mxu0
      %8772 = vrot.lane.b32.xlu0 %v1621, 32
      %v8773 = vpop.permute.xlu0 %8772
      %v8776 = vsel %vm2917, %v7952, 0
      %8778 = vmatpush.bf16.msra.mxu0 0
      %8779 = vmatpush.bf16.msra.mxu0 0
      %8780 = vmatpush.bf16.msra.mxu0 0
      %8781 = vmatpush.bf16.msra.mxu0 0
      %8782 = vmatpush.bf16.msra.mxu0 0
      %8783 = vmatpush.bf16.msra.mxu0 0
      %8784 = vmatpush.bf16.msra.mxu0 0
      %8785 = vmatpush.bf16.msra.mxu0 %v8773
      %8786 = vmatmul.bf16.gmra.mxu0 %v8776
      %v8787 = vpop.f32.mrf.mxu0
      %v8788 = vadd.f32 0.0, %v8787
      %v8789 = vpop.f32.mrf.mxu0
      %8790 = vdwg.mxu0
      %8791 = vrot.lane.b32.xlu0 %v1645, 32
      %v8792 = vpop.permute.xlu0 %8791
      %v8795 = vsel %vm2917, %v7953, 0
      %8797 = vmatpush.bf16.msra.mxu0 0
      %8798 = vmatpush.bf16.msra.mxu0 0
      %8799 = vmatpush.bf16.msra.mxu0 0
      %8800 = vmatpush.bf16.msra.mxu0 0
      %8801 = vmatpush.bf16.msra.mxu0 0
      %8802 = vmatpush.bf16.msra.mxu0 0
      %8803 = vmatpush.bf16.msra.mxu0 0
      %8804 = vmatpush.bf16.msra.mxu0 %v8792
      %8805 = vmatmul.bf16.gmra.mxu0 %v8795
      %v8806 = vpop.f32.mrf.mxu0
      %v8807 = vadd.f32 0.0, %v8806
      %v8808 = vpop.f32.mrf.mxu0
      %8809 = vdwg.mxu0
      %8810 = vrot.lane.b32.xlu0 %v1669, 32
      %v8811 = vpop.permute.xlu0 %8810
      %v8814 = vsel %vm2917, %v7954, 0
      %8816 = vmatpush.bf16.msra.mxu0 0
      %8817 = vmatpush.bf16.msra.mxu0 0
      %8818 = vmatpush.bf16.msra.mxu0 0
      %8819 = vmatpush.bf16.msra.mxu0 0
      %8820 = vmatpush.bf16.msra.mxu0 0
      %8821 = vmatpush.bf16.msra.mxu0 0
      %8822 = vmatpush.bf16.msra.mxu0 0
      %8823 = vmatpush.bf16.msra.mxu0 %v8811
      %8824 = vmatmul.bf16.gmra.mxu0 %v8814
      %v8825 = vpop.f32.mrf.mxu0
      %v8826 = vadd.f32 0.0, %v8825
      %v8827 = vpop.f32.mrf.mxu0
      %8828 = vdwg.mxu0
      %8829 = vrot.lane.b32.xlu0 %v1693, 32
      %v8830 = vpop.permute.xlu0 %8829
      %v8833 = vsel %vm2917, %v7955, 0
      %8835 = vmatpush.bf16.msra.mxu0 0
      %8836 = vmatpush.bf16.msra.mxu0 0
      %8837 = vmatpush.bf16.msra.mxu0 0
      %8838 = vmatpush.bf16.msra.mxu0 0
      %8839 = vmatpush.bf16.msra.mxu0 0
      %8840 = vmatpush.bf16.msra.mxu0 0
      %8841 = vmatpush.bf16.msra.mxu0 0
      %8842 = vmatpush.bf16.msra.mxu0 %v8830
      %8843 = vmatmul.bf16.gmra.mxu0 %v8833
      %v8844 = vpop.f32.mrf.mxu0
      %v8845 = vadd.f32 0.0, %v8844
      %v8846 = vpop.f32.mrf.mxu0
      %8847 = vdwg.mxu0
      %8848 = vrot.lane.b32.xlu0 %v1717, 32
      %v8849 = vpop.permute.xlu0 %8848
      %v8852 = vsel %vm2917, %v7956, 0
      %8854 = vmatpush.bf16.msra.mxu0 0
      %8855 = vmatpush.bf16.msra.mxu0 0
      %8856 = vmatpush.bf16.msra.mxu0 0
      %8857 = vmatpush.bf16.msra.mxu0 0
      %8858 = vmatpush.bf16.msra.mxu0 0
      %8859 = vmatpush.bf16.msra.mxu0 0
      %8860 = vmatpush.bf16.msra.mxu0 0
      %8861 = vmatpush.bf16.msra.mxu0 %v8849
      %8862 = vmatmul.bf16.gmra.mxu0 %v8852
      %v8863 = vpop.f32.mrf.mxu0
      %v8864 = vadd.f32 0.0, %v8863
      %v8865 = vpop.f32.mrf.mxu0
      %8866 = vdwg.mxu0
      %8867 = vrot.lane.b32.xlu0 %v1741, 32
      %v8868 = vpop.permute.xlu0 %8867
      %v8871 = vsel %vm2917, %v7957, 0
      %8873 = vmatpush.bf16.msra.mxu0 0
      %8874 = vmatpush.bf16.msra.mxu0 0
      %8875 = vmatpush.bf16.msra.mxu0 0
      %8876 = vmatpush.bf16.msra.mxu0 0
      %8877 = vmatpush.bf16.msra.mxu0 0
      %8878 = vmatpush.bf16.msra.mxu0 0
      %8879 = vmatpush.bf16.msra.mxu0 0
      %8880 = vmatpush.bf16.msra.mxu0 %v8868
      %8881 = vmatmul.bf16.gmra.mxu0 %v8871
      %v8882 = vpop.f32.mrf.mxu0
      %v8883 = vadd.f32 0.0, %v8882
      %v8884 = vpop.f32.mrf.mxu0
      %8885 = vdwg.mxu0
      %8886 = vrot.lane.b32.xlu0 %v1765, 32
      %v8887 = vpop.permute.xlu0 %8886
      %v8890 = vsel %vm2917, %v7958, 0
      %8892 = vmatpush.bf16.msra.mxu0 0
      %8893 = vmatpush.bf16.msra.mxu0 0
      %8894 = vmatpush.bf16.msra.mxu0 0
      %8895 = vmatpush.bf16.msra.mxu0 0
      %8896 = vmatpush.bf16.msra.mxu0 0
      %8897 = vmatpush.bf16.msra.mxu0 0
      %8898 = vmatpush.bf16.msra.mxu0 0
      %8899 = vmatpush.bf16.msra.mxu0 %v8887
      %8900 = vmatmul.bf16.gmra.mxu0 %v8890
      %v8901 = vpop.f32.mrf.mxu0
      %v8902 = vadd.f32 0.0, %v8901
      %v8903 = vpop.f32.mrf.mxu0
      %8904 = vdwg.mxu0
      %8905 = vrot.lane.b32.xlu0 %v1789, 32
      %v8906 = vpop.permute.xlu0 %8905
      %v8909 = vsel %vm2917, %v7959, 0
      %8911 = vmatpush.bf16.msra.mxu0 0
      %8912 = vmatpush.bf16.msra.mxu0 0
      %8913 = vmatpush.bf16.msra.mxu0 0
      %8914 = vmatpush.bf16.msra.mxu0 0
      %8915 = vmatpush.bf16.msra.mxu0 0
      %8916 = vmatpush.bf16.msra.mxu0 0
      %8917 = vmatpush.bf16.msra.mxu0 0
      %8918 = vmatpush.bf16.msra.mxu0 %v8906
      %8919 = vmatmul.bf16.gmra.mxu0 %v8909
      %v8920 = vpop.f32.mrf.mxu0
      %v8921 = vadd.f32 0.0, %v8920
      %v8922 = vpop.f32.mrf.mxu0
      %8923 = vdwg.mxu0
      %8924 = vrot.lane.b32.xlu0 %v1813, 32
      %v8925 = vpop.permute.xlu0 %8924
      %v8928 = vsel %vm2917, %v7960, 0
      %8930 = vmatpush.bf16.msra.mxu0 0
      %8931 = vmatpush.bf16.msra.mxu0 0
      %8932 = vmatpush.bf16.msra.mxu0 0
      %8933 = vmatpush.bf16.msra.mxu0 0
      %8934 = vmatpush.bf16.msra.mxu0 0
      %8935 = vmatpush.bf16.msra.mxu0 0
      %8936 = vmatpush.bf16.msra.mxu0 0
      %8937 = vmatpush.bf16.msra.mxu0 %v8925
      %8938 = vmatmul.bf16.gmra.mxu0 %v8928
      %v8939 = vpop.f32.mrf.mxu0
      %v8940 = vadd.f32 0.0, %v8939
      %v8941 = vpop.f32.mrf.mxu0
      %8942 = vdwg.mxu0
      %8943 = vrot.lane.b32.xlu0 %v1837, 32
      %v8944 = vpop.permute.xlu0 %8943
      %v8947 = vsel %vm2917, %v7961, 0
      %8949 = vmatpush.bf16.msra.mxu0 0
      %8950 = vmatpush.bf16.msra.mxu0 0
      %8951 = vmatpush.bf16.msra.mxu0 0
      %8952 = vmatpush.bf16.msra.mxu0 0
      %8953 = vmatpush.bf16.msra.mxu0 0
      %8954 = vmatpush.bf16.msra.mxu0 0
      %8955 = vmatpush.bf16.msra.mxu0 0
      %8956 = vmatpush.bf16.msra.mxu0 %v8944
      %8957 = vmatmul.bf16.gmra.mxu0 %v8947
      %v8958 = vpop.f32.mrf.mxu0
      %v8959 = vadd.f32 0.0, %v8958
      %v8960 = vpop.f32.mrf.mxu0
      %8961 = vdwg.mxu0
      %8962 = vrot.lane.b32.xlu0 %v1861, 32
      %v8963 = vpop.permute.xlu0 %8962
      %v8966 = vsel %vm2917, %v7962, 0
      %8968 = vmatpush.bf16.msra.mxu0 0
      %8969 = vmatpush.bf16.msra.mxu0 0
      %8970 = vmatpush.bf16.msra.mxu0 0
      %8971 = vmatpush.bf16.msra.mxu0 0
      %8972 = vmatpush.bf16.msra.mxu0 0
      %8973 = vmatpush.bf16.msra.mxu0 0
      %8974 = vmatpush.bf16.msra.mxu0 0
      %8975 = vmatpush.bf16.msra.mxu0 %v8963
      %8976 = vmatmul.bf16.gmra.mxu0 %v8966
      %v8977 = vpop.f32.mrf.mxu0
      %v8978 = vadd.f32 0.0, %v8977
      %v8979 = vpop.f32.mrf.mxu0
      %8980 = vdwg.mxu0
      %8981 = vrot.lane.b32.xlu0 %v1885, 32
      %v8982 = vpop.permute.xlu0 %8981
      %v8985 = vsel %vm2917, %v7963, 0
      %8987 = vmatpush.bf16.msra.mxu0 0
      %8988 = vmatpush.bf16.msra.mxu0 0
      %8989 = vmatpush.bf16.msra.mxu0 0
      %8990 = vmatpush.bf16.msra.mxu0 0
      %8991 = vmatpush.bf16.msra.mxu0 0
      %8992 = vmatpush.bf16.msra.mxu0 0
      %8993 = vmatpush.bf16.msra.mxu0 0
      %8994 = vmatpush.bf16.msra.mxu0 %v8982
      %8995 = vmatmul.bf16.gmra.mxu0 %v8985
      %v8996 = vpop.f32.mrf.mxu0
      %v8997 = vadd.f32 0.0, %v8996
      %v8998 = vpop.f32.mrf.mxu0
      %8999 = vdwg.mxu0
      %9000 = vrot.lane.b32.xlu0 %v1909, 32
      %v9001 = vpop.permute.xlu0 %9000
      %v9004 = vsel %vm2917, %v7964, 0
      %9006 = vmatpush.bf16.msra.mxu0 0
      %9007 = vmatpush.bf16.msra.mxu0 0
      %9008 = vmatpush.bf16.msra.mxu0 0
      %9009 = vmatpush.bf16.msra.mxu0 0
      %9010 = vmatpush.bf16.msra.mxu0 0
      %9011 = vmatpush.bf16.msra.mxu0 0
      %9012 = vmatpush.bf16.msra.mxu0 0
      %9013 = vmatpush.bf16.msra.mxu0 %v9001
      %9014 = vmatmul.bf16.gmra.mxu0 %v9004
      %v9015 = vpop.f32.mrf.mxu0
      %v9016 = vadd.f32 0.0, %v9015
      %v9017 = vpop.f32.mrf.mxu0
      %9018 = vdwg.mxu0
      %9019 = vrot.lane.b32.xlu0 %v1933, 32
      %v9020 = vpop.permute.xlu0 %9019
      %v9023 = vsel %vm2917, %v7965, 0
      %9025 = vmatpush.bf16.msra.mxu0 0
      %9026 = vmatpush.bf16.msra.mxu0 0
      %9027 = vmatpush.bf16.msra.mxu0 0
      %9028 = vmatpush.bf16.msra.mxu0 0
      %9029 = vmatpush.bf16.msra.mxu0 0
      %9030 = vmatpush.bf16.msra.mxu0 0
      %9031 = vmatpush.bf16.msra.mxu0 0
      %9032 = vmatpush.bf16.msra.mxu0 %v9020
      %9033 = vmatmul.bf16.gmra.mxu0 %v9023
      %v9034 = vpop.f32.mrf.mxu0
      %v9035 = vadd.f32 0.0, %v9034
      %v9036 = vpop.f32.mrf.mxu0
      %9037 = vdwg.mxu0
      %9038 = vrot.lane.b32.xlu0 %v1957, 32
      %v9039 = vpop.permute.xlu0 %9038
      %v9042 = vsel %vm2917, %v7966, 0
      %9044 = vmatpush.bf16.msra.mxu0 0
      %9045 = vmatpush.bf16.msra.mxu0 0
      %9046 = vmatpush.bf16.msra.mxu0 0
      %9047 = vmatpush.bf16.msra.mxu0 0
      %9048 = vmatpush.bf16.msra.mxu0 0
      %9049 = vmatpush.bf16.msra.mxu0 0
      %9050 = vmatpush.bf16.msra.mxu0 0
      %9051 = vmatpush.bf16.msra.mxu0 %v9039
      %9052 = vmatmul.bf16.gmra.mxu0 %v9042
      %v9053 = vpop.f32.mrf.mxu0
      %v9054 = vadd.f32 0.0, %v9053
      %v9055 = vpop.f32.mrf.mxu0
      %9056 = vdwg.mxu0
      %9057 = vrot.lane.b32.xlu0 %v1981, 32
      %v9058 = vpop.permute.xlu0 %9057
      %v9061 = vsel %vm2917, %v7967, 0
      %9063 = vmatpush.bf16.msra.mxu0 0
      %9064 = vmatpush.bf16.msra.mxu0 0
      %9065 = vmatpush.bf16.msra.mxu0 0
      %9066 = vmatpush.bf16.msra.mxu0 0
      %9067 = vmatpush.bf16.msra.mxu0 0
      %9068 = vmatpush.bf16.msra.mxu0 0
      %9069 = vmatpush.bf16.msra.mxu0 0
      %9070 = vmatpush.bf16.msra.mxu0 %v9058
      %9071 = vmatmul.bf16.gmra.mxu0 %v9061
      %v9072 = vpop.f32.mrf.mxu0
      %v9073 = vadd.f32 0.0, %v9072
      %v9074 = vpop.f32.mrf.mxu0
      %9075 = vdwg.mxu0
      %9076 = vrot.lane.b32.xlu0 %v2005, 32
      %v9077 = vpop.permute.xlu0 %9076
      %v9080 = vsel %vm2917, %v7968, 0
      %9082 = vmatpush.bf16.msra.mxu0 0
      %9083 = vmatpush.bf16.msra.mxu0 0
      %9084 = vmatpush.bf16.msra.mxu0 0
      %9085 = vmatpush.bf16.msra.mxu0 0
      %9086 = vmatpush.bf16.msra.mxu0 0
      %9087 = vmatpush.bf16.msra.mxu0 0
      %9088 = vmatpush.bf16.msra.mxu0 0
      %9089 = vmatpush.bf16.msra.mxu0 %v9077
      %9090 = vmatmul.bf16.gmra.mxu0 %v9080
      %v9091 = vpop.f32.mrf.mxu0
      %v9092 = vadd.f32 0.0, %v9091
      %v9093 = vpop.f32.mrf.mxu0
      %9094 = vdwg.mxu0
      %9095 = vrot.lane.b32.xlu0 %v2029, 32
      %v9096 = vpop.permute.xlu0 %9095
      %v9099 = vsel %vm2917, %v7969, 0
      %9101 = vmatpush.bf16.msra.mxu0 0
      %9102 = vmatpush.bf16.msra.mxu0 0
      %9103 = vmatpush.bf16.msra.mxu0 0
      %9104 = vmatpush.bf16.msra.mxu0 0
      %9105 = vmatpush.bf16.msra.mxu0 0
      %9106 = vmatpush.bf16.msra.mxu0 0
      %9107 = vmatpush.bf16.msra.mxu0 0
      %9108 = vmatpush.bf16.msra.mxu0 %v9096
      %9109 = vmatmul.bf16.gmra.mxu0 %v9099
      %v9110 = vpop.f32.mrf.mxu0
      %v9111 = vadd.f32 0.0, %v9110
      %v9112 = vpop.f32.mrf.mxu0
      %9113 = vdwg.mxu0
      %9114 = vrot.lane.b32.xlu0 %v2053, 32
      %v9115 = vpop.permute.xlu0 %9114
      %v9118 = vsel %vm2917, %v7970, 0
      %9120 = vmatpush.bf16.msra.mxu0 0
      %9121 = vmatpush.bf16.msra.mxu0 0
      %9122 = vmatpush.bf16.msra.mxu0 0
      %9123 = vmatpush.bf16.msra.mxu0 0
      %9124 = vmatpush.bf16.msra.mxu0 0
      %9125 = vmatpush.bf16.msra.mxu0 0
      %9126 = vmatpush.bf16.msra.mxu0 0
      %9127 = vmatpush.bf16.msra.mxu0 %v9115
      %9128 = vmatmul.bf16.gmra.mxu0 %v9118
      %v9129 = vpop.f32.mrf.mxu0
      %v9130 = vadd.f32 0.0, %v9129
      %v9131 = vpop.f32.mrf.mxu0
      %9132 = vdwg.mxu0
      %9133 = vrot.lane.b32.xlu0 %v2077, 32
      %v9134 = vpop.permute.xlu0 %9133
      %v9137 = vsel %vm2917, %v7971, 0
      %9139 = vmatpush.bf16.msra.mxu0 0
      %9140 = vmatpush.bf16.msra.mxu0 0
      %9141 = vmatpush.bf16.msra.mxu0 0
      %9142 = vmatpush.bf16.msra.mxu0 0
      %9143 = vmatpush.bf16.msra.mxu0 0
      %9144 = vmatpush.bf16.msra.mxu0 0
      %9145 = vmatpush.bf16.msra.mxu0 0
      %9146 = vmatpush.bf16.msra.mxu0 %v9134
      %9147 = vmatmul.bf16.gmra.mxu0 %v9137
      %v9148 = vpop.f32.mrf.mxu0
      %v9149 = vadd.f32 0.0, %v9148
      %v9150 = vpop.f32.mrf.mxu0
      %9151 = vdwg.mxu0
      %9152 = vrot.lane.b32.xlu0 %v2101, 32
      %v9153 = vpop.permute.xlu0 %9152
      %v9156 = vsel %vm2917, %v7972, 0
      %9158 = vmatpush.bf16.msra.mxu0 0
      %9159 = vmatpush.bf16.msra.mxu0 0
      %9160 = vmatpush.bf16.msra.mxu0 0
      %9161 = vmatpush.bf16.msra.mxu0 0
      %9162 = vmatpush.bf16.msra.mxu0 0
      %9163 = vmatpush.bf16.msra.mxu0 0
      %9164 = vmatpush.bf16.msra.mxu0 0
      %9165 = vmatpush.bf16.msra.mxu0 %v9153
      %9166 = vmatmul.bf16.gmra.mxu0 %v9156
      %v9167 = vpop.f32.mrf.mxu0
      %v9168 = vadd.f32 0.0, %v9167
      %v9169 = vpop.f32.mrf.mxu0
      %9170 = vdwg.mxu0
      %9171 = vrot.lane.b32.xlu0 %v2125, 32
      %v9172 = vpop.permute.xlu0 %9171
      %v9175 = vsel %vm2917, %v7973, 0
      %9177 = vmatpush.bf16.msra.mxu0 0
      %9178 = vmatpush.bf16.msra.mxu0 0
      %9179 = vmatpush.bf16.msra.mxu0 0
      %9180 = vmatpush.bf16.msra.mxu0 0
      %9181 = vmatpush.bf16.msra.mxu0 0
      %9182 = vmatpush.bf16.msra.mxu0 0
      %9183 = vmatpush.bf16.msra.mxu0 0
      %9184 = vmatpush.bf16.msra.mxu0 %v9172
      %9185 = vmatmul.bf16.gmra.mxu0 %v9175
      %v9186 = vpop.f32.mrf.mxu0
      %v9187 = vadd.f32 0.0, %v9186
      %v9188 = vpop.f32.mrf.mxu0
      %9189 = vdwg.mxu0
      %v9190 = vrcp.pop %v7720
      %v9191 = vmul.f32 %v7720, %v9190
      %v9192 = vsub.f32 1.0, %v9191
      %v9193 = vmul.f32 %v9190, %v9192
      %v9194 = vadd.f32 %v9190, %v9193
      %vm9195 = vweird.f32 %v7720
      %vm9196 = vweird.f32 %v9190
      %vm9197 = vmor %vm9195, %vm9196
      %v9198 = vsel %vm9197, %v9190, %v9194
      %v9199 = vand.u32 2147483647, %v7720
      %vm9200 = vcmp.eq.f32.partialorder %v9199, 8.507059e+37
      %v9201 = vand.u32 %v7720, 2147483648
      %v9202 = vor.u32 1.1754944e-38, %v9201
      %v9203 = vsel %vm9200, %v9202, %v9198
      %v9204 = vmul.f32 1.0, %v9203
      %v9205 = vrcp.pop %v7723
      %v9206 = vmul.f32 %v7723, %v9205
      %v9207 = vsub.f32 1.0, %v9206
      %v9208 = vmul.f32 %v9205, %v9207
      %v9209 = vadd.f32 %v9205, %v9208
      %vm9210 = vweird.f32 %v7723
      %vm9211 = vweird.f32 %v9205
      %vm9212 = vmor %vm9210, %vm9211
      %v9213 = vsel %vm9212, %v9205, %v9209
      %v9214 = vand.u32 2147483647, %v7723
      %vm9215 = vcmp.eq.f32.partialorder %v9214, 8.507059e+37
      %v9216 = vand.u32 %v7723, 2147483648
      %v9217 = vor.u32 1.1754944e-38, %v9216
      %v9218 = vsel %vm9215, %v9217, %v9213
      %v9219 = vmul.f32 1.0, %v9218
      %v9220 = vrcp.pop %v7726
      %v9221 = vmul.f32 %v7726, %v9220
      %v9222 = vsub.f32 1.0, %v9221
      %v9223 = vmul.f32 %v9220, %v9222
      %v9224 = vadd.f32 %v9220, %v9223
      %vm9225 = vweird.f32 %v7726
      %vm9226 = vweird.f32 %v9220
      %vm9227 = vmor %vm9225, %vm9226
      %v9228 = vsel %vm9227, %v9220, %v9224
      %v9229 = vand.u32 2147483647, %v7726
      %vm9230 = vcmp.eq.f32.partialorder %v9229, 8.507059e+37
      %v9231 = vand.u32 %v7726, 2147483648
      %v9232 = vor.u32 1.1754944e-38, %v9231
      %v9233 = vsel %vm9230, %v9232, %v9228
      %v9234 = vmul.f32 1.0, %v9233
      %v9235 = vrcp.pop %v7729
      %v9236 = vmul.f32 %v7729, %v9235
      %v9237 = vsub.f32 1.0, %v9236
      %v9238 = vmul.f32 %v9235, %v9237
      %v9239 = vadd.f32 %v9235, %v9238
      %vm9240 = vweird.f32 %v7729
      %vm9241 = vweird.f32 %v9235
      %vm9242 = vmor %vm9240, %vm9241
      %v9243 = vsel %vm9242, %v9235, %v9239
      %v9244 = vand.u32 2147483647, %v7729
      %vm9245 = vcmp.eq.f32.partialorder %v9244, 8.507059e+37
      %v9246 = vand.u32 %v7729, 2147483648
      %v9247 = vor.u32 1.1754944e-38, %v9246
      %v9248 = vsel %vm9245, %v9247, %v9243
      %v9249 = vmul.f32 1.0, %v9248
      %v9250 = vrcp.pop %v7732
      %v9251 = vmul.f32 %v7732, %v9250
      %v9252 = vsub.f32 1.0, %v9251
      %v9253 = vmul.f32 %v9250, %v9252
      %v9254 = vadd.f32 %v9250, %v9253
      %vm9255 = vweird.f32 %v7732
      %vm9256 = vweird.f32 %v9250
      %vm9257 = vmor %vm9255, %vm9256
      %v9258 = vsel %vm9257, %v9250, %v9254
      %v9259 = vand.u32 2147483647, %v7732
      %vm9260 = vcmp.eq.f32.partialorder %v9259, 8.507059e+37
      %v9261 = vand.u32 %v7732, 2147483648
      %v9262 = vor.u32 1.1754944e-38, %v9261
      %v9263 = vsel %vm9260, %v9262, %v9258
      %v9264 = vmul.f32 1.0, %v9263
      %v9265 = vrcp.pop %v7735
      %v9266 = vmul.f32 %v7735, %v9265
      %v9267 = vsub.f32 1.0, %v9266
      %v9268 = vmul.f32 %v9265, %v9267
      %v9269 = vadd.f32 %v9265, %v9268
      %vm9270 = vweird.f32 %v7735
      %vm9271 = vweird.f32 %v9265
      %vm9272 = vmor %vm9270, %vm9271
      %v9273 = vsel %vm9272, %v9265, %v9269
      %v9274 = vand.u32 2147483647, %v7735
      %vm9275 = vcmp.eq.f32.partialorder %v9274, 8.507059e+37
      %v9276 = vand.u32 %v7735, 2147483648
      %v9277 = vor.u32 1.1754944e-38, %v9276
      %v9278 = vsel %vm9275, %v9277, %v9273
      %v9279 = vmul.f32 1.0, %v9278
      %v9280 = vrcp.pop %v7738
      %v9281 = vmul.f32 %v7738, %v9280
      %v9282 = vsub.f32 1.0, %v9281
      %v9283 = vmul.f32 %v9280, %v9282
      %v9284 = vadd.f32 %v9280, %v9283
      %vm9285 = vweird.f32 %v7738
      %vm9286 = vweird.f32 %v9280
      %vm9287 = vmor %vm9285, %vm9286
      %v9288 = vsel %vm9287, %v9280, %v9284
      %v9289 = vand.u32 2147483647, %v7738
      %vm9290 = vcmp.eq.f32.partialorder %v9289, 8.507059e+37
      %v9291 = vand.u32 %v7738, 2147483648
      %v9292 = vor.u32 1.1754944e-38, %v9291
      %v9293 = vsel %vm9290, %v9292, %v9288
      %v9294 = vmul.f32 1.0, %v9293
      %v9295 = vrcp.pop %v7741
      %v9296 = vmul.f32 %v7741, %v9295
      %v9297 = vsub.f32 1.0, %v9296
      %v9298 = vmul.f32 %v9295, %v9297
      %v9299 = vadd.f32 %v9295, %v9298
      %vm9300 = vweird.f32 %v7741
      %vm9301 = vweird.f32 %v9295
      %vm9302 = vmor %vm9300, %vm9301
      %v9303 = vsel %vm9302, %v9295, %v9299
      %v9304 = vand.u32 2147483647, %v7741
      %vm9305 = vcmp.eq.f32.partialorder %v9304, 8.507059e+37
      %v9306 = vand.u32 %v7741, 2147483648
      %v9307 = vor.u32 1.1754944e-38, %v9306
      %v9308 = vsel %vm9305, %v9307, %v9303
      %v9309 = vmul.f32 1.0, %v9308
      %v9310 = vrcp.pop %v7744
      %v9311 = vmul.f32 %v7744, %v9310
      %v9312 = vsub.f32 1.0, %v9311
      %v9313 = vmul.f32 %v9310, %v9312
      %v9314 = vadd.f32 %v9310, %v9313
      %vm9315 = vweird.f32 %v7744
      %vm9316 = vweird.f32 %v9310
      %vm9317 = vmor %vm9315, %vm9316
      %v9318 = vsel %vm9317, %v9310, %v9314
      %v9319 = vand.u32 2147483647, %v7744
      %vm9320 = vcmp.eq.f32.partialorder %v9319, 8.507059e+37
      %v9321 = vand.u32 %v7744, 2147483648
      %v9322 = vor.u32 1.1754944e-38, %v9321
      %v9323 = vsel %vm9320, %v9322, %v9318
      %v9324 = vmul.f32 1.0, %v9323
      %v9325 = vrcp.pop %v7747
      %v9326 = vmul.f32 %v7747, %v9325
      %v9327 = vsub.f32 1.0, %v9326
      %v9328 = vmul.f32 %v9325, %v9327
      %v9329 = vadd.f32 %v9325, %v9328
      %vm9330 = vweird.f32 %v7747
      %vm9331 = vweird.f32 %v9325
      %vm9332 = vmor %vm9330, %vm9331
      %v9333 = vsel %vm9332, %v9325, %v9329
      %v9334 = vand.u32 2147483647, %v7747
      %vm9335 = vcmp.eq.f32.partialorder %v9334, 8.507059e+37
      %v9336 = vand.u32 %v7747, 2147483648
      %v9337 = vor.u32 1.1754944e-38, %v9336
      %v9338 = vsel %vm9335, %v9337, %v9333
      %v9339 = vmul.f32 1.0, %v9338
      %v9340 = vrcp.pop %v7750
      %v9341 = vmul.f32 %v7750, %v9340
      %v9342 = vsub.f32 1.0, %v9341
      %v9343 = vmul.f32 %v9340, %v9342
      %v9344 = vadd.f32 %v9340, %v9343
      %vm9345 = vweird.f32 %v7750
      %vm9346 = vweird.f32 %v9340
      %vm9347 = vmor %vm9345, %vm9346
      %v9348 = vsel %vm9347, %v9340, %v9344
      %v9349 = vand.u32 2147483647, %v7750
      %vm9350 = vcmp.eq.f32.partialorder %v9349, 8.507059e+37
      %v9351 = vand.u32 %v7750, 2147483648
      %v9352 = vor.u32 1.1754944e-38, %v9351
      %v9353 = vsel %vm9350, %v9352, %v9348
      %v9354 = vmul.f32 1.0, %v9353
      %v9355 = vrcp.pop %v7753
      %v9356 = vmul.f32 %v7753, %v9355
      %v9357 = vsub.f32 1.0, %v9356
      %v9358 = vmul.f32 %v9355, %v9357
      %v9359 = vadd.f32 %v9355, %v9358
      %vm9360 = vweird.f32 %v7753
      %vm9361 = vweird.f32 %v9355
      %vm9362 = vmor %vm9360, %vm9361
      %v9363 = vsel %vm9362, %v9355, %v9359
      %v9364 = vand.u32 2147483647, %v7753
      %vm9365 = vcmp.eq.f32.partialorder %v9364, 8.507059e+37
      %v9366 = vand.u32 %v7753, 2147483648
      %v9367 = vor.u32 1.1754944e-38, %v9366
      %v9368 = vsel %vm9365, %v9367, %v9363
      %v9369 = vmul.f32 1.0, %v9368
      %v9370 = vrcp.pop %v7756
      %v9371 = vmul.f32 %v7756, %v9370
      %v9372 = vsub.f32 1.0, %v9371
      %v9373 = vmul.f32 %v9370, %v9372
      %v9374 = vadd.f32 %v9370, %v9373
      %vm9375 = vweird.f32 %v7756
      %vm9376 = vweird.f32 %v9370
      %vm9377 = vmor %vm9375, %vm9376
      %v9378 = vsel %vm9377, %v9370, %v9374
      %v9379 = vand.u32 2147483647, %v7756
      %vm9380 = vcmp.eq.f32.partialorder %v9379, 8.507059e+37
      %v9381 = vand.u32 %v7756, 2147483648
      %v9382 = vor.u32 1.1754944e-38, %v9381
      %v9383 = vsel %vm9380, %v9382, %v9378
      %v9384 = vmul.f32 1.0, %v9383
      %v9385 = vrcp.pop %v7759
      %v9386 = vmul.f32 %v7759, %v9385
      %v9387 = vsub.f32 1.0, %v9386
      %v9388 = vmul.f32 %v9385, %v9387
      %v9389 = vadd.f32 %v9385, %v9388
      %vm9390 = vweird.f32 %v7759
      %vm9391 = vweird.f32 %v9385
      %vm9392 = vmor %vm9390, %vm9391
      %v9393 = vsel %vm9392, %v9385, %v9389
      %v9394 = vand.u32 2147483647, %v7759
      %vm9395 = vcmp.eq.f32.partialorder %v9394, 8.507059e+37
      %v9396 = vand.u32 %v7759, 2147483648
      %v9397 = vor.u32 1.1754944e-38, %v9396
      %v9398 = vsel %vm9395, %v9397, %v9393
      %v9399 = vmul.f32 1.0, %v9398
      %v9400 = vrcp.pop %v7762
      %v9401 = vmul.f32 %v7762, %v9400
      %v9402 = vsub.f32 1.0, %v9401
      %v9403 = vmul.f32 %v9400, %v9402
      %v9404 = vadd.f32 %v9400, %v9403
      %vm9405 = vweird.f32 %v7762
      %vm9406 = vweird.f32 %v9400
      %vm9407 = vmor %vm9405, %vm9406
      %v9408 = vsel %vm9407, %v9400, %v9404
      %v9409 = vand.u32 2147483647, %v7762
      %vm9410 = vcmp.eq.f32.partialorder %v9409, 8.507059e+37
      %v9411 = vand.u32 %v7762, 2147483648
      %v9412 = vor.u32 1.1754944e-38, %v9411
      %v9413 = vsel %vm9410, %v9412, %v9408
      %v9414 = vmul.f32 1.0, %v9413
      %v9415 = vrcp.pop %v7765
      %v9416 = vmul.f32 %v7765, %v9415
      %v9417 = vsub.f32 1.0, %v9416
      %v9418 = vmul.f32 %v9415, %v9417
      %v9419 = vadd.f32 %v9415, %v9418
      %vm9420 = vweird.f32 %v7765
      %vm9421 = vweird.f32 %v9415
      %vm9422 = vmor %vm9420, %vm9421
      %v9423 = vsel %vm9422, %v9415, %v9419
      %v9424 = vand.u32 2147483647, %v7765
      %vm9425 = vcmp.eq.f32.partialorder %v9424, 8.507059e+37
      %v9426 = vand.u32 %v7765, 2147483648
      %v9427 = vor.u32 1.1754944e-38, %v9426
      %v9428 = vsel %vm9425, %v9427, %v9423
      %v9429 = vmul.f32 1.0, %v9428
      %v9430 = vrcp.pop %v7768
      %v9431 = vmul.f32 %v7768, %v9430
      %v9432 = vsub.f32 1.0, %v9431
      %v9433 = vmul.f32 %v9430, %v9432
      %v9434 = vadd.f32 %v9430, %v9433
      %vm9435 = vweird.f32 %v7768
      %vm9436 = vweird.f32 %v9430
      %vm9437 = vmor %vm9435, %vm9436
      %v9438 = vsel %vm9437, %v9430, %v9434
      %v9439 = vand.u32 2147483647, %v7768
      %vm9440 = vcmp.eq.f32.partialorder %v9439, 8.507059e+37
      %v9441 = vand.u32 %v7768, 2147483648
      %v9442 = vor.u32 1.1754944e-38, %v9441
      %v9443 = vsel %vm9440, %v9442, %v9438
      %v9444 = vmul.f32 1.0, %v9443
      %v9445 = vrcp.pop %v7771
      %v9446 = vmul.f32 %v7771, %v9445
      %v9447 = vsub.f32 1.0, %v9446
      %v9448 = vmul.f32 %v9445, %v9447
      %v9449 = vadd.f32 %v9445, %v9448
      %vm9450 = vweird.f32 %v7771
      %vm9451 = vweird.f32 %v9445
      %vm9452 = vmor %vm9450, %vm9451
      %v9453 = vsel %vm9452, %v9445, %v9449
      %v9454 = vand.u32 2147483647, %v7771
      %vm9455 = vcmp.eq.f32.partialorder %v9454, 8.507059e+37
      %v9456 = vand.u32 %v7771, 2147483648
      %v9457 = vor.u32 1.1754944e-38, %v9456
      %v9458 = vsel %vm9455, %v9457, %v9453
      %v9459 = vmul.f32 1.0, %v9458
      %v9460 = vrcp.pop %v7774
      %v9461 = vmul.f32 %v7774, %v9460
      %v9462 = vsub.f32 1.0, %v9461
      %v9463 = vmul.f32 %v9460, %v9462
      %v9464 = vadd.f32 %v9460, %v9463
      %vm9465 = vweird.f32 %v7774
      %vm9466 = vweird.f32 %v9460
      %vm9467 = vmor %vm9465, %vm9466
      %v9468 = vsel %vm9467, %v9460, %v9464
      %v9469 = vand.u32 2147483647, %v7774
      %vm9470 = vcmp.eq.f32.partialorder %v9469, 8.507059e+37
      %v9471 = vand.u32 %v7774, 2147483648
      %v9472 = vor.u32 1.1754944e-38, %v9471
      %v9473 = vsel %vm9470, %v9472, %v9468
      %v9474 = vmul.f32 1.0, %v9473
      %v9475 = vrcp.pop %v7777
      %v9476 = vmul.f32 %v7777, %v9475
      %v9477 = vsub.f32 1.0, %v9476
      %v9478 = vmul.f32 %v9475, %v9477
      %v9479 = vadd.f32 %v9475, %v9478
      %vm9480 = vweird.f32 %v7777
      %vm9481 = vweird.f32 %v9475
      %vm9482 = vmor %vm9480, %vm9481
      %v9483 = vsel %vm9482, %v9475, %v9479
      %v9484 = vand.u32 2147483647, %v7777
      %vm9485 = vcmp.eq.f32.partialorder %v9484, 8.507059e+37
      %v9486 = vand.u32 %v7777, 2147483648
      %v9487 = vor.u32 1.1754944e-38, %v9486
      %v9488 = vsel %vm9485, %v9487, %v9483
      %v9489 = vmul.f32 1.0, %v9488
      %v9490 = vrcp.pop %v7780
      %v9491 = vmul.f32 %v7780, %v9490
      %v9492 = vsub.f32 1.0, %v9491
      %v9493 = vmul.f32 %v9490, %v9492
      %v9494 = vadd.f32 %v9490, %v9493
      %vm9495 = vweird.f32 %v7780
      %vm9496 = vweird.f32 %v9490
      %vm9497 = vmor %vm9495, %vm9496
      %v9498 = vsel %vm9497, %v9490, %v9494
      %v9499 = vand.u32 2147483647, %v7780
      %vm9500 = vcmp.eq.f32.partialorder %v9499, 8.507059e+37
      %v9501 = vand.u32 %v7780, 2147483648
      %v9502 = vor.u32 1.1754944e-38, %v9501
      %v9503 = vsel %vm9500, %v9502, %v9498
      %v9504 = vmul.f32 1.0, %v9503
      %v9505 = vrcp.pop %v7783
      %v9506 = vmul.f32 %v7783, %v9505
      %v9507 = vsub.f32 1.0, %v9506
      %v9508 = vmul.f32 %v9505, %v9507
      %v9509 = vadd.f32 %v9505, %v9508
      %vm9510 = vweird.f32 %v7783
      %vm9511 = vweird.f32 %v9505
      %vm9512 = vmor %vm9510, %vm9511
      %v9513 = vsel %vm9512, %v9505, %v9509
      %v9514 = vand.u32 2147483647, %v7783
      %vm9515 = vcmp.eq.f32.partialorder %v9514, 8.507059e+37
      %v9516 = vand.u32 %v7783, 2147483648
      %v9517 = vor.u32 1.1754944e-38, %v9516
      %v9518 = vsel %vm9515, %v9517, %v9513
      %v9519 = vmul.f32 1.0, %v9518
      %v9520 = vrcp.pop %v7786
      %v9521 = vmul.f32 %v7786, %v9520
      %v9522 = vsub.f32 1.0, %v9521
      %v9523 = vmul.f32 %v9520, %v9522
      %v9524 = vadd.f32 %v9520, %v9523
      %vm9525 = vweird.f32 %v7786
      %vm9526 = vweird.f32 %v9520
      %vm9527 = vmor %vm9525, %vm9526
      %v9528 = vsel %vm9527, %v9520, %v9524
      %v9529 = vand.u32 2147483647, %v7786
      %vm9530 = vcmp.eq.f32.partialorder %v9529, 8.507059e+37
      %v9531 = vand.u32 %v7786, 2147483648
      %v9532 = vor.u32 1.1754944e-38, %v9531
      %v9533 = vsel %vm9530, %v9532, %v9528
      %v9534 = vmul.f32 1.0, %v9533
      %v9535 = vrcp.pop %v7789
      %v9536 = vmul.f32 %v7789, %v9535
      %v9537 = vsub.f32 1.0, %v9536
      %v9538 = vmul.f32 %v9535, %v9537
      %v9539 = vadd.f32 %v9535, %v9538
      %vm9540 = vweird.f32 %v7789
      %vm9541 = vweird.f32 %v9535
      %vm9542 = vmor %vm9540, %vm9541
      %v9543 = vsel %vm9542, %v9535, %v9539
      %v9544 = vand.u32 2147483647, %v7789
      %vm9545 = vcmp.eq.f32.partialorder %v9544, 8.507059e+37
      %v9546 = vand.u32 %v7789, 2147483648
      %v9547 = vor.u32 1.1754944e-38, %v9546
      %v9548 = vsel %vm9545, %v9547, %v9543
      %v9549 = vmul.f32 1.0, %v9548
      %v9550 = vrcp.pop %v7792
      %v9551 = vmul.f32 %v7792, %v9550
      %v9552 = vsub.f32 1.0, %v9551
      %v9553 = vmul.f32 %v9550, %v9552
      %v9554 = vadd.f32 %v9550, %v9553
      %vm9555 = vweird.f32 %v7792
      %vm9556 = vweird.f32 %v9550
      %vm9557 = vmor %vm9555, %vm9556
      %v9558 = vsel %vm9557, %v9550, %v9554
      %v9559 = vand.u32 2147483647, %v7792
      %vm9560 = vcmp.eq.f32.partialorder %v9559, 8.507059e+37
      %v9561 = vand.u32 %v7792, 2147483648
      %v9562 = vor.u32 1.1754944e-38, %v9561
      %v9563 = vsel %vm9560, %v9562, %v9558
      %v9564 = vmul.f32 1.0, %v9563
      %v9565 = vrcp.pop %v7795
      %v9566 = vmul.f32 %v7795, %v9565
      %v9567 = vsub.f32 1.0, %v9566
      %v9568 = vmul.f32 %v9565, %v9567
      %v9569 = vadd.f32 %v9565, %v9568
      %vm9570 = vweird.f32 %v7795
      %vm9571 = vweird.f32 %v9565
      %vm9572 = vmor %vm9570, %vm9571
      %v9573 = vsel %vm9572, %v9565, %v9569
      %v9574 = vand.u32 2147483647, %v7795
      %vm9575 = vcmp.eq.f32.partialorder %v9574, 8.507059e+37
      %v9576 = vand.u32 %v7795, 2147483648
      %v9577 = vor.u32 1.1754944e-38, %v9576
      %v9578 = vsel %vm9575, %v9577, %v9573
      %v9579 = vmul.f32 1.0, %v9578
      %v9580 = vrcp.pop %v7798
      %v9581 = vmul.f32 %v7798, %v9580
      %v9582 = vsub.f32 1.0, %v9581
      %v9583 = vmul.f32 %v9580, %v9582
      %v9584 = vadd.f32 %v9580, %v9583
      %vm9585 = vweird.f32 %v7798
      %vm9586 = vweird.f32 %v9580
      %vm9587 = vmor %vm9585, %vm9586
      %v9588 = vsel %vm9587, %v9580, %v9584
      %v9589 = vand.u32 2147483647, %v7798
      %vm9590 = vcmp.eq.f32.partialorder %v9589, 8.507059e+37
      %v9591 = vand.u32 %v7798, 2147483648
      %v9592 = vor.u32 1.1754944e-38, %v9591
      %v9593 = vsel %vm9590, %v9592, %v9588
      %v9594 = vmul.f32 1.0, %v9593
      %v9595 = vrcp.pop %v7801
      %v9596 = vmul.f32 %v7801, %v9595
      %v9597 = vsub.f32 1.0, %v9596
      %v9598 = vmul.f32 %v9595, %v9597
      %v9599 = vadd.f32 %v9595, %v9598
      %vm9600 = vweird.f32 %v7801
      %vm9601 = vweird.f32 %v9595
      %vm9602 = vmor %vm9600, %vm9601
      %v9603 = vsel %vm9602, %v9595, %v9599
      %v9604 = vand.u32 2147483647, %v7801
      %vm9605 = vcmp.eq.f32.partialorder %v9604, 8.507059e+37
      %v9606 = vand.u32 %v7801, 2147483648
      %v9607 = vor.u32 1.1754944e-38, %v9606
      %v9608 = vsel %vm9605, %v9607, %v9603
      %v9609 = vmul.f32 1.0, %v9608
      %v9610 = vrcp.pop %v7804
      %v9611 = vmul.f32 %v7804, %v9610
      %v9612 = vsub.f32 1.0, %v9611
      %v9613 = vmul.f32 %v9610, %v9612
      %v9614 = vadd.f32 %v9610, %v9613
      %vm9615 = vweird.f32 %v7804
      %vm9616 = vweird.f32 %v9610
      %vm9617 = vmor %vm9615, %vm9616
      %v9618 = vsel %vm9617, %v9610, %v9614
      %v9619 = vand.u32 2147483647, %v7804
      %vm9620 = vcmp.eq.f32.partialorder %v9619, 8.507059e+37
      %v9621 = vand.u32 %v7804, 2147483648
      %v9622 = vor.u32 1.1754944e-38, %v9621
      %v9623 = vsel %vm9620, %v9622, %v9618
      %v9624 = vmul.f32 1.0, %v9623
      %v9625 = vrcp.pop %v7807
      %v9626 = vmul.f32 %v7807, %v9625
      %v9627 = vsub.f32 1.0, %v9626
      %v9628 = vmul.f32 %v9625, %v9627
      %v9629 = vadd.f32 %v9625, %v9628
      %vm9630 = vweird.f32 %v7807
      %vm9631 = vweird.f32 %v9625
      %vm9632 = vmor %vm9630, %vm9631
      %v9633 = vsel %vm9632, %v9625, %v9629
      %v9634 = vand.u32 2147483647, %v7807
      %vm9635 = vcmp.eq.f32.partialorder %v9634, 8.507059e+37
      %v9636 = vand.u32 %v7807, 2147483648
      %v9637 = vor.u32 1.1754944e-38, %v9636
      %v9638 = vsel %vm9635, %v9637, %v9633
      %v9639 = vmul.f32 1.0, %v9638
      %v9640 = vrcp.pop %v7810
      %v9641 = vmul.f32 %v7810, %v9640
      %v9642 = vsub.f32 1.0, %v9641
      %v9643 = vmul.f32 %v9640, %v9642
      %v9644 = vadd.f32 %v9640, %v9643
      %vm9645 = vweird.f32 %v7810
      %vm9646 = vweird.f32 %v9640
      %vm9647 = vmor %vm9645, %vm9646
      %v9648 = vsel %vm9647, %v9640, %v9644
      %v9649 = vand.u32 2147483647, %v7810
      %vm9650 = vcmp.eq.f32.partialorder %v9649, 8.507059e+37
      %v9651 = vand.u32 %v7810, 2147483648
      %v9652 = vor.u32 1.1754944e-38, %v9651
      %v9653 = vsel %vm9650, %v9652, %v9648
      %v9654 = vmul.f32 1.0, %v9653
      %v9655 = vrcp.pop %v7813
      %v9656 = vmul.f32 %v7813, %v9655
      %v9657 = vsub.f32 1.0, %v9656
      %v9658 = vmul.f32 %v9655, %v9657
      %v9659 = vadd.f32 %v9655, %v9658
      %vm9660 = vweird.f32 %v7813
      %vm9661 = vweird.f32 %v9655
      %vm9662 = vmor %vm9660, %vm9661
      %v9663 = vsel %vm9662, %v9655, %v9659
      %v9664 = vand.u32 2147483647, %v7813
      %vm9665 = vcmp.eq.f32.partialorder %v9664, 8.507059e+37
      %v9666 = vand.u32 %v7813, 2147483648
      %v9667 = vor.u32 1.1754944e-38, %v9666
      %v9668 = vsel %vm9665, %v9667, %v9663
      %v9669 = vmul.f32 1.0, %v9668
      %v9670 = vrcp.pop %v7816
      %v9671 = vmul.f32 %v7816, %v9670
      %v9672 = vsub.f32 1.0, %v9671
      %v9673 = vmul.f32 %v9670, %v9672
      %v9674 = vadd.f32 %v9670, %v9673
      %vm9675 = vweird.f32 %v7816
      %vm9676 = vweird.f32 %v9670
      %vm9677 = vmor %vm9675, %vm9676
      %v9678 = vsel %vm9677, %v9670, %v9674
      %v9679 = vand.u32 2147483647, %v7816
      %vm9680 = vcmp.eq.f32.partialorder %v9679, 8.507059e+37
      %v9681 = vand.u32 %v7816, 2147483648
      %v9682 = vor.u32 1.1754944e-38, %v9681
      %v9683 = vsel %vm9680, %v9682, %v9678
      %v9684 = vmul.f32 1.0, %v9683
      %v9685 = vrcp.pop %v7819
      %v9686 = vmul.f32 %v7819, %v9685
      %v9687 = vsub.f32 1.0, %v9686
      %v9688 = vmul.f32 %v9685, %v9687
      %v9689 = vadd.f32 %v9685, %v9688
      %vm9690 = vweird.f32 %v7819
      %vm9691 = vweird.f32 %v9685
      %vm9692 = vmor %vm9690, %vm9691
      %v9693 = vsel %vm9692, %v9685, %v9689
      %v9694 = vand.u32 2147483647, %v7819
      %vm9695 = vcmp.eq.f32.partialorder %v9694, 8.507059e+37
      %v9696 = vand.u32 %v7819, 2147483648
      %v9697 = vor.u32 1.1754944e-38, %v9696
      %v9698 = vsel %vm9695, %v9697, %v9693
      %v9699 = vmul.f32 1.0, %v9698
      %v9700 = vrcp.pop %v7822
      %v9701 = vmul.f32 %v7822, %v9700
      %v9702 = vsub.f32 1.0, %v9701
      %v9703 = vmul.f32 %v9700, %v9702
      %v9704 = vadd.f32 %v9700, %v9703
      %vm9705 = vweird.f32 %v7822
      %vm9706 = vweird.f32 %v9700
      %vm9707 = vmor %vm9705, %vm9706
      %v9708 = vsel %vm9707, %v9700, %v9704
      %v9709 = vand.u32 2147483647, %v7822
      %vm9710 = vcmp.eq.f32.partialorder %v9709, 8.507059e+37
      %v9711 = vand.u32 %v7822, 2147483648
      %v9712 = vor.u32 1.1754944e-38, %v9711
      %v9713 = vsel %vm9710, %v9712, %v9708
      %v9714 = vmul.f32 1.0, %v9713
      %v9715 = vrcp.pop %v7825
      %v9716 = vmul.f32 %v7825, %v9715
      %v9717 = vsub.f32 1.0, %v9716
      %v9718 = vmul.f32 %v9715, %v9717
      %v9719 = vadd.f32 %v9715, %v9718
      %vm9720 = vweird.f32 %v7825
      %vm9721 = vweird.f32 %v9715
      %vm9722 = vmor %vm9720, %vm9721
      %v9723 = vsel %vm9722, %v9715, %v9719
      %v9724 = vand.u32 2147483647, %v7825
      %vm9725 = vcmp.eq.f32.partialorder %v9724, 8.507059e+37
      %v9726 = vand.u32 %v7825, 2147483648
      %v9727 = vor.u32 1.1754944e-38, %v9726
      %v9728 = vsel %vm9725, %v9727, %v9723
      %v9729 = vmul.f32 1.0, %v9728
      %v9730 = vrcp.pop %v7828
      %v9731 = vmul.f32 %v7828, %v9730
      %v9732 = vsub.f32 1.0, %v9731
      %v9733 = vmul.f32 %v9730, %v9732
      %v9734 = vadd.f32 %v9730, %v9733
      %vm9735 = vweird.f32 %v7828
      %vm9736 = vweird.f32 %v9730
      %vm9737 = vmor %vm9735, %vm9736
      %v9738 = vsel %vm9737, %v9730, %v9734
      %v9739 = vand.u32 2147483647, %v7828
      %vm9740 = vcmp.eq.f32.partialorder %v9739, 8.507059e+37
      %v9741 = vand.u32 %v7828, 2147483648
      %v9742 = vor.u32 1.1754944e-38, %v9741
      %v9743 = vsel %vm9740, %v9742, %v9738
      %v9744 = vmul.f32 1.0, %v9743
      %v9745 = vrcp.pop %v7831
      %v9746 = vmul.f32 %v7831, %v9745
      %v9747 = vsub.f32 1.0, %v9746
      %v9748 = vmul.f32 %v9745, %v9747
      %v9749 = vadd.f32 %v9745, %v9748
      %vm9750 = vweird.f32 %v7831
      %vm9751 = vweird.f32 %v9745
      %vm9752 = vmor %vm9750, %vm9751
      %v9753 = vsel %vm9752, %v9745, %v9749
      %v9754 = vand.u32 2147483647, %v7831
      %vm9755 = vcmp.eq.f32.partialorder %v9754, 8.507059e+37
      %v9756 = vand.u32 %v7831, 2147483648
      %v9757 = vor.u32 1.1754944e-38, %v9756
      %v9758 = vsel %vm9755, %v9757, %v9753
      %v9759 = vmul.f32 1.0, %v9758
      %v9760 = vrcp.pop %v7834
      %v9761 = vmul.f32 %v7834, %v9760
      %v9762 = vsub.f32 1.0, %v9761
      %v9763 = vmul.f32 %v9760, %v9762
      %v9764 = vadd.f32 %v9760, %v9763
      %vm9765 = vweird.f32 %v7834
      %vm9766 = vweird.f32 %v9760
      %vm9767 = vmor %vm9765, %vm9766
      %v9768 = vsel %vm9767, %v9760, %v9764
      %v9769 = vand.u32 2147483647, %v7834
      %vm9770 = vcmp.eq.f32.partialorder %v9769, 8.507059e+37
      %v9771 = vand.u32 %v7834, 2147483648
      %v9772 = vor.u32 1.1754944e-38, %v9771
      %v9773 = vsel %vm9770, %v9772, %v9768
      %v9774 = vmul.f32 1.0, %v9773
      %v9775 = vrcp.pop %v7837
      %v9776 = vmul.f32 %v7837, %v9775
      %v9777 = vsub.f32 1.0, %v9776
      %v9778 = vmul.f32 %v9775, %v9777
      %v9779 = vadd.f32 %v9775, %v9778
      %vm9780 = vweird.f32 %v7837
      %vm9781 = vweird.f32 %v9775
      %vm9782 = vmor %vm9780, %vm9781
      %v9783 = vsel %vm9782, %v9775, %v9779
      %v9784 = vand.u32 2147483647, %v7837
      %vm9785 = vcmp.eq.f32.partialorder %v9784, 8.507059e+37
      %v9786 = vand.u32 %v7837, 2147483648
      %v9787 = vor.u32 1.1754944e-38, %v9786
      %v9788 = vsel %vm9785, %v9787, %v9783
      %v9789 = vmul.f32 1.0, %v9788
      %v9790 = vrcp.pop %v7840
      %v9791 = vmul.f32 %v7840, %v9790
      %v9792 = vsub.f32 1.0, %v9791
      %v9793 = vmul.f32 %v9790, %v9792
      %v9794 = vadd.f32 %v9790, %v9793
      %vm9795 = vweird.f32 %v7840
      %vm9796 = vweird.f32 %v9790
      %vm9797 = vmor %vm9795, %vm9796
      %v9798 = vsel %vm9797, %v9790, %v9794
      %v9799 = vand.u32 2147483647, %v7840
      %vm9800 = vcmp.eq.f32.partialorder %v9799, 8.507059e+37
      %v9801 = vand.u32 %v7840, 2147483648
      %v9802 = vor.u32 1.1754944e-38, %v9801
      %v9803 = vsel %vm9800, %v9802, %v9798
      %v9804 = vmul.f32 1.0, %v9803
      %v9805 = vrcp.pop %v7843
      %v9806 = vmul.f32 %v7843, %v9805
      %v9807 = vsub.f32 1.0, %v9806
      %v9808 = vmul.f32 %v9805, %v9807
      %v9809 = vadd.f32 %v9805, %v9808
      %vm9810 = vweird.f32 %v7843
      %vm9811 = vweird.f32 %v9805
      %vm9812 = vmor %vm9810, %vm9811
      %v9813 = vsel %vm9812, %v9805, %v9809
      %v9814 = vand.u32 2147483647, %v7843
      %vm9815 = vcmp.eq.f32.partialorder %v9814, 8.507059e+37
      %v9816 = vand.u32 %v7843, 2147483648
      %v9817 = vor.u32 1.1754944e-38, %v9816
      %v9818 = vsel %vm9815, %v9817, %v9813
      %v9819 = vmul.f32 1.0, %v9818
      %v9820 = vrcp.pop %v7846
      %v9821 = vmul.f32 %v7846, %v9820
      %v9822 = vsub.f32 1.0, %v9821
      %v9823 = vmul.f32 %v9820, %v9822
      %v9824 = vadd.f32 %v9820, %v9823
      %vm9825 = vweird.f32 %v7846
      %vm9826 = vweird.f32 %v9820
      %vm9827 = vmor %vm9825, %vm9826
      %v9828 = vsel %vm9827, %v9820, %v9824
      %v9829 = vand.u32 2147483647, %v7846
      %vm9830 = vcmp.eq.f32.partialorder %v9829, 8.507059e+37
      %v9831 = vand.u32 %v7846, 2147483648
      %v9832 = vor.u32 1.1754944e-38, %v9831
      %v9833 = vsel %vm9830, %v9832, %v9828
      %v9834 = vmul.f32 1.0, %v9833
      %v9835 = vrcp.pop %v7849
      %v9836 = vmul.f32 %v7849, %v9835
      %v9837 = vsub.f32 1.0, %v9836
      %v9838 = vmul.f32 %v9835, %v9837
      %v9839 = vadd.f32 %v9835, %v9838
      %vm9840 = vweird.f32 %v7849
      %vm9841 = vweird.f32 %v9835
      %vm9842 = vmor %vm9840, %vm9841
      %v9843 = vsel %vm9842, %v9835, %v9839
      %v9844 = vand.u32 2147483647, %v7849
      %vm9845 = vcmp.eq.f32.partialorder %v9844, 8.507059e+37
      %v9846 = vand.u32 %v7849, 2147483648
      %v9847 = vor.u32 1.1754944e-38, %v9846
      %v9848 = vsel %vm9845, %v9847, %v9843
      %v9849 = vmul.f32 1.0, %v9848
      %v9850 = vrcp.pop %v7852
      %v9851 = vmul.f32 %v7852, %v9850
      %v9852 = vsub.f32 1.0, %v9851
      %v9853 = vmul.f32 %v9850, %v9852
      %v9854 = vadd.f32 %v9850, %v9853
      %vm9855 = vweird.f32 %v7852
      %vm9856 = vweird.f32 %v9850
      %vm9857 = vmor %vm9855, %vm9856
      %v9858 = vsel %vm9857, %v9850, %v9854
      %v9859 = vand.u32 2147483647, %v7852
      %vm9860 = vcmp.eq.f32.partialorder %v9859, 8.507059e+37
      %v9861 = vand.u32 %v7852, 2147483648
      %v9862 = vor.u32 1.1754944e-38, %v9861
      %v9863 = vsel %vm9860, %v9862, %v9858
      %v9864 = vmul.f32 1.0, %v9863
      %v9865 = vrcp.pop %v7855
      %v9866 = vmul.f32 %v7855, %v9865
      %v9867 = vsub.f32 1.0, %v9866
      %v9868 = vmul.f32 %v9865, %v9867
      %v9869 = vadd.f32 %v9865, %v9868
      %vm9870 = vweird.f32 %v7855
      %vm9871 = vweird.f32 %v9865
      %vm9872 = vmor %vm9870, %vm9871
      %v9873 = vsel %vm9872, %v9865, %v9869
      %v9874 = vand.u32 2147483647, %v7855
      %vm9875 = vcmp.eq.f32.partialorder %v9874, 8.507059e+37
      %v9876 = vand.u32 %v7855, 2147483648
      %v9877 = vor.u32 1.1754944e-38, %v9876
      %v9878 = vsel %vm9875, %v9877, %v9873
      %v9879 = vmul.f32 1.0, %v9878
      %v9880 = vrcp.pop %v7858
      %v9881 = vmul.f32 %v7858, %v9880
      %v9882 = vsub.f32 1.0, %v9881
      %v9883 = vmul.f32 %v9880, %v9882
      %v9884 = vadd.f32 %v9880, %v9883
      %vm9885 = vweird.f32 %v7858
      %vm9886 = vweird.f32 %v9880
      %vm9887 = vmor %vm9885, %vm9886
      %v9888 = vsel %vm9887, %v9880, %v9884
      %v9889 = vand.u32 2147483647, %v7858
      %vm9890 = vcmp.eq.f32.partialorder %v9889, 8.507059e+37
      %v9891 = vand.u32 %v7858, 2147483648
      %v9892 = vor.u32 1.1754944e-38, %v9891
      %v9893 = vsel %vm9890, %v9892, %v9888
      %v9894 = vmul.f32 1.0, %v9893
      %v9895 = vrcp.pop %v7861
      %v9896 = vmul.f32 %v7861, %v9895
      %v9897 = vsub.f32 1.0, %v9896
      %v9898 = vmul.f32 %v9895, %v9897
      %v9899 = vadd.f32 %v9895, %v9898
      %vm9900 = vweird.f32 %v7861
      %vm9901 = vweird.f32 %v9895
      %vm9902 = vmor %vm9900, %vm9901
      %v9903 = vsel %vm9902, %v9895, %v9899
      %v9904 = vand.u32 2147483647, %v7861
      %vm9905 = vcmp.eq.f32.partialorder %v9904, 8.507059e+37
      %v9906 = vand.u32 %v7861, 2147483648
      %v9907 = vor.u32 1.1754944e-38, %v9906
      %v9908 = vsel %vm9905, %v9907, %v9903
      %v9909 = vmul.f32 1.0, %v9908
      %v9910 = vrcp.pop %v7864
      %v9911 = vmul.f32 %v7864, %v9910
      %v9912 = vsub.f32 1.0, %v9911
      %v9913 = vmul.f32 %v9910, %v9912
      %v9914 = vadd.f32 %v9910, %v9913
      %vm9915 = vweird.f32 %v7864
      %vm9916 = vweird.f32 %v9910
      %vm9917 = vmor %vm9915, %vm9916
      %v9918 = vsel %vm9917, %v9910, %v9914
      %v9919 = vand.u32 2147483647, %v7864
      %vm9920 = vcmp.eq.f32.partialorder %v9919, 8.507059e+37
      %v9921 = vand.u32 %v7864, 2147483648
      %v9922 = vor.u32 1.1754944e-38, %v9921
      %v9923 = vsel %vm9920, %v9922, %v9918
      %v9924 = vmul.f32 1.0, %v9923
      %v9925 = vrcp.pop %v7867
      %v9926 = vmul.f32 %v7867, %v9925
      %v9927 = vsub.f32 1.0, %v9926
      %v9928 = vmul.f32 %v9925, %v9927
      %v9929 = vadd.f32 %v9925, %v9928
      %vm9930 = vweird.f32 %v7867
      %vm9931 = vweird.f32 %v9925
      %vm9932 = vmor %vm9930, %vm9931
      %v9933 = vsel %vm9932, %v9925, %v9929
      %v9934 = vand.u32 2147483647, %v7867
      %vm9935 = vcmp.eq.f32.partialorder %v9934, 8.507059e+37
      %v9936 = vand.u32 %v7867, 2147483648
      %v9937 = vor.u32 1.1754944e-38, %v9936
      %v9938 = vsel %vm9935, %v9937, %v9933
      %v9939 = vmul.f32 1.0, %v9938
      %v9940 = vrcp.pop %v7870
      %v9941 = vmul.f32 %v7870, %v9940
      %v9942 = vsub.f32 1.0, %v9941
      %v9943 = vmul.f32 %v9940, %v9942
      %v9944 = vadd.f32 %v9940, %v9943
      %vm9945 = vweird.f32 %v7870
      %vm9946 = vweird.f32 %v9940
      %vm9947 = vmor %vm9945, %vm9946
      %v9948 = vsel %vm9947, %v9940, %v9944
      %v9949 = vand.u32 2147483647, %v7870
      %vm9950 = vcmp.eq.f32.partialorder %v9949, 8.507059e+37
      %v9951 = vand.u32 %v7870, 2147483648
      %v9952 = vor.u32 1.1754944e-38, %v9951
      %v9953 = vsel %vm9950, %v9952, %v9948
      %v9954 = vmul.f32 1.0, %v9953
      %v9955 = vrcp.pop %v7873
      %v9956 = vmul.f32 %v7873, %v9955
      %v9957 = vsub.f32 1.0, %v9956
      %v9958 = vmul.f32 %v9955, %v9957
      %v9959 = vadd.f32 %v9955, %v9958
      %vm9960 = vweird.f32 %v7873
      %vm9961 = vweird.f32 %v9955
      %vm9962 = vmor %vm9960, %vm9961
      %v9963 = vsel %vm9962, %v9955, %v9959
      %v9964 = vand.u32 2147483647, %v7873
      %vm9965 = vcmp.eq.f32.partialorder %v9964, 8.507059e+37
      %v9966 = vand.u32 %v7873, 2147483648
      %v9967 = vor.u32 1.1754944e-38, %v9966
      %v9968 = vsel %vm9965, %v9967, %v9963
      %v9969 = vmul.f32 1.0, %v9968
      %v9970 = vrcp.pop %v7876
      %v9971 = vmul.f32 %v7876, %v9970
      %v9972 = vsub.f32 1.0, %v9971
      %v9973 = vmul.f32 %v9970, %v9972
      %v9974 = vadd.f32 %v9970, %v9973
      %vm9975 = vweird.f32 %v7876
      %vm9976 = vweird.f32 %v9970
      %vm9977 = vmor %vm9975, %vm9976
      %v9978 = vsel %vm9977, %v9970, %v9974
      %v9979 = vand.u32 2147483647, %v7876
      %vm9980 = vcmp.eq.f32.partialorder %v9979, 8.507059e+37
      %v9981 = vand.u32 %v7876, 2147483648
      %v9982 = vor.u32 1.1754944e-38, %v9981
      %v9983 = vsel %vm9980, %v9982, %v9978
      %v9984 = vmul.f32 1.0, %v9983
      %v9985 = vrcp.pop %v7879
      %v9986 = vmul.f32 %v7879, %v9985
      %v9987 = vsub.f32 1.0, %v9986
      %v9988 = vmul.f32 %v9985, %v9987
      %v9989 = vadd.f32 %v9985, %v9988
      %vm9990 = vweird.f32 %v7879
      %vm9991 = vweird.f32 %v9985
      %vm9992 = vmor %vm9990, %vm9991
      %v9993 = vsel %vm9992, %v9985, %v9989
      %v9994 = vand.u32 2147483647, %v7879
      %vm9995 = vcmp.eq.f32.partialorder %v9994, 8.507059e+37
      %v9996 = vand.u32 %v7879, 2147483648
      %v9997 = vor.u32 1.1754944e-38, %v9996
      %v9998 = vsel %vm9995, %v9997, %v9993
      %v9999 = vmul.f32 1.0, %v9998
      %v10000 = vrcp.pop %v7882
      %v10001 = vmul.f32 %v7882, %v10000
      %v10002 = vsub.f32 1.0, %v10001
      %v10003 = vmul.f32 %v10000, %v10002
      %v10004 = vadd.f32 %v10000, %v10003
      %vm10005 = vweird.f32 %v7882
      %vm10006 = vweird.f32 %v10000
      %vm10007 = vmor %vm10005, %vm10006
      %v10008 = vsel %vm10007, %v10000, %v10004
      %v10009 = vand.u32 2147483647, %v7882
      %vm10010 = vcmp.eq.f32.partialorder %v10009, 8.507059e+37
      %v10011 = vand.u32 %v7882, 2147483648
      %v10012 = vor.u32 1.1754944e-38, %v10011
      %v10013 = vsel %vm10010, %v10012, %v10008
      %v10014 = vmul.f32 1.0, %v10013
      %v10015 = vrcp.pop %v7885
      %v10016 = vmul.f32 %v7885, %v10015
      %v10017 = vsub.f32 1.0, %v10016
      %v10018 = vmul.f32 %v10015, %v10017
      %v10019 = vadd.f32 %v10015, %v10018
      %vm10020 = vweird.f32 %v7885
      %vm10021 = vweird.f32 %v10015
      %vm10022 = vmor %vm10020, %vm10021
      %v10023 = vsel %vm10022, %v10015, %v10019
      %v10024 = vand.u32 2147483647, %v7885
      %vm10025 = vcmp.eq.f32.partialorder %v10024, 8.507059e+37
      %v10026 = vand.u32 %v7885, 2147483648
      %v10027 = vor.u32 1.1754944e-38, %v10026
      %v10028 = vsel %vm10025, %v10027, %v10023
      %v10029 = vmul.f32 1.0, %v10028
      %v10030 = vrcp.pop %v7888
      %v10031 = vmul.f32 %v7888, %v10030
      %v10032 = vsub.f32 1.0, %v10031
      %v10033 = vmul.f32 %v10030, %v10032
      %v10034 = vadd.f32 %v10030, %v10033
      %vm10035 = vweird.f32 %v7888
      %vm10036 = vweird.f32 %v10030
      %vm10037 = vmor %vm10035, %vm10036
      %v10038 = vsel %vm10037, %v10030, %v10034
      %v10039 = vand.u32 2147483647, %v7888
      %vm10040 = vcmp.eq.f32.partialorder %v10039, 8.507059e+37
      %v10041 = vand.u32 %v7888, 2147483648
      %v10042 = vor.u32 1.1754944e-38, %v10041
      %v10043 = vsel %vm10040, %v10042, %v10038
      %v10044 = vmul.f32 1.0, %v10043
      %v10045 = vrcp.pop %v7891
      %v10046 = vmul.f32 %v7891, %v10045
      %v10047 = vsub.f32 1.0, %v10046
      %v10048 = vmul.f32 %v10045, %v10047
      %v10049 = vadd.f32 %v10045, %v10048
      %vm10050 = vweird.f32 %v7891
      %vm10051 = vweird.f32 %v10045
      %vm10052 = vmor %vm10050, %vm10051
      %v10053 = vsel %vm10052, %v10045, %v10049
      %v10054 = vand.u32 2147483647, %v7891
      %vm10055 = vcmp.eq.f32.partialorder %v10054, 8.507059e+37
      %v10056 = vand.u32 %v7891, 2147483648
      %v10057 = vor.u32 1.1754944e-38, %v10056
      %v10058 = vsel %vm10055, %v10057, %v10053
      %v10059 = vmul.f32 1.0, %v10058
      %v10060 = vrcp.pop %v7894
      %v10061 = vmul.f32 %v7894, %v10060
      %v10062 = vsub.f32 1.0, %v10061
      %v10063 = vmul.f32 %v10060, %v10062
      %v10064 = vadd.f32 %v10060, %v10063
      %vm10065 = vweird.f32 %v7894
      %vm10066 = vweird.f32 %v10060
      %vm10067 = vmor %vm10065, %vm10066
      %v10068 = vsel %vm10067, %v10060, %v10064
      %v10069 = vand.u32 2147483647, %v7894
      %vm10070 = vcmp.eq.f32.partialorder %v10069, 8.507059e+37
      %v10071 = vand.u32 %v7894, 2147483648
      %v10072 = vor.u32 1.1754944e-38, %v10071
      %v10073 = vsel %vm10070, %v10072, %v10068
      %v10074 = vmul.f32 1.0, %v10073
      %v10075 = vrcp.pop %v7897
      %v10076 = vmul.f32 %v7897, %v10075
      %v10077 = vsub.f32 1.0, %v10076
      %v10078 = vmul.f32 %v10075, %v10077
      %v10079 = vadd.f32 %v10075, %v10078
      %vm10080 = vweird.f32 %v7897
      %vm10081 = vweird.f32 %v10075
      %vm10082 = vmor %vm10080, %vm10081
      %v10083 = vsel %vm10082, %v10075, %v10079
      %v10084 = vand.u32 2147483647, %v7897
      %vm10085 = vcmp.eq.f32.partialorder %v10084, 8.507059e+37
      %v10086 = vand.u32 %v7897, 2147483648
      %v10087 = vor.u32 1.1754944e-38, %v10086
      %v10088 = vsel %vm10085, %v10087, %v10083
      %v10089 = vmul.f32 1.0, %v10088
      %v10090 = vrcp.pop %v7900
      %v10091 = vmul.f32 %v7900, %v10090
      %v10092 = vsub.f32 1.0, %v10091
      %v10093 = vmul.f32 %v10090, %v10092
      %v10094 = vadd.f32 %v10090, %v10093
      %vm10095 = vweird.f32 %v7900
      %vm10096 = vweird.f32 %v10090
      %vm10097 = vmor %vm10095, %vm10096
      %v10098 = vsel %vm10097, %v10090, %v10094
      %v10099 = vand.u32 2147483647, %v7900
      %vm10100 = vcmp.eq.f32.partialorder %v10099, 8.507059e+37
      %v10101 = vand.u32 %v7900, 2147483648
      %v10102 = vor.u32 1.1754944e-38, %v10101
      %v10103 = vsel %vm10100, %v10102, %v10098
      %v10104 = vmul.f32 1.0, %v10103
      %v10105 = vrcp.pop %v7903
      %v10106 = vmul.f32 %v7903, %v10105
      %v10107 = vsub.f32 1.0, %v10106
      %v10108 = vmul.f32 %v10105, %v10107
      %v10109 = vadd.f32 %v10105, %v10108
      %vm10110 = vweird.f32 %v7903
      %vm10111 = vweird.f32 %v10105
      %vm10112 = vmor %vm10110, %vm10111
      %v10113 = vsel %vm10112, %v10105, %v10109
      %v10114 = vand.u32 2147483647, %v7903
      %vm10115 = vcmp.eq.f32.partialorder %v10114, 8.507059e+37
      %v10116 = vand.u32 %v7903, 2147483648
      %v10117 = vor.u32 1.1754944e-38, %v10116
      %v10118 = vsel %vm10115, %v10117, %v10113
      %v10119 = vmul.f32 1.0, %v10118
      %v10120 = vrcp.pop %v7906
      %v10121 = vmul.f32 %v7906, %v10120
      %v10122 = vsub.f32 1.0, %v10121
      %v10123 = vmul.f32 %v10120, %v10122
      %v10124 = vadd.f32 %v10120, %v10123
      %vm10125 = vweird.f32 %v7906
      %vm10126 = vweird.f32 %v10120
      %vm10127 = vmor %vm10125, %vm10126
      %v10128 = vsel %vm10127, %v10120, %v10124
      %v10129 = vand.u32 2147483647, %v7906
      %vm10130 = vcmp.eq.f32.partialorder %v10129, 8.507059e+37
      %v10131 = vand.u32 %v7906, 2147483648
      %v10132 = vor.u32 1.1754944e-38, %v10131
      %v10133 = vsel %vm10130, %v10132, %v10128
      %v10134 = vmul.f32 1.0, %v10133
      %v10135 = vrcp.pop %v7909
      %v10136 = vmul.f32 %v7909, %v10135
      %v10137 = vsub.f32 1.0, %v10136
      %v10138 = vmul.f32 %v10135, %v10137
      %v10139 = vadd.f32 %v10135, %v10138
      %vm10140 = vweird.f32 %v7909
      %vm10141 = vweird.f32 %v10135
      %vm10142 = vmor %vm10140, %vm10141
      %v10143 = vsel %vm10142, %v10135, %v10139
      %v10144 = vand.u32 2147483647, %v7909
      %vm10145 = vcmp.eq.f32.partialorder %v10144, 8.507059e+37
      %v10146 = vand.u32 %v7909, 2147483648
      %v10147 = vor.u32 1.1754944e-38, %v10146
      %v10148 = vsel %vm10145, %v10147, %v10143
      %v10149 = vmul.f32 1.0, %v10148
      %v10150 = vmul.f32 %v7990, %v9204
      %v10151 = vmul.f32 %v8009, %v9219
      %v10152 = vmul.f32 %v8028, %v9234
      %v10153 = vmul.f32 %v8047, %v9249
      %v10154 = vmul.f32 %v8066, %v9264
      %v10155 = vmul.f32 %v8085, %v9279
      %v10156 = vmul.f32 %v8104, %v9294
      %v10157 = vmul.f32 %v8123, %v9309
      %v10158 = vmul.f32 %v8142, %v9324
      %v10159 = vmul.f32 %v8161, %v9339
      %v10160 = vmul.f32 %v8180, %v9354
      %v10161 = vmul.f32 %v8199, %v9369
      %v10162 = vmul.f32 %v8218, %v9384
      %v10163 = vmul.f32 %v8237, %v9399
      %v10164 = vmul.f32 %v8256, %v9414
      %v10165 = vmul.f32 %v8275, %v9429
      %v10166 = vmul.f32 %v8294, %v9444
      %v10167 = vmul.f32 %v8313, %v9459
      %v10168 = vmul.f32 %v8332, %v9474
      %v10169 = vmul.f32 %v8351, %v9489
      %v10170 = vmul.f32 %v8370, %v9504
      %v10171 = vmul.f32 %v8389, %v9519
      %v10172 = vmul.f32 %v8408, %v9534
      %v10173 = vmul.f32 %v8427, %v9549
      %v10174 = vmul.f32 %v8446, %v9564
      %v10175 = vmul.f32 %v8465, %v9579
      %v10176 = vmul.f32 %v8484, %v9594
      %v10177 = vmul.f32 %v8503, %v9609
      %v10178 = vmul.f32 %v8522, %v9624
      %v10179 = vmul.f32 %v8541, %v9639
      %v10180 = vmul.f32 %v8560, %v9654
      %v10181 = vmul.f32 %v8579, %v9669
      %v10182 = vmul.f32 %v8598, %v9684
      %v10183 = vmul.f32 %v8617, %v9699
      %v10184 = vmul.f32 %v8636, %v9714
      %v10185 = vmul.f32 %v8655, %v9729
      %v10186 = vmul.f32 %v8674, %v9744
      %v10187 = vmul.f32 %v8693, %v9759
      %v10188 = vmul.f32 %v8712, %v9774
      %v10189 = vmul.f32 %v8731, %v9789
      %v10190 = vmul.f32 %v8750, %v9804
      %v10191 = vmul.f32 %v8769, %v9819
      %v10192 = vmul.f32 %v8788, %v9834
      %v10193 = vmul.f32 %v8807, %v9849
      %v10194 = vmul.f32 %v8826, %v9864
      %v10195 = vmul.f32 %v8845, %v9879
      %v10196 = vmul.f32 %v8864, %v9894
      %v10197 = vmul.f32 %v8883, %v9909
      %v10198 = vmul.f32 %v8902, %v9924
      %v10199 = vmul.f32 %v8921, %v9939
      %v10200 = vmul.f32 %v8940, %v9954
      %v10201 = vmul.f32 %v8959, %v9969
      %v10202 = vmul.f32 %v8978, %v9984
      %v10203 = vmul.f32 %v8997, %v9999
      %v10204 = vmul.f32 %v9016, %v10014
      %v10205 = vmul.f32 %v9035, %v10029
      %v10206 = vmul.f32 %v9054, %v10044
      %v10207 = vmul.f32 %v9073, %v10059
      %v10208 = vmul.f32 %v9092, %v10074
      %v10209 = vmul.f32 %v9111, %v10089
      %v10210 = vmul.f32 %v9130, %v10104
      %v10211 = vmul.f32 %v9149, %v10119
      %v10212 = vmul.f32 %v9168, %v10134
      %v10213 = vmul.f32 %v9187, %v10149
      %10278 = vrot.lane.b32.xlu0 %v10150, 32
      %v10279 = vpop.permute.xlu0 %10278
      %10280 = vrot.lane.b32.xlu0 %v10151, 32
      %v10281 = vpop.permute.xlu0 %10280
      %10282 = vrot.lane.b32.xlu0 %v10152, 32
      %v10283 = vpop.permute.xlu0 %10282
      %10284 = vrot.lane.b32.xlu0 %v10153, 32
      %v10285 = vpop.permute.xlu0 %10284
      %10286 = vrot.lane.b32.xlu0 %v10154, 32
      %v10287 = vpop.permute.xlu0 %10286
      %10288 = vrot.lane.b32.xlu0 %v10155, 32
      %v10289 = vpop.permute.xlu0 %10288
      %10290 = vrot.lane.b32.xlu0 %v10156, 32
      %v10291 = vpop.permute.xlu0 %10290
      %10292 = vrot.lane.b32.xlu0 %v10157, 32
      %v10293 = vpop.permute.xlu0 %10292
      %10294 = vrot.lane.b32.xlu0 %v10158, 32
      %v10295 = vpop.permute.xlu0 %10294
      %10296 = vrot.lane.b32.xlu0 %v10159, 32
      %v10297 = vpop.permute.xlu0 %10296
      %10298 = vrot.lane.b32.xlu0 %v10160, 32
      %v10299 = vpop.permute.xlu0 %10298
      %10300 = vrot.lane.b32.xlu0 %v10161, 32
      %v10301 = vpop.permute.xlu0 %10300
      %10302 = vrot.lane.b32.xlu0 %v10162, 32
      %v10303 = vpop.permute.xlu0 %10302
      %10304 = vrot.lane.b32.xlu0 %v10163, 32
      %v10305 = vpop.permute.xlu0 %10304
      %10306 = vrot.lane.b32.xlu0 %v10164, 32
      %v10307 = vpop.permute.xlu0 %10306
      %10308 = vrot.lane.b32.xlu0 %v10165, 32
      %v10309 = vpop.permute.xlu0 %10308
      %10310 = vrot.lane.b32.xlu0 %v10166, 32
      %v10311 = vpop.permute.xlu0 %10310
      %10312 = vrot.lane.b32.xlu0 %v10167, 32
      %v10313 = vpop.permute.xlu0 %10312
      %10314 = vrot.lane.b32.xlu0 %v10168, 32
      %v10315 = vpop.permute.xlu0 %10314
      %10316 = vrot.lane.b32.xlu0 %v10169, 32
      %v10317 = vpop.permute.xlu0 %10316
      %10318 = vrot.lane.b32.xlu0 %v10170, 32
      %v10319 = vpop.permute.xlu0 %10318
      %10320 = vrot.lane.b32.xlu0 %v10171, 32
      %v10321 = vpop.permute.xlu0 %10320
      %10322 = vrot.lane.b32.xlu0 %v10172, 32
      %v10323 = vpop.permute.xlu0 %10322
      %10324 = vrot.lane.b32.xlu0 %v10173, 32
      %v10325 = vpop.permute.xlu0 %10324
      %10326 = vrot.lane.b32.xlu0 %v10174, 32
      %v10327 = vpop.permute.xlu0 %10326
      %10328 = vrot.lane.b32.xlu0 %v10175, 32
      %v10329 = vpop.permute.xlu0 %10328
      %10330 = vrot.lane.b32.xlu0 %v10176, 32
      %v10331 = vpop.permute.xlu0 %10330
      %10332 = vrot.lane.b32.xlu0 %v10177, 32
      %v10333 = vpop.permute.xlu0 %10332
      %10334 = vrot.lane.b32.xlu0 %v10178, 32
      %v10335 = vpop.permute.xlu0 %10334
      %10336 = vrot.lane.b32.xlu0 %v10179, 32
      %v10337 = vpop.permute.xlu0 %10336
      %10338 = vrot.lane.b32.xlu0 %v10180, 32
      %v10339 = vpop.permute.xlu0 %10338
      %10340 = vrot.lane.b32.xlu0 %v10181, 32
      %v10341 = vpop.permute.xlu0 %10340
      %10342 = vrot.lane.b32.xlu0 %v10182, 32
      %v10343 = vpop.permute.xlu0 %10342
      %10344 = vrot.lane.b32.xlu0 %v10183, 32
      %v10345 = vpop.permute.xlu0 %10344
      %10346 = vrot.lane.b32.xlu0 %v10184, 32
      %v10347 = vpop.permute.xlu0 %10346
      %10348 = vrot.lane.b32.xlu0 %v10185, 32
      %v10349 = vpop.permute.xlu0 %10348
      %10350 = vrot.lane.b32.xlu0 %v10186, 32
      %v10351 = vpop.permute.xlu0 %10350
      %10352 = vrot.lane.b32.xlu0 %v10187, 32
      %v10353 = vpop.permute.xlu0 %10352
      %10354 = vrot.lane.b32.xlu0 %v10188, 32
      %v10355 = vpop.permute.xlu0 %10354
      %10356 = vrot.lane.b32.xlu0 %v10189, 32
      %v10357 = vpop.permute.xlu0 %10356
      %10358 = vrot.lane.b32.xlu0 %v10190, 32
      %v10359 = vpop.permute.xlu0 %10358
      %10360 = vrot.lane.b32.xlu0 %v10191, 32
      %v10361 = vpop.permute.xlu0 %10360
      %10362 = vrot.lane.b32.xlu0 %v10192, 32
      %v10363 = vpop.permute.xlu0 %10362
      %10364 = vrot.lane.b32.xlu0 %v10193, 32
      %v10365 = vpop.permute.xlu0 %10364
      %10366 = vrot.lane.b32.xlu0 %v10194, 32
      %v10367 = vpop.permute.xlu0 %10366
      %10368 = vrot.lane.b32.xlu0 %v10195, 32
      %v10369 = vpop.permute.xlu0 %10368
      %10370 = vrot.lane.b32.xlu0 %v10196, 32
      %v10371 = vpop.permute.xlu0 %10370
      %10372 = vrot.lane.b32.xlu0 %v10197, 32
      %v10373 = vpop.permute.xlu0 %10372
      %10374 = vrot.lane.b32.xlu0 %v10198, 32
      %v10375 = vpop.permute.xlu0 %10374
      %10376 = vrot.lane.b32.xlu0 %v10199, 32
      %v10377 = vpop.permute.xlu0 %10376
      %10378 = vrot.lane.b32.xlu0 %v10200, 32
      %v10379 = vpop.permute.xlu0 %10378
      %10380 = vrot.lane.b32.xlu0 %v10201, 32
      %v10381 = vpop.permute.xlu0 %10380
      %10382 = vrot.lane.b32.xlu0 %v10202, 32
      %v10383 = vpop.permute.xlu0 %10382
      %10384 = vrot.lane.b32.xlu0 %v10203, 32
      %v10385 = vpop.permute.xlu0 %10384
      %10386 = vrot.lane.b32.xlu0 %v10204, 32
      %v10387 = vpop.permute.xlu0 %10386
      %10388 = vrot.lane.b32.xlu0 %v10205, 32
      %v10389 = vpop.permute.xlu0 %10388
      %10390 = vrot.lane.b32.xlu0 %v10206, 32
      %v10391 = vpop.permute.xlu0 %10390
      %10392 = vrot.lane.b32.xlu0 %v10207, 32
      %v10393 = vpop.permute.xlu0 %10392
      %10394 = vrot.lane.b32.xlu0 %v10208, 32
      %v10395 = vpop.permute.xlu0 %10394
      %10396 = vrot.lane.b32.xlu0 %v10209, 32
      %v10397 = vpop.permute.xlu0 %10396
      %10398 = vrot.lane.b32.xlu0 %v10210, 32
      %v10399 = vpop.permute.xlu0 %10398
      %10400 = vrot.lane.b32.xlu0 %v10211, 32
      %v10401 = vpop.permute.xlu0 %10400
      %10402 = vrot.lane.b32.xlu0 %v10212, 32
      %v10403 = vpop.permute.xlu0 %10402
      %10404 = vrot.lane.b32.xlu0 %v10213, 32
      %v10405 = vpop.permute.xlu0 %10404
      %v10470 = vsel %vm613, %v5091, %v10279
      %v10471 = vsel %vm613, %v5092, %v10281
      %v10472 = vsel %vm613, %v5093, %v10283
      %v10473 = vsel %vm613, %v5094, %v10285
      %v10474 = vsel %vm613, %v5095, %v10287
      %v10475 = vsel %vm613, %v5096, %v10289
      %v10476 = vsel %vm613, %v5097, %v10291
      %v10477 = vsel %vm613, %v5098, %v10293
      %v10478 = vsel %vm613, %v5099, %v10295
      %v10479 = vsel %vm613, %v5100, %v10297
      %v10480 = vsel %vm613, %v5101, %v10299
      %v10481 = vsel %vm613, %v5102, %v10301
      %v10482 = vsel %vm613, %v5103, %v10303
      %v10483 = vsel %vm613, %v5104, %v10305
      %v10484 = vsel %vm613, %v5105, %v10307
      %v10485 = vsel %vm613, %v5106, %v10309
      %v10486 = vsel %vm613, %v5107, %v10311
      %v10487 = vsel %vm613, %v5108, %v10313
      %v10488 = vsel %vm613, %v5109, %v10315
      %v10489 = vsel %vm613, %v5110, %v10317
      %v10490 = vsel %vm613, %v5111, %v10319
      %v10491 = vsel %vm613, %v5112, %v10321
      %v10492 = vsel %vm613, %v5113, %v10323
      %v10493 = vsel %vm613, %v5114, %v10325
      %v10494 = vsel %vm613, %v5115, %v10327
      %v10495 = vsel %vm613, %v5116, %v10329
      %v10496 = vsel %vm613, %v5117, %v10331
      %v10497 = vsel %vm613, %v5118, %v10333
      %v10498 = vsel %vm613, %v5119, %v10335
      %v10499 = vsel %vm613, %v5120, %v10337
      %v10500 = vsel %vm613, %v5121, %v10339
      %v10501 = vsel %vm613, %v5122, %v10341
      %v10502 = vsel %vm613, %v5123, %v10343
      %v10503 = vsel %vm613, %v5124, %v10345
      %v10504 = vsel %vm613, %v5125, %v10347
      %v10505 = vsel %vm613, %v5126, %v10349
      %v10506 = vsel %vm613, %v5127, %v10351
      %v10507 = vsel %vm613, %v5128, %v10353
      %v10508 = vsel %vm613, %v5129, %v10355
      %v10509 = vsel %vm613, %v5130, %v10357
      %v10510 = vsel %vm613, %v5131, %v10359
      %v10511 = vsel %vm613, %v5132, %v10361
      %v10512 = vsel %vm613, %v5133, %v10363
      %v10513 = vsel %vm613, %v5134, %v10365
      %v10514 = vsel %vm613, %v5135, %v10367
      %v10515 = vsel %vm613, %v5136, %v10369
      %v10516 = vsel %vm613, %v5137, %v10371
      %v10517 = vsel %vm613, %v5138, %v10373
      %v10518 = vsel %vm613, %v5139, %v10375
      %v10519 = vsel %vm613, %v5140, %v10377
      %v10520 = vsel %vm613, %v5141, %v10379
      %v10521 = vsel %vm613, %v5142, %v10381
      %v10522 = vsel %vm613, %v5143, %v10383
      %v10523 = vsel %vm613, %v5144, %v10385
      %v10524 = vsel %vm613, %v5145, %v10387
      %v10525 = vsel %vm613, %v5146, %v10389
      %v10526 = vsel %vm613, %v5147, %v10391
      %v10527 = vsel %vm613, %v5148, %v10393
      %v10528 = vsel %vm613, %v5149, %v10395
      %v10529 = vsel %vm613, %v5150, %v10397
      %v10530 = vsel %vm613, %v5151, %v10399
      %v10531 = vsel %vm613, %v5152, %v10401
      %v10532 = vsel %vm613, %v5153, %v10403
      %v10533 = vsel %vm613, %v5154, %v10405
      %v10534 = vrot.slane %v10472, 4
      %vm10535 = vcmask 1047556
      %v10536 = vsel %vm10535, %v10534, %v10470
      %v10538 = vunpack.c.l.s4 1983009808
      %v10539 = vunpack.c.0.s8 %v10538
      %v10540 = vperm.slane %v10536, %v10539
      %v10541 = vrot.slane %v10473, 4
      %v10542 = vsel %vm10535, %v10541, %v10471
      %v10544 = vunpack.c.l.s4 1983009808
      %v10545 = vunpack.c.0.s8 %v10544
      %v10546 = vperm.slane %v10542, %v10545
      %v10547 = vrot.slane %v10476, 4
      %v10548 = vsel %vm10535, %v10547, %v10474
      %v10550 = vunpack.c.l.s4 1983009808
      %v10551 = vunpack.c.0.s8 %v10550
      %v10552 = vperm.slane %v10548, %v10551
      %v10553 = vrot.slane %v10477, 4
      %v10554 = vsel %vm10535, %v10553, %v10475
      %v10556 = vunpack.c.l.s4 1983009808
      %v10557 = vunpack.c.0.s8 %v10556
      %v10558 = vperm.slane %v10554, %v10557
      %v10559 = vrot.slane %v10546, 4
      %v10560 = vsel %vm10535, %v10559, %v10540
      %v10561 = vrot.slane %v10540, 4
      %v10562 = vsel %vm10535, %v10546, %v10561
      %v10564 = vunpack.c.l.s4 1934713408
      %v10565 = vunpack.c.0.s8 %v10564
      %v10566 = vperm.slane %v10560, %v10565
      %v10568 = vunpack.c.l.s4 1934713408
      %v10569 = vunpack.c.0.s8 %v10568
      %v10570 = vperm.slane %v10562, %v10569
      %v10571 = vrot.slane %v10558, 4
      %v10572 = vsel %vm10535, %v10571, %v10552
      %v10573 = vrot.slane %v10552, 4
      %v10574 = vsel %vm10535, %v10558, %v10573
      %v10576 = vunpack.c.l.s4 1934713408
      %v10577 = vunpack.c.0.s8 %v10576
      %v10578 = vperm.slane %v10572, %v10577
      %v10580 = vunpack.c.l.s4 1934713408
      %v10581 = vunpack.c.0.s8 %v10580
      %v10582 = vperm.slane %v10574, %v10581
      %v10583 = vrot.slane %v10578, 4
      %v10584 = vsel %vm10535, %v10583, %v10566
      %v10585 = vrot.slane %v10566, 4
      %v10586 = vsel %vm10535, %v10578, %v10585
      %v10587 = vrot.slane %v10582, 4
      %v10588 = vsel %vm10535, %v10587, %v10570
      %v10589 = vrot.slane %v10570, 4
      %v10590 = vsel %vm10535, %v10582, %v10589
      %v10591 = vrot.slane %v10480, 4
      %v10592 = vsel %vm10535, %v10591, %v10478
      %v10594 = vunpack.c.l.s4 1983009808
      %v10595 = vunpack.c.0.s8 %v10594
      %v10596 = vperm.slane %v10592, %v10595
      %v10597 = vrot.slane %v10481, 4
      %v10598 = vsel %vm10535, %v10597, %v10479
      %v10600 = vunpack.c.l.s4 1983009808
      %v10601 = vunpack.c.0.s8 %v10600
      %v10602 = vperm.slane %v10598, %v10601
      %v10603 = vrot.slane %v10484, 4
      %v10604 = vsel %vm10535, %v10603, %v10482
      %v10606 = vunpack.c.l.s4 1983009808
      %v10607 = vunpack.c.0.s8 %v10606
      %v10608 = vperm.slane %v10604, %v10607
      %v10609 = vrot.slane %v10485, 4
      %v10610 = vsel %vm10535, %v10609, %v10483
      %v10612 = vunpack.c.l.s4 1983009808
      %v10613 = vunpack.c.0.s8 %v10612
      %v10614 = vperm.slane %v10610, %v10613
      %v10615 = vrot.slane %v10602, 4
      %v10616 = vsel %vm10535, %v10615, %v10596
      %v10617 = vrot.slane %v10596, 4
      %v10618 = vsel %vm10535, %v10602, %v10617
      %v10620 = vunpack.c.l.s4 1934713408
      %v10621 = vunpack.c.0.s8 %v10620
      %v10622 = vperm.slane %v10616, %v10621
      %v10624 = vunpack.c.l.s4 1934713408
      %v10625 = vunpack.c.0.s8 %v10624
      %v10626 = vperm.slane %v10618, %v10625
      %v10627 = vrot.slane %v10614, 4
      %v10628 = vsel %vm10535, %v10627, %v10608
      %v10629 = vrot.slane %v10608, 4
      %v10630 = vsel %vm10535, %v10614, %v10629
      %v10632 = vunpack.c.l.s4 1934713408
      %v10633 = vunpack.c.0.s8 %v10632
      %v10634 = vperm.slane %v10628, %v10633
      %v10636 = vunpack.c.l.s4 1934713408
      %v10637 = vunpack.c.0.s8 %v10636
      %v10638 = vperm.slane %v10630, %v10637
      %v10639 = vrot.slane %v10634, 4
      %v10640 = vsel %vm10535, %v10639, %v10622
      %v10641 = vrot.slane %v10622, 4
      %v10642 = vsel %vm10535, %v10634, %v10641
      %v10643 = vrot.slane %v10638, 4
      %v10644 = vsel %vm10535, %v10643, %v10626
      %v10645 = vrot.slane %v10626, 4
      %v10646 = vsel %vm10535, %v10638, %v10645
      %v10647 = vrot.slane %v10488, 4
      %v10648 = vsel %vm10535, %v10647, %v10486
      %v10650 = vunpack.c.l.s4 1983009808
      %v10651 = vunpack.c.0.s8 %v10650
      %v10652 = vperm.slane %v10648, %v10651
      %v10653 = vrot.slane %v10489, 4
      %v10654 = vsel %vm10535, %v10653, %v10487
      %v10656 = vunpack.c.l.s4 1983009808
      %v10657 = vunpack.c.0.s8 %v10656
      %v10658 = vperm.slane %v10654, %v10657
      %v10659 = vrot.slane %v10492, 4
      %v10660 = vsel %vm10535, %v10659, %v10490
      %v10662 = vunpack.c.l.s4 1983009808
      %v10663 = vunpack.c.0.s8 %v10662
      %v10664 = vperm.slane %v10660, %v10663
      %v10665 = vrot.slane %v10493, 4
      %v10666 = vsel %vm10535, %v10665, %v10491
      %v10668 = vunpack.c.l.s4 1983009808
      %v10669 = vunpack.c.0.s8 %v10668
      %v10670 = vperm.slane %v10666, %v10669
      %v10671 = vrot.slane %v10658, 4
      %v10672 = vsel %vm10535, %v10671, %v10652
      %v10673 = vrot.slane %v10652, 4
      %v10674 = vsel %vm10535, %v10658, %v10673
      %v10676 = vunpack.c.l.s4 1934713408
      %v10677 = vunpack.c.0.s8 %v10676
      %v10678 = vperm.slane %v10672, %v10677
      %v10680 = vunpack.c.l.s4 1934713408
      %v10681 = vunpack.c.0.s8 %v10680
      %v10682 = vperm.slane %v10674, %v10681
      %v10683 = vrot.slane %v10670, 4
      %v10684 = vsel %vm10535, %v10683, %v10664
      %v10685 = vrot.slane %v10664, 4
      %v10686 = vsel %vm10535, %v10670, %v10685
      %v10688 = vunpack.c.l.s4 1934713408
      %v10689 = vunpack.c.0.s8 %v10688
      %v10690 = vperm.slane %v10684, %v10689
      %v10692 = vunpack.c.l.s4 1934713408
      %v10693 = vunpack.c.0.s8 %v10692
      %v10694 = vperm.slane %v10686, %v10693
      %v10695 = vrot.slane %v10690, 4
      %v10696 = vsel %vm10535, %v10695, %v10678
      %v10697 = vrot.slane %v10678, 4
      %v10698 = vsel %vm10535, %v10690, %v10697
      %v10699 = vrot.slane %v10694, 4
      %v10700 = vsel %vm10535, %v10699, %v10682
      %v10701 = vrot.slane %v10682, 4
      %v10702 = vsel %vm10535, %v10694, %v10701
      %v10703 = vrot.slane %v10496, 4
      %v10704 = vsel %vm10535, %v10703, %v10494
      %v10706 = vunpack.c.l.s4 1983009808
      %v10707 = vunpack.c.0.s8 %v10706
      %v10708 = vperm.slane %v10704, %v10707
      %v10709 = vrot.slane %v10497, 4
      %v10710 = vsel %vm10535, %v10709, %v10495
      %v10712 = vunpack.c.l.s4 1983009808
      %v10713 = vunpack.c.0.s8 %v10712
      %v10714 = vperm.slane %v10710, %v10713
      %v10715 = vrot.slane %v10500, 4
      %v10716 = vsel %vm10535, %v10715, %v10498
      %v10718 = vunpack.c.l.s4 1983009808
      %v10719 = vunpack.c.0.s8 %v10718
      %v10720 = vperm.slane %v10716, %v10719
      %v10721 = vrot.slane %v10501, 4
      %v10722 = vsel %vm10535, %v10721, %v10499
      %v10724 = vunpack.c.l.s4 1983009808
      %v10725 = vunpack.c.0.s8 %v10724
      %v10726 = vperm.slane %v10722, %v10725
      %v10727 = vrot.slane %v10714, 4
      %v10728 = vsel %vm10535, %v10727, %v10708
      %v10729 = vrot.slane %v10708, 4
      %v10730 = vsel %vm10535, %v10714, %v10729
      %v10732 = vunpack.c.l.s4 1934713408
      %v10733 = vunpack.c.0.s8 %v10732
      %v10734 = vperm.slane %v10728, %v10733
      %v10736 = vunpack.c.l.s4 1934713408
      %v10737 = vunpack.c.0.s8 %v10736
      %v10738 = vperm.slane %v10730, %v10737
      %v10739 = vrot.slane %v10726, 4
      %v10740 = vsel %vm10535, %v10739, %v10720
      %v10741 = vrot.slane %v10720, 4
      %v10742 = vsel %vm10535, %v10726, %v10741
      %v10744 = vunpack.c.l.s4 1934713408
      %v10745 = vunpack.c.0.s8 %v10744
      %v10746 = vperm.slane %v10740, %v10745
      %v10748 = vunpack.c.l.s4 1934713408
      %v10749 = vunpack.c.0.s8 %v10748
      %v10750 = vperm.slane %v10742, %v10749
      %v10751 = vrot.slane %v10746, 4
      %v10752 = vsel %vm10535, %v10751, %v10734
      %v10753 = vrot.slane %v10734, 4
      %v10754 = vsel %vm10535, %v10746, %v10753
      %v10755 = vrot.slane %v10750, 4
      %v10756 = vsel %vm10535, %v10755, %v10738
      %v10757 = vrot.slane %v10738, 4
      %v10758 = vsel %vm10535, %v10750, %v10757
      %v10759 = vrot.slane %v10504, 4
      %v10760 = vsel %vm10535, %v10759, %v10502
      %v10762 = vunpack.c.l.s4 1983009808
      %v10763 = vunpack.c.0.s8 %v10762
      %v10764 = vperm.slane %v10760, %v10763
      %v10765 = vrot.slane %v10505, 4
      %v10766 = vsel %vm10535, %v10765, %v10503
      %v10768 = vunpack.c.l.s4 1983009808
      %v10769 = vunpack.c.0.s8 %v10768
      %v10770 = vperm.slane %v10766, %v10769
      %v10771 = vrot.slane %v10508, 4
      %v10772 = vsel %vm10535, %v10771, %v10506
      %v10774 = vunpack.c.l.s4 1983009808
      %v10775 = vunpack.c.0.s8 %v10774
      %v10776 = vperm.slane %v10772, %v10775
      %v10777 = vrot.slane %v10509, 4
      %v10778 = vsel %vm10535, %v10777, %v10507
      %v10780 = vunpack.c.l.s4 1983009808
      %v10781 = vunpack.c.0.s8 %v10780
      %v10782 = vperm.slane %v10778, %v10781
      %v10783 = vrot.slane %v10770, 4
      %v10784 = vsel %vm10535, %v10783, %v10764
      %v10785 = vrot.slane %v10764, 4
      %v10786 = vsel %vm10535, %v10770, %v10785
      %v10788 = vunpack.c.l.s4 1934713408
      %v10789 = vunpack.c.0.s8 %v10788
      %v10790 = vperm.slane %v10784, %v10789
      %v10792 = vunpack.c.l.s4 1934713408
      %v10793 = vunpack.c.0.s8 %v10792
      %v10794 = vperm.slane %v10786, %v10793
      %v10795 = vrot.slane %v10782, 4
      %v10796 = vsel %vm10535, %v10795, %v10776
      %v10797 = vrot.slane %v10776, 4
      %v10798 = vsel %vm10535, %v10782, %v10797
      %v10800 = vunpack.c.l.s4 1934713408
      %v10801 = vunpack.c.0.s8 %v10800
      %v10802 = vperm.slane %v10796, %v10801
      %v10804 = vunpack.c.l.s4 1934713408
      %v10805 = vunpack.c.0.s8 %v10804
      %v10806 = vperm.slane %v10798, %v10805
      %v10807 = vrot.slane %v10802, 4
      %v10808 = vsel %vm10535, %v10807, %v10790
      %v10809 = vrot.slane %v10790, 4
      %v10810 = vsel %vm10535, %v10802, %v10809
      %v10811 = vrot.slane %v10806, 4
      %v10812 = vsel %vm10535, %v10811, %v10794
      %v10813 = vrot.slane %v10794, 4
      %v10814 = vsel %vm10535, %v10806, %v10813
      %v10815 = vrot.slane %v10512, 4
      %v10816 = vsel %vm10535, %v10815, %v10510
      %v10818 = vunpack.c.l.s4 1983009808
      %v10819 = vunpack.c.0.s8 %v10818
      %v10820 = vperm.slane %v10816, %v10819
      %v10821 = vrot.slane %v10513, 4
      %v10822 = vsel %vm10535, %v10821, %v10511
      %v10824 = vunpack.c.l.s4 1983009808
      %v10825 = vunpack.c.0.s8 %v10824
      %v10826 = vperm.slane %v10822, %v10825
      %v10827 = vrot.slane %v10516, 4
      %v10828 = vsel %vm10535, %v10827, %v10514
      %v10830 = vunpack.c.l.s4 1983009808
      %v10831 = vunpack.c.0.s8 %v10830
      %v10832 = vperm.slane %v10828, %v10831
      %v10833 = vrot.slane %v10517, 4
      %v10834 = vsel %vm10535, %v10833, %v10515
      %v10836 = vunpack.c.l.s4 1983009808
      %v10837 = vunpack.c.0.s8 %v10836
      %v10838 = vperm.slane %v10834, %v10837
      %v10839 = vrot.slane %v10826, 4
      %v10840 = vsel %vm10535, %v10839, %v10820
      %v10841 = vrot.slane %v10820, 4
      %v10842 = vsel %vm10535, %v10826, %v10841
      %v10844 = vunpack.c.l.s4 1934713408
      %v10845 = vunpack.c.0.s8 %v10844
      %v10846 = vperm.slane %v10840, %v10845
      %v10848 = vunpack.c.l.s4 1934713408
      %v10849 = vunpack.c.0.s8 %v10848
      %v10850 = vperm.slane %v10842, %v10849
      %v10851 = vrot.slane %v10838, 4
      %v10852 = vsel %vm10535, %v10851, %v10832
      %v10853 = vrot.slane %v10832, 4
      %v10854 = vsel %vm10535, %v10838, %v10853
      %v10856 = vunpack.c.l.s4 1934713408
      %v10857 = vunpack.c.0.s8 %v10856
      %v10858 = vperm.slane %v10852, %v10857
      %v10860 = vunpack.c.l.s4 1934713408
      %v10861 = vunpack.c.0.s8 %v10860
      %v10862 = vperm.slane %v10854, %v10861
      %v10863 = vrot.slane %v10858, 4
      %v10864 = vsel %vm10535, %v10863, %v10846
      %v10865 = vrot.slane %v10846, 4
      %v10866 = vsel %vm10535, %v10858, %v10865
      %v10867 = vrot.slane %v10862, 4
      %v10868 = vsel %vm10535, %v10867, %v10850
      %v10869 = vrot.slane %v10850, 4
      %v10870 = vsel %vm10535, %v10862, %v10869
      %v10871 = vrot.slane %v10520, 4
      %v10872 = vsel %vm10535, %v10871, %v10518
      %v10874 = vunpack.c.l.s4 1983009808
      %v10875 = vunpack.c.0.s8 %v10874
      %v10876 = vperm.slane %v10872, %v10875
      %v10877 = vrot.slane %v10521, 4
      %v10878 = vsel %vm10535, %v10877, %v10519
      %v10880 = vunpack.c.l.s4 1983009808
      %v10881 = vunpack.c.0.s8 %v10880
      %v10882 = vperm.slane %v10878, %v10881
      %v10883 = vrot.slane %v10524, 4
      %v10884 = vsel %vm10535, %v10883, %v10522
      %v10886 = vunpack.c.l.s4 1983009808
      %v10887 = vunpack.c.0.s8 %v10886
      %v10888 = vperm.slane %v10884, %v10887
      %v10889 = vrot.slane %v10525, 4
      %v10890 = vsel %vm10535, %v10889, %v10523
      %v10892 = vunpack.c.l.s4 1983009808
      %v10893 = vunpack.c.0.s8 %v10892
      %v10894 = vperm.slane %v10890, %v10893
      %v10895 = vrot.slane %v10882, 4
      %v10896 = vsel %vm10535, %v10895, %v10876
      %v10897 = vrot.slane %v10876, 4
      %v10898 = vsel %vm10535, %v10882, %v10897
      %v10900 = vunpack.c.l.s4 1934713408
      %v10901 = vunpack.c.0.s8 %v10900
      %v10902 = vperm.slane %v10896, %v10901
      %v10904 = vunpack.c.l.s4 1934713408
      %v10905 = vunpack.c.0.s8 %v10904
      %v10906 = vperm.slane %v10898, %v10905
      %v10907 = vrot.slane %v10894, 4
      %v10908 = vsel %vm10535, %v10907, %v10888
      %v10909 = vrot.slane %v10888, 4
      %v10910 = vsel %vm10535, %v10894, %v10909
      %v10912 = vunpack.c.l.s4 1934713408
      %v10913 = vunpack.c.0.s8 %v10912
      %v10914 = vperm.slane %v10908, %v10913
      %v10916 = vunpack.c.l.s4 1934713408
      %v10917 = vunpack.c.0.s8 %v10916
      %v10918 = vperm.slane %v10910, %v10917
      %v10919 = vrot.slane %v10914, 4
      %v10920 = vsel %vm10535, %v10919, %v10902
      %v10921 = vrot.slane %v10902, 4
      %v10922 = vsel %vm10535, %v10914, %v10921
      %v10923 = vrot.slane %v10918, 4
      %v10924 = vsel %vm10535, %v10923, %v10906
      %v10925 = vrot.slane %v10906, 4
      %v10926 = vsel %vm10535, %v10918, %v10925
      %v10927 = vrot.slane %v10528, 4
      %v10928 = vsel %vm10535, %v10927, %v10526
      %v10930 = vunpack.c.l.s4 1983009808
      %v10931 = vunpack.c.0.s8 %v10930
      %v10932 = vperm.slane %v10928, %v10931
      %v10933 = vrot.slane %v10529, 4
      %v10934 = vsel %vm10535, %v10933, %v10527
      %v10936 = vunpack.c.l.s4 1983009808
      %v10937 = vunpack.c.0.s8 %v10936
      %v10938 = vperm.slane %v10934, %v10937
      %v10939 = vrot.slane %v10532, 4
      %v10940 = vsel %vm10535, %v10939, %v10530
      %v10942 = vunpack.c.l.s4 1983009808
      %v10943 = vunpack.c.0.s8 %v10942
      %v10944 = vperm.slane %v10940, %v10943
      %v10945 = vrot.slane %v10533, 4
      %v10946 = vsel %vm10535, %v10945, %v10531
      %v10948 = vunpack.c.l.s4 1983009808
      %v10949 = vunpack.c.0.s8 %v10948
      %v10950 = vperm.slane %v10946, %v10949
      %v10951 = vrot.slane %v10938, 4
      %v10952 = vsel %vm10535, %v10951, %v10932
      %v10953 = vrot.slane %v10932, 4
      %v10954 = vsel %vm10535, %v10938, %v10953
      %v10956 = vunpack.c.l.s4 1934713408
      %v10957 = vunpack.c.0.s8 %v10956
      %v10958 = vperm.slane %v10952, %v10957
      %v10960 = vunpack.c.l.s4 1934713408
      %v10961 = vunpack.c.0.s8 %v10960
      %v10962 = vperm.slane %v10954, %v10961
      %v10963 = vrot.slane %v10950, 4
      %v10964 = vsel %vm10535, %v10963, %v10944
      %v10965 = vrot.slane %v10944, 4
      %v10966 = vsel %vm10535, %v10950, %v10965
      %v10968 = vunpack.c.l.s4 1934713408
      %v10969 = vunpack.c.0.s8 %v10968
      %v10970 = vperm.slane %v10964, %v10969
      %v10972 = vunpack.c.l.s4 1934713408
      %v10973 = vunpack.c.0.s8 %v10972
      %v10974 = vperm.slane %v10966, %v10973
      %v10975 = vrot.slane %v10970, 4
      %v10976 = vsel %vm10535, %v10975, %v10958
      %v10977 = vrot.slane %v10958, 4
      %v10978 = vsel %vm10535, %v10970, %v10977
      %v10979 = vrot.slane %v10974, 4
      %v10980 = vsel %vm10535, %v10979, %v10962
      %v10981 = vrot.slane %v10962, 4
      %v10982 = vsel %vm10535, %v10974, %v10981
      %10991 = vrot.lane.b32.xlu0 %v10586, 64
      %v10992 = vpop.permute.xlu0 %10991
      %10993 = vrot.lane.b32.xlu0 %v10642, 64
      %v10994 = vpop.permute.xlu0 %10993
      %10995 = vrot.lane.b32.xlu0 %v10698, 64
      %v10996 = vpop.permute.xlu0 %10995
      %10997 = vrot.lane.b32.xlu0 %v10754, 64
      %v10998 = vpop.permute.xlu0 %10997
      %10999 = vrot.lane.b32.xlu0 %v10810, 64
      %v11000 = vpop.permute.xlu0 %10999
      %11001 = vrot.lane.b32.xlu0 %v10866, 64
      %v11002 = vpop.permute.xlu0 %11001
      %11003 = vrot.lane.b32.xlu0 %v10922, 64
      %v11004 = vpop.permute.xlu0 %11003
      %11005 = vrot.lane.b32.xlu0 %v10978, 64
      %v11006 = vpop.permute.xlu0 %11005
      %11023 = vrot.lane.b32.xlu0 %v10590, 64
      %v11024 = vpop.permute.xlu0 %11023
      %11025 = vrot.lane.b32.xlu0 %v10646, 64
      %v11026 = vpop.permute.xlu0 %11025
      %11027 = vrot.lane.b32.xlu0 %v10702, 64
      %v11028 = vpop.permute.xlu0 %11027
      %11029 = vrot.lane.b32.xlu0 %v10758, 64
      %v11030 = vpop.permute.xlu0 %11029
      %11031 = vrot.lane.b32.xlu0 %v10814, 64
      %v11032 = vpop.permute.xlu0 %11031
      %11033 = vrot.lane.b32.xlu0 %v10870, 64
      %v11034 = vpop.permute.xlu0 %11033
      %11035 = vrot.lane.b32.xlu0 %v10926, 64
      %v11036 = vpop.permute.xlu0 %11035
      %11037 = vrot.lane.b32.xlu0 %v10982, 64
      %v11038 = vpop.permute.xlu0 %11037
      %vm11047 = vcmask 523264
      %v11048 = vsel %vm11047, %v10584, %v10992
      %v11049 = vsel %vm11047, %v10640, %v10994
      %v11050 = vsel %vm11047, %v10696, %v10996
      %v11051 = vsel %vm11047, %v10752, %v10998
      %v11052 = vsel %vm11047, %v10808, %v11000
      %v11053 = vsel %vm11047, %v10864, %v11002
      %v11054 = vsel %vm11047, %v10920, %v11004
      %v11055 = vsel %vm11047, %v10976, %v11006
      %v11056 = vsel %vm11047, %v10588, %v11024
      %v11057 = vsel %vm11047, %v10644, %v11026
      %v11058 = vsel %vm11047, %v10700, %v11028
      %v11059 = vsel %vm11047, %v10756, %v11030
      %v11060 = vsel %vm11047, %v10812, %v11032
      %v11061 = vsel %vm11047, %v10868, %v11034
      %v11062 = vsel %vm11047, %v10924, %v11036
      %v11063 = vsel %vm11047, %v10980, %v11038
      %11064 = vst [vmem:[%s285] sm:$0xff] %v11048
      %11065 = vst [vmem:[%s285 + $0x8] sm:$0xff] %v11056
      %11066 = vst [vmem:[%s285 + $0x10] sm:$0xff] %v11049
      %11067 = vst [vmem:[%s285 + $0x18] sm:$0xff] %v11057
      %11068 = vst [vmem:[%s285 + $0x20] sm:$0xff] %v11050
      %11069 = vst [vmem:[%s285 + $0x28] sm:$0xff] %v11058
      %11070 = vst [vmem:[%s285 + $0x30] sm:$0xff] %v11051
      %11071 = vst [vmem:[%s285 + $0x38] sm:$0xff] %v11059
      %11072 = vst [vmem:[%s285 + $0x40] sm:$0xff] %v11052
      %11073 = vst [vmem:[%s285 + $0x48] sm:$0xff] %v11060
      %11074 = vst [vmem:[%s285 + $0x50] sm:$0xff] %v11053
      %11075 = vst [vmem:[%s285 + $0x58] sm:$0xff] %v11061
      %11076 = vst [vmem:[%s285 + $0x60] sm:$0xff] %v11054
      %11077 = vst [vmem:[%s285 + $0x68] sm:$0xff] %v11062
      %11078 = vst [vmem:[%s285 + $0x70] sm:$0xff] %v11055
      %11079 = vst [vmem:[%s285 + $0x78] sm:$0xff] %v11063
      %s11080 = smul.u32 8, %s19
      %p11081 = scmp.lt.s32.totalorder %s18, 1
      %s11082 = scalar_select %p11081, %s18, 1
      %p11083 = scmp.lt.s32.totalorder %s11080, 31
      %s11084 = scalar_select %p11083, %s11080, 31
      %s11085 = smul.addr %s11084, 2
      %s11086 = smul.addr %s11082, 64
      %s11087 = sadd.s32 %s11085, %s11086
      %s11088 = smul.addr %s11087, 8
      %s11089 = scalar_lea.vmem %s3, %s11088
      // Predicated region
      $region33: #{cascade_qt_att_b.1} parent=31 // pred_check
        %p11090 = pneg %p130
      $region34: #{cascade_qt_att_b.1} parent=31 // pred_check_branch
        %11092 = sbr.rel (%p11090) target = $region36
      $region35: #{cascade_qt_att_b.1} parent=31 // pred_region
        %s11093 = smul.u32 8, %s19
      $region36: #{cascade_qt_att_b.1} parent=31 // pred_fallthru
        _
    $region32: #{cascade_qt_att_b.1} parent=5 // pred_fallthru
      _
    %p11094 = scmp.le.s32.totalorder 2, %s9
    // Predicated region
    $region37: #{cascade_qt_att_b.1} parent=5 // pred_check
      %p11095 = pneg %p11094
    $region38: #{cascade_qt_att_b.1} parent=5 // pred_check_branch
      %11097 = sbr.rel (%p11095) target = $region40
    $region39: #{cascade_qt_att_b.1} parent=5 // pred_region
      %s11098 = ssub.s32 %s9, 2
      // Predicated region
      $region41: #{cascade_qt_att_b.1} parent=39 // pred_check
        %p11099 = pneg %p136
      $region42: #{cascade_qt_att_b.1} parent=39 // pred_check_branch
        %11101 = sbr.rel (%p11099) target = $region44
      $region43: #{cascade_qt_att_b.1} parent=39 // pred_region
        %s11102 = smul.u32 8, %s21
        %p11103 = scmp.lt.s32.totalorder %s20, 1
        %s11104 = scalar_select %p11103, %s20, 1
        %p11105 = scmp.lt.s32.totalorder %s11102, 31
        %s11106 = scalar_select %p11105, %s11102, 31
        %s11107 = smul.addr %s11106, 2
        %s11108 = smul.addr %s11104, 64
        %s11109 = sadd.s32 %s11107, %s11108
        %s11110 = smul.addr %s11109, 8
        %s11111 = scalar_lea.vmem %s3, %s11110
      $region44: #{cascade_qt_att_b.1} parent=39 // pred_fallthru
        _
    $region40: #{cascade_qt_att_b.1} parent=5 // pred_fallthru
      _
  $region6: #{cascade_qt_att_b.1} parent=0 // loop_footer
    %s13 = sadd.s32 1, %s9
  $region7: #{cascade_qt_att_b.1} parent=0 // loop_footer_branch
    %8 = sbr.rel target = $region3
  $region8: #{cascade_qt_att_b.1} parent=0 // loop_exit
    _

</llo_original>
